<compile_context>
chip_gen: v7x
topology: tpu7x:2x2x1
jax: 0.10.0
libtpu: 0.0.40
codegen_flags: <defaults>
</compile_context>

<pallas_src>
import math

import jax
import jax.numpy as jnp
from jax.experimental import pallas as pl
from jax.experimental.pallas import tpu as pltpu

# ---- config (mirrors args) ----
B = 32           # batch of users (exercises 2 grid steps of 16 users each)
S = 8            # args.max_length_tweet
H = 32           # hidden_dim
NH = 4           # args.num_head_encoder
L = 2            # args.num_layer_encoder
HD = H // NH
LN_EPS = 1e-5

TARGET_ROWS = 128                       # rows per grid step (v5e MXU sublane target)
G = min(B, max(1, TARGET_ROWS // S))    # users per grid step
assert B % G == 0, "pad the user batch to a multiple of the group size"
NG = B // G                             # number of grid steps (user groups)
GS = G * S                              # rows per group


# ---------------- in-kernel helpers ----------------
def _mm_nt(a, b):
    # a @ b.T (contract last dims) on the MXU, f32 accumulate.
    # `a` is cast to b's dtype so bf16 weights get a native bf16 MXU pass.
    return jax.lax.dot_general(
        a.astype(b.dtype), b, (((a.ndim - 1,), (b.ndim - 1,)), ((), ())),
        preferred_element_type=jnp.float32)


def _softmax(x, axis=-1, approx=True):
    m = jnp.max(x, axis=axis, keepdims=True)
    e = jnp.exp(x - m)
    s = jnp.sum(e, axis=axis, keepdims=True)
    if approx:
        # EUP approximate reciprocal: off the VALU critical path
        return e * pl.reciprocal(s, approx=True)
    return e / s


def _layer_norm(x, w, b):
    mu = jnp.mean(x, axis=-1, keepdims=True)
    xc = x - mu
    var = jnp.mean(xc * xc, axis=-1, keepdims=True)
    return xc * jax.lax.rsqrt(var + LN_EPS) * w + b


def _gelu(x):
    # TODO(synk): PyTorch 'gelu' is the exact erf-GELU; tanh approximation used
    # here (erf lowering availability in Mosaic varies).
    c = jnp.float32(0.7978845608028654)  # sqrt(2/pi)
    return 0.5 * x * (1.0 + jnp.tanh(c * (x + 0.044715 * x * x * x)))


# ---------------- the kernel: one grid step == one group of G users ----------------
def mood_and_content_kernel(lens_ref, x_ref, pos_ref,
                            qw_ref, qb_ref, kw_ref, kb_ref, vw_ref, vb_ref,
                            opw_ref, opb_ref, ln1w_ref, ln1b_ref,
                            l1w_ref, l1b_ref, l2w_ref, l2b_ref,
                            ln2w_ref, ln2b_ref,
                            aw_ref, ab_ref, cw_ref, cb_ref,
                            out_ref):
    f32 = jnp.float32
    bf16 = jnp.bfloat16
    neg_inf = f32(-1e30)

    x = x_ref[...]                                   # (GS, H) f32, row = local_user*S + slot
    lens_g = lens_ref[0]                             # (1, G) f32, lens of this group's users

    # ---- vectorized mask construction (once per group; no O(B) loops) ----
    rid = jax.lax.broadcasted_iota(jnp.int32, (GS, 1), 0)     # row id
    cid = jax.lax.broadcasted_iota(jnp.int32, (1, GS), 1)     # key-column id
    u_r = jax.lax.broadcasted_iota(jnp.int32, (GS, G), 1)     # candidate user per row
    u_c = jax.lax.broadcasted_iota(jnp.int32, (G, GS), 0)     # candidate user per key

    # user index of each row/key without vector integer division
    ruser = jnp.sum((rid >= (u_r + 1) * S).astype(jnp.int32), axis=1, keepdims=True)  # (GS,1)
    cuser = jnp.sum((cid >= (u_c + 1) * S).astype(jnp.int32), axis=0, keepdims=True)  # (1,GS)
    rpos = rid - ruser * S                                     # tweet slot within user (rows)
    cpos = cid - cuser * S                                     # tweet slot within user (keys)

    # per-row / per-key len via tiny one-hot matmuls from the VMEM lens copy
    U_row = (ruser == u_r).astype(f32)                         # (GS, G) one-hot
    V_col = (cuser == u_c).astype(f32)                         # (G, GS) one-hot
    len_row = _mm_nt(U_row, lens_g).astype(jnp.int32)          # (GS, 1)
    len_col = jnp.dot(lens_g, V_col,
                      preferred_element_type=f32).astype(jnp.int32)  # (1, GS)

    valid_row = rpos < len_row                                 # (GS, 1) real tweet row
    valid_col = cpos < len_col                                 # (1, GS) real tweet key
    attn_mask = (ruser == cuser) & valid_col                   # (GS, GS) block-diag & key-pad

    # emb_user = emb_user + pos_emb[-len_real:]  -> ONE fused one-hot gather matmul
    pc = jax.lax.broadcasted_iota(jnp.int32, (GS, S), 1)
    tgt = rpos + (S - len_row)                                 # >= S on padded rows -> no hit
    pos_onehot = ((pc == tgt) & valid_row).astype(f32)         # (GS, S)
    pos = jnp.dot(pos_onehot, pos_ref[...], preferred_element_type=f32)
    x = jnp.where(valid_row, x + pos, 0.0)

    # head-column selectors (hoisted out of the layer loop)
    hcol = jax.lax.broadcasted_iota(jnp.int32, (1, H), 1)
    head_masks = [(hcol >= h * HD) & (hcol < (h + 1) * HD) for h in range(NH)]

    # ---- nn.TransformerEncoder (post-norm, gelu, dropout = identity in eval) ----
    # TODO(synk): when the real hidden size (~1536) is restored, add a layer grid
    # axis ("arbitrary") over the leading L dim of the weights and set
    # vmem_limit_bytes explicitly so per-layer weights stream instead of staying
    # resident (v7x VMEM is 64 MiB).
    for li in range(L):
        xb = x.astype(bf16)
        q = _mm_nt(xb, qw_ref[li]) + qb_ref[li]                # 1/sqrt(HD) folded into qw
        k = _mm_nt(xb, kw_ref[li]) + kb_ref[li]
        v = _mm_nt(xb, vw_ref[li]) + vb_ref[li]
        q_bf, k_bf, v_bf = q.astype(bf16), k.astype(bf16), v.astype(bf16)

        attn = None
        for h in range(NH):
            hm = head_masks[h]
            # k/v masked to head-h columns; q-side mask is redundant (zeros in k kill it)
            sc = _mm_nt(q_bf, jnp.where(hm, k_bf, bf16(0.0)))  # (GS, GS) f32
            sc = jnp.where(attn_mask, sc, neg_inf)
            p = _softmax(sc, axis=-1, approx=True)
            ctx = jnp.dot(p.astype(bf16), jnp.where(hm, v_bf, bf16(0.0)),
                          preferred_element_type=f32)          # nonzero only in head-h cols
            attn = ctx if attn is None else attn + ctx          # disjoint cols -> concat by sum

        attn = _mm_nt(attn, opw_ref[li]) + opb_ref[li]
        x = _layer_norm(x + attn, ln1w_ref[li], ln1b_ref[li])
        hid = _gelu(_mm_nt(x, l1w_ref[li]) + l1b_ref[li])
        ff = _mm_nt(hid, l2w_ref[li]) + l2b_ref[li]
        x = _layer_norm(x + ff, ln2w_ref[li], ln2b_ref[li])

    # ---- scores_attn = softmax(attn_ff(x)) per user, then pooled classifier ----
    s_log = _mm_nt(aw_ref[...], x) + ab_ref[...]               # (1, GS) f32
    sel = (V_col > 0.5) & valid_col                            # (G, GS): own-user valid slots
    # exact divide here: user-facing output, padded lanes are exactly 0, rows sum to 1
    scores_mat = _softmax(jnp.where(sel, s_log, neg_inf), axis=-1, approx=False)   # (G, GS)

    pooled = jnp.dot(scores_mat, x, preferred_element_type=f32)         # (G, H)
    logits = _mm_nt(pooled, cw_ref[...]) + cb_ref[...]                   # (G, 2)

    # single combined store; per-user diagonal S-blocks are extracted in the wrapper
    out_ref[...] = jnp.concatenate([logits, scores_mat], axis=-1)        # (G, 2 + GS)


# ---------------- wrapper ----------------
def mood_and_content_forward(emb, lens, params):
    (pos_emb, qw, qb, kw, kb, vw, vb, opw, opb, ln1w, ln1b,
     l1w, l1b, l2w, l2b, ln2w, ln2b, aw, ab, cw, cb) = params

    x2d = emb.reshape(B * S, H)                                # collapse (B, S) -> rows
    lens_f = lens.astype(jnp.float32).reshape(NG, 1, G)        # per-group VMEM lens copy

    def const_spec(arr):                                       # grid-invariant full block
        nd = arr.ndim
        return pl.BlockSpec(arr.shape, lambda g, _nd=nd: (0,) * _nd)

    in_specs = [
        pl.BlockSpec((1, 1, G), lambda g: (g, 0, 0)),          # lens (this group)
        pl.BlockSpec((GS, H), lambda g: (g, 0)),               # embeddings (this group)
        const_spec(pos_emb),
        const_spec(qw), const_spec(qb), const_spec(kw), const_spec(kb),
        const_spec(vw), const_spec(vb),
        const_spec(opw), const_spec(opb), const_spec(ln1w), const_spec(ln1b),
        const_spec(l1w), const_spec(l1b), const_spec(l2w), const_spec(l2b),
        const_spec(ln2w), const_spec(ln2b),
        const_spec(aw), const_spec(ab), const_spec(cw), const_spec(cb),
    ]
    out_specs = pl.BlockSpec((G, 2 + GS), lambda g: (g, 0))
    out_shape = jax.ShapeDtypeStruct((B, 2 + GS), jnp.float32)

    combined = pl.pallas_call(
        mood_and_content_kernel,
        out_shape=out_shape,
        grid_spec=pltpu.PrefetchScalarGridSpec(
            num_scalar_prefetch=0,
            grid=(NG,),                                        # user-group axis
            in_specs=in_specs,
            out_specs=out_specs,
        ),
        compiler_params=pltpu.CompilerParams(
            dimension_semantics=("parallel",)),                # 2nd TC on v7x
    )(lens_f, x2d, pos_emb, qw, qb, kw, kb, vw, vb, opw, opb,
      ln1w, ln1b, l1w, l1b, l2w, l2b, ln2w, ln2b, aw, ab, cw, cb)

    logits = combined[:, :2]
    sc_full = combined[:, 2:].reshape(NG, G, G, S)             # [group, user, col_user, slot]
    diag = jnp.arange(G)
    scores = sc_full[:, diag, diag, :].reshape(B, S)           # diagonal blocks = own scores
    return logits, scores


# ---------------- deterministic parameter init ----------------
def init_params(key):
    ks = jax.random.split(key, 9)

    def w(k, shape, scale=0.05):
        return (scale * jax.random.normal(k, shape)).astype(jnp.float32)

    bound = math.sqrt(6.0 / (S + H))                           # xavier_uniform for pos_emb
    pos_emb = jax.random.uniform(ks[0], (S, H), jnp.float32, -bound, bound)

    scale = 1.0 / math.sqrt(HD)                                # folded into Q projection
    qw = (w(ks[1], (L, H, H)) * scale).astype(jnp.bfloat16)
    kw = w(ks[2], (L, H, H)).astype(jnp.bfloat16)
    vw = w(ks[3], (L, H, H)).astype(jnp.bfloat16)
    qb = jnp.zeros((L, 1, H), jnp.float32)                     # (scale fold is a no-op on 0)
    kb = jnp.zeros((L, 1, H), jnp.float32)
    vb = jnp.zeros((L, 1, H), jnp.float32)
    opw = w(ks[4], (L, H, H)).astype(jnp.bfloat16)             # out_proj
    opb = jnp.zeros((L, 1, H), jnp.float32)
    ln1w = jnp.ones((L, 1, H), jnp.float32)
    ln1b = jnp.zeros((L, 1, H), jnp.float32)
    l1w = w(ks[5], (L, H, H)).astype(jnp.bfloat16)             # linear1 (dim_feedforward = H)
    l1b = jnp.zeros((L, 1, H), jnp.float32)
    l2w = w(ks[6], (L, H, H)).astype(jnp.bfloat16)             # linear2
    l2b = jnp.zeros((L, 1, H), jnp.float32)
    ln2w = jnp.ones((L, 1, H), jnp.float32)
    ln2b = jnp.zeros((L, 1, H), jnp.float32)
    aw = w(ks[7], (1, H))                                      # attn_ff: Linear(H, 1)
    ab = jnp.zeros((1, 1), jnp.float32)
    cw = w(ks[8], (2, H))                                      # classifier: Linear(H, 2)
    cb = jnp.zeros((1, 2), jnp.float32)
    return (pos_emb, qw, qb, kw, kb, vw, vb, opw, opb, ln1w, ln1b,
            l1w, l1b, l2w, l2b, ln2w, ln2b, aw, ab, cw, cb)


if __name__ == "__main__":
    key = jax.random.PRNGKey(0)
    k_emb, k_par = jax.random.split(key)

    # synthetic pooled per-tweet embeddings (stand-in for tweet_encoder + get_pool_emb + hstack)
    emb = jax.random.normal(k_emb, (B, S, H), dtype=jnp.float32)
    lens = (1 + (jnp.arange(B) % S)).astype(jnp.int32)         # len_real per user (>= 1)
    pad_mask = (jnp.arange(S)[None, :, None] < lens[:, None, None])
    emb = jnp.where(pad_mask, emb, 0.0)

    params = init_params(k_par)
    logits, scores = mood_and_content_forward(emb, lens, params)
    jax.block_until_ready((logits, scores))

    assert logits.shape == (B, 2) and scores.shape == (B, S)
    # attention scores over real tweets sum to 1; padded positions are exactly 0
    assert bool(jnp.allclose(scores.sum(axis=-1), 1.0, atol=1e-4))
    pad = jnp.arange(S)[None, :] >= lens[:, None]
    assert float(jnp.abs(jnp.where(pad, scores, 0.0)).max()) <= 1e-6
    print("KERNEL_OK")
</pallas_src>

<mosaic_0001>
module attributes {stable_mosaic.version = 11 : i64} {
  func.func @mood_and_content_kernel(%arg0: i32, %arg1: memref<1x1x16xf32, #tpu.memory_space<vmem>>, %arg2: memref<128x32xf32, #tpu.memory_space<vmem>>, %arg3: memref<8x32xf32, #tpu.memory_space<vmem>>, %arg4: memref<2x32x32xbf16, #tpu.memory_space<vmem>>, %arg5: memref<2x1x32xf32, #tpu.memory_space<vmem>>, %arg6: memref<2x32x32xbf16, #tpu.memory_space<vmem>>, %arg7: memref<2x1x32xf32, #tpu.memory_space<vmem>>, %arg8: memref<2x32x32xbf16, #tpu.memory_space<vmem>>, %arg9: memref<2x1x32xf32, #tpu.memory_space<vmem>>, %arg10: memref<2x32x32xbf16, #tpu.memory_space<vmem>>, %arg11: memref<2x1x32xf32, #tpu.memory_space<vmem>>, %arg12: memref<2x1x32xf32, #tpu.memory_space<vmem>>, %arg13: memref<2x1x32xf32, #tpu.memory_space<vmem>>, %arg14: memref<2x32x32xbf16, #tpu.memory_space<vmem>>, %arg15: memref<2x1x32xf32, #tpu.memory_space<vmem>>, %arg16: memref<2x32x32xbf16, #tpu.memory_space<vmem>>, %arg17: memref<2x1x32xf32, #tpu.memory_space<vmem>>, %arg18: memref<2x1x32xf32, #tpu.memory_space<vmem>>, %arg19: memref<2x1x32xf32, #tpu.memory_space<vmem>>, %arg20: memref<1x32xf32, #tpu.memory_space<vmem>>, %arg21: memref<1x1xf32, #tpu.memory_space<vmem>>, %arg22: memref<2x32xf32, #tpu.memory_space<vmem>>, %arg23: memref<1x2xf32, #tpu.memory_space<vmem>>, %arg24: memref<16x130xf32, #tpu.memory_space<vmem>>) attributes {dimension_semantics = [#tpu.dimension_semantics<parallel>], iteration_bounds = array<i64: 2>, scalar_prefetch = 0 : i64, scratch_operands = 0 : i64, tpu.core_type = #tpu.core_type<tc>, window_params = [{transform_indices = @transform_0, window_bounds = array<i64: 1, 1, 16>}, {transform_indices = @transform_1, window_bounds = array<i64: 128, 32>}, {pipeline_mode = #tpu.pipeline_mode<synchronous>, transform_indices = @transform_2, window_bounds = array<i64: 8, 32>}, {pipeline_mode = #tpu.pipeline_mode<synchronous>, transform_indices = @transform_3, window_bounds = array<i64: 2, 32, 32>}, {pipeline_mode = #tpu.pipeline_mode<synchronous>, transform_indices = @transform_4, window_bounds = array<i64: 2, 1, 32>}, {pipeline_mode = #tpu.pipeline_mode<synchronous>, transform_indices = @transform_5, window_bounds = array<i64: 2, 32, 32>}, {pipeline_mode = #tpu.pipeline_mode<synchronous>, transform_indices = @transform_6, window_bounds = array<i64: 2, 1, 32>}, {pipeline_mode = #tpu.pipeline_mode<synchronous>, transform_indices = @transform_7, window_bounds = array<i64: 2, 32, 32>}, {pipeline_mode = #tpu.pipeline_mode<synchronous>, transform_indices = @transform_8, window_bounds = array<i64: 2, 1, 32>}, {pipeline_mode = #tpu.pipeline_mode<synchronous>, transform_indices = @transform_9, window_bounds = array<i64: 2, 32, 32>}, {pipeline_mode = #tpu.pipeline_mode<synchronous>, transform_indices = @transform_10, window_bounds = array<i64: 2, 1, 32>}, {pipeline_mode = #tpu.pipeline_mode<synchronous>, transform_indices = @transform_11, window_bounds = array<i64: 2, 1, 32>}, {pipeline_mode = #tpu.pipeline_mode<synchronous>, transform_indices = @transform_12, window_bounds = array<i64: 2, 1, 32>}, {pipeline_mode = #tpu.pipeline_mode<synchronous>, transform_indices = @transform_13, window_bounds = array<i64: 2, 32, 32>}, {pipeline_mode = #tpu.pipeline_mode<synchronous>, transform_indices = @transform_14, window_bounds = array<i64: 2, 1, 32>}, {pipeline_mode = #tpu.pipeline_mode<synchronous>, transform_indices = @transform_15, window_bounds = array<i64: 2, 32, 32>}, {pipeline_mode = #tpu.pipeline_mode<synchronous>, transform_indices = @transform_16, window_bounds = array<i64: 2, 1, 32>}, {pipeline_mode = #tpu.pipeline_mode<synchronous>, transform_indices = @transform_17, window_bounds = array<i64: 2, 1, 32>}, {pipeline_mode = #tpu.pipeline_mode<synchronous>, transform_indices = @transform_18, window_bounds = array<i64: 2, 1, 32>}, {pipeline_mode = #tpu.pipeline_mode<synchronous>, transform_indices = @transform_19, window_bounds = array<i64: 1, 32>}, {pipeline_mode = #tpu.pipeline_mode<synchronous>, transform_indices = @transform_20, window_bounds = array<i64: 1, 1>}, {pipeline_mode = #tpu.pipeline_mode<synchronous>, transform_indices = @transform_21, window_bounds = array<i64: 2, 32>}, {pipeline_mode = #tpu.pipeline_mode<synchronous>, transform_indices = @transform_22, window_bounds = array<i64: 1, 2>}, {transform_indices = @transform_23, window_bounds = array<i64: 16, 130>}]} {
    %c0 = arith.constant 0 : index
    %c0_0 = arith.constant 0 : index
    %0 = vector.load %arg2[%c0, %c0_0] : memref<128x32xf32, #tpu.memory_space<vmem>>, vector<128x32xf32>
    %c0_1 = arith.constant 0 : index
    %c0_2 = arith.constant 0 : index
    %c0_3 = arith.constant 0 : index
    %1 = vector.load %arg1[%c0_1, %c0_2, %c0_3] : memref<1x1x16xf32, #tpu.memory_space<vmem>>, vector<1x1x16xf32>
    %2 = vector.shape_cast %1 : vector<1x1x16xf32> to vector<1x16xf32>
    %3 = tpu.iota {dimensions = array<i32: 0>} : vector<128x1xi32>
    %4 = tpu.iota {dimensions = array<i32: 1>} : vector<1x128xi32>
    %5 = tpu.iota {dimensions = array<i32: 1>} : vector<128x16xi32>
    %6 = tpu.iota {dimensions = array<i32: 0>} : vector<16x128xi32>
    %c1_i32 = arith.constant 1 : i32
    %7 = vector.broadcast %c1_i32 : i32 to vector<128x16xi32>
    %8 = arith.addi %5, %7 : vector<128x16xi32>
    %c8_i32 = arith.constant 8 : i32
    %9 = vector.broadcast %c8_i32 : i32 to vector<128x16xi32>
    %10 = arith.muli %8, %9 : vector<128x16xi32>
    %11 = vector.broadcast %3 : vector<128x1xi32> to vector<128x16xi32>
    %12 = arith.cmpi sge, %11, %10 : vector<128x16xi32>
    %13 = arith.extui %12 : vector<128x16xi1> to vector<128x16xi32>
    %cst = arith.constant dense<0> : vector<128xi32>
    %14 = vector.multi_reduction <add>, %13, %cst [1] : vector<128x16xi32> to vector<128xi32>
    %15 = vector.shape_cast %14 : vector<128xi32> to vector<128x1xi32>
    %c1_i32_4 = arith.constant 1 : i32
    %16 = vector.broadcast %c1_i32_4 : i32 to vector<16x128xi32>
    %17 = arith.addi %6, %16 : vector<16x128xi32>
    %c8_i32_5 = arith.constant 8 : i32
    %18 = vector.broadcast %c8_i32_5 : i32 to vector<16x128xi32>
    %19 = arith.muli %17, %18 : vector<16x128xi32>
    %20 = vector.broadcast %4 : vector<1x128xi32> to vector<16x128xi32>
    %21 = arith.cmpi sge, %20, %19 : vector<16x128xi32>
    %22 = arith.extui %21 : vector<16x128xi1> to vector<16x128xi32>
    %cst_6 = arith.constant dense<0> : vector<128xi32>
    %23 = vector.multi_reduction <add>, %22, %cst_6 [0] : vector<16x128xi32> to vector<128xi32>
    %24 = vector.shape_cast %23 : vector<128xi32> to vector<1x128xi32>
    %c8_i32_7 = arith.constant 8 : i32
    %25 = vector.broadcast %c8_i32_7 : i32 to vector<128x1xi32>
    %26 = arith.muli %15, %25 : vector<128x1xi32>
    %27 = arith.subi %3, %26 : vector<128x1xi32>
    %c8_i32_8 = arith.constant 8 : i32
    %28 = vector.broadcast %c8_i32_8 : i32 to vector<1x128xi32>
    %29 = arith.muli %24, %28 : vector<1x128xi32>
    %30 = arith.subi %4, %29 : vector<1x128xi32>
    %31 = vector.broadcast %15 : vector<128x1xi32> to vector<128x16xi32>
    %32 = arith.cmpi eq, %31, %5 : vector<128x16xi32>
    %33 = arith.extui %32 : vector<128x16xi1> to vector<128x16xi32>
    %34 = arith.sitofp %33 : vector<128x16xi32> to vector<128x16xf32>
    %35 = vector.broadcast %24 : vector<1x128xi32> to vector<16x128xi32>
    %36 = arith.cmpi eq, %35, %6 : vector<16x128xi32>
    %37 = arith.extui %36 : vector<16x128xi1> to vector<16x128xi32>
    %38 = arith.sitofp %37 : vector<16x128xi32> to vector<16x128xf32>
    %cst_9 = arith.constant dense<0.000000e+00> : vector<128x1xf32>
    %39 = tpu.matmul %34, %2, %cst_9 {dimension_numbers = #tpu.dot_dimension_numbers<[1], [1], [0], [0], [0, 0, 1, 0], [], []>} : vector<128x16xf32>, vector<1x16xf32>, vector<128x1xf32> -> vector<128x1xf32>
    %40 = arith.fptosi %39 : vector<128x1xf32> to vector<128x1xi32>
    %cst_10 = arith.constant dense<0.000000e+00> : vector<1x128xf32>
    %41 = tpu.matmul %2, %38, %cst_10 {dimension_numbers = #tpu.dot_dimension_numbers<[1], [0], [0], [1], [0, 0, 1, 1], [], []>} : vector<1x16xf32>, vector<16x128xf32>, vector<1x128xf32> -> vector<1x128xf32>
    %42 = arith.fptosi %41 : vector<1x128xf32> to vector<1x128xi32>
    %43 = arith.cmpi slt, %27, %40 : vector<128x1xi32>
    %44 = arith.cmpi slt, %30, %42 : vector<1x128xi32>
    %45 = vector.broadcast %15 : vector<128x1xi32> to vector<128x128xi32>
    %46 = vector.broadcast %24 : vector<1x128xi32> to vector<128x128xi32>
    %47 = arith.cmpi eq, %45, %46 : vector<128x128xi32>
    %48 = vector.broadcast %44 : vector<1x128xi1> to vector<128x128xi1>
    %49 = arith.andi %47, %48 : vector<128x128xi1>
    %50 = tpu.iota {dimensions = array<i32: 1>} : vector<128x8xi32>
    %c8_i32_11 = arith.constant 8 : i32
    %51 = vector.broadcast %c8_i32_11 : i32 to vector<128x1xi32>
    %52 = arith.subi %51, %40 : vector<128x1xi32>
    %53 = arith.addi %27, %52 : vector<128x1xi32>
    %54 = vector.broadcast %53 : vector<128x1xi32> to vector<128x8xi32>
    %55 = arith.cmpi eq, %50, %54 : vector<128x8xi32>
    %56 = vector.broadcast %43 : vector<128x1xi1> to vector<128x8xi1>
    %57 = arith.andi %55, %56 : vector<128x8xi1>
    %58 = arith.extui %57 : vector<128x8xi1> to vector<128x8xi32>
    %59 = arith.sitofp %58 : vector<128x8xi32> to vector<128x8xf32>
    %c0_12 = arith.constant 0 : index
    %c0_13 = arith.constant 0 : index
    %60 = vector.load %arg3[%c0_12, %c0_13] : memref<8x32xf32, #tpu.memory_space<vmem>>, vector<8x32xf32>
    %cst_14 = arith.constant dense<0.000000e+00> : vector<128x32xf32>
    %61 = tpu.matmul %59, %60, %cst_14 {dimension_numbers = #tpu.dot_dimension_numbers<[1], [0], [0], [1], [0, 0, 1, 1], [], []>} : vector<128x8xf32>, vector<8x32xf32>, vector<128x32xf32> -> vector<128x32xf32>
    %62 = arith.addf %0, %61 : vector<128x32xf32>
    %cst_15 = arith.constant 0.000000e+00 : f32
    %63 = vector.shape_cast %43 : vector<128x1xi1> to vector<128x1xi1>
    %64 = vector.broadcast %63 : vector<128x1xi1> to vector<128x32xi1>
    %65 = vector.broadcast %cst_15 : f32 to vector<128x32xf32>
    %66 = arith.select %64, %62, %65 : vector<128x32xi1>, vector<128x32xf32>
    %67 = tpu.iota {dimensions = array<i32: 1>} : vector<1x32xi32>
    %c0_i32 = arith.constant 0 : i32
    %68 = vector.broadcast %c0_i32 : i32 to vector<1x32xi32>
    %69 = arith.cmpi sge, %67, %68 : vector<1x32xi32>
    %c8_i32_16 = arith.constant 8 : i32
    %70 = vector.broadcast %c8_i32_16 : i32 to vector<1x32xi32>
    %71 = arith.cmpi slt, %67, %70 : vector<1x32xi32>
    %72 = arith.andi %69, %71 : vector<1x32xi1>
    %c8_i32_17 = arith.constant 8 : i32
    %73 = vector.broadcast %c8_i32_17 : i32 to vector<1x32xi32>
    %74 = arith.cmpi sge, %67, %73 : vector<1x32xi32>
    %c16_i32 = arith.constant 16 : i32
    %75 = vector.broadcast %c16_i32 : i32 to vector<1x32xi32>
    %76 = arith.cmpi slt, %67, %75 : vector<1x32xi32>
    %77 = arith.andi %74, %76 : vector<1x32xi1>
    %c16_i32_18 = arith.constant 16 : i32
    %78 = vector.broadcast %c16_i32_18 : i32 to vector<1x32xi32>
    %79 = arith.cmpi sge, %67, %78 : vector<1x32xi32>
    %c24_i32 = arith.constant 24 : i32
    %80 = vector.broadcast %c24_i32 : i32 to vector<1x32xi32>
    %81 = arith.cmpi slt, %67, %80 : vector<1x32xi32>
    %82 = arith.andi %79, %81 : vector<1x32xi1>
    %c24_i32_19 = arith.constant 24 : i32
    %83 = vector.broadcast %c24_i32_19 : i32 to vector<1x32xi32>
    %84 = arith.cmpi sge, %67, %83 : vector<1x32xi32>
    %c32_i32 = arith.constant 32 : i32
    %85 = vector.broadcast %c32_i32 : i32 to vector<1x32xi32>
    %86 = arith.cmpi slt, %67, %85 : vector<1x32xi32>
    %87 = arith.andi %84, %86 : vector<1x32xi1>
    %88 = arith.truncf %66 : vector<128x32xf32> to vector<128x32xbf16>
    %c0_20 = arith.constant 0 : index
    %c0_21 = arith.constant 0 : index
    %c0_22 = arith.constant 0 : index
    %89 = vector.load %arg4[%c0_20, %c0_21, %c0_22] : memref<2x32x32xbf16, #tpu.memory_space<vmem>>, vector<1x32x32xbf16>
    %90 = vector.shape_cast %89 : vector<1x32x32xbf16> to vector<32x32xbf16>
    %cst_23 = arith.constant dense<0.000000e+00> : vector<128x32xf32>
    %91 = tpu.matmul %88, %90, %cst_23 {dimension_numbers = #tpu.dot_dimension_numbers<[1], [1], [0], [0], [0, 0, 1, 0], [], []>} : vector<128x32xbf16>, vector<32x32xbf16>, vector<128x32xf32> -> vector<128x32xf32>
    %c0_24 = arith.constant 0 : index
    %c0_25 = arith.constant 0 : index
    %c0_26 = arith.constant 0 : index
    %92 = vector.load %arg5[%c0_24, %c0_25, %c0_26] : memref<2x1x32xf32, #tpu.memory_space<vmem>>, vector<1x1x32xf32>
    %93 = vector.shape_cast %92 : vector<1x1x32xf32> to vector<1x32xf32>
    %94 = vector.broadcast %93 : vector<1x32xf32> to vector<128x32xf32>
    %95 = arith.addf %91, %94 : vector<128x32xf32>
    %c0_27 = arith.constant 0 : index
    %c0_28 = arith.constant 0 : index
    %c0_29 = arith.constant 0 : index
    %96 = vector.load %arg6[%c0_27, %c0_28, %c0_29] : memref<2x32x32xbf16, #tpu.memory_space<vmem>>, vector<1x32x32xbf16>
    %97 = vector.shape_cast %96 : vector<1x32x32xbf16> to vector<32x32xbf16>
    %cst_30 = arith.constant dense<0.000000e+00> : vector<128x32xf32>
    %98 = tpu.matmul %88, %97, %cst_30 {dimension_numbers = #tpu.dot_dimension_numbers<[1], [1], [0], [0], [0, 0, 1, 0], [], []>} : vector<128x32xbf16>, vector<32x32xbf16>, vector<128x32xf32> -> vector<128x32xf32>
    %c0_31 = arith.constant 0 : index
    %c0_32 = arith.constant 0 : index
    %c0_33 = arith.constant 0 : index
    %99 = vector.load %arg7[%c0_31, %c0_32, %c0_33] : memref<2x1x32xf32, #tpu.memory_space<vmem>>, vector<1x1x32xf32>
    %100 = vector.shape_cast %99 : vector<1x1x32xf32> to vector<1x32xf32>
    %101 = vector.broadcast %100 : vector<1x32xf32> to vector<128x32xf32>
    %102 = arith.addf %98, %101 : vector<128x32xf32>
    %c0_34 = arith.constant 0 : index
    %c0_35 = arith.constant 0 : index
    %c0_36 = arith.constant 0 : index
    %103 = vector.load %arg8[%c0_34, %c0_35, %c0_36] : memref<2x32x32xbf16, #tpu.memory_space<vmem>>, vector<1x32x32xbf16>
    %104 = vector.shape_cast %103 : vector<1x32x32xbf16> to vector<32x32xbf16>
    %cst_37 = arith.constant dense<0.000000e+00> : vector<128x32xf32>
    %105 = tpu.matmul %88, %104, %cst_37 {dimension_numbers = #tpu.dot_dimension_numbers<[1], [1], [0], [0], [0, 0, 1, 0], [], []>} : vector<128x32xbf16>, vector<32x32xbf16>, vector<128x32xf32> -> vector<128x32xf32>
    %c0_38 = arith.constant 0 : index
    %c0_39 = arith.constant 0 : index
    %c0_40 = arith.constant 0 : index
    %106 = vector.load %arg9[%c0_38, %c0_39, %c0_40] : memref<2x1x32xf32, #tpu.memory_space<vmem>>, vector<1x1x32xf32>
    %107 = vector.shape_cast %106 : vector<1x1x32xf32> to vector<1x32xf32>
    %108 = vector.broadcast %107 : vector<1x32xf32> to vector<128x32xf32>
    %109 = arith.addf %105, %108 : vector<128x32xf32>
    %110 = arith.truncf %95 : vector<128x32xf32> to vector<128x32xbf16>
    %111 = arith.truncf %102 : vector<128x32xf32> to vector<128x32xbf16>
    %112 = arith.truncf %109 : vector<128x32xf32> to vector<128x32xbf16>
    %cst_41 = arith.constant 0.000000e+00 : bf16
    %113 = vector.shape_cast %72 : vector<1x32xi1> to vector<1x32xi1>
    %114 = vector.broadcast %113 : vector<1x32xi1> to vector<128x32xi1>
    %115 = vector.broadcast %cst_41 : bf16 to vector<128x32xbf16>
    %116 = arith.select %114, %111, %115 : vector<128x32xi1>, vector<128x32xbf16>
    %cst_42 = arith.constant dense<0.000000e+00> : vector<128x128xf32>
    %117 = tpu.matmul %110, %116, %cst_42 {dimension_numbers = #tpu.dot_dimension_numbers<[1], [1], [0], [0], [0, 0, 1, 0], [], []>} : vector<128x32xbf16>, vector<128x32xbf16>, vector<128x128xf32> -> vector<128x128xf32>
    %cst_43 = arith.constant -1.000000e+30 : f32
    %118 = vector.broadcast %cst_43 : f32 to vector<128x128xf32>
    %119 = arith.select %49, %117, %118 : vector<128x128xi1>, vector<128x128xf32>
    %cst_44 = arith.constant dense<0xFF800000> : vector<128xf32>
    %120 = vector.multi_reduction <maximumf>, %119, %cst_44 [1] : vector<128x128xf32> to vector<128xf32>
    %121 = vector.shape_cast %120 : vector<128xf32> to vector<128x1xf32>
    %122 = vector.broadcast %121 : vector<128x1xf32> to vector<128x128xf32>
    %123 = arith.subf %119, %122 : vector<128x128xf32>
    %124 = math.exp %123 : vector<128x128xf32>
    %cst_45 = arith.constant dense<0.000000e+00> : vector<128xf32>
    %125 = vector.multi_reduction <add>, %124, %cst_45 [1] : vector<128x128xf32> to vector<128xf32>
    %126 = vector.shape_cast %125 : vector<128xf32> to vector<128x1xf32>
    %127 = tpu.reciprocal %126 {approx = true} : vector<128x1xf32> -> vector<128x1xf32>
    %128 = vector.broadcast %127 : vector<128x1xf32> to vector<128x128xf32>
    %129 = arith.mulf %124, %128 : vector<128x128xf32>
    %130 = arith.truncf %129 : vector<128x128xf32> to vector<128x128xbf16>
    %cst_46 = arith.constant 0.000000e+00 : bf16
    %131 = vector.shape_cast %72 : vector<1x32xi1> to vector<1x32xi1>
    %132 = vector.broadcast %131 : vector<1x32xi1> to vector<128x32xi1>
    %133 = vector.broadcast %cst_46 : bf16 to vector<128x32xbf16>
    %134 = arith.select %132, %112, %133 : vector<128x32xi1>, vector<128x32xbf16>
    %cst_47 = arith.constant dense<0.000000e+00> : vector<128x32xf32>
    %135 = tpu.matmul %130, %134, %cst_47 {dimension_numbers = #tpu.dot_dimension_numbers<[1], [0], [0], [1], [0, 0, 1, 1], [], []>} : vector<128x128xbf16>, vector<128x32xbf16>, vector<128x32xf32> -> vector<128x32xf32>
    %cst_48 = arith.constant 0.000000e+00 : bf16
    %136 = vector.shape_cast %77 : vector<1x32xi1> to vector<1x32xi1>
    %137 = vector.broadcast %136 : vector<1x32xi1> to vector<128x32xi1>
    %138 = vector.broadcast %cst_48 : bf16 to vector<128x32xbf16>
    %139 = arith.select %137, %111, %138 : vector<128x32xi1>, vector<128x32xbf16>
    %cst_49 = arith.constant dense<0.000000e+00> : vector<128x128xf32>
    %140 = tpu.matmul %110, %139, %cst_49 {dimension_numbers = #tpu.dot_dimension_numbers<[1], [1], [0], [0], [0, 0, 1, 0], [], []>} : vector<128x32xbf16>, vector<128x32xbf16>, vector<128x128xf32> -> vector<128x128xf32>
    %cst_50 = arith.constant -1.000000e+30 : f32
    %141 = vector.broadcast %cst_50 : f32 to vector<128x128xf32>
    %142 = arith.select %49, %140, %141 : vector<128x128xi1>, vector<128x128xf32>
    %cst_51 = arith.constant dense<0xFF800000> : vector<128xf32>
    %143 = vector.multi_reduction <maximumf>, %142, %cst_51 [1] : vector<128x128xf32> to vector<128xf32>
    %144 = vector.shape_cast %143 : vector<128xf32> to vector<128x1xf32>
    %145 = vector.broadcast %144 : vector<128x1xf32> to vector<128x128xf32>
    %146 = arith.subf %142, %145 : vector<128x128xf32>
    %147 = math.exp %146 : vector<128x128xf32>
    %cst_52 = arith.constant dense<0.000000e+00> : vector<128xf32>
    %148 = vector.multi_reduction <add>, %147, %cst_52 [1] : vector<128x128xf32> to vector<128xf32>
    %149 = vector.shape_cast %148 : vector<128xf32> to vector<128x1xf32>
    %150 = tpu.reciprocal %149 {approx = true} : vector<128x1xf32> -> vector<128x1xf32>
    %151 = vector.broadcast %150 : vector<128x1xf32> to vector<128x128xf32>
    %152 = arith.mulf %147, %151 : vector<128x128xf32>
    %153 = arith.truncf %152 : vector<128x128xf32> to vector<128x128xbf16>
    %cst_53 = arith.constant 0.000000e+00 : bf16
    %154 = vector.shape_cast %77 : vector<1x32xi1> to vector<1x32xi1>
    %155 = vector.broadcast %154 : vector<1x32xi1> to vector<128x32xi1>
    %156 = vector.broadcast %cst_53 : bf16 to vector<128x32xbf16>
    %157 = arith.select %155, %112, %156 : vector<128x32xi1>, vector<128x32xbf16>
    %cst_54 = arith.constant dense<0.000000e+00> : vector<128x32xf32>
    %158 = tpu.matmul %153, %157, %cst_54 {dimension_numbers = #tpu.dot_dimension_numbers<[1], [0], [0], [1], [0, 0, 1, 1], [], []>} : vector<128x128xbf16>, vector<128x32xbf16>, vector<128x32xf32> -> vector<128x32xf32>
    %159 = arith.addf %135, %158 : vector<128x32xf32>
    %cst_55 = arith.constant 0.000000e+00 : bf16
    %160 = vector.shape_cast %82 : vector<1x32xi1> to vector<1x32xi1>
    %161 = vector.broadcast %160 : vector<1x32xi1> to vector<128x32xi1>
    %162 = vector.broadcast %cst_55 : bf16 to vector<128x32xbf16>
    %163 = arith.select %161, %111, %162 : vector<128x32xi1>, vector<128x32xbf16>
    %cst_56 = arith.constant dense<0.000000e+00> : vector<128x128xf32>
    %164 = tpu.matmul %110, %163, %cst_56 {dimension_numbers = #tpu.dot_dimension_numbers<[1], [1], [0], [0], [0, 0, 1, 0], [], []>} : vector<128x32xbf16>, vector<128x32xbf16>, vector<128x128xf32> -> vector<128x128xf32>
    %cst_57 = arith.constant -1.000000e+30 : f32
    %165 = vector.broadcast %cst_57 : f32 to vector<128x128xf32>
    %166 = arith.select %49, %164, %165 : vector<128x128xi1>, vector<128x128xf32>
    %cst_58 = arith.constant dense<0xFF800000> : vector<128xf32>
    %167 = vector.multi_reduction <maximumf>, %166, %cst_58 [1] : vector<128x128xf32> to vector<128xf32>
    %168 = vector.shape_cast %167 : vector<128xf32> to vector<128x1xf32>
    %169 = vector.broadcast %168 : vector<128x1xf32> to vector<128x128xf32>
    %170 = arith.subf %166, %169 : vector<128x128xf32>
    %171 = math.exp %170 : vector<128x128xf32>
    %cst_59 = arith.constant dense<0.000000e+00> : vector<128xf32>
    %172 = vector.multi_reduction <add>, %171, %cst_59 [1] : vector<128x128xf32> to vector<128xf32>
    %173 = vector.shape_cast %172 : vector<128xf32> to vector<128x1xf32>
    %174 = tpu.reciprocal %173 {approx = true} : vector<128x1xf32> -> vector<128x1xf32>
    %175 = vector.broadcast %174 : vector<128x1xf32> to vector<128x128xf32>
    %176 = arith.mulf %171, %175 : vector<128x128xf32>
    %177 = arith.truncf %176 : vector<128x128xf32> to vector<128x128xbf16>
    %cst_60 = arith.constant 0.000000e+00 : bf16
    %178 = vector.shape_cast %82 : vector<1x32xi1> to vector<1x32xi1>
    %179 = vector.broadcast %178 : vector<1x32xi1> to vector<128x32xi1>
    %180 = vector.broadcast %cst_60 : bf16 to vector<128x32xbf16>
    %181 = arith.select %179, %112, %180 : vector<128x32xi1>, vector<128x32xbf16>
    %cst_61 = arith.constant dense<0.000000e+00> : vector<128x32xf32>
    %182 = tpu.matmul %177, %181, %cst_61 {dimension_numbers = #tpu.dot_dimension_numbers<[1], [0], [0], [1], [0, 0, 1, 1], [], []>} : vector<128x128xbf16>, vector<128x32xbf16>, vector<128x32xf32> -> vector<128x32xf32>
    %183 = arith.addf %159, %182 : vector<128x32xf32>
    %cst_62 = arith.constant 0.000000e+00 : bf16
    %184 = vector.shape_cast %87 : vector<1x32xi1> to vector<1x32xi1>
    %185 = vector.broadcast %184 : vector<1x32xi1> to vector<128x32xi1>
    %186 = vector.broadcast %cst_62 : bf16 to vector<128x32xbf16>
    %187 = arith.select %185, %111, %186 : vector<128x32xi1>, vector<128x32xbf16>
    %cst_63 = arith.constant dense<0.000000e+00> : vector<128x128xf32>
    %188 = tpu.matmul %110, %187, %cst_63 {dimension_numbers = #tpu.dot_dimension_numbers<[1], [1], [0], [0], [0, 0, 1, 0], [], []>} : vector<128x32xbf16>, vector<128x32xbf16>, vector<128x128xf32> -> vector<128x128xf32>
    %cst_64 = arith.constant -1.000000e+30 : f32
    %189 = vector.broadcast %cst_64 : f32 to vector<128x128xf32>
    %190 = arith.select %49, %188, %189 : vector<128x128xi1>, vector<128x128xf32>
    %cst_65 = arith.constant dense<0xFF800000> : vector<128xf32>
    %191 = vector.multi_reduction <maximumf>, %190, %cst_65 [1] : vector<128x128xf32> to vector<128xf32>
    %192 = vector.shape_cast %191 : vector<128xf32> to vector<128x1xf32>
    %193 = vector.broadcast %192 : vector<128x1xf32> to vector<128x128xf32>
    %194 = arith.subf %190, %193 : vector<128x128xf32>
    %195 = math.exp %194 : vector<128x128xf32>
    %cst_66 = arith.constant dense<0.000000e+00> : vector<128xf32>
    %196 = vector.multi_reduction <add>, %195, %cst_66 [1] : vector<128x128xf32> to vector<128xf32>
    %197 = vector.shape_cast %196 : vector<128xf32> to vector<128x1xf32>
    %198 = tpu.reciprocal %197 {approx = true} : vector<128x1xf32> -> vector<128x1xf32>
    %199 = vector.broadcast %198 : vector<128x1xf32> to vector<128x128xf32>
    %200 = arith.mulf %195, %199 : vector<128x128xf32>
    %201 = arith.truncf %200 : vector<128x128xf32> to vector<128x128xbf16>
    %cst_67 = arith.constant 0.000000e+00 : bf16
    %202 = vector.shape_cast %87 : vector<1x32xi1> to vector<1x32xi1>
    %203 = vector.broadcast %202 : vector<1x32xi1> to vector<128x32xi1>
    %204 = vector.broadcast %cst_67 : bf16 to vector<128x32xbf16>
    %205 = arith.select %203, %112, %204 : vector<128x32xi1>, vector<128x32xbf16>
    %cst_68 = arith.constant dense<0.000000e+00> : vector<128x32xf32>
    %206 = tpu.matmul %201, %205, %cst_68 {dimension_numbers = #tpu.dot_dimension_numbers<[1], [0], [0], [1], [0, 0, 1, 1], [], []>} : vector<128x128xbf16>, vector<128x32xbf16>, vector<128x32xf32> -> vector<128x32xf32>
    %207 = arith.addf %183, %206 : vector<128x32xf32>
    %c0_69 = arith.constant 0 : index
    %c0_70 = arith.constant 0 : index
    %c0_71 = arith.constant 0 : index
    %208 = vector.load %arg10[%c0_69, %c0_70, %c0_71] : memref<2x32x32xbf16, #tpu.memory_space<vmem>>, vector<1x32x32xbf16>
    %209 = vector.shape_cast %208 : vector<1x32x32xbf16> to vector<32x32xbf16>
    %210 = arith.truncf %207 : vector<128x32xf32> to vector<128x32xbf16>
    %cst_72 = arith.constant dense<0.000000e+00> : vector<128x32xf32>
    %211 = tpu.matmul %210, %209, %cst_72 {dimension_numbers = #tpu.dot_dimension_numbers<[1], [1], [0], [0], [0, 0, 1, 0], [], []>} : vector<128x32xbf16>, vector<32x32xbf16>, vector<128x32xf32> -> vector<128x32xf32>
    %c0_73 = arith.constant 0 : index
    %c0_74 = arith.constant 0 : index
    %c0_75 = arith.constant 0 : index
    %212 = vector.load %arg11[%c0_73, %c0_74, %c0_75] : memref<2x1x32xf32, #tpu.memory_space<vmem>>, vector<1x1x32xf32>
    %213 = vector.shape_cast %212 : vector<1x1x32xf32> to vector<1x32xf32>
    %214 = vector.broadcast %213 : vector<1x32xf32> to vector<128x32xf32>
    %215 = arith.addf %211, %214 : vector<128x32xf32>
    %216 = arith.addf %66, %215 : vector<128x32xf32>
    %c0_76 = arith.constant 0 : index
    %c0_77 = arith.constant 0 : index
    %c0_78 = arith.constant 0 : index
    %217 = vector.load %arg12[%c0_76, %c0_77, %c0_78] : memref<2x1x32xf32, #tpu.memory_space<vmem>>, vector<1x1x32xf32>
    %218 = vector.shape_cast %217 : vector<1x1x32xf32> to vector<1x32xf32>
    %c0_79 = arith.constant 0 : index
    %c0_80 = arith.constant 0 : index
    %c0_81 = arith.constant 0 : index
    %219 = vector.load %arg13[%c0_79, %c0_80, %c0_81] : memref<2x1x32xf32, #tpu.memory_space<vmem>>, vector<1x1x32xf32>
    %220 = vector.shape_cast %219 : vector<1x1x32xf32> to vector<1x32xf32>
    %cst_82 = arith.constant dense<0.000000e+00> : vector<128xf32>
    %221 = vector.multi_reduction <add>, %216, %cst_82 [1] : vector<128x32xf32> to vector<128xf32>
    %222 = vector.shape_cast %221 : vector<128xf32> to vector<128x1xf32>
    %cst_83 = arith.constant 3.200000e+01 : f32
    %223 = vector.broadcast %cst_83 : f32 to vector<128x1xf32>
    %224 = arith.divf %222, %223 : vector<128x1xf32>
    %225 = vector.broadcast %224 : vector<128x1xf32> to vector<128x32xf32>
    %226 = arith.subf %216, %225 : vector<128x32xf32>
    %227 = arith.mulf %226, %226 : vector<128x32xf32>
    %cst_84 = arith.constant dense<0.000000e+00> : vector<128xf32>
    %228 = vector.multi_reduction <add>, %227, %cst_84 [1] : vector<128x32xf32> to vector<128xf32>
    %229 = vector.shape_cast %228 : vector<128xf32> to vector<128x1xf32>
    %cst_85 = arith.constant 3.200000e+01 : f32
    %230 = vector.broadcast %cst_85 : f32 to vector<128x1xf32>
    %231 = arith.divf %229, %230 : vector<128x1xf32>
    %cst_86 = arith.constant 9.99999974E-6 : f32
    %232 = vector.broadcast %cst_86 : f32 to vector<128x1xf32>
    %233 = arith.addf %231, %232 : vector<128x1xf32>
    %234 = math.rsqrt %233 : vector<128x1xf32>
    %235 = vector.broadcast %234 : vector<128x1xf32> to vector<128x32xf32>
    %236 = arith.mulf %226, %235 : vector<128x32xf32>
    %237 = vector.broadcast %218 : vector<1x32xf32> to vector<128x32xf32>
    %238 = arith.mulf %236, %237 : vector<128x32xf32>
    %239 = vector.broadcast %220 : vector<1x32xf32> to vector<128x32xf32>
    %240 = arith.addf %238, %239 : vector<128x32xf32>
    %c0_87 = arith.constant 0 : index
    %c0_88 = arith.constant 0 : index
    %c0_89 = arith.constant 0 : index
    %241 = vector.load %arg14[%c0_87, %c0_88, %c0_89] : memref<2x32x32xbf16, #tpu.memory_space<vmem>>, vector<1x32x32xbf16>
    %242 = vector.shape_cast %241 : vector<1x32x32xbf16> to vector<32x32xbf16>
    %243 = arith.truncf %240 : vector<128x32xf32> to vector<128x32xbf16>
    %cst_90 = arith.constant dense<0.000000e+00> : vector<128x32xf32>
    %244 = tpu.matmul %243, %242, %cst_90 {dimension_numbers = #tpu.dot_dimension_numbers<[1], [1], [0], [0], [0, 0, 1, 0], [], []>} : vector<128x32xbf16>, vector<32x32xbf16>, vector<128x32xf32> -> vector<128x32xf32>
    %c0_91 = arith.constant 0 : index
    %c0_92 = arith.constant 0 : index
    %c0_93 = arith.constant 0 : index
    %245 = vector.load %arg15[%c0_91, %c0_92, %c0_93] : memref<2x1x32xf32, #tpu.memory_space<vmem>>, vector<1x1x32xf32>
    %246 = vector.shape_cast %245 : vector<1x1x32xf32> to vector<1x32xf32>
    %247 = vector.broadcast %246 : vector<1x32xf32> to vector<128x32xf32>
    %248 = arith.addf %244, %247 : vector<128x32xf32>
    %cst_94 = arith.constant 5.000000e-01 : f32
    %249 = vector.broadcast %cst_94 : f32 to vector<128x32xf32>
    %250 = arith.mulf %249, %248 : vector<128x32xf32>
    %cst_95 = arith.constant 4.471500e-02 : f32
    %251 = vector.broadcast %cst_95 : f32 to vector<128x32xf32>
    %252 = arith.mulf %251, %248 : vector<128x32xf32>
    %253 = arith.mulf %252, %248 : vector<128x32xf32>
    %254 = arith.mulf %253, %248 : vector<128x32xf32>
    %255 = arith.addf %248, %254 : vector<128x32xf32>
    %cst_96 = arith.constant 0.797884583 : f32
    %256 = vector.broadcast %cst_96 : f32 to vector<128x32xf32>
    %257 = arith.mulf %256, %255 : vector<128x32xf32>
    %258 = math.tanh %257 : vector<128x32xf32>
    %cst_97 = arith.constant 1.000000e+00 : f32
    %259 = vector.broadcast %cst_97 : f32 to vector<128x32xf32>
    %260 = arith.addf %259, %258 : vector<128x32xf32>
    %261 = arith.mulf %250, %260 : vector<128x32xf32>
    %c0_98 = arith.constant 0 : index
    %c0_99 = arith.constant 0 : index
    %c0_100 = arith.constant 0 : index
    %262 = vector.load %arg16[%c0_98, %c0_99, %c0_100] : memref<2x32x32xbf16, #tpu.memory_space<vmem>>, vector<1x32x32xbf16>
    %263 = vector.shape_cast %262 : vector<1x32x32xbf16> to vector<32x32xbf16>
    %264 = arith.truncf %261 : vector<128x32xf32> to vector<128x32xbf16>
    %cst_101 = arith.constant dense<0.000000e+00> : vector<128x32xf32>
    %265 = tpu.matmul %264, %263, %cst_101 {dimension_numbers = #tpu.dot_dimension_numbers<[1], [1], [0], [0], [0, 0, 1, 0], [], []>} : vector<128x32xbf16>, vector<32x32xbf16>, vector<128x32xf32> -> vector<128x32xf32>
    %c0_102 = arith.constant 0 : index
    %c0_103 = arith.constant 0 : index
    %c0_104 = arith.constant 0 : index
    %266 = vector.load %arg17[%c0_102, %c0_103, %c0_104] : memref<2x1x32xf32, #tpu.memory_space<vmem>>, vector<1x1x32xf32>
    %267 = vector.shape_cast %266 : vector<1x1x32xf32> to vector<1x32xf32>
    %268 = vector.broadcast %267 : vector<1x32xf32> to vector<128x32xf32>
    %269 = arith.addf %265, %268 : vector<128x32xf32>
    %270 = arith.addf %240, %269 : vector<128x32xf32>
    %c0_105 = arith.constant 0 : index
    %c0_106 = arith.constant 0 : index
    %c0_107 = arith.constant 0 : index
    %271 = vector.load %arg18[%c0_105, %c0_106, %c0_107] : memref<2x1x32xf32, #tpu.memory_space<vmem>>, vector<1x1x32xf32>
    %272 = vector.shape_cast %271 : vector<1x1x32xf32> to vector<1x32xf32>
    %c0_108 = arith.constant 0 : index
    %c0_109 = arith.constant 0 : index
    %c0_110 = arith.constant 0 : index
    %273 = vector.load %arg19[%c0_108, %c0_109, %c0_110] : memref<2x1x32xf32, #tpu.memory_space<vmem>>, vector<1x1x32xf32>
    %274 = vector.shape_cast %273 : vector<1x1x32xf32> to vector<1x32xf32>
    %cst_111 = arith.constant dense<0.000000e+00> : vector<128xf32>
    %275 = vector.multi_reduction <add>, %270, %cst_111 [1] : vector<128x32xf32> to vector<128xf32>
    %276 = vector.shape_cast %275 : vector<128xf32> to vector<128x1xf32>
    %cst_112 = arith.constant 3.200000e+01 : f32
    %277 = vector.broadcast %cst_112 : f32 to vector<128x1xf32>
    %278 = arith.divf %276, %277 : vector<128x1xf32>
    %279 = vector.broadcast %278 : vector<128x1xf32> to vector<128x32xf32>
    %280 = arith.subf %270, %279 : vector<128x32xf32>
    %281 = arith.mulf %280, %280 : vector<128x32xf32>
    %cst_113 = arith.constant dense<0.000000e+00> : vector<128xf32>
    %282 = vector.multi_reduction <add>, %281, %cst_113 [1] : vector<128x32xf32> to vector<128xf32>
    %283 = vector.shape_cast %282 : vector<128xf32> to vector<128x1xf32>
    %cst_114 = arith.constant 3.200000e+01 : f32
    %284 = vector.broadcast %cst_114 : f32 to vector<128x1xf32>
    %285 = arith.divf %283, %284 : vector<128x1xf32>
    %cst_115 = arith.constant 9.99999974E-6 : f32
    %286 = vector.broadcast %cst_115 : f32 to vector<128x1xf32>
    %287 = arith.addf %285, %286 : vector<128x1xf32>
    %288 = math.rsqrt %287 : vector<128x1xf32>
    %289 = vector.broadcast %288 : vector<128x1xf32> to vector<128x32xf32>
    %290 = arith.mulf %280, %289 : vector<128x32xf32>
    %291 = vector.broadcast %272 : vector<1x32xf32> to vector<128x32xf32>
    %292 = arith.mulf %290, %291 : vector<128x32xf32>
    %293 = vector.broadcast %274 : vector<1x32xf32> to vector<128x32xf32>
    %294 = arith.addf %292, %293 : vector<128x32xf32>
    %295 = arith.truncf %294 : vector<128x32xf32> to vector<128x32xbf16>
    %c1 = arith.constant 1 : index
    %c0_116 = arith.constant 0 : index
    %c0_117 = arith.constant 0 : index
    %296 = vector.load %arg4[%c1, %c0_116, %c0_117] : memref<2x32x32xbf16, #tpu.memory_space<vmem>>, vector<1x32x32xbf16>
    %297 = vector.shape_cast %296 : vector<1x32x32xbf16> to vector<32x32xbf16>
    %cst_118 = arith.constant dense<0.000000e+00> : vector<128x32xf32>
    %298 = tpu.matmul %295, %297, %cst_118 {dimension_numbers = #tpu.dot_dimension_numbers<[1], [1], [0], [0], [0, 0, 1, 0], [], []>} : vector<128x32xbf16>, vector<32x32xbf16>, vector<128x32xf32> -> vector<128x32xf32>
    %c1_119 = arith.constant 1 : index
    %c0_120 = arith.constant 0 : index
    %c0_121 = arith.constant 0 : index
    %299 = vector.load %arg5[%c1_119, %c0_120, %c0_121] : memref<2x1x32xf32, #tpu.memory_space<vmem>>, vector<1x1x32xf32>
    %300 = vector.shape_cast %299 : vector<1x1x32xf32> to vector<1x32xf32>
    %301 = vector.broadcast %300 : vector<1x32xf32> to vector<128x32xf32>
    %302 = arith.addf %298, %301 : vector<128x32xf32>
    %c1_122 = arith.constant 1 : index
    %c0_123 = arith.constant 0 : index
    %c0_124 = arith.constant 0 : index
    %303 = vector.load %arg6[%c1_122, %c0_123, %c0_124] : memref<2x32x32xbf16, #tpu.memory_space<vmem>>, vector<1x32x32xbf16>
    %304 = vector.shape_cast %303 : vector<1x32x32xbf16> to vector<32x32xbf16>
    %cst_125 = arith.constant dense<0.000000e+00> : vector<128x32xf32>
    %305 = tpu.matmul %295, %304, %cst_125 {dimension_numbers = #tpu.dot_dimension_numbers<[1], [1], [0], [0], [0, 0, 1, 0], [], []>} : vector<128x32xbf16>, vector<32x32xbf16>, vector<128x32xf32> -> vector<128x32xf32>
    %c1_126 = arith.constant 1 : index
    %c0_127 = arith.constant 0 : index
    %c0_128 = arith.constant 0 : index
    %306 = vector.load %arg7[%c1_126, %c0_127, %c0_128] : memref<2x1x32xf32, #tpu.memory_space<vmem>>, vector<1x1x32xf32>
    %307 = vector.shape_cast %306 : vector<1x1x32xf32> to vector<1x32xf32>
    %308 = vector.broadcast %307 : vector<1x32xf32> to vector<128x32xf32>
    %309 = arith.addf %305, %308 : vector<128x32xf32>
    %c1_129 = arith.constant 1 : index
    %c0_130 = arith.constant 0 : index
    %c0_131 = arith.constant 0 : index
    %310 = vector.load %arg8[%c1_129, %c0_130, %c0_131] : memref<2x32x32xbf16, #tpu.memory_space<vmem>>, vector<1x32x32xbf16>
    %311 = vector.shape_cast %310 : vector<1x32x32xbf16> to vector<32x32xbf16>
    %cst_132 = arith.constant dense<0.000000e+00> : vector<128x32xf32>
    %312 = tpu.matmul %295, %311, %cst_132 {dimension_numbers = #tpu.dot_dimension_numbers<[1], [1], [0], [0], [0, 0, 1, 0], [], []>} : vector<128x32xbf16>, vector<32x32xbf16>, vector<128x32xf32> -> vector<128x32xf32>
    %c1_133 = arith.constant 1 : index
    %c0_134 = arith.constant 0 : index
    %c0_135 = arith.constant 0 : index
    %313 = vector.load %arg9[%c1_133, %c0_134, %c0_135] : memref<2x1x32xf32, #tpu.memory_space<vmem>>, vector<1x1x32xf32>
    %314 = vector.shape_cast %313 : vector<1x1x32xf32> to vector<1x32xf32>
    %315 = vector.broadcast %314 : vector<1x32xf32> to vector<128x32xf32>
    %316 = arith.addf %312, %315 : vector<128x32xf32>
    %317 = arith.truncf %302 : vector<128x32xf32> to vector<128x32xbf16>
    %318 = arith.truncf %309 : vector<128x32xf32> to vector<128x32xbf16>
    %319 = arith.truncf %316 : vector<128x32xf32> to vector<128x32xbf16>
    %cst_136 = arith.constant 0.000000e+00 : bf16
    %320 = vector.shape_cast %72 : vector<1x32xi1> to vector<1x32xi1>
    %321 = vector.broadcast %320 : vector<1x32xi1> to vector<128x32xi1>
    %322 = vector.broadcast %cst_136 : bf16 to vector<128x32xbf16>
    %323 = arith.select %321, %318, %322 : vector<128x32xi1>, vector<128x32xbf16>
    %cst_137 = arith.constant dense<0.000000e+00> : vector<128x128xf32>
    %324 = tpu.matmul %317, %323, %cst_137 {dimension_numbers = #tpu.dot_dimension_numbers<[1], [1], [0], [0], [0, 0, 1, 0], [], []>} : vector<128x32xbf16>, vector<128x32xbf16>, vector<128x128xf32> -> vector<128x128xf32>
    %cst_138 = arith.constant -1.000000e+30 : f32
    %325 = vector.broadcast %cst_138 : f32 to vector<128x128xf32>
    %326 = arith.select %49, %324, %325 : vector<128x128xi1>, vector<128x128xf32>
    %cst_139 = arith.constant dense<0xFF800000> : vector<128xf32>
    %327 = vector.multi_reduction <maximumf>, %326, %cst_139 [1] : vector<128x128xf32> to vector<128xf32>
    %328 = vector.shape_cast %327 : vector<128xf32> to vector<128x1xf32>
    %329 = vector.broadcast %328 : vector<128x1xf32> to vector<128x128xf32>
    %330 = arith.subf %326, %329 : vector<128x128xf32>
    %331 = math.exp %330 : vector<128x128xf32>
    %cst_140 = arith.constant dense<0.000000e+00> : vector<128xf32>
    %332 = vector.multi_reduction <add>, %331, %cst_140 [1] : vector<128x128xf32> to vector<128xf32>
    %333 = vector.shape_cast %332 : vector<128xf32> to vector<128x1xf32>
    %334 = tpu.reciprocal %333 {approx = true} : vector<128x1xf32> -> vector<128x1xf32>
    %335 = vector.broadcast %334 : vector<128x1xf32> to vector<128x128xf32>
    %336 = arith.mulf %331, %335 : vector<128x128xf32>
    %337 = arith.truncf %336 : vector<128x128xf32> to vector<128x128xbf16>
    %cst_141 = arith.constant 0.000000e+00 : bf16
    %338 = vector.shape_cast %72 : vector<1x32xi1> to vector<1x32xi1>
    %339 = vector.broadcast %338 : vector<1x32xi1> to vector<128x32xi1>
    %340 = vector.broadcast %cst_141 : bf16 to vector<128x32xbf16>
    %341 = arith.select %339, %319, %340 : vector<128x32xi1>, vector<128x32xbf16>
    %cst_142 = arith.constant dense<0.000000e+00> : vector<128x32xf32>
    %342 = tpu.matmul %337, %341, %cst_142 {dimension_numbers = #tpu.dot_dimension_numbers<[1], [0], [0], [1], [0, 0, 1, 1], [], []>} : vector<128x128xbf16>, vector<128x32xbf16>, vector<128x32xf32> -> vector<128x32xf32>
    %cst_143 = arith.constant 0.000000e+00 : bf16
    %343 = vector.shape_cast %77 : vector<1x32xi1> to vector<1x32xi1>
    %344 = vector.broadcast %343 : vector<1x32xi1> to vector<128x32xi1>
    %345 = vector.broadcast %cst_143 : bf16 to vector<128x32xbf16>
    %346 = arith.select %344, %318, %345 : vector<128x32xi1>, vector<128x32xbf16>
    %cst_144 = arith.constant dense<0.000000e+00> : vector<128x128xf32>
    %347 = tpu.matmul %317, %346, %cst_144 {dimension_numbers = #tpu.dot_dimension_numbers<[1], [1], [0], [0], [0, 0, 1, 0], [], []>} : vector<128x32xbf16>, vector<128x32xbf16>, vector<128x128xf32> -> vector<128x128xf32>
    %cst_145 = arith.constant -1.000000e+30 : f32
    %348 = vector.broadcast %cst_145 : f32 to vector<128x128xf32>
    %349 = arith.select %49, %347, %348 : vector<128x128xi1>, vector<128x128xf32>
    %cst_146 = arith.constant dense<0xFF800000> : vector<128xf32>
    %350 = vector.multi_reduction <maximumf>, %349, %cst_146 [1] : vector<128x128xf32> to vector<128xf32>
    %351 = vector.shape_cast %350 : vector<128xf32> to vector<128x1xf32>
    %352 = vector.broadcast %351 : vector<128x1xf32> to vector<128x128xf32>
    %353 = arith.subf %349, %352 : vector<128x128xf32>
    %354 = math.exp %353 : vector<128x128xf32>
    %cst_147 = arith.constant dense<0.000000e+00> : vector<128xf32>
    %355 = vector.multi_reduction <add>, %354, %cst_147 [1] : vector<128x128xf32> to vector<128xf32>
    %356 = vector.shape_cast %355 : vector<128xf32> to vector<128x1xf32>
    %357 = tpu.reciprocal %356 {approx = true} : vector<128x1xf32> -> vector<128x1xf32>
    %358 = vector.broadcast %357 : vector<128x1xf32> to vector<128x128xf32>
    %359 = arith.mulf %354, %358 : vector<128x128xf32>
    %360 = arith.truncf %359 : vector<128x128xf32> to vector<128x128xbf16>
    %cst_148 = arith.constant 0.000000e+00 : bf16
    %361 = vector.shape_cast %77 : vector<1x32xi1> to vector<1x32xi1>
    %362 = vector.broadcast %361 : vector<1x32xi1> to vector<128x32xi1>
    %363 = vector.broadcast %cst_148 : bf16 to vector<128x32xbf16>
    %364 = arith.select %362, %319, %363 : vector<128x32xi1>, vector<128x32xbf16>
    %cst_149 = arith.constant dense<0.000000e+00> : vector<128x32xf32>
    %365 = tpu.matmul %360, %364, %cst_149 {dimension_numbers = #tpu.dot_dimension_numbers<[1], [0], [0], [1], [0, 0, 1, 1], [], []>} : vector<128x128xbf16>, vector<128x32xbf16>, vector<128x32xf32> -> vector<128x32xf32>
    %366 = arith.addf %342, %365 : vector<128x32xf32>
    %cst_150 = arith.constant 0.000000e+00 : bf16
    %367 = vector.shape_cast %82 : vector<1x32xi1> to vector<1x32xi1>
    %368 = vector.broadcast %367 : vector<1x32xi1> to vector<128x32xi1>
    %369 = vector.broadcast %cst_150 : bf16 to vector<128x32xbf16>
    %370 = arith.select %368, %318, %369 : vector<128x32xi1>, vector<128x32xbf16>
    %cst_151 = arith.constant dense<0.000000e+00> : vector<128x128xf32>
    %371 = tpu.matmul %317, %370, %cst_151 {dimension_numbers = #tpu.dot_dimension_numbers<[1], [1], [0], [0], [0, 0, 1, 0], [], []>} : vector<128x32xbf16>, vector<128x32xbf16>, vector<128x128xf32> -> vector<128x128xf32>
    %cst_152 = arith.constant -1.000000e+30 : f32
    %372 = vector.broadcast %cst_152 : f32 to vector<128x128xf32>
    %373 = arith.select %49, %371, %372 : vector<128x128xi1>, vector<128x128xf32>
    %cst_153 = arith.constant dense<0xFF800000> : vector<128xf32>
    %374 = vector.multi_reduction <maximumf>, %373, %cst_153 [1] : vector<128x128xf32> to vector<128xf32>
    %375 = vector.shape_cast %374 : vector<128xf32> to vector<128x1xf32>
    %376 = vector.broadcast %375 : vector<128x1xf32> to vector<128x128xf32>
    %377 = arith.subf %373, %376 : vector<128x128xf32>
    %378 = math.exp %377 : vector<128x128xf32>
    %cst_154 = arith.constant dense<0.000000e+00> : vector<128xf32>
    %379 = vector.multi_reduction <add>, %378, %cst_154 [1] : vector<128x128xf32> to vector<128xf32>
    %380 = vector.shape_cast %379 : vector<128xf32> to vector<128x1xf32>
    %381 = tpu.reciprocal %380 {approx = true} : vector<128x1xf32> -> vector<128x1xf32>
    %382 = vector.broadcast %381 : vector<128x1xf32> to vector<128x128xf32>
    %383 = arith.mulf %378, %382 : vector<128x128xf32>
    %384 = arith.truncf %383 : vector<128x128xf32> to vector<128x128xbf16>
    %cst_155 = arith.constant 0.000000e+00 : bf16
    %385 = vector.shape_cast %82 : vector<1x32xi1> to vector<1x32xi1>
    %386 = vector.broadcast %385 : vector<1x32xi1> to vector<128x32xi1>
    %387 = vector.broadcast %cst_155 : bf16 to vector<128x32xbf16>
    %388 = arith.select %386, %319, %387 : vector<128x32xi1>, vector<128x32xbf16>
    %cst_156 = arith.constant dense<0.000000e+00> : vector<128x32xf32>
    %389 = tpu.matmul %384, %388, %cst_156 {dimension_numbers = #tpu.dot_dimension_numbers<[1], [0], [0], [1], [0, 0, 1, 1], [], []>} : vector<128x128xbf16>, vector<128x32xbf16>, vector<128x32xf32> -> vector<128x32xf32>
    %390 = arith.addf %366, %389 : vector<128x32xf32>
    %cst_157 = arith.constant 0.000000e+00 : bf16
    %391 = vector.shape_cast %87 : vector<1x32xi1> to vector<1x32xi1>
    %392 = vector.broadcast %391 : vector<1x32xi1> to vector<128x32xi1>
    %393 = vector.broadcast %cst_157 : bf16 to vector<128x32xbf16>
    %394 = arith.select %392, %318, %393 : vector<128x32xi1>, vector<128x32xbf16>
    %cst_158 = arith.constant dense<0.000000e+00> : vector<128x128xf32>
    %395 = tpu.matmul %317, %394, %cst_158 {dimension_numbers = #tpu.dot_dimension_numbers<[1], [1], [0], [0], [0, 0, 1, 0], [], []>} : vector<128x32xbf16>, vector<128x32xbf16>, vector<128x128xf32> -> vector<128x128xf32>
    %cst_159 = arith.constant -1.000000e+30 : f32
    %396 = vector.broadcast %cst_159 : f32 to vector<128x128xf32>
    %397 = arith.select %49, %395, %396 : vector<128x128xi1>, vector<128x128xf32>
    %cst_160 = arith.constant dense<0xFF800000> : vector<128xf32>
    %398 = vector.multi_reduction <maximumf>, %397, %cst_160 [1] : vector<128x128xf32> to vector<128xf32>
    %399 = vector.shape_cast %398 : vector<128xf32> to vector<128x1xf32>
    %400 = vector.broadcast %399 : vector<128x1xf32> to vector<128x128xf32>
    %401 = arith.subf %397, %400 : vector<128x128xf32>
    %402 = math.exp %401 : vector<128x128xf32>
    %cst_161 = arith.constant dense<0.000000e+00> : vector<128xf32>
    %403 = vector.multi_reduction <add>, %402, %cst_161 [1] : vector<128x128xf32> to vector<128xf32>
    %404 = vector.shape_cast %403 : vector<128xf32> to vector<128x1xf32>
    %405 = tpu.reciprocal %404 {approx = true} : vector<128x1xf32> -> vector<128x1xf32>
    %406 = vector.broadcast %405 : vector<128x1xf32> to vector<128x128xf32>
    %407 = arith.mulf %402, %406 : vector<128x128xf32>
    %408 = arith.truncf %407 : vector<128x128xf32> to vector<128x128xbf16>
    %cst_162 = arith.constant 0.000000e+00 : bf16
    %409 = vector.shape_cast %87 : vector<1x32xi1> to vector<1x32xi1>
    %410 = vector.broadcast %409 : vector<1x32xi1> to vector<128x32xi1>
    %411 = vector.broadcast %cst_162 : bf16 to vector<128x32xbf16>
    %412 = arith.select %410, %319, %411 : vector<128x32xi1>, vector<128x32xbf16>
    %cst_163 = arith.constant dense<0.000000e+00> : vector<128x32xf32>
    %413 = tpu.matmul %408, %412, %cst_163 {dimension_numbers = #tpu.dot_dimension_numbers<[1], [0], [0], [1], [0, 0, 1, 1], [], []>} : vector<128x128xbf16>, vector<128x32xbf16>, vector<128x32xf32> -> vector<128x32xf32>
    %414 = arith.addf %390, %413 : vector<128x32xf32>
    %c1_164 = arith.constant 1 : index
    %c0_165 = arith.constant 0 : index
    %c0_166 = arith.constant 0 : index
    %415 = vector.load %arg10[%c1_164, %c0_165, %c0_166] : memref<2x32x32xbf16, #tpu.memory_space<vmem>>, vector<1x32x32xbf16>
    %416 = vector.shape_cast %415 : vector<1x32x32xbf16> to vector<32x32xbf16>
    %417 = arith.truncf %414 : vector<128x32xf32> to vector<128x32xbf16>
    %cst_167 = arith.constant dense<0.000000e+00> : vector<128x32xf32>
    %418 = tpu.matmul %417, %416, %cst_167 {dimension_numbers = #tpu.dot_dimension_numbers<[1], [1], [0], [0], [0, 0, 1, 0], [], []>} : vector<128x32xbf16>, vector<32x32xbf16>, vector<128x32xf32> -> vector<128x32xf32>
    %c1_168 = arith.constant 1 : index
    %c0_169 = arith.constant 0 : index
    %c0_170 = arith.constant 0 : index
    %419 = vector.load %arg11[%c1_168, %c0_169, %c0_170] : memref<2x1x32xf32, #tpu.memory_space<vmem>>, vector<1x1x32xf32>
    %420 = vector.shape_cast %419 : vector<1x1x32xf32> to vector<1x32xf32>
    %421 = vector.broadcast %420 : vector<1x32xf32> to vector<128x32xf32>
    %422 = arith.addf %418, %421 : vector<128x32xf32>
    %423 = arith.addf %294, %422 : vector<128x32xf32>
    %c1_171 = arith.constant 1 : index
    %c0_172 = arith.constant 0 : index
    %c0_173 = arith.constant 0 : index
    %424 = vector.load %arg12[%c1_171, %c0_172, %c0_173] : memref<2x1x32xf32, #tpu.memory_space<vmem>>, vector<1x1x32xf32>
    %425 = vector.shape_cast %424 : vector<1x1x32xf32> to vector<1x32xf32>
    %c1_174 = arith.constant 1 : index
    %c0_175 = arith.constant 0 : index
    %c0_176 = arith.constant 0 : index
    %426 = vector.load %arg13[%c1_174, %c0_175, %c0_176] : memref<2x1x32xf32, #tpu.memory_space<vmem>>, vector<1x1x32xf32>
    %427 = vector.shape_cast %426 : vector<1x1x32xf32> to vector<1x32xf32>
    %cst_177 = arith.constant dense<0.000000e+00> : vector<128xf32>
    %428 = vector.multi_reduction <add>, %423, %cst_177 [1] : vector<128x32xf32> to vector<128xf32>
    %429 = vector.shape_cast %428 : vector<128xf32> to vector<128x1xf32>
    %cst_178 = arith.constant 3.200000e+01 : f32
    %430 = vector.broadcast %cst_178 : f32 to vector<128x1xf32>
    %431 = arith.divf %429, %430 : vector<128x1xf32>
    %432 = vector.broadcast %431 : vector<128x1xf32> to vector<128x32xf32>
    %433 = arith.subf %423, %432 : vector<128x32xf32>
    %434 = arith.mulf %433, %433 : vector<128x32xf32>
    %cst_179 = arith.constant dense<0.000000e+00> : vector<128xf32>
    %435 = vector.multi_reduction <add>, %434, %cst_179 [1] : vector<128x32xf32> to vector<128xf32>
    %436 = vector.shape_cast %435 : vector<128xf32> to vector<128x1xf32>
    %cst_180 = arith.constant 3.200000e+01 : f32
    %437 = vector.broadcast %cst_180 : f32 to vector<128x1xf32>
    %438 = arith.divf %436, %437 : vector<128x1xf32>
    %cst_181 = arith.constant 9.99999974E-6 : f32
    %439 = vector.broadcast %cst_181 : f32 to vector<128x1xf32>
    %440 = arith.addf %438, %439 : vector<128x1xf32>
    %441 = math.rsqrt %440 : vector<128x1xf32>
    %442 = vector.broadcast %441 : vector<128x1xf32> to vector<128x32xf32>
    %443 = arith.mulf %433, %442 : vector<128x32xf32>
    %444 = vector.broadcast %425 : vector<1x32xf32> to vector<128x32xf32>
    %445 = arith.mulf %443, %444 : vector<128x32xf32>
    %446 = vector.broadcast %427 : vector<1x32xf32> to vector<128x32xf32>
    %447 = arith.addf %445, %446 : vector<128x32xf32>
    %c1_182 = arith.constant 1 : index
    %c0_183 = arith.constant 0 : index
    %c0_184 = arith.constant 0 : index
    %448 = vector.load %arg14[%c1_182, %c0_183, %c0_184] : memref<2x32x32xbf16, #tpu.memory_space<vmem>>, vector<1x32x32xbf16>
    %449 = vector.shape_cast %448 : vector<1x32x32xbf16> to vector<32x32xbf16>
    %450 = arith.truncf %447 : vector<128x32xf32> to vector<128x32xbf16>
    %cst_185 = arith.constant dense<0.000000e+00> : vector<128x32xf32>
    %451 = tpu.matmul %450, %449, %cst_185 {dimension_numbers = #tpu.dot_dimension_numbers<[1], [1], [0], [0], [0, 0, 1, 0], [], []>} : vector<128x32xbf16>, vector<32x32xbf16>, vector<128x32xf32> -> vector<128x32xf32>
    %c1_186 = arith.constant 1 : index
    %c0_187 = arith.constant 0 : index
    %c0_188 = arith.constant 0 : index
    %452 = vector.load %arg15[%c1_186, %c0_187, %c0_188] : memref<2x1x32xf32, #tpu.memory_space<vmem>>, vector<1x1x32xf32>
    %453 = vector.shape_cast %452 : vector<1x1x32xf32> to vector<1x32xf32>
    %454 = vector.broadcast %453 : vector<1x32xf32> to vector<128x32xf32>
    %455 = arith.addf %451, %454 : vector<128x32xf32>
    %cst_189 = arith.constant 5.000000e-01 : f32
    %456 = vector.broadcast %cst_189 : f32 to vector<128x32xf32>
    %457 = arith.mulf %456, %455 : vector<128x32xf32>
    %cst_190 = arith.constant 4.471500e-02 : f32
    %458 = vector.broadcast %cst_190 : f32 to vector<128x32xf32>
    %459 = arith.mulf %458, %455 : vector<128x32xf32>
    %460 = arith.mulf %459, %455 : vector<128x32xf32>
    %461 = arith.mulf %460, %455 : vector<128x32xf32>
    %462 = arith.addf %455, %461 : vector<128x32xf32>
    %cst_191 = arith.constant 0.797884583 : f32
    %463 = vector.broadcast %cst_191 : f32 to vector<128x32xf32>
    %464 = arith.mulf %463, %462 : vector<128x32xf32>
    %465 = math.tanh %464 : vector<128x32xf32>
    %cst_192 = arith.constant 1.000000e+00 : f32
    %466 = vector.broadcast %cst_192 : f32 to vector<128x32xf32>
    %467 = arith.addf %466, %465 : vector<128x32xf32>
    %468 = arith.mulf %457, %467 : vector<128x32xf32>
    %c1_193 = arith.constant 1 : index
    %c0_194 = arith.constant 0 : index
    %c0_195 = arith.constant 0 : index
    %469 = vector.load %arg16[%c1_193, %c0_194, %c0_195] : memref<2x32x32xbf16, #tpu.memory_space<vmem>>, vector<1x32x32xbf16>
    %470 = vector.shape_cast %469 : vector<1x32x32xbf16> to vector<32x32xbf16>
    %471 = arith.truncf %468 : vector<128x32xf32> to vector<128x32xbf16>
    %cst_196 = arith.constant dense<0.000000e+00> : vector<128x32xf32>
    %472 = tpu.matmul %471, %470, %cst_196 {dimension_numbers = #tpu.dot_dimension_numbers<[1], [1], [0], [0], [0, 0, 1, 0], [], []>} : vector<128x32xbf16>, vector<32x32xbf16>, vector<128x32xf32> -> vector<128x32xf32>
    %c1_197 = arith.constant 1 : index
    %c0_198 = arith.constant 0 : index
    %c0_199 = arith.constant 0 : index
    %473 = vector.load %arg17[%c1_197, %c0_198, %c0_199] : memref<2x1x32xf32, #tpu.memory_space<vmem>>, vector<1x1x32xf32>
    %474 = vector.shape_cast %473 : vector<1x1x32xf32> to vector<1x32xf32>
    %475 = vector.broadcast %474 : vector<1x32xf32> to vector<128x32xf32>
    %476 = arith.addf %472, %475 : vector<128x32xf32>
    %477 = arith.addf %447, %476 : vector<128x32xf32>
    %c1_200 = arith.constant 1 : index
    %c0_201 = arith.constant 0 : index
    %c0_202 = arith.constant 0 : index
    %478 = vector.load %arg18[%c1_200, %c0_201, %c0_202] : memref<2x1x32xf32, #tpu.memory_space<vmem>>, vector<1x1x32xf32>
    %479 = vector.shape_cast %478 : vector<1x1x32xf32> to vector<1x32xf32>
    %c1_203 = arith.constant 1 : index
    %c0_204 = arith.constant 0 : index
    %c0_205 = arith.constant 0 : index
    %480 = vector.load %arg19[%c1_203, %c0_204, %c0_205] : memref<2x1x32xf32, #tpu.memory_space<vmem>>, vector<1x1x32xf32>
    %481 = vector.shape_cast %480 : vector<1x1x32xf32> to vector<1x32xf32>
    %cst_206 = arith.constant dense<0.000000e+00> : vector<128xf32>
    %482 = vector.multi_reduction <add>, %477, %cst_206 [1] : vector<128x32xf32> to vector<128xf32>
    %483 = vector.shape_cast %482 : vector<128xf32> to vector<128x1xf32>
    %cst_207 = arith.constant 3.200000e+01 : f32
    %484 = vector.broadcast %cst_207 : f32 to vector<128x1xf32>
    %485 = arith.divf %483, %484 : vector<128x1xf32>
    %486 = vector.broadcast %485 : vector<128x1xf32> to vector<128x32xf32>
    %487 = arith.subf %477, %486 : vector<128x32xf32>
    %488 = arith.mulf %487, %487 : vector<128x32xf32>
    %cst_208 = arith.constant dense<0.000000e+00> : vector<128xf32>
    %489 = vector.multi_reduction <add>, %488, %cst_208 [1] : vector<128x32xf32> to vector<128xf32>
    %490 = vector.shape_cast %489 : vector<128xf32> to vector<128x1xf32>
    %cst_209 = arith.constant 3.200000e+01 : f32
    %491 = vector.broadcast %cst_209 : f32 to vector<128x1xf32>
    %492 = arith.divf %490, %491 : vector<128x1xf32>
    %cst_210 = arith.constant 9.99999974E-6 : f32
    %493 = vector.broadcast %cst_210 : f32 to vector<128x1xf32>
    %494 = arith.addf %492, %493 : vector<128x1xf32>
    %495 = math.rsqrt %494 : vector<128x1xf32>
    %496 = vector.broadcast %495 : vector<128x1xf32> to vector<128x32xf32>
    %497 = arith.mulf %487, %496 : vector<128x32xf32>
    %498 = vector.broadcast %479 : vector<1x32xf32> to vector<128x32xf32>
    %499 = arith.mulf %497, %498 : vector<128x32xf32>
    %500 = vector.broadcast %481 : vector<1x32xf32> to vector<128x32xf32>
    %501 = arith.addf %499, %500 : vector<128x32xf32>
    %c0_211 = arith.constant 0 : index
    %c0_212 = arith.constant 0 : index
    %502 = vector.load %arg20[%c0_211, %c0_212] : memref<1x32xf32, #tpu.memory_space<vmem>>, vector<1x32xf32>
    %cst_213 = arith.constant dense<0.000000e+00> : vector<1x128xf32>
    %503 = tpu.matmul %502, %501, %cst_213 {dimension_numbers = #tpu.dot_dimension_numbers<[1], [1], [0], [0], [0, 0, 1, 0], [], []>} : vector<1x32xf32>, vector<128x32xf32>, vector<1x128xf32> -> vector<1x128xf32>
    %c0_214 = arith.constant 0 : index
    %c0_215 = arith.constant 0 : index
    %504 = vector.load %arg21[%c0_214, %c0_215] : memref<1x1xf32, #tpu.memory_space<vmem>>, vector<1x1xf32>
    %505 = vector.broadcast %504 : vector<1x1xf32> to vector<1x128xf32>
    %506 = arith.addf %503, %505 : vector<1x128xf32>
    %cst_216 = arith.constant 5.000000e-01 : f32
    %507 = vector.broadcast %cst_216 : f32 to vector<16x128xf32>
    %508 = arith.cmpf ogt, %38, %507 : vector<16x128xf32>
    %509 = vector.broadcast %44 : vector<1x128xi1> to vector<16x128xi1>
    %510 = arith.andi %508, %509 : vector<16x128xi1>
    %cst_217 = arith.constant -1.000000e+30 : f32
    %511 = vector.shape_cast %506 : vector<1x128xf32> to vector<1x128xf32>
    %512 = vector.broadcast %511 : vector<1x128xf32> to vector<16x128xf32>
    %513 = vector.broadcast %cst_217 : f32 to vector<16x128xf32>
    %514 = arith.select %510, %512, %513 : vector<16x128xi1>, vector<16x128xf32>
    %cst_218 = arith.constant dense<0xFF800000> : vector<16xf32>
    %515 = vector.multi_reduction <maximumf>, %514, %cst_218 [1] : vector<16x128xf32> to vector<16xf32>
    %516 = vector.shape_cast %515 : vector<16xf32> to vector<16x1xf32>
    %517 = vector.broadcast %516 : vector<16x1xf32> to vector<16x128xf32>
    %518 = arith.subf %514, %517 : vector<16x128xf32>
    %519 = math.exp %518 : vector<16x128xf32>
    %cst_219 = arith.constant dense<0.000000e+00> : vector<16xf32>
    %520 = vector.multi_reduction <add>, %519, %cst_219 [1] : vector<16x128xf32> to vector<16xf32>
    %521 = vector.shape_cast %520 : vector<16xf32> to vector<16x1xf32>
    %522 = vector.broadcast %521 : vector<16x1xf32> to vector<16x128xf32>
    %523 = arith.divf %519, %522 : vector<16x128xf32>
    %cst_220 = arith.constant dense<0.000000e+00> : vector<16x32xf32>
    %524 = tpu.matmul %523, %501, %cst_220 {dimension_numbers = #tpu.dot_dimension_numbers<[1], [0], [0], [1], [0, 0, 1, 1], [], []>} : vector<16x128xf32>, vector<128x32xf32>, vector<16x32xf32> -> vector<16x32xf32>
    %c0_221 = arith.constant 0 : index
    %c0_222 = arith.constant 0 : index
    %525 = vector.load %arg22[%c0_221, %c0_222] : memref<2x32xf32, #tpu.memory_space<vmem>>, vector<2x32xf32>
    %cst_223 = arith.constant dense<0.000000e+00> : vector<16x2xf32>
    %526 = tpu.matmul %524, %525, %cst_223 {dimension_numbers = #tpu.dot_dimension_numbers<[1], [1], [0], [0], [0, 0, 1, 0], [], []>} : vector<16x32xf32>, vector<2x32xf32>, vector<16x2xf32> -> vector<16x2xf32>
    %c0_224 = arith.constant 0 : index
    %c0_225 = arith.constant 0 : index
    %527 = vector.load %arg23[%c0_224, %c0_225] : memref<1x2xf32, #tpu.memory_space<vmem>>, vector<1x2xf32>
    %528 = vector.broadcast %527 : vector<1x2xf32> to vector<16x2xf32>
    %529 = arith.addf %526, %528 : vector<16x2xf32>
    %530 = tpu.concatenate %529, %523 in 1 : vector<16x2xf32>, vector<16x128xf32> -> vector<16x130xf32>
    %c0_226 = arith.constant 0 : index
    %c0_227 = arith.constant 0 : index
    %531 = vector.load %arg24[%c0_226, %c0_227] : memref<16x130xf32, #tpu.memory_space<vmem>>, vector<16x130xf32>
    tpu.vector_store %arg24[%c0_226, %c0_227], %530 {strides = array<i32>} : memref<16x130xf32, #tpu.memory_space<vmem>>, vector<16x130xf32>,
    return
  }
  func.func @transform_0(%arg0: i32) -> (i32, i32, i32) {
    %c0_i32 = arith.constant 0 : i32
    %c0_i32_0 = arith.constant 0 : i32
    %c0_i32_1 = arith.constant 0 : i32
    return %arg0, %c0_i32, %c0_i32_0 : i32, i32, i32
  }
  func.func @transform_1(%arg0: i32) -> (i32, i32) {
    %c0_i32 = arith.constant 0 : i32
    %c0_i32_0 = arith.constant 0 : i32
    return %arg0, %c0_i32 : i32, i32
  }
  func.func @transform_2(%arg0: i32) -> (i32, i32) {
    %c0_i32 = arith.constant 0 : i32
    %c0_i32_0 = arith.constant 0 : i32
    %c0_i32_1 = arith.constant 0 : i32
    return %c0_i32, %c0_i32_0 : i32, i32
  }
  func.func @transform_3(%arg0: i32) -> (i32, i32, i32) {
    %c0_i32 = arith.constant 0 : i32
    %c0_i32_0 = arith.constant 0 : i32
    %c0_i32_1 = arith.constant 0 : i32
    %c0_i32_2 = arith.constant 0 : i32
    return %c0_i32, %c0_i32_0, %c0_i32_1 : i32, i32, i32
  }
  func.func @transform_4(%arg0: i32) -> (i32, i32, i32) {
    %c0_i32 = arith.constant 0 : i32
    %c0_i32_0 = arith.constant 0 : i32
    %c0_i32_1 = arith.constant 0 : i32
    %c0_i32_2 = arith.constant 0 : i32
    return %c0_i32, %c0_i32_0, %c0_i32_1 : i32, i32, i32
  }
  func.func @transform_5(%arg0: i32) -> (i32, i32, i32) {
    %c0_i32 = arith.constant 0 : i32
    %c0_i32_0 = arith.constant 0 : i32
    %c0_i32_1 = arith.constant 0 : i32
    %c0_i32_2 = arith.constant 0 : i32
    return %c0_i32, %c0_i32_0, %c0_i32_1 : i32, i32, i32
  }
  func.func @transform_6(%arg0: i32) -> (i32, i32, i32) {
    %c0_i32 = arith.constant 0 : i32
    %c0_i32_0 = arith.constant 0 : i32
    %c0_i32_1 = arith.constant 0 : i32
    %c0_i32_2 = arith.constant 0 : i32
    return %c0_i32, %c0_i32_0, %c0_i32_1 : i32, i32, i32
  }
  func.func @transform_7(%arg0: i32) -> (i32, i32, i32) {
    %c0_i32 = arith.constant 0 : i32
    %c0_i32_0 = arith.constant 0 : i32
    %c0_i32_1 = arith.constant 0 : i32
    %c0_i32_2 = arith.constant 0 : i32
    return %c0_i32, %c0_i32_0, %c0_i32_1 : i32, i32, i32
  }
  func.func @transform_8(%arg0: i32) -> (i32, i32, i32) {
    %c0_i32 = arith.constant 0 : i32
    %c0_i32_0 = arith.constant 0 : i32
    %c0_i32_1 = arith.constant 0 : i32
    %c0_i32_2 = arith.constant 0 : i32
    return %c0_i32, %c0_i32_0, %c0_i32_1 : i32, i32, i32
  }
  func.func @transform_9(%arg0: i32) -> (i32, i32, i32) {
    %c0_i32 = arith.constant 0 : i32
    %c0_i32_0 = arith.constant 0 : i32
    %c0_i32_1 = arith.constant 0 : i32
    %c0_i32_2 = arith.constant 0 : i32
    return %c0_i32, %c0_i32_0, %c0_i32_1 : i32, i32, i32
  }
  func.func @transform_10(%arg0: i32) -> (i32, i32, i32) {
    %c0_i32 = arith.constant 0 : i32
    %c0_i32_0 = arith.constant 0 : i32
    %c0_i32_1 = arith.constant 0 : i32
    %c0_i32_2 = arith.constant 0 : i32
    return %c0_i32, %c0_i32_0, %c0_i32_1 : i32, i32, i32
  }
  func.func @transform_11(%arg0: i32) -> (i32, i32, i32) {
    %c0_i32 = arith.constant 0 : i32
    %c0_i32_0 = arith.constant 0 : i32
    %c0_i32_1 = arith.constant 0 : i32
    %c0_i32_2 = arith.constant 0 : i32
    return %c0_i32, %c0_i32_0, %c0_i32_1 : i32, i32, i32
  }
  func.func @transform_12(%arg0: i32) -> (i32, i32, i32) {
    %c0_i32 = arith.constant 0 : i32
    %c0_i32_0 = arith.constant 0 : i32
    %c0_i32_1 = arith.constant 0 : i32
    %c0_i32_2 = arith.constant 0 : i32
    return %c0_i32, %c0_i32_0, %c0_i32_1 : i32, i32, i32
  }
  func.func @transform_13(%arg0: i32) -> (i32, i32, i32) {
    %c0_i32 = arith.constant 0 : i32
    %c0_i32_0 = arith.constant 0 : i32
    %c0_i32_1 = arith.constant 0 : i32
    %c0_i32_2 = arith.constant 0 : i32
    return %c0_i32, %c0_i32_0, %c0_i32_1 : i32, i32, i32
  }
  func.func @transform_14(%arg0: i32) -> (i32, i32, i32) {
    %c0_i32 = arith.constant 0 : i32
    %c0_i32_0 = arith.constant 0 : i32
    %c0_i32_1 = arith.constant 0 : i32
    %c0_i32_2 = arith.constant 0 : i32
    return %c0_i32, %c0_i32_0, %c0_i32_1 : i32, i32, i32
  }
  func.func @transform_15(%arg0: i32) -> (i32, i32, i32) {
    %c0_i32 = arith.constant 0 : i32
    %c0_i32_0 = arith.constant 0 : i32
    %c0_i32_1 = arith.constant 0 : i32
    %c0_i32_2 = arith.constant 0 : i32
    return %c0_i32, %c0_i32_0, %c0_i32_1 : i32, i32, i32
  }
  func.func @transform_16(%arg0: i32) -> (i32, i32, i32) {
    %c0_i32 = arith.constant 0 : i32
    %c0_i32_0 = arith.constant 0 : i32
    %c0_i32_1 = arith.constant 0 : i32
    %c0_i32_2 = arith.constant 0 : i32
    return %c0_i32, %c0_i32_0, %c0_i32_1 : i32, i32, i32
  }
  func.func @transform_17(%arg0: i32) -> (i32, i32, i32) {
    %c0_i32 = arith.constant 0 : i32
    %c0_i32_0 = arith.constant 0 : i32
    %c0_i32_1 = arith.constant 0 : i32
    %c0_i32_2 = arith.constant 0 : i32
    return %c0_i32, %c0_i32_0, %c0_i32_1 : i32, i32, i32
  }
  func.func @transform_18(%arg0: i32) -> (i32, i32, i32) {
    %c0_i32 = arith.constant 0 : i32
    %c0_i32_0 = arith.constant 0 : i32
    %c0_i32_1 = arith.constant 0 : i32
    %c0_i32_2 = arith.constant 0 : i32
    return %c0_i32, %c0_i32_0, %c0_i32_1 : i32, i32, i32
  }
  func.func @transform_19(%arg0: i32) -> (i32, i32) {
    %c0_i32 = arith.constant 0 : i32
    %c0_i32_0 = arith.constant 0 : i32
    %c0_i32_1 = arith.constant 0 : i32
    return %c0_i32, %c0_i32_0 : i32, i32
  }
  func.func @transform_20(%arg0: i32) -> (i32, i32) {
    %c0_i32 = arith.constant 0 : i32
    %c0_i32_0 = arith.constant 0 : i32
    %c0_i32_1 = arith.constant 0 : i32
    return %c0_i32, %c0_i32_0 : i32, i32
  }
  func.func @transform_21(%arg0: i32) -> (i32, i32) {
    %c0_i32 = arith.constant 0 : i32
    %c0_i32_0 = arith.constant 0 : i32
    %c0_i32_1 = arith.constant 0 : i32
    return %c0_i32, %c0_i32_0 : i32, i32
  }
  func.func @transform_22(%arg0: i32) -> (i32, i32) {
    %c0_i32 = arith.constant 0 : i32
    %c0_i32_0 = arith.constant 0 : i32
    %c0_i32_1 = arith.constant 0 : i32
    return %c0_i32, %c0_i32_0 : i32, i32
  }
  func.func @transform_23(%arg0: i32) -> (i32, i32) {
    %c0_i32 = arith.constant 0 : i32
    %c0_i32_0 = arith.constant 0 : i32
    return %arg0, %c0_i32 : i32, i32
  }
}

</mosaic_0001>

<llo_original>
// kernel: tpu_custom_call.1
$region0: #{tpu_custom_call.1}
  #allocation0 [shape = 'u32[]', space=smem, size = 0x4, offset = 0x4, fixed_abs, tag = 'smem constant byte address 0x4 - core index']
  #allocation1 [shape = 'u32[144,128]{1,0:T(1,128)}', space=vmem, size = 0x12000, scoped, tag = 'internal scratch']
  #allocation2 [shape = 'f32[1,1]{1,0:T(1,128)S(1)}', space=vmem, size = 0x200, scoped, tag = 'scoped memory for tpu_custom_call.1']
  %s0 = inlined_call_operand.vmem [shape: f32[2,1,16], index: 0, kind: input, shape index: {}]
  %s1 = inlined_call_operand.vmem [shape: f32[256,32], index: 1, kind: input, shape index: {}]
  %s2 = inlined_call_operand.vmem [shape: f32[8,32], index: 2, kind: input, shape index: {}]
  %s3 = inlined_call_operand.vmem [shape: bf16[2,32,32], index: 3, kind: input, shape index: {}]
  %s4 = inlined_call_operand.vmem [shape: f32[2,1,32], index: 4, kind: input, shape index: {}]
  %s5 = inlined_call_operand.vmem [shape: bf16[2,32,32], index: 5, kind: input, shape index: {}]
  %s6 = inlined_call_operand.vmem [shape: f32[2,1,32], index: 6, kind: input, shape index: {}]
  %s7 = inlined_call_operand.vmem [shape: bf16[2,32,32], index: 7, kind: input, shape index: {}]
  %s8 = inlined_call_operand.vmem [shape: f32[2,1,32], index: 8, kind: input, shape index: {}]
  %s9 = inlined_call_operand.vmem [shape: bf16[2,32,32], index: 9, kind: input, shape index: {}]
  %s10 = inlined_call_operand.vmem [shape: f32[2,1,32], index: 10, kind: input, shape index: {}]
  %s11 = inlined_call_operand.vmem [shape: f32[2,1,32], index: 11, kind: input, shape index: {}]
  %s12 = inlined_call_operand.vmem [shape: f32[2,1,32], index: 12, kind: input, shape index: {}]
  %s13 = inlined_call_operand.vmem [shape: bf16[2,32,32], index: 13, kind: input, shape index: {}]
  %s14 = inlined_call_operand.vmem [shape: f32[2,1,32], index: 14, kind: input, shape index: {}]
  %s15 = inlined_call_operand.vmem [shape: bf16[2,32,32], index: 15, kind: input, shape index: {}]
  %s16 = inlined_call_operand.vmem [shape: f32[2,1,32], index: 16, kind: input, shape index: {}]
  %s17 = inlined_call_operand.vmem [shape: f32[2,1,32], index: 17, kind: input, shape index: {}]
  %s18 = inlined_call_operand.vmem [shape: f32[2,1,32], index: 18, kind: input, shape index: {}]
  %s19 = inlined_call_operand.vmem [shape: f32[1,32], index: 19, kind: input, shape index: {}]
  %s20 = inlined_call_operand.<no memory space> [shape: f32[1,1], index: 20, kind: input, shape index: {}]
  %s21 = inlined_call_operand.vmem [shape: f32[2,32], index: 21, kind: input, shape index: {}]
  %s22 = inlined_call_operand.vmem [shape: f32[1,2], index: 22, kind: input, shape index: {}]
  %s23 = inlined_call_operand.hbm [shape: f32[32,130], index: 23, kind: output, shape index: {}]
  %s24 = sld [smem:[#allocation0]]
  $region125: #{tpu_custom_call.1} parent=0
    _
  %s26 = ssub.s32 1, %s24
  %s27 = scalar_select 0, %s26, %s24
  %v28 = vstv %s20
  %29 = vst [vmem:[#allocation2] sm:$0x1] %v28
  $region1: #{tpu_custom_call.1} parent=0
    #allocation3 [shape = 'u8[32768]{0}', space=vmem, size = 0x8000, scoped, tag = 'output window, operand 0']
    #allocation4 [shape = 's32[2]{0}', space=sflag, size = 0x8, scoped, tag = 'scoped memory for tpu_custom_call.1']
    %30 = vsyncpa [#allocation4], 0
    %s31 = scalar_lea.sflag [#allocation4], 1
    %32 = vsyncpa %s31, 0
    loop: start=0, step=1, limit=4
    $region2: #{tpu_custom_call.1} parent=1 // loop_pre_header
      _
    $region3: #{tpu_custom_call.1} parent=1 // loop_header
      %s34 = sphi 0, %s38
      %p35 = scmp.ge.s32.totalorder %s34, 4
      %s44 = sphi 0, %s46
      %s47 = sphi 0, %s44
      %s48 = sphi 0, %s47
      %s64 = sphi 0, %s48
      %s70 = sphi 0, %s72
      %s73 = sphi 0, %s70
      %s74 = sphi 0, %s73
      %s90 = sphi 0, %s74
      %s94 = sphi 0, %s94
      %s96 = sphi 0, %s94
      %s97 = sphi 0, %s96
      %s111 = sphi 0, %s97
      %s115 = sphi 0, %s115
      %s117 = sphi 0, %s115
      %s118 = sphi 0, %s117
      %s132 = sphi 0, %s118
      %s136 = sphi 0, %s136
      %s138 = sphi 0, %s136
      %s139 = sphi 0, %s138
      %s153 = sphi 0, %s139
      %s157 = sphi 0, %s157
      %s159 = sphi 0, %s157
      %s160 = sphi 0, %s159
      %s174 = sphi 0, %s160
      %s178 = sphi 0, %s178
      %s180 = sphi 0, %s178
      %s181 = sphi 0, %s180
      %s195 = sphi 0, %s181
      %s199 = sphi 0, %s199
      %s201 = sphi 0, %s199
      %s202 = sphi 0, %s201
      %s216 = sphi 0, %s202
      %s220 = sphi 0, %s220
      %s222 = sphi 0, %s220
      %s223 = sphi 0, %s222
      %s237 = sphi 0, %s223
      %s241 = sphi 0, %s241
      %s243 = sphi 0, %s241
      %s244 = sphi 0, %s243
      %s258 = sphi 0, %s244
      %s262 = sphi 0, %s262
      %s264 = sphi 0, %s262
      %s265 = sphi 0, %s264
      %s279 = sphi 0, %s265
      %s283 = sphi 0, %s283
      %s285 = sphi 0, %s283
      %s286 = sphi 0, %s285
      %s300 = sphi 0, %s286
      %s304 = sphi 0, %s304
      %s306 = sphi 0, %s304
      %s307 = sphi 0, %s306
      %s321 = sphi 0, %s307
      %s325 = sphi 0, %s325
      %s327 = sphi 0, %s325
      %s328 = sphi 0, %s327
      %s342 = sphi 0, %s328
      %s346 = sphi 0, %s346
      %s348 = sphi 0, %s346
      %s349 = sphi 0, %s348
      %s363 = sphi 0, %s349
      %s367 = sphi 0, %s367
      %s369 = sphi 0, %s367
      %s370 = sphi 0, %s369
      %s384 = sphi 0, %s370
      %s388 = sphi 0, %s388
      %s390 = sphi 0, %s388
      %s391 = sphi 0, %s390
      %s405 = sphi 0, %s391
      %s409 = sphi 0, %s409
      %s411 = sphi 0, %s409
      %s412 = sphi 0, %s411
      %s426 = sphi 0, %s412
      %s430 = sphi 0, %s430
      %s432 = sphi 0, %s430
      %s433 = sphi 0, %s432
      %s447 = sphi 0, %s433
      %s451 = sphi 0, %s451
      %s453 = sphi 0, %s451
      %s454 = sphi 0, %s453
      %s468 = sphi 0, %s454
      %s472 = sphi 0, %s472
      %s474 = sphi 0, %s472
      %s475 = sphi 0, %s474
      %s489 = sphi 0, %s475
      %s493 = sphi 0, %s493
      %s495 = sphi 0, %s493
      %s496 = sphi 0, %s495
      %s510 = sphi 0, %s496
      %s514 = sphi 0, %s514
      %s516 = sphi 0, %s514
      %s517 = sphi 0, %s516
      %s531 = sphi 0, %s517
      %s537 = sphi 0, %s539
      %s540 = sphi 0, %s537
      %s541 = sphi 0, %s540
      %s557 = sphi 0, %s541
    $region4: #{tpu_custom_call.1} parent=1 // loop_header_branch
      %37 = sbr.rel (%p35) target = $region8
    $region5: #{tpu_custom_call.1} parent=1 // loop_body
      %s39 = ssub.s32 %s34, 1
      %s40 = ssub.s32 %s34, 2
      %s41 = sadd.s32 %s34, 1
      %s42 = ssub.s32 %s34, %s41
      %p43 = scmp.eq.s32.totalorder %s42, 0
      %s45 = sadd.s32 %s44, 1
      %s46 = scalar_select %p43, %s44, %s45
      %p49 = pneg %p43
      %p50 = scmp.eq.s32.totalorder %s34, 1
      %p51 = por %p49, %p50
      %p52 = scmp.ne.s32.totalorder %s44, %s47
      %p53 = scmp.eq.s32.totalorder %s34, 0
      %p54 = por %p52, %p53
      %p55 = scmp.ne.s32.totalorder %s44, %s47
      %p56 = scmp.eq.s32.totalorder %s39, 1
      %p57 = por %p55, %p56
      %p58 = scmp.ne.s32.totalorder %s47, %s48
      %p59 = scmp.eq.s32.totalorder %s39, 0
      %p60 = por %p58, %p59
      %p61 = scmp.ne.s32.totalorder %s47, %s48
      %p62 = scmp.eq.s32.totalorder %s40, 1
      %p63 = por %p61, %p62
      %p65 = scmp.ne.s32.totalorder %s48, %s64
      %p66 = scmp.eq.s32.totalorder %s40, 0
      %p67 = por %p65, %p66
      %s68 = ssub.s32 %s34, %s41
      %p69 = scmp.eq.s32.totalorder %s68, 0
      %s71 = sadd.s32 %s70, 1
      %s72 = scalar_select %p69, %s70, %s71
      %p75 = pneg %p69
      %p76 = scmp.eq.s32.totalorder %s34, 1
      %p77 = por %p75, %p76
      %p78 = scmp.ne.s32.totalorder %s70, %s73
      %p79 = scmp.eq.s32.totalorder %s34, 0
      %p80 = por %p78, %p79
      %p81 = scmp.ne.s32.totalorder %s70, %s73
      %p82 = scmp.eq.s32.totalorder %s39, 1
      %p83 = por %p81, %p82
      %p84 = scmp.ne.s32.totalorder %s73, %s74
      %p85 = scmp.eq.s32.totalorder %s39, 0
      %p86 = por %p84, %p85
      %p87 = scmp.ne.s32.totalorder %s73, %s74
      %p88 = scmp.eq.s32.totalorder %s40, 1
      %p89 = por %p87, %p88
      %p91 = scmp.ne.s32.totalorder %s74, %s90
      %p92 = scmp.eq.s32.totalorder %s40, 0
      %p93 = por %p91, %p92
      %s95 = sadd.s32 %s94, 1
      %p98 = scmp.eq.s32.totalorder %s34, 1
      %p99 = scmp.ne.s32.totalorder %s94, %s96
      %p100 = scmp.eq.s32.totalorder %s34, 0
      %p101 = por %p99, %p100
      %p102 = scmp.ne.s32.totalorder %s94, %s96
      %p103 = scmp.eq.s32.totalorder %s39, 1
      %p104 = por %p102, %p103
      %p105 = scmp.ne.s32.totalorder %s96, %s97
      %p106 = scmp.eq.s32.totalorder %s39, 0
      %p107 = por %p105, %p106
      %p108 = scmp.ne.s32.totalorder %s96, %s97
      %p109 = scmp.eq.s32.totalorder %s40, 1
      %p110 = por %p108, %p109
      %p112 = scmp.ne.s32.totalorder %s97, %s111
      %p113 = scmp.eq.s32.totalorder %s40, 0
      %p114 = por %p112, %p113
      %s116 = sadd.s32 %s115, 1
      %p119 = scmp.eq.s32.totalorder %s34, 1
      %p120 = scmp.ne.s32.totalorder %s115, %s117
      %p121 = scmp.eq.s32.totalorder %s34, 0
      %p122 = por %p120, %p121
      %p123 = scmp.ne.s32.totalorder %s115, %s117
      %p124 = scmp.eq.s32.totalorder %s39, 1
      %p125 = por %p123, %p124
      %p126 = scmp.ne.s32.totalorder %s117, %s118
      %p127 = scmp.eq.s32.totalorder %s39, 0
      %p128 = por %p126, %p127
      %p129 = scmp.ne.s32.totalorder %s117, %s118
      %p130 = scmp.eq.s32.totalorder %s40, 1
      %p131 = por %p129, %p130
      %p133 = scmp.ne.s32.totalorder %s118, %s132
      %p134 = scmp.eq.s32.totalorder %s40, 0
      %p135 = por %p133, %p134
      %s137 = sadd.s32 %s136, 1
      %p140 = scmp.eq.s32.totalorder %s34, 1
      %p141 = scmp.ne.s32.totalorder %s136, %s138
      %p142 = scmp.eq.s32.totalorder %s34, 0
      %p143 = por %p141, %p142
      %p144 = scmp.ne.s32.totalorder %s136, %s138
      %p145 = scmp.eq.s32.totalorder %s39, 1
      %p146 = por %p144, %p145
      %p147 = scmp.ne.s32.totalorder %s138, %s139
      %p148 = scmp.eq.s32.totalorder %s39, 0
      %p149 = por %p147, %p148
      %p150 = scmp.ne.s32.totalorder %s138, %s139
      %p151 = scmp.eq.s32.totalorder %s40, 1
      %p152 = por %p150, %p151
      %p154 = scmp.ne.s32.totalorder %s139, %s153
      %p155 = scmp.eq.s32.totalorder %s40, 0
      %p156 = por %p154, %p155
      %s158 = sadd.s32 %s157, 1
      %p161 = scmp.eq.s32.totalorder %s34, 1
      %p162 = scmp.ne.s32.totalorder %s157, %s159
      %p163 = scmp.eq.s32.totalorder %s34, 0
      %p164 = por %p162, %p163
      %p165 = scmp.ne.s32.totalorder %s157, %s159
      %p166 = scmp.eq.s32.totalorder %s39, 1
      %p167 = por %p165, %p166
      %p168 = scmp.ne.s32.totalorder %s159, %s160
      %p169 = scmp.eq.s32.totalorder %s39, 0
      %p170 = por %p168, %p169
      %p171 = scmp.ne.s32.totalorder %s159, %s160
      %p172 = scmp.eq.s32.totalorder %s40, 1
      %p173 = por %p171, %p172
      %p175 = scmp.ne.s32.totalorder %s160, %s174
      %p176 = scmp.eq.s32.totalorder %s40, 0
      %p177 = por %p175, %p176
      %s179 = sadd.s32 %s178, 1
      %p182 = scmp.eq.s32.totalorder %s34, 1
      %p183 = scmp.ne.s32.totalorder %s178, %s180
      %p184 = scmp.eq.s32.totalorder %s34, 0
      %p185 = por %p183, %p184
      %p186 = scmp.ne.s32.totalorder %s178, %s180
      %p187 = scmp.eq.s32.totalorder %s39, 1
      %p188 = por %p186, %p187
      %p189 = scmp.ne.s32.totalorder %s180, %s181
      %p190 = scmp.eq.s32.totalorder %s39, 0
      %p191 = por %p189, %p190
      %p192 = scmp.ne.s32.totalorder %s180, %s181
      %p193 = scmp.eq.s32.totalorder %s40, 1
      %p194 = por %p192, %p193
      %p196 = scmp.ne.s32.totalorder %s181, %s195
      %p197 = scmp.eq.s32.totalorder %s40, 0
      %p198 = por %p196, %p197
      %s200 = sadd.s32 %s199, 1
      %p203 = scmp.eq.s32.totalorder %s34, 1
      %p204 = scmp.ne.s32.totalorder %s199, %s201
      %p205 = scmp.eq.s32.totalorder %s34, 0
      %p206 = por %p204, %p205
      %p207 = scmp.ne.s32.totalorder %s199, %s201
      %p208 = scmp.eq.s32.totalorder %s39, 1
      %p209 = por %p207, %p208
      %p210 = scmp.ne.s32.totalorder %s201, %s202
      %p211 = scmp.eq.s32.totalorder %s39, 0
      %p212 = por %p210, %p211
      %p213 = scmp.ne.s32.totalorder %s201, %s202
      %p214 = scmp.eq.s32.totalorder %s40, 1
      %p215 = por %p213, %p214
      %p217 = scmp.ne.s32.totalorder %s202, %s216
      %p218 = scmp.eq.s32.totalorder %s40, 0
      %p219 = por %p217, %p218
      %s221 = sadd.s32 %s220, 1
      %p224 = scmp.eq.s32.totalorder %s34, 1
      %p225 = scmp.ne.s32.totalorder %s220, %s222
      %p226 = scmp.eq.s32.totalorder %s34, 0
      %p227 = por %p225, %p226
      %p228 = scmp.ne.s32.totalorder %s220, %s222
      %p229 = scmp.eq.s32.totalorder %s39, 1
      %p230 = por %p228, %p229
      %p231 = scmp.ne.s32.totalorder %s222, %s223
      %p232 = scmp.eq.s32.totalorder %s39, 0
      %p233 = por %p231, %p232
      %p234 = scmp.ne.s32.totalorder %s222, %s223
      %p235 = scmp.eq.s32.totalorder %s40, 1
      %p236 = por %p234, %p235
      %p238 = scmp.ne.s32.totalorder %s223, %s237
      %p239 = scmp.eq.s32.totalorder %s40, 0
      %p240 = por %p238, %p239
      %s242 = sadd.s32 %s241, 1
      %p245 = scmp.eq.s32.totalorder %s34, 1
      %p246 = scmp.ne.s32.totalorder %s241, %s243
      %p247 = scmp.eq.s32.totalorder %s34, 0
      %p248 = por %p246, %p247
      %p249 = scmp.ne.s32.totalorder %s241, %s243
      %p250 = scmp.eq.s32.totalorder %s39, 1
      %p251 = por %p249, %p250
      %p252 = scmp.ne.s32.totalorder %s243, %s244
      %p253 = scmp.eq.s32.totalorder %s39, 0
      %p254 = por %p252, %p253
      %p255 = scmp.ne.s32.totalorder %s243, %s244
      %p256 = scmp.eq.s32.totalorder %s40, 1
      %p257 = por %p255, %p256
      %p259 = scmp.ne.s32.totalorder %s244, %s258
      %p260 = scmp.eq.s32.totalorder %s40, 0
      %p261 = por %p259, %p260
      %s263 = sadd.s32 %s262, 1
      %p266 = scmp.eq.s32.totalorder %s34, 1
      %p267 = scmp.ne.s32.totalorder %s262, %s264
      %p268 = scmp.eq.s32.totalorder %s34, 0
      %p269 = por %p267, %p268
      %p270 = scmp.ne.s32.totalorder %s262, %s264
      %p271 = scmp.eq.s32.totalorder %s39, 1
      %p272 = por %p270, %p271
      %p273 = scmp.ne.s32.totalorder %s264, %s265
      %p274 = scmp.eq.s32.totalorder %s39, 0
      %p275 = por %p273, %p274
      %p276 = scmp.ne.s32.totalorder %s264, %s265
      %p277 = scmp.eq.s32.totalorder %s40, 1
      %p278 = por %p276, %p277
      %p280 = scmp.ne.s32.totalorder %s265, %s279
      %p281 = scmp.eq.s32.totalorder %s40, 0
      %p282 = por %p280, %p281
      %s284 = sadd.s32 %s283, 1
      %p287 = scmp.eq.s32.totalorder %s34, 1
      %p288 = scmp.ne.s32.totalorder %s283, %s285
      %p289 = scmp.eq.s32.totalorder %s34, 0
      %p290 = por %p288, %p289
      %p291 = scmp.ne.s32.totalorder %s283, %s285
      %p292 = scmp.eq.s32.totalorder %s39, 1
      %p293 = por %p291, %p292
      %p294 = scmp.ne.s32.totalorder %s285, %s286
      %p295 = scmp.eq.s32.totalorder %s39, 0
      %p296 = por %p294, %p295
      %p297 = scmp.ne.s32.totalorder %s285, %s286
      %p298 = scmp.eq.s32.totalorder %s40, 1
      %p299 = por %p297, %p298
      %p301 = scmp.ne.s32.totalorder %s286, %s300
      %p302 = scmp.eq.s32.totalorder %s40, 0
      %p303 = por %p301, %p302
      %s305 = sadd.s32 %s304, 1
      %p308 = scmp.eq.s32.totalorder %s34, 1
      %p309 = scmp.ne.s32.totalorder %s304, %s306
      %p310 = scmp.eq.s32.totalorder %s34, 0
      %p311 = por %p309, %p310
      %p312 = scmp.ne.s32.totalorder %s304, %s306
      %p313 = scmp.eq.s32.totalorder %s39, 1
      %p314 = por %p312, %p313
      %p315 = scmp.ne.s32.totalorder %s306, %s307
      %p316 = scmp.eq.s32.totalorder %s39, 0
      %p317 = por %p315, %p316
      %p318 = scmp.ne.s32.totalorder %s306, %s307
      %p319 = scmp.eq.s32.totalorder %s40, 1
      %p320 = por %p318, %p319
      %p322 = scmp.ne.s32.totalorder %s307, %s321
      %p323 = scmp.eq.s32.totalorder %s40, 0
      %p324 = por %p322, %p323
      %s326 = sadd.s32 %s325, 1
      %p329 = scmp.eq.s32.totalorder %s34, 1
      %p330 = scmp.ne.s32.totalorder %s325, %s327
      %p331 = scmp.eq.s32.totalorder %s34, 0
      %p332 = por %p330, %p331
      %p333 = scmp.ne.s32.totalorder %s325, %s327
      %p334 = scmp.eq.s32.totalorder %s39, 1
      %p335 = por %p333, %p334
      %p336 = scmp.ne.s32.totalorder %s327, %s328
      %p337 = scmp.eq.s32.totalorder %s39, 0
      %p338 = por %p336, %p337
      %p339 = scmp.ne.s32.totalorder %s327, %s328
      %p340 = scmp.eq.s32.totalorder %s40, 1
      %p341 = por %p339, %p340
      %p343 = scmp.ne.s32.totalorder %s328, %s342
      %p344 = scmp.eq.s32.totalorder %s40, 0
      %p345 = por %p343, %p344
      %s347 = sadd.s32 %s346, 1
      %p350 = scmp.eq.s32.totalorder %s34, 1
      %p351 = scmp.ne.s32.totalorder %s346, %s348
      %p352 = scmp.eq.s32.totalorder %s34, 0
      %p353 = por %p351, %p352
      %p354 = scmp.ne.s32.totalorder %s346, %s348
      %p355 = scmp.eq.s32.totalorder %s39, 1
      %p356 = por %p354, %p355
      %p357 = scmp.ne.s32.totalorder %s348, %s349
      %p358 = scmp.eq.s32.totalorder %s39, 0
      %p359 = por %p357, %p358
      %p360 = scmp.ne.s32.totalorder %s348, %s349
      %p361 = scmp.eq.s32.totalorder %s40, 1
      %p362 = por %p360, %p361
      %p364 = scmp.ne.s32.totalorder %s349, %s363
      %p365 = scmp.eq.s32.totalorder %s40, 0
      %p366 = por %p364, %p365
      %s368 = sadd.s32 %s367, 1
      %p371 = scmp.eq.s32.totalorder %s34, 1
      %p372 = scmp.ne.s32.totalorder %s367, %s369
      %p373 = scmp.eq.s32.totalorder %s34, 0
      %p374 = por %p372, %p373
      %p375 = scmp.ne.s32.totalorder %s367, %s369
      %p376 = scmp.eq.s32.totalorder %s39, 1
      %p377 = por %p375, %p376
      %p378 = scmp.ne.s32.totalorder %s369, %s370
      %p379 = scmp.eq.s32.totalorder %s39, 0
      %p380 = por %p378, %p379
      %p381 = scmp.ne.s32.totalorder %s369, %s370
      %p382 = scmp.eq.s32.totalorder %s40, 1
      %p383 = por %p381, %p382
      %p385 = scmp.ne.s32.totalorder %s370, %s384
      %p386 = scmp.eq.s32.totalorder %s40, 0
      %p387 = por %p385, %p386
      %s389 = sadd.s32 %s388, 1
      %p392 = scmp.eq.s32.totalorder %s34, 1
      %p393 = scmp.ne.s32.totalorder %s388, %s390
      %p394 = scmp.eq.s32.totalorder %s34, 0
      %p395 = por %p393, %p394
      %p396 = scmp.ne.s32.totalorder %s388, %s390
      %p397 = scmp.eq.s32.totalorder %s39, 1
      %p398 = por %p396, %p397
      %p399 = scmp.ne.s32.totalorder %s390, %s391
      %p400 = scmp.eq.s32.totalorder %s39, 0
      %p401 = por %p399, %p400
      %p402 = scmp.ne.s32.totalorder %s390, %s391
      %p403 = scmp.eq.s32.totalorder %s40, 1
      %p404 = por %p402, %p403
      %p406 = scmp.ne.s32.totalorder %s391, %s405
      %p407 = scmp.eq.s32.totalorder %s40, 0
      %p408 = por %p406, %p407
      %s410 = sadd.s32 %s409, 1
      %p413 = scmp.eq.s32.totalorder %s34, 1
      %p414 = scmp.ne.s32.totalorder %s409, %s411
      %p415 = scmp.eq.s32.totalorder %s34, 0
      %p416 = por %p414, %p415
      %p417 = scmp.ne.s32.totalorder %s409, %s411
      %p418 = scmp.eq.s32.totalorder %s39, 1
      %p419 = por %p417, %p418
      %p420 = scmp.ne.s32.totalorder %s411, %s412
      %p421 = scmp.eq.s32.totalorder %s39, 0
      %p422 = por %p420, %p421
      %p423 = scmp.ne.s32.totalorder %s411, %s412
      %p424 = scmp.eq.s32.totalorder %s40, 1
      %p425 = por %p423, %p424
      %p427 = scmp.ne.s32.totalorder %s412, %s426
      %p428 = scmp.eq.s32.totalorder %s40, 0
      %p429 = por %p427, %p428
      %s431 = sadd.s32 %s430, 1
      %p434 = scmp.eq.s32.totalorder %s34, 1
      %p435 = scmp.ne.s32.totalorder %s430, %s432
      %p436 = scmp.eq.s32.totalorder %s34, 0
      %p437 = por %p435, %p436
      %p438 = scmp.ne.s32.totalorder %s430, %s432
      %p439 = scmp.eq.s32.totalorder %s39, 1
      %p440 = por %p438, %p439
      %p441 = scmp.ne.s32.totalorder %s432, %s433
      %p442 = scmp.eq.s32.totalorder %s39, 0
      %p443 = por %p441, %p442
      %p444 = scmp.ne.s32.totalorder %s432, %s433
      %p445 = scmp.eq.s32.totalorder %s40, 1
      %p446 = por %p444, %p445
      %p448 = scmp.ne.s32.totalorder %s433, %s447
      %p449 = scmp.eq.s32.totalorder %s40, 0
      %p450 = por %p448, %p449
      %s452 = sadd.s32 %s451, 1
      %p455 = scmp.eq.s32.totalorder %s34, 1
      %p456 = scmp.ne.s32.totalorder %s451, %s453
      %p457 = scmp.eq.s32.totalorder %s34, 0
      %p458 = por %p456, %p457
      %p459 = scmp.ne.s32.totalorder %s451, %s453
      %p460 = scmp.eq.s32.totalorder %s39, 1
      %p461 = por %p459, %p460
      %p462 = scmp.ne.s32.totalorder %s453, %s454
      %p463 = scmp.eq.s32.totalorder %s39, 0
      %p464 = por %p462, %p463
      %p465 = scmp.ne.s32.totalorder %s453, %s454
      %p466 = scmp.eq.s32.totalorder %s40, 1
      %p467 = por %p465, %p466
      %p469 = scmp.ne.s32.totalorder %s454, %s468
      %p470 = scmp.eq.s32.totalorder %s40, 0
      %p471 = por %p469, %p470
      %s473 = sadd.s32 %s472, 1
      %p476 = scmp.eq.s32.totalorder %s34, 1
      %p477 = scmp.ne.s32.totalorder %s472, %s474
      %p478 = scmp.eq.s32.totalorder %s34, 0
      %p479 = por %p477, %p478
      %p480 = scmp.ne.s32.totalorder %s472, %s474
      %p481 = scmp.eq.s32.totalorder %s39, 1
      %p482 = por %p480, %p481
      %p483 = scmp.ne.s32.totalorder %s474, %s475
      %p484 = scmp.eq.s32.totalorder %s39, 0
      %p485 = por %p483, %p484
      %p486 = scmp.ne.s32.totalorder %s474, %s475
      %p487 = scmp.eq.s32.totalorder %s40, 1
      %p488 = por %p486, %p487
      %p490 = scmp.ne.s32.totalorder %s475, %s489
      %p491 = scmp.eq.s32.totalorder %s40, 0
      %p492 = por %p490, %p491
      %s494 = sadd.s32 %s493, 1
      %p497 = scmp.eq.s32.totalorder %s34, 1
      %p498 = scmp.ne.s32.totalorder %s493, %s495
      %p499 = scmp.eq.s32.totalorder %s34, 0
      %p500 = por %p498, %p499
      %p501 = scmp.ne.s32.totalorder %s493, %s495
      %p502 = scmp.eq.s32.totalorder %s39, 1
      %p503 = por %p501, %p502
      %p504 = scmp.ne.s32.totalorder %s495, %s496
      %p505 = scmp.eq.s32.totalorder %s39, 0
      %p506 = por %p504, %p505
      %p507 = scmp.ne.s32.totalorder %s495, %s496
      %p508 = scmp.eq.s32.totalorder %s40, 1
      %p509 = por %p507, %p508
      %p511 = scmp.ne.s32.totalorder %s496, %s510
      %p512 = scmp.eq.s32.totalorder %s40, 0
      %p513 = por %p511, %p512
      %s515 = sadd.s32 %s514, 1
      %p518 = scmp.eq.s32.totalorder %s34, 1
      %p519 = scmp.ne.s32.totalorder %s514, %s516
      %p520 = scmp.eq.s32.totalorder %s34, 0
      %p521 = por %p519, %p520
      %p522 = scmp.ne.s32.totalorder %s514, %s516
      %p523 = scmp.eq.s32.totalorder %s39, 1
      %p524 = por %p522, %p523
      %p525 = scmp.ne.s32.totalorder %s516, %s517
      %p526 = scmp.eq.s32.totalorder %s39, 0
      %p527 = por %p525, %p526
      %p528 = scmp.ne.s32.totalorder %s516, %s517
      %p529 = scmp.eq.s32.totalorder %s40, 1
      %p530 = por %p528, %p529
      %p532 = scmp.ne.s32.totalorder %s517, %s531
      %p533 = scmp.eq.s32.totalorder %s40, 0
      %p534 = por %p532, %p533
      %s535 = ssub.s32 %s34, %s41
      %p536 = scmp.eq.s32.totalorder %s535, 0
      %s538 = sadd.s32 %s537, 1
      %s539 = scalar_select %p536, %s537, %s538
      %p542 = pneg %p536
      %p543 = scmp.eq.s32.totalorder %s34, 1
      %p544 = por %p542, %p543
      %p545 = scmp.ne.s32.totalorder %s537, %s540
      %p546 = scmp.eq.s32.totalorder %s34, 0
      %p547 = por %p545, %p546
      %p548 = scmp.ne.s32.totalorder %s537, %s540
      %p549 = scmp.eq.s32.totalorder %s39, 1
      %p550 = por %p548, %p549
      %p551 = scmp.ne.s32.totalorder %s540, %s541
      %p552 = scmp.eq.s32.totalorder %s39, 0
      %p553 = por %p551, %p552
      %p554 = scmp.ne.s32.totalorder %s540, %s541
      %p555 = scmp.eq.s32.totalorder %s40, 1
      %p556 = por %p554, %p555
      %p558 = scmp.ne.s32.totalorder %s541, %s557
      %p559 = scmp.eq.s32.totalorder %s40, 0
      %p560 = por %p558, %p559
      %p561 = scmp.le.s32.totalorder 1, %s34
      %p562 = scmp.lt.s32.totalorder %s34, 3
      %p563 = pnand %p561, %p562
      %p564 = pneg %p563
      // Predicated region
      $region9: #{tpu_custom_call.1} parent=5 // pred_check
        _
      $region10: #{tpu_custom_call.1} parent=5 // pred_check_branch
        %566 = sbr.rel (%p563) target = $region12
      $region11: #{tpu_custom_call.1} parent=5 // pred_region
        %s567 = ssub.s32 %s34, 1
        // Predicated region
        $region13: #{tpu_custom_call.1} parent=11 // pred_check
          %p568 = pneg %p107
        $region14: #{tpu_custom_call.1} parent=11 // pred_check_branch
          %570 = sbr.rel (%p568) target = $region16
        $region15: #{tpu_custom_call.1} parent=11 // pred_region
          _
        $region16: #{tpu_custom_call.1} parent=11 // pred_fallthru
          _
        // Predicated region
        $region17: #{tpu_custom_call.1} parent=11 // pred_check
          %p571 = pneg %p128
        $region18: #{tpu_custom_call.1} parent=11 // pred_check_branch
          %573 = sbr.rel (%p571) target = $region20
        $region19: #{tpu_custom_call.1} parent=11 // pred_region
          _
        $region20: #{tpu_custom_call.1} parent=11 // pred_fallthru
          _
        // Predicated region
        $region21: #{tpu_custom_call.1} parent=11 // pred_check
          %p574 = pneg %p149
        $region22: #{tpu_custom_call.1} parent=11 // pred_check_branch
          %576 = sbr.rel (%p574) target = $region24
        $region23: #{tpu_custom_call.1} parent=11 // pred_region
          _
        $region24: #{tpu_custom_call.1} parent=11 // pred_fallthru
          _
        // Predicated region
        $region25: #{tpu_custom_call.1} parent=11 // pred_check
          %p577 = pneg %p170
        $region26: #{tpu_custom_call.1} parent=11 // pred_check_branch
          %579 = sbr.rel (%p577) target = $region28
        $region27: #{tpu_custom_call.1} parent=11 // pred_region
          _
        $region28: #{tpu_custom_call.1} parent=11 // pred_fallthru
          _
        // Predicated region
        $region29: #{tpu_custom_call.1} parent=11 // pred_check
          %p580 = pneg %p191
        $region30: #{tpu_custom_call.1} parent=11 // pred_check_branch
          %582 = sbr.rel (%p580) target = $region32
        $region31: #{tpu_custom_call.1} parent=11 // pred_region
          _
        $region32: #{tpu_custom_call.1} parent=11 // pred_fallthru
          _
        // Predicated region
        $region33: #{tpu_custom_call.1} parent=11 // pred_check
          %p583 = pneg %p212
        $region34: #{tpu_custom_call.1} parent=11 // pred_check_branch
          %585 = sbr.rel (%p583) target = $region36
        $region35: #{tpu_custom_call.1} parent=11 // pred_region
          _
        $region36: #{tpu_custom_call.1} parent=11 // pred_fallthru
          _
        // Predicated region
        $region37: #{tpu_custom_call.1} parent=11 // pred_check
          %p586 = pneg %p233
        $region38: #{tpu_custom_call.1} parent=11 // pred_check_branch
          %588 = sbr.rel (%p586) target = $region40
        $region39: #{tpu_custom_call.1} parent=11 // pred_region
          _
        $region40: #{tpu_custom_call.1} parent=11 // pred_fallthru
          _
        // Predicated region
        $region41: #{tpu_custom_call.1} parent=11 // pred_check
          %p589 = pneg %p254
        $region42: #{tpu_custom_call.1} parent=11 // pred_check_branch
          %591 = sbr.rel (%p589) target = $region44
        $region43: #{tpu_custom_call.1} parent=11 // pred_region
          _
        $region44: #{tpu_custom_call.1} parent=11 // pred_fallthru
          _
        // Predicated region
        $region45: #{tpu_custom_call.1} parent=11 // pred_check
          %p592 = pneg %p275
        $region46: #{tpu_custom_call.1} parent=11 // pred_check_branch
          %594 = sbr.rel (%p592) target = $region48
        $region47: #{tpu_custom_call.1} parent=11 // pred_region
          _
        $region48: #{tpu_custom_call.1} parent=11 // pred_fallthru
          _
        // Predicated region
        $region49: #{tpu_custom_call.1} parent=11 // pred_check
          %p595 = pneg %p296
        $region50: #{tpu_custom_call.1} parent=11 // pred_check_branch
          %597 = sbr.rel (%p595) target = $region52
        $region51: #{tpu_custom_call.1} parent=11 // pred_region
          _
        $region52: #{tpu_custom_call.1} parent=11 // pred_fallthru
          _
        // Predicated region
        $region53: #{tpu_custom_call.1} parent=11 // pred_check
          %p598 = pneg %p317
        $region54: #{tpu_custom_call.1} parent=11 // pred_check_branch
          %600 = sbr.rel (%p598) target = $region56
        $region55: #{tpu_custom_call.1} parent=11 // pred_region
          _
        $region56: #{tpu_custom_call.1} parent=11 // pred_fallthru
          _
        // Predicated region
        $region57: #{tpu_custom_call.1} parent=11 // pred_check
          %p601 = pneg %p338
        $region58: #{tpu_custom_call.1} parent=11 // pred_check_branch
          %603 = sbr.rel (%p601) target = $region60
        $region59: #{tpu_custom_call.1} parent=11 // pred_region
          _
        $region60: #{tpu_custom_call.1} parent=11 // pred_fallthru
          _
        // Predicated region
        $region61: #{tpu_custom_call.1} parent=11 // pred_check
          %p604 = pneg %p359
        $region62: #{tpu_custom_call.1} parent=11 // pred_check_branch
          %606 = sbr.rel (%p604) target = $region64
        $region63: #{tpu_custom_call.1} parent=11 // pred_region
          _
        $region64: #{tpu_custom_call.1} parent=11 // pred_fallthru
          _
        // Predicated region
        $region65: #{tpu_custom_call.1} parent=11 // pred_check
          %p607 = pneg %p380
        $region66: #{tpu_custom_call.1} parent=11 // pred_check_branch
          %609 = sbr.rel (%p607) target = $region68
        $region67: #{tpu_custom_call.1} parent=11 // pred_region
          _
        $region68: #{tpu_custom_call.1} parent=11 // pred_fallthru
          _
        // Predicated region
        $region69: #{tpu_custom_call.1} parent=11 // pred_check
          %p610 = pneg %p401
        $region70: #{tpu_custom_call.1} parent=11 // pred_check_branch
          %612 = sbr.rel (%p610) target = $region72
        $region71: #{tpu_custom_call.1} parent=11 // pred_region
          _
        $region72: #{tpu_custom_call.1} parent=11 // pred_fallthru
          _
        // Predicated region
        $region73: #{tpu_custom_call.1} parent=11 // pred_check
          %p613 = pneg %p422
        $region74: #{tpu_custom_call.1} parent=11 // pred_check_branch
          %615 = sbr.rel (%p613) target = $region76
        $region75: #{tpu_custom_call.1} parent=11 // pred_region
          _
        $region76: #{tpu_custom_call.1} parent=11 // pred_fallthru
          _
        // Predicated region
        $region77: #{tpu_custom_call.1} parent=11 // pred_check
          %p616 = pneg %p443
        $region78: #{tpu_custom_call.1} parent=11 // pred_check_branch
          %618 = sbr.rel (%p616) target = $region80
        $region79: #{tpu_custom_call.1} parent=11 // pred_region
          _
        $region80: #{tpu_custom_call.1} parent=11 // pred_fallthru
          _
        // Predicated region
        $region81: #{tpu_custom_call.1} parent=11 // pred_check
          %p619 = pneg %p464
        $region82: #{tpu_custom_call.1} parent=11 // pred_check_branch
          %621 = sbr.rel (%p619) target = $region84
        $region83: #{tpu_custom_call.1} parent=11 // pred_region
          _
        $region84: #{tpu_custom_call.1} parent=11 // pred_fallthru
          _
        // Predicated region
        $region85: #{tpu_custom_call.1} parent=11 // pred_check
          %p622 = pneg %p485
        $region86: #{tpu_custom_call.1} parent=11 // pred_check_branch
          %624 = sbr.rel (%p622) target = $region88
        $region87: #{tpu_custom_call.1} parent=11 // pred_region
          _
        $region88: #{tpu_custom_call.1} parent=11 // pred_fallthru
          _
        // Predicated region
        $region89: #{tpu_custom_call.1} parent=11 // pred_check
          %p625 = pneg %p506
        $region90: #{tpu_custom_call.1} parent=11 // pred_check_branch
          %627 = sbr.rel (%p625) target = $region92
        $region91: #{tpu_custom_call.1} parent=11 // pred_region
          _
        $region92: #{tpu_custom_call.1} parent=11 // pred_fallthru
          _
        // Predicated region
        $region93: #{tpu_custom_call.1} parent=11 // pred_check
          %p628 = pneg %p527
        $region94: #{tpu_custom_call.1} parent=11 // pred_check_branch
          %630 = sbr.rel (%p628) target = $region96
        $region95: #{tpu_custom_call.1} parent=11 // pred_region
          _
        $region96: #{tpu_custom_call.1} parent=11 // pred_fallthru
          _
      $region12: #{tpu_custom_call.1} parent=5 // pred_fallthru
        _
      %p631 = scmp.lt.s32.totalorder %s34, 2
      // Predicated region
      $region97: #{tpu_custom_call.1} parent=5 // pred_check
        %p632 = pneg %p631
      $region98: #{tpu_custom_call.1} parent=5 // pred_check_branch
        %634 = sbr.rel (%p632) target = $region100
      $region99: #{tpu_custom_call.1} parent=5 // pred_region
        // Predicated region
        $region101: #{tpu_custom_call.1} parent=99 // pred_check
          %p635 = pneg %p54
        $region102: #{tpu_custom_call.1} parent=99 // pred_check_branch
          %637 = sbr.rel (%p635) target = $region104
        $region103: #{tpu_custom_call.1} parent=99 // pred_region
          %p638 = scmp.lt.s32.totalorder %s34, 1
          %s639 = scalar_select %p638, %s34, 1
          %s640 = scalar_lea.vmem %s0, %s639
        $region104: #{tpu_custom_call.1} parent=99 // pred_fallthru
          _
        // Predicated region
        $region105: #{tpu_custom_call.1} parent=99 // pred_check
          %p641 = pneg %p80
        $region106: #{tpu_custom_call.1} parent=99 // pred_check_branch
          %643 = sbr.rel (%p641) target = $region108
        $region107: #{tpu_custom_call.1} parent=99 // pred_region
          %s644 = smul.u32 16, %s34
          %p645 = scmp.lt.s32.totalorder %s644, 31
          %s646 = scalar_select %p645, %s644, 31
          %s647 = smul.addr %s646, 8
          %s648 = scalar_lea.vmem %s1, %s647
          %s649 = smul.u32 16, %s34
        $region108: #{tpu_custom_call.1} parent=99 // pred_fallthru
          _
      $region100: #{tpu_custom_call.1} parent=5 // pred_fallthru
        _
      %p650 = scmp.le.s32.totalorder 1, %s34
      %p651 = scmp.lt.s32.totalorder %s34, 3
      %p652 = pnand %p650, %p651
      %p653 = pneg %p652
      // Predicated region
      $region109: #{tpu_custom_call.1} parent=5 // pred_check
        _
      $region110: #{tpu_custom_call.1} parent=5 // pred_check_branch
        %655 = sbr.rel (%p652) target = $region112
      $region111: #{tpu_custom_call.1} parent=5 // pred_region
        %s656 = ssub.s32 %s34, 1
        %p657 = scmp.lt.s32.totalorder %s39, 1
        %s658 = scalar_select %p657, %s39, 1
        %s659 = scalar_lea.vmem %s0, %s658
        %p660 = pneg %p60
        %p661 = pneg %p57
        %s662 = smul.u32 16, %s39
        %p663 = scmp.lt.s32.totalorder %s662, 31
        %s664 = scalar_select %p663, %s662, 31
        %s665 = smul.addr %s664, 8
        %s666 = scalar_lea.vmem %s1, %s665
        %p667 = pneg %p86
        %p668 = pneg %p83
        %p669 = pneg %p107
        %p670 = pneg %p104
        %p671 = pneg %p128
        %p672 = pneg %p125
        %p673 = pneg %p149
        %p674 = pneg %p146
        %p675 = pneg %p170
        %p676 = pneg %p167
        %p677 = pneg %p191
        %p678 = pneg %p188
        %p679 = pneg %p212
        %p680 = pneg %p209
        %p681 = pneg %p233
        %p682 = pneg %p230
        %p683 = pneg %p254
        %p684 = pneg %p251
        %p685 = pneg %p275
        %p686 = pneg %p272
        %p687 = pneg %p296
        %p688 = pneg %p293
        %p689 = pneg %p317
        %p690 = pneg %p314
        %p691 = pneg %p338
        %p692 = pneg %p335
        %p693 = pneg %p359
        %p694 = pneg %p356
        %p695 = pneg %p380
        %p696 = pneg %p377
        %p697 = pneg %p401
        %p698 = pneg %p398
        %p699 = pneg %p422
        %p700 = pneg %p419
        %p701 = pneg %p443
        %p702 = pneg %p440
        %p703 = pneg %p464
        %p704 = pneg %p461
        %p705 = pneg %p485
        %p706 = pneg %p482
        %p707 = pneg %p506
        %p708 = pneg %p503
        %p709 = pneg %p527
        %p710 = pneg %p524
        %p711 = pneg %p553
        %p712 = pneg %p550
        %s713 = sand.u32 %s540, 1
        %s714 = scalar_lea.sflag [#allocation4], %s713
        %s715 = sand.u32 %s540, 1
        %s716 = smul.addr %s715, 32
        %s717 = scalar_lea.vmem [#allocation3], %s716
        %p718 = scmp.lt.s32.totalorder %s39, 1
        %s719 = scalar_select %p718, %s39, 1
        %s720 = scalar_lea.vmem %s0, %s719
        %s721 = smul.u32 16, %s39
        %p722 = scmp.lt.s32.totalorder %s721, 31
        %s723 = scalar_select %p722, %s721, 31
        %s724 = smul.addr %s723, 8
        %s725 = scalar_lea.vmem %s1, %s724
        %s726 = smul.u32 16, %s39
        %s727 = smul.u32 2, %s39
        %v731 = vld [vmem:[%s725] sm:$0xff]
        %v732 = vld [vmem:[%s725 + $0x8] sm:$0xff]
        %v733 = vld [vmem:[%s725 + $0x10] sm:$0xff]
        %v734 = vld [vmem:[%s725 + $0x18] sm:$0xff]
        %v735 = vld [vmem:[%s725 + $0x20] sm:$0xff]
        %v736 = vld [vmem:[%s725 + $0x28] sm:$0xff]
        %v737 = vld [vmem:[%s725 + $0x30] sm:$0xff]
        %v738 = vld [vmem:[%s725 + $0x38] sm:$0xff]
        %v739 = vld [vmem:[%s725 + $0x40] sm:$0xff]
        %v740 = vld [vmem:[%s725 + $0x48] sm:$0xff]
        %v741 = vld [vmem:[%s725 + $0x50] sm:$0xff]
        %v742 = vld [vmem:[%s725 + $0x58] sm:$0xff]
        %v743 = vld [vmem:[%s725 + $0x60] sm:$0xff]
        %v744 = vld [vmem:[%s725 + $0x68] sm:$0xff]
        %v745 = vld [vmem:[%s725 + $0x70] sm:$0xff]
        %v746 = vld [vmem:[%s725 + $0x78] sm:$0xff]
        %v747 = vld [vmem:[%s720] sm:$0x1]
        %v748 = vlaneseq
        %v749 = vshrl.u32 %v748, 7
        %v750 = vadd.s32 %v749, 8
        %v751 = vadd.s32 %v749, 16
        %v752 = vadd.s32 %v749, 24
        %v753 = vadd.s32 %v749, 32
        %v754 = vadd.s32 %v749, 40
        %v755 = vadd.s32 %v749, 48
        %v756 = vadd.s32 %v749, 56
        %v757 = vadd.s32 %v749, 64
        %v758 = vadd.s32 %v749, 72
        %v759 = vadd.s32 %v749, 80
        %v760 = vadd.s32 %v749, 88
        %v761 = vadd.s32 %v749, 96
        %v762 = vadd.s32 %v749, 104
        %v763 = vadd.s32 %v749, 112
        %v764 = vadd.s32 %v749, 120
        %v765 = vlaneseq
        %v766 = vand.u32 %v765, 127
        %v767 = vadd.s32 %v766, 1
        %v768 = vmul.u32 %v767, 8
        %vm769 = vcmp.ge.s32.totalorder %v749, %v768
        %vm770 = vcmp.ge.s32.totalorder %v750, %v768
        %vm771 = vcmp.ge.s32.totalorder %v751, %v768
        %vm772 = vcmp.ge.s32.totalorder %v752, %v768
        %vm773 = vcmp.ge.s32.totalorder %v753, %v768
        %vm774 = vcmp.ge.s32.totalorder %v754, %v768
        %vm775 = vcmp.ge.s32.totalorder %v755, %v768
        %vm776 = vcmp.ge.s32.totalorder %v756, %v768
        %vm777 = vcmp.ge.s32.totalorder %v757, %v768
        %vm778 = vcmp.ge.s32.totalorder %v758, %v768
        %vm779 = vcmp.ge.s32.totalorder %v759, %v768
        %vm780 = vcmp.ge.s32.totalorder %v760, %v768
        %vm781 = vcmp.ge.s32.totalorder %v761, %v768
        %vm782 = vcmp.ge.s32.totalorder %v762, %v768
        %vm783 = vcmp.ge.s32.totalorder %v763, %v768
        %vm784 = vcmp.ge.s32.totalorder %v764, %v768
        %v785 = vsel %vm769, 1, 0
        %v786 = vsel %vm770, 1, 0
        %v787 = vsel %vm771, 1, 0
        %v788 = vsel %vm772, 1, 0
        %v789 = vsel %vm773, 1, 0
        %v790 = vsel %vm774, 1, 0
        %v791 = vsel %vm775, 1, 0
        %v792 = vsel %vm776, 1, 0
        %v793 = vsel %vm777, 1, 0
        %v794 = vsel %vm778, 1, 0
        %v795 = vsel %vm779, 1, 0
        %v796 = vsel %vm780, 1, 0
        %v797 = vsel %vm781, 1, 0
        %v798 = vsel %vm782, 1, 0
        %v799 = vsel %vm783, 1, 0
        %v800 = vsel %vm784, 1, 0
        %vm801 = vcmask 130048
        %v802 = vsel %vm801, %v785, 0
        %v803 = vand.u32 %v802, 65535
        %v804 = vshrl.u32 %v802, 16
        %v805 = vcvt.s32.f32 %v803
        %v806 = vcvt.s32.f32 %v804
        %807 = vadd.xlane.f32.xlu0 %v805
        %v808 = vpop.xlane.xlu0 %807
        %809 = vadd.xlane.f32.xlu0 %v806
        %v810 = vpop.xlane.xlu0 %809
        %v811 = vcvt.f32.s32 %v808
        %v812 = vcvt.f32.s32 %v810
        %v813 = vshll.u32 %v812, 16
        %v814 = vadd.s32 %v813, %v811
        %v815 = vsel %vm801, %v786, 0
        %v816 = vand.u32 %v815, 65535
        %v817 = vshrl.u32 %v815, 16
        %v818 = vcvt.s32.f32 %v816
        %v819 = vcvt.s32.f32 %v817
        %820 = vadd.xlane.f32.xlu0 %v818
        %v821 = vpop.xlane.xlu0 %820
        %822 = vadd.xlane.f32.xlu0 %v819
        %v823 = vpop.xlane.xlu0 %822
        %v824 = vcvt.f32.s32 %v821
        %v825 = vcvt.f32.s32 %v823
        %v826 = vshll.u32 %v825, 16
        %v827 = vadd.s32 %v826, %v824
        %v828 = vsel %vm801, %v787, 0
        %v829 = vand.u32 %v828, 65535
        %v830 = vshrl.u32 %v828, 16
        %v831 = vcvt.s32.f32 %v829
        %v832 = vcvt.s32.f32 %v830
        %833 = vadd.xlane.f32.xlu0 %v831
        %v834 = vpop.xlane.xlu0 %833
        %835 = vadd.xlane.f32.xlu0 %v832
        %v836 = vpop.xlane.xlu0 %835
        %v837 = vcvt.f32.s32 %v834
        %v838 = vcvt.f32.s32 %v836
        %v839 = vshll.u32 %v838, 16
        %v840 = vadd.s32 %v839, %v837
        %v841 = vsel %vm801, %v788, 0
        %v842 = vand.u32 %v841, 65535
        %v843 = vshrl.u32 %v841, 16
        %v844 = vcvt.s32.f32 %v842
        %v845 = vcvt.s32.f32 %v843
        %846 = vadd.xlane.f32.xlu0 %v844
        %v847 = vpop.xlane.xlu0 %846
        %848 = vadd.xlane.f32.xlu0 %v845
        %v849 = vpop.xlane.xlu0 %848
        %v850 = vcvt.f32.s32 %v847
        %v851 = vcvt.f32.s32 %v849
        %v852 = vshll.u32 %v851, 16
        %v853 = vadd.s32 %v852, %v850
        %v854 = vsel %vm801, %v789, 0
        %v855 = vand.u32 %v854, 65535
        %v856 = vshrl.u32 %v854, 16
        %v857 = vcvt.s32.f32 %v855
        %v858 = vcvt.s32.f32 %v856
        %859 = vadd.xlane.f32.xlu0 %v857
        %v860 = vpop.xlane.xlu0 %859
        %861 = vadd.xlane.f32.xlu0 %v858
        %v862 = vpop.xlane.xlu0 %861
        %v863 = vcvt.f32.s32 %v860
        %v864 = vcvt.f32.s32 %v862
        %v865 = vshll.u32 %v864, 16
        %v866 = vadd.s32 %v865, %v863
        %v867 = vsel %vm801, %v790, 0
        %v868 = vand.u32 %v867, 65535
        %v869 = vshrl.u32 %v867, 16
        %v870 = vcvt.s32.f32 %v868
        %v871 = vcvt.s32.f32 %v869
        %872 = vadd.xlane.f32.xlu0 %v870
        %v873 = vpop.xlane.xlu0 %872
        %874 = vadd.xlane.f32.xlu0 %v871
        %v875 = vpop.xlane.xlu0 %874
        %v876 = vcvt.f32.s32 %v873
        %v877 = vcvt.f32.s32 %v875
        %v878 = vshll.u32 %v877, 16
        %v879 = vadd.s32 %v878, %v876
        %v880 = vsel %vm801, %v791, 0
        %v881 = vand.u32 %v880, 65535
        %v882 = vshrl.u32 %v880, 16
        %v883 = vcvt.s32.f32 %v881
        %v884 = vcvt.s32.f32 %v882
        %885 = vadd.xlane.f32.xlu0 %v883
        %v886 = vpop.xlane.xlu0 %885
        %887 = vadd.xlane.f32.xlu0 %v884
        %v888 = vpop.xlane.xlu0 %887
        %v889 = vcvt.f32.s32 %v886
        %v890 = vcvt.f32.s32 %v888
        %v891 = vshll.u32 %v890, 16
        %v892 = vadd.s32 %v891, %v889
        %v893 = vsel %vm801, %v792, 0
        %v894 = vand.u32 %v893, 65535
        %v895 = vshrl.u32 %v893, 16
        %v896 = vcvt.s32.f32 %v894
        %v897 = vcvt.s32.f32 %v895
        %898 = vadd.xlane.f32.xlu0 %v896
        %v899 = vpop.xlane.xlu0 %898
        %900 = vadd.xlane.f32.xlu0 %v897
        %v901 = vpop.xlane.xlu0 %900
        %v902 = vcvt.f32.s32 %v899
        %v903 = vcvt.f32.s32 %v901
        %v904 = vshll.u32 %v903, 16
        %v905 = vadd.s32 %v904, %v902
        %v906 = vsel %vm801, %v793, 0
        %v907 = vand.u32 %v906, 65535
        %v908 = vshrl.u32 %v906, 16
        %v909 = vcvt.s32.f32 %v907
        %v910 = vcvt.s32.f32 %v908
        %911 = vadd.xlane.f32.xlu0 %v909
        %v912 = vpop.xlane.xlu0 %911
        %913 = vadd.xlane.f32.xlu0 %v910
        %v914 = vpop.xlane.xlu0 %913
        %v915 = vcvt.f32.s32 %v912
        %v916 = vcvt.f32.s32 %v914
        %v917 = vshll.u32 %v916, 16
        %v918 = vadd.s32 %v917, %v915
        %v919 = vsel %vm801, %v794, 0
        %v920 = vand.u32 %v919, 65535
        %v921 = vshrl.u32 %v919, 16
        %v922 = vcvt.s32.f32 %v920
        %v923 = vcvt.s32.f32 %v921
        %924 = vadd.xlane.f32.xlu0 %v922
        %v925 = vpop.xlane.xlu0 %924
        %926 = vadd.xlane.f32.xlu0 %v923
        %v927 = vpop.xlane.xlu0 %926
        %v928 = vcvt.f32.s32 %v925
        %v929 = vcvt.f32.s32 %v927
        %v930 = vshll.u32 %v929, 16
        %v931 = vadd.s32 %v930, %v928
        %v932 = vsel %vm801, %v795, 0
        %v933 = vand.u32 %v932, 65535
        %v934 = vshrl.u32 %v932, 16
        %v935 = vcvt.s32.f32 %v933
        %v936 = vcvt.s32.f32 %v934
        %937 = vadd.xlane.f32.xlu0 %v935
        %v938 = vpop.xlane.xlu0 %937
        %939 = vadd.xlane.f32.xlu0 %v936
        %v940 = vpop.xlane.xlu0 %939
        %v941 = vcvt.f32.s32 %v938
        %v942 = vcvt.f32.s32 %v940
        %v943 = vshll.u32 %v942, 16
        %v944 = vadd.s32 %v943, %v941
        %v945 = vsel %vm801, %v796, 0
        %v946 = vand.u32 %v945, 65535
        %v947 = vshrl.u32 %v945, 16
        %v948 = vcvt.s32.f32 %v946
        %v949 = vcvt.s32.f32 %v947
        %950 = vadd.xlane.f32.xlu0 %v948
        %v951 = vpop.xlane.xlu0 %950
        %952 = vadd.xlane.f32.xlu0 %v949
        %v953 = vpop.xlane.xlu0 %952
        %v954 = vcvt.f32.s32 %v951
        %v955 = vcvt.f32.s32 %v953
        %v956 = vshll.u32 %v955, 16
        %v957 = vadd.s32 %v956, %v954
        %v958 = vsel %vm801, %v797, 0
        %v959 = vand.u32 %v958, 65535
        %v960 = vshrl.u32 %v958, 16
        %v961 = vcvt.s32.f32 %v959
        %v962 = vcvt.s32.f32 %v960
        %963 = vadd.xlane.f32.xlu0 %v961
        %v964 = vpop.xlane.xlu0 %963
        %965 = vadd.xlane.f32.xlu0 %v962
        %v966 = vpop.xlane.xlu0 %965
        %v967 = vcvt.f32.s32 %v964
        %v968 = vcvt.f32.s32 %v966
        %v969 = vshll.u32 %v968, 16
        %v970 = vadd.s32 %v969, %v967
        %v971 = vsel %vm801, %v798, 0
        %v972 = vand.u32 %v971, 65535
        %v973 = vshrl.u32 %v971, 16
        %v974 = vcvt.s32.f32 %v972
        %v975 = vcvt.s32.f32 %v973
        %976 = vadd.xlane.f32.xlu0 %v974
        %v977 = vpop.xlane.xlu0 %976
        %978 = vadd.xlane.f32.xlu0 %v975
        %v979 = vpop.xlane.xlu0 %978
        %v980 = vcvt.f32.s32 %v977
        %v981 = vcvt.f32.s32 %v979
        %v982 = vshll.u32 %v981, 16
        %v983 = vadd.s32 %v982, %v980
        %v984 = vsel %vm801, %v799, 0
        %v985 = vand.u32 %v984, 65535
        %v986 = vshrl.u32 %v984, 16
        %v987 = vcvt.s32.f32 %v985
        %v988 = vcvt.s32.f32 %v986
        %989 = vadd.xlane.f32.xlu0 %v987
        %v990 = vpop.xlane.xlu0 %989
        %991 = vadd.xlane.f32.xlu0 %v988
        %v992 = vpop.xlane.xlu0 %991
        %v993 = vcvt.f32.s32 %v990
        %v994 = vcvt.f32.s32 %v992
        %v995 = vshll.u32 %v994, 16
        %v996 = vadd.s32 %v995, %v993
        %v997 = vsel %vm801, %v800, 0
        %v998 = vand.u32 %v997, 65535
        %v999 = vshrl.u32 %v997, 16
        %v1000 = vcvt.s32.f32 %v998
        %v1001 = vcvt.s32.f32 %v999
        %1002 = vadd.xlane.f32.xlu0 %v1000
        %v1003 = vpop.xlane.xlu0 %1002
        %1004 = vadd.xlane.f32.xlu0 %v1001
        %v1005 = vpop.xlane.xlu0 %1004
        %v1006 = vcvt.f32.s32 %v1003
        %v1007 = vcvt.f32.s32 %v1005
        %v1008 = vshll.u32 %v1007, 16
        %v1009 = vadd.s32 %v1008, %v1006
        %v1010 = vadd.s32 %v749, 1
        %v1011 = vadd.s32 %v750, 1
        %v1012 = vmul.u32 %v1010, 8
        %v1013 = vmul.u32 %v1011, 8
        %vm1014 = vcmp.ge.s32.totalorder %v766, %v1012
        %vm1015 = vcmp.ge.s32.totalorder %v766, %v1013
        %v1016 = vsel %vm1014, 1, 0
        %v1017 = vsel %vm1015, 1, 0
        %v1018 = vadd.s32 %v1016, %v1017
        %v1019 = vrot.slane %v1018, 4
        %v1020 = vadd.s32 %v1018, %v1019
        %v1021 = vrot.slane %v1020, 2
        %v1022 = vadd.s32 %v1020, %v1021
        %v1023 = vrot.slane %v1022, 1
        %v1024 = vadd.s32 %v1022, %v1023
        %v1025 = vmul.u32 %v814, 8
        %v1026 = vmul.u32 %v827, 8
        %v1027 = vmul.u32 %v840, 8
        %v1028 = vmul.u32 %v853, 8
        %v1029 = vmul.u32 %v866, 8
        %v1030 = vmul.u32 %v879, 8
        %v1031 = vmul.u32 %v892, 8
        %v1032 = vmul.u32 %v905, 8
        %v1033 = vmul.u32 %v918, 8
        %v1034 = vmul.u32 %v931, 8
        %v1035 = vmul.u32 %v944, 8
        %v1036 = vmul.u32 %v957, 8
        %v1037 = vmul.u32 %v970, 8
        %v1038 = vmul.u32 %v983, 8
        %v1039 = vmul.u32 %v996, 8
        %v1040 = vmul.u32 %v1009, 8
        %v1041 = vsub.s32 %v749, %v1025
        %v1042 = vsub.s32 %v750, %v1026
        %v1043 = vsub.s32 %v751, %v1027
        %v1044 = vsub.s32 %v752, %v1028
        %v1045 = vsub.s32 %v753, %v1029
        %v1046 = vsub.s32 %v754, %v1030
        %v1047 = vsub.s32 %v755, %v1031
        %v1048 = vsub.s32 %v756, %v1032
        %v1049 = vsub.s32 %v757, %v1033
        %v1050 = vsub.s32 %v758, %v1034
        %v1051 = vsub.s32 %v759, %v1035
        %v1052 = vsub.s32 %v760, %v1036
        %v1053 = vsub.s32 %v761, %v1037
        %v1054 = vsub.s32 %v762, %v1038
        %v1055 = vsub.s32 %v763, %v1039
        %v1056 = vsub.s32 %v764, %v1040
        %v1057 = vmul.u32 %v1024, 8
        %v1058 = vsub.s32 %v766, %v1057
        %vm1059 = vcmp.eq.s32.totalorder %v814, %v766
        %vm1060 = vcmp.eq.s32.totalorder %v827, %v766
        %vm1061 = vcmp.eq.s32.totalorder %v840, %v766
        %vm1062 = vcmp.eq.s32.totalorder %v853, %v766
        %vm1063 = vcmp.eq.s32.totalorder %v866, %v766
        %vm1064 = vcmp.eq.s32.totalorder %v879, %v766
        %vm1065 = vcmp.eq.s32.totalorder %v892, %v766
        %vm1066 = vcmp.eq.s32.totalorder %v905, %v766
        %vm1067 = vcmp.eq.s32.totalorder %v918, %v766
        %vm1068 = vcmp.eq.s32.totalorder %v931, %v766
        %vm1069 = vcmp.eq.s32.totalorder %v944, %v766
        %vm1070 = vcmp.eq.s32.totalorder %v957, %v766
        %vm1071 = vcmp.eq.s32.totalorder %v970, %v766
        %vm1072 = vcmp.eq.s32.totalorder %v983, %v766
        %vm1073 = vcmp.eq.s32.totalorder %v996, %v766
        %vm1074 = vcmp.eq.s32.totalorder %v1009, %v766
        %v1075 = vsel %vm1059, 1, 0
        %v1076 = vsel %vm1060, 1, 0
        %v1077 = vsel %vm1061, 1, 0
        %v1078 = vsel %vm1062, 1, 0
        %v1079 = vsel %vm1063, 1, 0
        %v1080 = vsel %vm1064, 1, 0
        %v1081 = vsel %vm1065, 1, 0
        %v1082 = vsel %vm1066, 1, 0
        %v1083 = vsel %vm1067, 1, 0
        %v1084 = vsel %vm1068, 1, 0
        %v1085 = vsel %vm1069, 1, 0
        %v1086 = vsel %vm1070, 1, 0
        %v1087 = vsel %vm1071, 1, 0
        %v1088 = vsel %vm1072, 1, 0
        %v1089 = vsel %vm1073, 1, 0
        %v1090 = vsel %vm1074, 1, 0
        %v1091 = vcvt.s32.f32 %v1075
        %v1092 = vcvt.s32.f32 %v1076
        %v1093 = vcvt.s32.f32 %v1077
        %v1094 = vcvt.s32.f32 %v1078
        %v1095 = vcvt.s32.f32 %v1079
        %v1096 = vcvt.s32.f32 %v1080
        %v1097 = vcvt.s32.f32 %v1081
        %v1098 = vcvt.s32.f32 %v1082
        %v1099 = vcvt.s32.f32 %v1083
        %v1100 = vcvt.s32.f32 %v1084
        %v1101 = vcvt.s32.f32 %v1085
        %v1102 = vcvt.s32.f32 %v1086
        %v1103 = vcvt.s32.f32 %v1087
        %v1104 = vcvt.s32.f32 %v1088
        %v1105 = vcvt.s32.f32 %v1089
        %v1106 = vcvt.s32.f32 %v1090
        %vm1107 = vcmp.eq.s32.totalorder %v1024, %v749
        %vm1108 = vcmp.eq.s32.totalorder %v1024, %v750
        %v1109 = vsel %vm1107, 1, 0
        %v1110 = vsel %vm1108, 1, 0
        %v1111 = vcvt.s32.f32 %v1109
        %v1112 = vcvt.s32.f32 %v1110
        %v1114 = vlaneseq
        %v1115 = vshrl.u32 %v1114, 7
        %v1116 = vsub.s32 0, %v1115
        %v1117 = vrot.slane %v747, %v1116
        %v1119 = vmul.f32 %v1091, %v1117
        %v1120 = vmul.f32 %v1092, %v1117
        %v1121 = vmul.f32 %v1093, %v1117
        %v1122 = vmul.f32 %v1094, %v1117
        %v1123 = vmul.f32 %v1095, %v1117
        %v1124 = vmul.f32 %v1096, %v1117
        %v1125 = vmul.f32 %v1097, %v1117
        %v1126 = vmul.f32 %v1098, %v1117
        %v1127 = vmul.f32 %v1099, %v1117
        %v1128 = vmul.f32 %v1100, %v1117
        %v1129 = vmul.f32 %v1101, %v1117
        %v1130 = vmul.f32 %v1102, %v1117
        %v1131 = vmul.f32 %v1103, %v1117
        %v1132 = vmul.f32 %v1104, %v1117
        %v1133 = vmul.f32 %v1105, %v1117
        %v1134 = vmul.f32 %v1106, %v1117
        %v1135 = vsel %vm801, %v1119, 0.0
        %1136 = vadd.xlane.f32.xlu0 %v1135
        %v1137 = vpop.xlane.xlu0 %1136
        %v1138 = vsel %vm801, %v1120, 0.0
        %1139 = vadd.xlane.f32.xlu0 %v1138
        %v1140 = vpop.xlane.xlu0 %1139
        %v1141 = vsel %vm801, %v1121, 0.0
        %1142 = vadd.xlane.f32.xlu0 %v1141
        %v1143 = vpop.xlane.xlu0 %1142
        %v1144 = vsel %vm801, %v1122, 0.0
        %1145 = vadd.xlane.f32.xlu0 %v1144
        %v1146 = vpop.xlane.xlu0 %1145
        %v1147 = vsel %vm801, %v1123, 0.0
        %1148 = vadd.xlane.f32.xlu0 %v1147
        %v1149 = vpop.xlane.xlu0 %1148
        %v1150 = vsel %vm801, %v1124, 0.0
        %1151 = vadd.xlane.f32.xlu0 %v1150
        %v1152 = vpop.xlane.xlu0 %1151
        %v1153 = vsel %vm801, %v1125, 0.0
        %1154 = vadd.xlane.f32.xlu0 %v1153
        %v1155 = vpop.xlane.xlu0 %1154
        %v1156 = vsel %vm801, %v1126, 0.0
        %1157 = vadd.xlane.f32.xlu0 %v1156
        %v1158 = vpop.xlane.xlu0 %1157
        %v1159 = vsel %vm801, %v1127, 0.0
        %1160 = vadd.xlane.f32.xlu0 %v1159
        %v1161 = vpop.xlane.xlu0 %1160
        %v1162 = vsel %vm801, %v1128, 0.0
        %1163 = vadd.xlane.f32.xlu0 %v1162
        %v1164 = vpop.xlane.xlu0 %1163
        %v1165 = vsel %vm801, %v1129, 0.0
        %1166 = vadd.xlane.f32.xlu0 %v1165
        %v1167 = vpop.xlane.xlu0 %1166
        %v1168 = vsel %vm801, %v1130, 0.0
        %1169 = vadd.xlane.f32.xlu0 %v1168
        %v1170 = vpop.xlane.xlu0 %1169
        %v1171 = vsel %vm801, %v1131, 0.0
        %1172 = vadd.xlane.f32.xlu0 %v1171
        %v1173 = vpop.xlane.xlu0 %1172
        %v1174 = vsel %vm801, %v1132, 0.0
        %1175 = vadd.xlane.f32.xlu0 %v1174
        %v1176 = vpop.xlane.xlu0 %1175
        %v1177 = vsel %vm801, %v1133, 0.0
        %1178 = vadd.xlane.f32.xlu0 %v1177
        %v1179 = vpop.xlane.xlu0 %1178
        %v1180 = vsel %vm801, %v1134, 0.0
        %1181 = vadd.xlane.f32.xlu0 %v1180
        %v1182 = vpop.xlane.xlu0 %1181
        %v1183 = vcvt.f32.s32.to.zero.pseudo %v1137
        %v1184 = vcvt.f32.s32.to.zero.pseudo %v1140
        %v1185 = vcvt.f32.s32.to.zero.pseudo %v1143
        %v1186 = vcvt.f32.s32.to.zero.pseudo %v1146
        %v1187 = vcvt.f32.s32.to.zero.pseudo %v1149
        %v1188 = vcvt.f32.s32.to.zero.pseudo %v1152
        %v1189 = vcvt.f32.s32.to.zero.pseudo %v1155
        %v1190 = vcvt.f32.s32.to.zero.pseudo %v1158
        %v1191 = vcvt.f32.s32.to.zero.pseudo %v1161
        %v1192 = vcvt.f32.s32.to.zero.pseudo %v1164
        %v1193 = vcvt.f32.s32.to.zero.pseudo %v1167
        %v1194 = vcvt.f32.s32.to.zero.pseudo %v1170
        %v1195 = vcvt.f32.s32.to.zero.pseudo %v1173
        %v1196 = vcvt.f32.s32.to.zero.pseudo %v1176
        %v1197 = vcvt.f32.s32.to.zero.pseudo %v1179
        %v1198 = vcvt.f32.s32.to.zero.pseudo %v1182
        %v1199 = vsel %vm801, %v747, 0
        %1201 = vmatprep.subr.mxu0 0.0
        %1202 = vmatpush1.msra.mxu0 %v1111
        %1203 = vmatprep.subr.mxu0 0.0
        %1204 = vmatpush1.msra.mxu0 %v1112
        %1205 = vmatprep.subr.mxu0 0.0
        %1206 = vmatpush1.msra.mxu0 0.0
        %1207 = vmatprep.subr.mxu0 0.0
        %1208 = vmatpush1.msra.mxu0 0.0
        %1209 = vmatprep.subr.mxu0 0.0
        %1210 = vmatpush1.msra.mxu0 0.0
        %1211 = vmatprep.subr.mxu0 0.0
        %1212 = vmatpush1.msra.mxu0 0.0
        %1213 = vmatprep.subr.mxu0 0.0
        %1214 = vmatpush1.msra.mxu0 0.0
        %1215 = vmatprep.subr.mxu0 0.0
        %1216 = vmatpush1.msra.mxu0 0.0
        %1217 = vmatprep.subr.mxu0 0.0
        %1218 = vmatpush1.msra.mxu0 0.0
        %1219 = vmatprep.subr.mxu0 0.0
        %1220 = vmatpush1.msra.mxu0 0.0
        %1221 = vmatprep.subr.mxu0 0.0
        %1222 = vmatpush1.msra.mxu0 0.0
        %1223 = vmatprep.subr.mxu0 0.0
        %1224 = vmatpush1.msra.mxu0 0.0
        %1225 = vmatprep.subr.mxu0 0.0
        %1226 = vmatpush1.msra.mxu0 0.0
        %1227 = vmatprep.subr.mxu0 0.0
        %1228 = vmatpush1.msra.mxu0 0.0
        %1229 = vmatprep.subr.mxu0 0.0
        %1230 = vmatpush1.msra.mxu0 0.0
        %1231 = vmatprep.subr.mxu0 0.0
        %1232 = vmatpush1.msra.mxu0 0.0
        %1233 = vmatprep.subr.mxu0 0.0
        %1234 = vmatpush1.msra.mxu0 0.0
        %1235 = vmatprep.subr.mxu0 0.0
        %1236 = vmatpush1.msra.mxu0 0.0
        %1237 = vmatprep.subr.mxu0 0.0
        %1238 = vmatpush1.msra.mxu0 0.0
        %1239 = vmatprep.subr.mxu0 0.0
        %1240 = vmatpush1.msra.mxu0 0.0
        %1241 = vmatprep.subr.mxu0 0.0
        %1242 = vmatpush1.msra.mxu0 0.0
        %1243 = vmatprep.subr.mxu0 0.0
        %1244 = vmatpush1.msra.mxu0 0.0
        %1245 = vmatprep.subr.mxu0 0.0
        %1246 = vmatpush1.msra.mxu0 0.0
        %1247 = vmatprep.subr.mxu0 0.0
        %1248 = vmatpush1.msra.mxu0 0.0
        %1249 = vmatprep.subr.mxu0 0.0
        %1250 = vmatpush1.msra.mxu0 0.0
        %1251 = vmatprep.subr.mxu0 0.0
        %1252 = vmatpush1.msra.mxu0 0.0
        %1253 = vmatprep.subr.mxu0 0.0
        %1254 = vmatpush1.msra.mxu0 0.0
        %1255 = vmatprep.subr.mxu0 0.0
        %1256 = vmatpush1.msra.mxu0 0.0
        %1257 = vmatprep.subr.mxu0 0.0
        %1258 = vmatpush1.msra.mxu0 0.0
        %1259 = vmatprep.subr.mxu0 0.0
        %1260 = vmatpush1.msra.mxu0 0.0
        %1261 = vmatprep.subr.mxu0 0.0
        %1262 = vmatpush1.msra.mxu0 0.0
        %1263 = vmatprep.subr.mxu0 0.0
        %1264 = vmatpush1.msra.mxu0 0.0
        %1265 = vmatprep.mubr.f32.mxu0 0.0
        %1266 = vmatmul.mubr.f32.gmra.mrb[0].mxu0 %v1199
        %v1267 = vpop.f32.mrb[0].mxu0
        %v1268 = vadd.f32 0.0, %v1267
        %v1269 = vpop.f32.mrb[0].mxu0
        %1270 = vdwg.mxu0
        %v1271 = vcvt.f32.s32.to.zero.pseudo %v1268
        %vm1272 = vcmp.lt.s32.totalorder %v1041, %v1183
        %vm1273 = vcmp.lt.s32.totalorder %v1042, %v1184
        %vm1274 = vcmp.lt.s32.totalorder %v1043, %v1185
        %vm1275 = vcmp.lt.s32.totalorder %v1044, %v1186
        %vm1276 = vcmp.lt.s32.totalorder %v1045, %v1187
        %vm1277 = vcmp.lt.s32.totalorder %v1046, %v1188
        %vm1278 = vcmp.lt.s32.totalorder %v1047, %v1189
        %vm1279 = vcmp.lt.s32.totalorder %v1048, %v1190
        %vm1280 = vcmp.lt.s32.totalorder %v1049, %v1191
        %vm1281 = vcmp.lt.s32.totalorder %v1050, %v1192
        %vm1282 = vcmp.lt.s32.totalorder %v1051, %v1193
        %vm1283 = vcmp.lt.s32.totalorder %v1052, %v1194
        %vm1284 = vcmp.lt.s32.totalorder %v1053, %v1195
        %vm1285 = vcmp.lt.s32.totalorder %v1054, %v1196
        %vm1286 = vcmp.lt.s32.totalorder %v1055, %v1197
        %vm1287 = vcmp.lt.s32.totalorder %v1056, %v1198
        %vm1288 = vcmp.lt.s32.totalorder %v1058, %v1271
        %vm1289 = vcmp.eq.s32.totalorder %v814, %v1024
        %vm1290 = vcmp.eq.s32.totalorder %v827, %v1024
        %vm1291 = vcmp.eq.s32.totalorder %v840, %v1024
        %vm1292 = vcmp.eq.s32.totalorder %v853, %v1024
        %vm1293 = vcmp.eq.s32.totalorder %v866, %v1024
        %vm1294 = vcmp.eq.s32.totalorder %v879, %v1024
        %vm1295 = vcmp.eq.s32.totalorder %v892, %v1024
        %vm1296 = vcmp.eq.s32.totalorder %v905, %v1024
        %vm1297 = vcmp.eq.s32.totalorder %v918, %v1024
        %vm1298 = vcmp.eq.s32.totalorder %v931, %v1024
        %vm1299 = vcmp.eq.s32.totalorder %v944, %v1024
        %vm1300 = vcmp.eq.s32.totalorder %v957, %v1024
        %vm1301 = vcmp.eq.s32.totalorder %v970, %v1024
        %vm1302 = vcmp.eq.s32.totalorder %v983, %v1024
        %vm1303 = vcmp.eq.s32.totalorder %v996, %v1024
        %vm1304 = vcmp.eq.s32.totalorder %v1009, %v1024
        %v1305 = vsel %vm1288, 1, 0
        %v1306 = vlaneseq
        %v1307 = vshrl.u32 %v1306, 7
        %v1308 = vsub.s32 0, %v1307
        %v1309 = vrot.slane %v1305, %v1308
        %vm1310 = vcmp.eq.s32.totalorder %v1309, 1
        %vm1311 = vmand %vm1289, %vm1310
        %vm1312 = vmand %vm1290, %vm1310
        %vm1313 = vmand %vm1291, %vm1310
        %vm1314 = vmand %vm1292, %vm1310
        %vm1315 = vmand %vm1293, %vm1310
        %vm1316 = vmand %vm1294, %vm1310
        %vm1317 = vmand %vm1295, %vm1310
        %vm1318 = vmand %vm1296, %vm1310
        %vm1319 = vmand %vm1297, %vm1310
        %vm1320 = vmand %vm1298, %vm1310
        %vm1321 = vmand %vm1299, %vm1310
        %vm1322 = vmand %vm1300, %vm1310
        %vm1323 = vmand %vm1301, %vm1310
        %vm1324 = vmand %vm1302, %vm1310
        %vm1325 = vmand %vm1303, %vm1310
        %vm1326 = vmand %vm1304, %vm1310
        %v1327 = vsub.s32 8, %v1183
        %v1328 = vsub.s32 8, %v1184
        %v1329 = vsub.s32 8, %v1185
        %v1330 = vsub.s32 8, %v1186
        %v1331 = vsub.s32 8, %v1187
        %v1332 = vsub.s32 8, %v1188
        %v1333 = vsub.s32 8, %v1189
        %v1334 = vsub.s32 8, %v1190
        %v1335 = vsub.s32 8, %v1191
        %v1336 = vsub.s32 8, %v1192
        %v1337 = vsub.s32 8, %v1193
        %v1338 = vsub.s32 8, %v1194
        %v1339 = vsub.s32 8, %v1195
        %v1340 = vsub.s32 8, %v1196
        %v1341 = vsub.s32 8, %v1197
        %v1342 = vsub.s32 8, %v1198
        %v1343 = vadd.s32 %v1041, %v1327
        %v1344 = vadd.s32 %v1042, %v1328
        %v1345 = vadd.s32 %v1043, %v1329
        %v1346 = vadd.s32 %v1044, %v1330
        %v1347 = vadd.s32 %v1045, %v1331
        %v1348 = vadd.s32 %v1046, %v1332
        %v1349 = vadd.s32 %v1047, %v1333
        %v1350 = vadd.s32 %v1048, %v1334
        %v1351 = vadd.s32 %v1049, %v1335
        %v1352 = vadd.s32 %v1050, %v1336
        %v1353 = vadd.s32 %v1051, %v1337
        %v1354 = vadd.s32 %v1052, %v1338
        %v1355 = vadd.s32 %v1053, %v1339
        %v1356 = vadd.s32 %v1054, %v1340
        %v1357 = vadd.s32 %v1055, %v1341
        %v1358 = vadd.s32 %v1056, %v1342
        %vm1359 = vcmp.eq.s32.totalorder %v766, %v1343
        %vm1360 = vcmp.eq.s32.totalorder %v766, %v1344
        %vm1361 = vcmp.eq.s32.totalorder %v766, %v1345
        %vm1362 = vcmp.eq.s32.totalorder %v766, %v1346
        %vm1363 = vcmp.eq.s32.totalorder %v766, %v1347
        %vm1364 = vcmp.eq.s32.totalorder %v766, %v1348
        %vm1365 = vcmp.eq.s32.totalorder %v766, %v1349
        %vm1366 = vcmp.eq.s32.totalorder %v766, %v1350
        %vm1367 = vcmp.eq.s32.totalorder %v766, %v1351
        %vm1368 = vcmp.eq.s32.totalorder %v766, %v1352
        %vm1369 = vcmp.eq.s32.totalorder %v766, %v1353
        %vm1370 = vcmp.eq.s32.totalorder %v766, %v1354
        %vm1371 = vcmp.eq.s32.totalorder %v766, %v1355
        %vm1372 = vcmp.eq.s32.totalorder %v766, %v1356
        %vm1373 = vcmp.eq.s32.totalorder %v766, %v1357
        %vm1374 = vcmp.eq.s32.totalorder %v766, %v1358
        %v1375 = vsel %vm1272, 1, 0
        %v1376 = vsel %vm1273, 1, 0
        %v1377 = vsel %vm1274, 1, 0
        %v1378 = vsel %vm1275, 1, 0
        %v1379 = vsel %vm1276, 1, 0
        %v1380 = vsel %vm1277, 1, 0
        %v1381 = vsel %vm1278, 1, 0
        %v1382 = vsel %vm1279, 1, 0
        %v1383 = vsel %vm1280, 1, 0
        %v1384 = vsel %vm1281, 1, 0
        %v1385 = vsel %vm1282, 1, 0
        %v1386 = vsel %vm1283, 1, 0
        %v1387 = vsel %vm1284, 1, 0
        %v1388 = vsel %vm1285, 1, 0
        %v1389 = vsel %vm1286, 1, 0
        %v1390 = vsel %vm1287, 1, 0
        %vm1391 = vcmp.eq.s32.totalorder %v1375, 1
        %vm1392 = vcmp.eq.s32.totalorder %v1376, 1
        %vm1393 = vcmp.eq.s32.totalorder %v1377, 1
        %vm1394 = vcmp.eq.s32.totalorder %v1378, 1
        %vm1395 = vcmp.eq.s32.totalorder %v1379, 1
        %vm1396 = vcmp.eq.s32.totalorder %v1380, 1
        %vm1397 = vcmp.eq.s32.totalorder %v1381, 1
        %vm1398 = vcmp.eq.s32.totalorder %v1382, 1
        %vm1399 = vcmp.eq.s32.totalorder %v1383, 1
        %vm1400 = vcmp.eq.s32.totalorder %v1384, 1
        %vm1401 = vcmp.eq.s32.totalorder %v1385, 1
        %vm1402 = vcmp.eq.s32.totalorder %v1386, 1
        %vm1403 = vcmp.eq.s32.totalorder %v1387, 1
        %vm1404 = vcmp.eq.s32.totalorder %v1388, 1
        %vm1405 = vcmp.eq.s32.totalorder %v1389, 1
        %vm1406 = vcmp.eq.s32.totalorder %v1390, 1
        %vm1407 = vmand %vm1359, %vm1391
        %vm1408 = vmand %vm1360, %vm1392
        %vm1409 = vmand %vm1361, %vm1393
        %vm1410 = vmand %vm1362, %vm1394
        %vm1411 = vmand %vm1363, %vm1395
        %vm1412 = vmand %vm1364, %vm1396
        %vm1413 = vmand %vm1365, %vm1397
        %vm1414 = vmand %vm1366, %vm1398
        %vm1415 = vmand %vm1367, %vm1399
        %vm1416 = vmand %vm1368, %vm1400
        %vm1417 = vmand %vm1369, %vm1401
        %vm1418 = vmand %vm1370, %vm1402
        %vm1419 = vmand %vm1371, %vm1403
        %vm1420 = vmand %vm1372, %vm1404
        %vm1421 = vmand %vm1373, %vm1405
        %vm1422 = vmand %vm1374, %vm1406
        %v1423 = vsel %vm1407, 1, 0
        %v1424 = vsel %vm1408, 1, 0
        %v1425 = vsel %vm1409, 1, 0
        %v1426 = vsel %vm1410, 1, 0
        %v1427 = vsel %vm1411, 1, 0
        %v1428 = vsel %vm1412, 1, 0
        %v1429 = vsel %vm1413, 1, 0
        %v1430 = vsel %vm1414, 1, 0
        %v1431 = vsel %vm1415, 1, 0
        %v1432 = vsel %vm1416, 1, 0
        %v1433 = vsel %vm1417, 1, 0
        %v1434 = vsel %vm1418, 1, 0
        %v1435 = vsel %vm1419, 1, 0
        %v1436 = vsel %vm1420, 1, 0
        %v1437 = vsel %vm1421, 1, 0
        %v1438 = vsel %vm1422, 1, 0
        %v1439 = vcvt.s32.f32 %v1423
        %v1440 = vcvt.s32.f32 %v1424
        %v1441 = vcvt.s32.f32 %v1425
        %v1442 = vcvt.s32.f32 %v1426
        %v1443 = vcvt.s32.f32 %v1427
        %v1444 = vcvt.s32.f32 %v1428
        %v1445 = vcvt.s32.f32 %v1429
        %v1446 = vcvt.s32.f32 %v1430
        %v1447 = vcvt.s32.f32 %v1431
        %v1448 = vcvt.s32.f32 %v1432
        %v1449 = vcvt.s32.f32 %v1433
        %v1450 = vcvt.s32.f32 %v1434
        %v1451 = vcvt.s32.f32 %v1435
        %v1452 = vcvt.s32.f32 %v1436
        %v1453 = vcvt.s32.f32 %v1437
        %v1454 = vcvt.s32.f32 %v1438
        %v1455 = vld [vmem:[%s2] sm:$0xff]
        %vm1456 = vcmask 64512
        %v1458 = vsel %vm1456, %v1439, 0
        %v1461 = vsel %vm1456, %v1440, 0
        %v1464 = vsel %vm1456, %v1441, 0
        %v1467 = vsel %vm1456, %v1442, 0
        %v1470 = vsel %vm1456, %v1443, 0
        %v1473 = vsel %vm1456, %v1444, 0
        %v1476 = vsel %vm1456, %v1445, 0
        %v1479 = vsel %vm1456, %v1446, 0
        %v1482 = vsel %vm1456, %v1447, 0
        %v1485 = vsel %vm1456, %v1448, 0
        %v1488 = vsel %vm1456, %v1449, 0
        %v1491 = vsel %vm1456, %v1450, 0
        %v1494 = vsel %vm1456, %v1451, 0
        %v1497 = vsel %vm1456, %v1452, 0
        %v1500 = vsel %vm1456, %v1453, 0
        %v1503 = vsel %vm1456, %v1454, 0
        %1505 = vmatprep.subr.mxu0 0.0
        %1506 = vmatpush1.msra.mxu0 %v1455
        %1507 = vmatprep.subr.mxu0 0.0
        %1508 = vmatpush1.msra.mxu0 0.0
        %1509 = vmatprep.subr.mxu0 0.0
        %1510 = vmatpush1.msra.mxu0 0.0
        %1511 = vmatprep.subr.mxu0 0.0
        %1512 = vmatpush1.msra.mxu0 0.0
        %1513 = vmatprep.subr.mxu0 0.0
        %1514 = vmatpush1.msra.mxu0 0.0
        %1515 = vmatprep.subr.mxu0 0.0
        %1516 = vmatpush1.msra.mxu0 0.0
        %1517 = vmatprep.subr.mxu0 0.0
        %1518 = vmatpush1.msra.mxu0 0.0
        %1519 = vmatprep.subr.mxu0 0.0
        %1520 = vmatpush1.msra.mxu0 0.0
        %1521 = vmatprep.subr.mxu0 0.0
        %1522 = vmatpush1.msra.mxu0 0.0
        %1523 = vmatprep.subr.mxu0 0.0
        %1524 = vmatpush1.msra.mxu0 0.0
        %1525 = vmatprep.subr.mxu0 0.0
        %1526 = vmatpush1.msra.mxu0 0.0
        %1527 = vmatprep.subr.mxu0 0.0
        %1528 = vmatpush1.msra.mxu0 0.0
        %1529 = vmatprep.subr.mxu0 0.0
        %1530 = vmatpush1.msra.mxu0 0.0
        %1531 = vmatprep.subr.mxu0 0.0
        %1532 = vmatpush1.msra.mxu0 0.0
        %1533 = vmatprep.subr.mxu0 0.0
        %1534 = vmatpush1.msra.mxu0 0.0
        %1535 = vmatprep.subr.mxu0 0.0
        %1536 = vmatpush1.msra.mxu0 0.0
        %1537 = vmatprep.subr.mxu0 0.0
        %1538 = vmatpush1.msra.mxu0 0.0
        %1539 = vmatprep.subr.mxu0 0.0
        %1540 = vmatpush1.msra.mxu0 0.0
        %1541 = vmatprep.subr.mxu0 0.0
        %1542 = vmatpush1.msra.mxu0 0.0
        %1543 = vmatprep.subr.mxu0 0.0
        %1544 = vmatpush1.msra.mxu0 0.0
        %1545 = vmatprep.subr.mxu0 0.0
        %1546 = vmatpush1.msra.mxu0 0.0
        %1547 = vmatprep.subr.mxu0 0.0
        %1548 = vmatpush1.msra.mxu0 0.0
        %1549 = vmatprep.subr.mxu0 0.0
        %1550 = vmatpush1.msra.mxu0 0.0
        %1551 = vmatprep.subr.mxu0 0.0
        %1552 = vmatpush1.msra.mxu0 0.0
        %1553 = vmatprep.subr.mxu0 0.0
        %1554 = vmatpush1.msra.mxu0 0.0
        %1555 = vmatprep.subr.mxu0 0.0
        %1556 = vmatpush1.msra.mxu0 0.0
        %1557 = vmatprep.subr.mxu0 0.0
        %1558 = vmatpush1.msra.mxu0 0.0
        %1559 = vmatprep.subr.mxu0 0.0
        %1560 = vmatpush1.msra.mxu0 0.0
        %1561 = vmatprep.subr.mxu0 0.0
        %1562 = vmatpush1.msra.mxu0 0.0
        %1563 = vmatprep.subr.mxu0 0.0
        %1564 = vmatpush1.msra.mxu0 0.0
        %1565 = vmatprep.subr.mxu0 0.0
        %1566 = vmatpush1.msra.mxu0 0.0
        %1567 = vmatprep.subr.mxu0 0.0
        %1568 = vmatpush1.msra.mxu0 0.0
        %1569 = vmatprep.mubr.f32.mxu0 0.0
        %1570 = vmatmul.mubr.f32.gmra.mrb[0].mxu0 %v1458
        %v1571 = vpop.f32.mrb[0].mxu0
        %v1572 = vadd.f32 0.0, %v1571
        %v1573 = vpop.f32.mrb[0].mxu0
        %1574 = vmatprep.mubr.f32.mxu0 0.0
        %1575 = vmatmul.mubr.f32.gmra.mrb[0].mxu0 %v1461
        %v1576 = vpop.f32.mrb[0].mxu0
        %v1577 = vadd.f32 0.0, %v1576
        %v1578 = vpop.f32.mrb[0].mxu0
        %1579 = vmatprep.mubr.f32.mxu0 0.0
        %1580 = vmatmul.mubr.f32.gmra.mrb[0].mxu0 %v1464
        %v1581 = vpop.f32.mrb[0].mxu0
        %v1582 = vadd.f32 0.0, %v1581
        %v1583 = vpop.f32.mrb[0].mxu0
        %1584 = vmatprep.mubr.f32.mxu0 0.0
        %1585 = vmatmul.mubr.f32.gmra.mrb[0].mxu0 %v1467
        %v1586 = vpop.f32.mrb[0].mxu0
        %v1587 = vadd.f32 0.0, %v1586
        %v1588 = vpop.f32.mrb[0].mxu0
        %1589 = vmatprep.mubr.f32.mxu0 0.0
        %1590 = vmatmul.mubr.f32.gmra.mrb[0].mxu0 %v1470
        %v1591 = vpop.f32.mrb[0].mxu0
        %v1592 = vadd.f32 0.0, %v1591
        %v1593 = vpop.f32.mrb[0].mxu0
        %1594 = vmatprep.mubr.f32.mxu0 0.0
        %1595 = vmatmul.mubr.f32.gmra.mrb[0].mxu0 %v1473
        %v1596 = vpop.f32.mrb[0].mxu0
        %v1597 = vadd.f32 0.0, %v1596
        %v1598 = vpop.f32.mrb[0].mxu0
        %1599 = vmatprep.mubr.f32.mxu0 0.0
        %1600 = vmatmul.mubr.f32.gmra.mrb[0].mxu0 %v1476
        %v1601 = vpop.f32.mrb[0].mxu0
        %v1602 = vadd.f32 0.0, %v1601
        %v1603 = vpop.f32.mrb[0].mxu0
        %1604 = vmatprep.mubr.f32.mxu0 0.0
        %1605 = vmatmul.mubr.f32.gmra.mrb[0].mxu0 %v1479
        %v1606 = vpop.f32.mrb[0].mxu0
        %v1607 = vadd.f32 0.0, %v1606
        %v1608 = vpop.f32.mrb[0].mxu0
        %1609 = vmatprep.mubr.f32.mxu0 0.0
        %1610 = vmatmul.mubr.f32.gmra.mrb[0].mxu0 %v1482
        %v1611 = vpop.f32.mrb[0].mxu0
        %v1612 = vadd.f32 0.0, %v1611
        %v1613 = vpop.f32.mrb[0].mxu0
        %1614 = vmatprep.mubr.f32.mxu0 0.0
        %1615 = vmatmul.mubr.f32.gmra.mrb[0].mxu0 %v1485
        %v1616 = vpop.f32.mrb[0].mxu0
        %v1617 = vadd.f32 0.0, %v1616
        %v1618 = vpop.f32.mrb[0].mxu0
        %1619 = vmatprep.mubr.f32.mxu0 0.0
        %1620 = vmatmul.mubr.f32.gmra.mrb[0].mxu0 %v1488
        %v1621 = vpop.f32.mrb[0].mxu0
        %v1622 = vadd.f32 0.0, %v1621
        %v1623 = vpop.f32.mrb[0].mxu0
        %1624 = vmatprep.mubr.f32.mxu0 0.0
        %1625 = vmatmul.mubr.f32.gmra.mrb[0].mxu0 %v1491
        %v1626 = vpop.f32.mrb[0].mxu0
        %v1627 = vadd.f32 0.0, %v1626
        %v1628 = vpop.f32.mrb[0].mxu0
        %1629 = vmatprep.mubr.f32.mxu0 0.0
        %1630 = vmatmul.mubr.f32.gmra.mrb[0].mxu0 %v1494
        %v1631 = vpop.f32.mrb[0].mxu0
        %v1632 = vadd.f32 0.0, %v1631
        %v1633 = vpop.f32.mrb[0].mxu0
        %1634 = vmatprep.mubr.f32.mxu0 0.0
        %1635 = vmatmul.mubr.f32.gmra.mrb[0].mxu0 %v1497
        %v1636 = vpop.f32.mrb[0].mxu0
        %v1637 = vadd.f32 0.0, %v1636
        %v1638 = vpop.f32.mrb[0].mxu0
        %1639 = vmatprep.mubr.f32.mxu0 0.0
        %1640 = vmatmul.mubr.f32.gmra.mrb[0].mxu0 %v1500
        %v1641 = vpop.f32.mrb[0].mxu0
        %v1642 = vadd.f32 0.0, %v1641
        %v1643 = vpop.f32.mrb[0].mxu0
        %1644 = vmatprep.mubr.f32.mxu0 0.0
        %1645 = vmatmul.mubr.f32.gmra.mrb[0].mxu0 %v1503
        %v1646 = vpop.f32.mrb[0].mxu0
        %v1647 = vadd.f32 0.0, %v1646
        %v1648 = vpop.f32.mrb[0].mxu0
        %1649 = vdwg.mxu0
        %v1650 = vadd.f32 %v731, %v1572
        %v1651 = vadd.f32 %v732, %v1577
        %v1652 = vadd.f32 %v733, %v1582
        %v1653 = vadd.f32 %v734, %v1587
        %v1654 = vadd.f32 %v735, %v1592
        %v1655 = vadd.f32 %v736, %v1597
        %v1656 = vadd.f32 %v737, %v1602
        %v1657 = vadd.f32 %v738, %v1607
        %v1658 = vadd.f32 %v739, %v1612
        %v1659 = vadd.f32 %v740, %v1617
        %v1660 = vadd.f32 %v741, %v1622
        %v1661 = vadd.f32 %v742, %v1627
        %v1662 = vadd.f32 %v743, %v1632
        %v1663 = vadd.f32 %v744, %v1637
        %v1664 = vadd.f32 %v745, %v1642
        %v1665 = vadd.f32 %v746, %v1647
        %v1666 = vsel %vm1391, %v1650, 0.0
        %v1667 = vsel %vm1392, %v1651, 0.0
        %v1668 = vsel %vm1393, %v1652, 0.0
        %v1669 = vsel %vm1394, %v1653, 0.0
        %v1670 = vsel %vm1395, %v1654, 0.0
        %v1671 = vsel %vm1396, %v1655, 0.0
        %v1672 = vsel %vm1397, %v1656, 0.0
        %v1673 = vsel %vm1398, %v1657, 0.0
        %v1674 = vsel %vm1399, %v1658, 0.0
        %v1675 = vsel %vm1400, %v1659, 0.0
        %v1676 = vsel %vm1401, %v1660, 0.0
        %v1677 = vsel %vm1402, %v1661, 0.0
        %v1678 = vsel %vm1403, %v1662, 0.0
        %v1679 = vsel %vm1404, %v1663, 0.0
        %v1680 = vsel %vm1405, %v1664, 0.0
        %v1681 = vsel %vm1406, %v1665, 0.0
        %vm1682 = vcmp.ge.s32.totalorder %v766, 0
        %vm1683 = vcmp.lt.s32.totalorder %v766, 8
        %vm1684 = vmand %vm1682, %vm1683
        %vm1685 = vcmp.ge.s32.totalorder %v766, 8
        %vm1686 = vcmp.lt.s32.totalorder %v766, 16
        %vm1687 = vmand %vm1685, %vm1686
        %vm1688 = vcmp.ge.s32.totalorder %v766, 16
        %vm1689 = vcmp.lt.s32.totalorder %v766, 24
        %vm1690 = vmand %vm1688, %vm1689
        %vm1691 = vcmp.ge.s32.totalorder %v766, 24
        %vm1692 = vcmp.lt.s32.totalorder %v766, 32
        %vm1693 = vmand %vm1691, %vm1692
        %v1694 = vpack.c.bf16 %v1667, %v1666
        %v1695 = vpack.c.bf16 %v1669, %v1668
        %v1696 = vpack.c.bf16 %v1671, %v1670
        %v1697 = vpack.c.bf16 %v1673, %v1672
        %v1698 = vpack.c.bf16 %v1675, %v1674
        %v1699 = vpack.c.bf16 %v1677, %v1676
        %v1700 = vpack.c.bf16 %v1679, %v1678
        %v1701 = vpack.c.bf16 %v1681, %v1680
        %v1702 = vld [vmem:[%s3] sm:$0xf]
        %v1703 = vld [vmem:[%s3 + $0x4] sm:$0xf]
        %v1704 = vld [vmem:[%s3 + $0x8] sm:$0xf]
        %v1705 = vld [vmem:[%s3 + $0xc] sm:$0xf]
        %v1706 = vld [vmem:[%s4] sm:$0x1]
        %v1708 = vlaneseq
        %v1709 = vshrl.u32 %v1708, 7
        %v1710 = vsub.s32 0, %v1709
        %v1711 = vrot.slane %v1706, %v1710
        %v1717 = vunpack.c.l.b16 %v1702
        %v1718 = vunpack.c.l.b16 %v1703
        %v1719 = vunpack.c.l.b16 %v1704
        %v1720 = vunpack.c.l.b16 %v1705
        %v1721 = vpack.c.b16 %v1718, %v1717
        %v1722 = vpack.c.b16 %v1720, %v1719
        %vm1723 = vcmask 261120
        %v1725 = vsel %vm1723, %v1694, 0
        %v1728 = vsel %vm1723, %v1695, 0
        %v1731 = vsel %vm1723, %v1696, 0
        %v1734 = vsel %vm1723, %v1697, 0
        %v1737 = vsel %vm1723, %v1698, 0
        %v1740 = vsel %vm1723, %v1699, 0
        %v1743 = vsel %vm1723, %v1700, 0
        %v1746 = vsel %vm1723, %v1701, 0
        %v1749 = vsel %vm1723, %v1721, 0
        %v1752 = vsel %vm1723, %v1722, 0
        %1754 = vmatprep.subr.bf16.mxu0 0
        %1755 = vmatpush1.bf16.xpose.msra.mxu0 %v1749
        %1756 = vmatprep.subr.bf16.mxu0 0
        %1757 = vmatpush1.bf16.xpose.msra.mxu0 %v1752
        %1758 = vmatprep.subr.bf16.mxu0 0
        %1759 = vmatpush1.bf16.xpose.msra.mxu0 0
        %1760 = vmatprep.subr.bf16.mxu0 0
        %1761 = vmatpush1.bf16.xpose.msra.mxu0 0
        %1762 = vmatprep.subr.bf16.mxu0 0
        %1763 = vmatpush1.bf16.xpose.msra.mxu0 0
        %1764 = vmatprep.subr.bf16.mxu0 0
        %1765 = vmatpush1.bf16.xpose.msra.mxu0 0
        %1766 = vmatprep.subr.bf16.mxu0 0
        %1767 = vmatpush1.bf16.xpose.msra.mxu0 0
        %1768 = vmatprep.subr.bf16.mxu0 0
        %1769 = vmatpush1.bf16.xpose.msra.mxu0 0
        %1770 = vmatprep.subr.bf16.mxu0 0
        %1771 = vmatpush1.bf16.xpose.msra.mxu0 0
        %1772 = vmatprep.subr.bf16.mxu0 0
        %1773 = vmatpush1.bf16.xpose.msra.mxu0 0
        %1774 = vmatprep.subr.bf16.mxu0 0
        %1775 = vmatpush1.bf16.xpose.msra.mxu0 0
        %1776 = vmatprep.subr.bf16.mxu0 0
        %1777 = vmatpush1.bf16.xpose.msra.mxu0 0
        %1778 = vmatprep.subr.bf16.mxu0 0
        %1779 = vmatpush1.bf16.xpose.msra.mxu0 0
        %1780 = vmatprep.subr.bf16.mxu0 0
        %1781 = vmatpush1.bf16.xpose.msra.mxu0 0
        %1782 = vmatprep.subr.bf16.mxu0 0
        %1783 = vmatpush1.bf16.xpose.msra.mxu0 0
        %1784 = vmatprep.subr.bf16.mxu0 0
        %1785 = vmatpush1.bf16.xpose.msra.mxu0 0
        %1786 = vmatprep.mubr.bf16.mxu0 0
        %1787 = vmatmul.mubr.bf16.gmra.mrb[0].mxu0 %v1725
        %v1788 = vpop.f32.mrb[0].mxu0
        %v1789 = vadd.f32 %v1711, %v1788
        %v1790 = vpop.f32.mrb[0].mxu0
        %v1791 = vpop.f32.mrb[0].mxu0
        %v1792 = vadd.f32 %v1711, %v1791
        %v1793 = vpop.f32.mrb[0].mxu0
        %1794 = vmatprep.mubr.bf16.mxu0 0
        %1795 = vmatmul.mubr.bf16.gmra.mrb[0].mxu0 %v1728
        %v1796 = vpop.f32.mrb[0].mxu0
        %v1797 = vadd.f32 %v1711, %v1796
        %v1798 = vpop.f32.mrb[0].mxu0
        %v1799 = vpop.f32.mrb[0].mxu0
        %v1800 = vadd.f32 %v1711, %v1799
        %v1801 = vpop.f32.mrb[0].mxu0
        %1802 = vmatprep.mubr.bf16.mxu0 0
        %1803 = vmatmul.mubr.bf16.gmra.mrb[0].mxu0 %v1731
        %v1804 = vpop.f32.mrb[0].mxu0
        %v1805 = vadd.f32 %v1711, %v1804
        %v1806 = vpop.f32.mrb[0].mxu0
        %v1807 = vpop.f32.mrb[0].mxu0
        %v1808 = vadd.f32 %v1711, %v1807
        %v1809 = vpop.f32.mrb[0].mxu0
        %1810 = vmatprep.mubr.bf16.mxu0 0
        %1811 = vmatmul.mubr.bf16.gmra.mrb[0].mxu0 %v1734
        %v1812 = vpop.f32.mrb[0].mxu0
        %v1813 = vadd.f32 %v1711, %v1812
        %v1814 = vpop.f32.mrb[0].mxu0
        %v1815 = vpop.f32.mrb[0].mxu0
        %v1816 = vadd.f32 %v1711, %v1815
        %v1817 = vpop.f32.mrb[0].mxu0
        %1818 = vmatprep.mubr.bf16.mxu0 0
        %1819 = vmatmul.mubr.bf16.gmra.mrb[0].mxu0 %v1737
        %v1820 = vpop.f32.mrb[0].mxu0
        %v1821 = vadd.f32 %v1711, %v1820
        %v1822 = vpop.f32.mrb[0].mxu0
        %v1823 = vpop.f32.mrb[0].mxu0
        %v1824 = vadd.f32 %v1711, %v1823
        %v1825 = vpop.f32.mrb[0].mxu0
        %1826 = vmatprep.mubr.bf16.mxu0 0
        %1827 = vmatmul.mubr.bf16.gmra.mrb[0].mxu0 %v1740
        %v1828 = vpop.f32.mrb[0].mxu0
        %v1829 = vadd.f32 %v1711, %v1828
        %v1830 = vpop.f32.mrb[0].mxu0
        %v1831 = vpop.f32.mrb[0].mxu0
        %v1832 = vadd.f32 %v1711, %v1831
        %v1833 = vpop.f32.mrb[0].mxu0
        %1834 = vmatprep.mubr.bf16.mxu0 0
        %1835 = vmatmul.mubr.bf16.gmra.mrb[0].mxu0 %v1743
        %v1836 = vpop.f32.mrb[0].mxu0
        %v1837 = vadd.f32 %v1711, %v1836
        %v1838 = vpop.f32.mrb[0].mxu0
        %v1839 = vpop.f32.mrb[0].mxu0
        %v1840 = vadd.f32 %v1711, %v1839
        %v1841 = vpop.f32.mrb[0].mxu0
        %1842 = vmatprep.mubr.bf16.mxu0 0
        %1843 = vmatmul.mubr.bf16.gmra.mrb[0].mxu0 %v1746
        %v1844 = vpop.f32.mrb[0].mxu0
        %v1845 = vadd.f32 %v1711, %v1844
        %v1846 = vpop.f32.mrb[0].mxu0
        %v1847 = vpop.f32.mrb[0].mxu0
        %v1848 = vadd.f32 %v1711, %v1847
        %v1849 = vpop.f32.mrb[0].mxu0
        %1850 = vdwg.mxu0
        %v1851 = vld [vmem:[%s5] sm:$0xf]
        %v1852 = vld [vmem:[%s5 + $0x4] sm:$0xf]
        %v1853 = vld [vmem:[%s5 + $0x8] sm:$0xf]
        %v1854 = vld [vmem:[%s5 + $0xc] sm:$0xf]
        %v1855 = vld [vmem:[%s6] sm:$0x1]
        %v1857 = vlaneseq
        %v1858 = vshrl.u32 %v1857, 7
        %v1859 = vsub.s32 0, %v1858
        %v1860 = vrot.slane %v1855, %v1859
        %v1866 = vunpack.c.l.b16 %v1851
        %v1867 = vunpack.c.l.b16 %v1852
        %v1868 = vunpack.c.l.b16 %v1853
        %v1869 = vunpack.c.l.b16 %v1854
        %v1870 = vpack.c.b16 %v1867, %v1866
        %v1871 = vpack.c.b16 %v1869, %v1868
        %v1873 = vsel %vm1723, %v1870, 0
        %v1876 = vsel %vm1723, %v1871, 0
        %1878 = vmatprep.subr.bf16.mxu0 0
        %1879 = vmatpush1.bf16.xpose.msra.mxu0 %v1873
        %1880 = vmatprep.subr.bf16.mxu0 0
        %1881 = vmatpush1.bf16.xpose.msra.mxu0 %v1876
        %1882 = vmatprep.subr.bf16.mxu0 0
        %1883 = vmatpush1.bf16.xpose.msra.mxu0 0
        %1884 = vmatprep.subr.bf16.mxu0 0
        %1885 = vmatpush1.bf16.xpose.msra.mxu0 0
        %1886 = vmatprep.subr.bf16.mxu0 0
        %1887 = vmatpush1.bf16.xpose.msra.mxu0 0
        %1888 = vmatprep.subr.bf16.mxu0 0
        %1889 = vmatpush1.bf16.xpose.msra.mxu0 0
        %1890 = vmatprep.subr.bf16.mxu0 0
        %1891 = vmatpush1.bf16.xpose.msra.mxu0 0
        %1892 = vmatprep.subr.bf16.mxu0 0
        %1893 = vmatpush1.bf16.xpose.msra.mxu0 0
        %1894 = vmatprep.subr.bf16.mxu0 0
        %1895 = vmatpush1.bf16.xpose.msra.mxu0 0
        %1896 = vmatprep.subr.bf16.mxu0 0
        %1897 = vmatpush1.bf16.xpose.msra.mxu0 0
        %1898 = vmatprep.subr.bf16.mxu0 0
        %1899 = vmatpush1.bf16.xpose.msra.mxu0 0
        %1900 = vmatprep.subr.bf16.mxu0 0
        %1901 = vmatpush1.bf16.xpose.msra.mxu0 0
        %1902 = vmatprep.subr.bf16.mxu0 0
        %1903 = vmatpush1.bf16.xpose.msra.mxu0 0
        %1904 = vmatprep.subr.bf16.mxu0 0
        %1905 = vmatpush1.bf16.xpose.msra.mxu0 0
        %1906 = vmatprep.subr.bf16.mxu0 0
        %1907 = vmatpush1.bf16.xpose.msra.mxu0 0
        %1908 = vmatprep.subr.bf16.mxu0 0
        %1909 = vmatpush1.bf16.xpose.msra.mxu0 0
        %1910 = vmatprep.mubr.bf16.mxu0 0
        %1911 = vmatmul.mubr.bf16.gmra.mrb[0].mxu0 %v1725
        %v1912 = vpop.f32.mrb[0].mxu0
        %v1913 = vadd.f32 %v1860, %v1912
        %v1914 = vpop.f32.mrb[0].mxu0
        %v1915 = vpop.f32.mrb[0].mxu0
        %v1916 = vadd.f32 %v1860, %v1915
        %v1917 = vpop.f32.mrb[0].mxu0
        %1918 = vmatprep.mubr.bf16.mxu0 0
        %1919 = vmatmul.mubr.bf16.gmra.mrb[0].mxu0 %v1728
        %v1920 = vpop.f32.mrb[0].mxu0
        %v1921 = vadd.f32 %v1860, %v1920
        %v1922 = vpop.f32.mrb[0].mxu0
        %v1923 = vpop.f32.mrb[0].mxu0
        %v1924 = vadd.f32 %v1860, %v1923
        %v1925 = vpop.f32.mrb[0].mxu0
        %1926 = vmatprep.mubr.bf16.mxu0 0
        %1927 = vmatmul.mubr.bf16.gmra.mrb[0].mxu0 %v1731
        %v1928 = vpop.f32.mrb[0].mxu0
        %v1929 = vadd.f32 %v1860, %v1928
        %v1930 = vpop.f32.mrb[0].mxu0
        %v1931 = vpop.f32.mrb[0].mxu0
        %v1932 = vadd.f32 %v1860, %v1931
        %v1933 = vpop.f32.mrb[0].mxu0
        %1934 = vmatprep.mubr.bf16.mxu0 0
        %1935 = vmatmul.mubr.bf16.gmra.mrb[0].mxu0 %v1734
        %v1936 = vpop.f32.mrb[0].mxu0
        %v1937 = vadd.f32 %v1860, %v1936
        %v1938 = vpop.f32.mrb[0].mxu0
        %v1939 = vpop.f32.mrb[0].mxu0
        %v1940 = vadd.f32 %v1860, %v1939
        %v1941 = vpop.f32.mrb[0].mxu0
        %1942 = vmatprep.mubr.bf16.mxu0 0
        %1943 = vmatmul.mubr.bf16.gmra.mrb[0].mxu0 %v1737
        %v1944 = vpop.f32.mrb[0].mxu0
        %v1945 = vadd.f32 %v1860, %v1944
        %v1946 = vpop.f32.mrb[0].mxu0
        %v1947 = vpop.f32.mrb[0].mxu0
        %v1948 = vadd.f32 %v1860, %v1947
        %v1949 = vpop.f32.mrb[0].mxu0
        %1950 = vmatprep.mubr.bf16.mxu0 0
        %1951 = vmatmul.mubr.bf16.gmra.mrb[0].mxu0 %v1740
        %v1952 = vpop.f32.mrb[0].mxu0
        %v1953 = vadd.f32 %v1860, %v1952
        %v1954 = vpop.f32.mrb[0].mxu0
        %v1955 = vpop.f32.mrb[0].mxu0
        %v1956 = vadd.f32 %v1860, %v1955
        %v1957 = vpop.f32.mrb[0].mxu0
        %1958 = vmatprep.mubr.bf16.mxu0 0
        %1959 = vmatmul.mubr.bf16.gmra.mrb[0].mxu0 %v1743
        %v1960 = vpop.f32.mrb[0].mxu0
        %v1961 = vadd.f32 %v1860, %v1960
        %v1962 = vpop.f32.mrb[0].mxu0
        %v1963 = vpop.f32.mrb[0].mxu0
        %v1964 = vadd.f32 %v1860, %v1963
        %v1965 = vpop.f32.mrb[0].mxu0
        %1966 = vmatprep.mubr.bf16.mxu0 0
        %1967 = vmatmul.mubr.bf16.gmra.mrb[0].mxu0 %v1746
        %v1968 = vpop.f32.mrb[0].mxu0
        %v1969 = vadd.f32 %v1860, %v1968
        %v1970 = vpop.f32.mrb[0].mxu0
        %v1971 = vpop.f32.mrb[0].mxu0
        %v1972 = vadd.f32 %v1860, %v1971
        %v1973 = vpop.f32.mrb[0].mxu0
        %1974 = vdwg.mxu0
        %v1975 = vld [vmem:[%s7] sm:$0xf]
        %v1976 = vld [vmem:[%s7 + $0x4] sm:$0xf]
        %v1977 = vld [vmem:[%s7 + $0x8] sm:$0xf]
        %v1978 = vld [vmem:[%s7 + $0xc] sm:$0xf]
        %v1979 = vld [vmem:[%s8] sm:$0x1]
        %v1981 = vlaneseq
        %v1982 = vshrl.u32 %v1981, 7
        %v1983 = vsub.s32 0, %v1982
        %v1984 = vrot.slane %v1979, %v1983
        %v1990 = vunpack.c.l.b16 %v1975
        %v1991 = vunpack.c.l.b16 %v1976
        %v1992 = vunpack.c.l.b16 %v1977
        %v1993 = vunpack.c.l.b16 %v1978
        %v1994 = vpack.c.b16 %v1991, %v1990
        %v1995 = vpack.c.b16 %v1993, %v1992
        %v1997 = vsel %vm1723, %v1994, 0
        %v2000 = vsel %vm1723, %v1995, 0
        %2002 = vmatprep.subr.bf16.mxu0 0
        %2003 = vmatpush1.bf16.xpose.msra.mxu0 %v1997
        %2004 = vmatprep.subr.bf16.mxu0 0
        %2005 = vmatpush1.bf16.xpose.msra.mxu0 %v2000
        %2006 = vmatprep.subr.bf16.mxu0 0
        %2007 = vmatpush1.bf16.xpose.msra.mxu0 0
        %2008 = vmatprep.subr.bf16.mxu0 0
        %2009 = vmatpush1.bf16.xpose.msra.mxu0 0
        %2010 = vmatprep.subr.bf16.mxu0 0
        %2011 = vmatpush1.bf16.xpose.msra.mxu0 0
        %2012 = vmatprep.subr.bf16.mxu0 0
        %2013 = vmatpush1.bf16.xpose.msra.mxu0 0
        %2014 = vmatprep.subr.bf16.mxu0 0
        %2015 = vmatpush1.bf16.xpose.msra.mxu0 0
        %2016 = vmatprep.subr.bf16.mxu0 0
        %2017 = vmatpush1.bf16.xpose.msra.mxu0 0
        %2018 = vmatprep.subr.bf16.mxu0 0
        %2019 = vmatpush1.bf16.xpose.msra.mxu0 0
        %2020 = vmatprep.subr.bf16.mxu0 0
        %2021 = vmatpush1.bf16.xpose.msra.mxu0 0
        %2022 = vmatprep.subr.bf16.mxu0 0
        %2023 = vmatpush1.bf16.xpose.msra.mxu0 0
        %2024 = vmatprep.subr.bf16.mxu0 0
        %2025 = vmatpush1.bf16.xpose.msra.mxu0 0
        %2026 = vmatprep.subr.bf16.mxu0 0
        %2027 = vmatpush1.bf16.xpose.msra.mxu0 0
        %2028 = vmatprep.subr.bf16.mxu0 0
        %2029 = vmatpush1.bf16.xpose.msra.mxu0 0
        %2030 = vmatprep.subr.bf16.mxu0 0
        %2031 = vmatpush1.bf16.xpose.msra.mxu0 0
        %2032 = vmatprep.subr.bf16.mxu0 0
        %2033 = vmatpush1.bf16.xpose.msra.mxu0 0
        %2034 = vmatprep.mubr.bf16.mxu0 0
        %2035 = vmatmul.mubr.bf16.gmra.mrb[0].mxu0 %v1725
        %v2036 = vpop.f32.mrb[0].mxu0
        %v2037 = vadd.f32 %v1984, %v2036
        %v2038 = vpop.f32.mrb[0].mxu0
        %v2039 = vpop.f32.mrb[0].mxu0
        %v2040 = vadd.f32 %v1984, %v2039
        %v2041 = vpop.f32.mrb[0].mxu0
        %2042 = vmatprep.mubr.bf16.mxu0 0
        %2043 = vmatmul.mubr.bf16.gmra.mrb[0].mxu0 %v1728
        %v2044 = vpop.f32.mrb[0].mxu0
        %v2045 = vadd.f32 %v1984, %v2044
        %v2046 = vpop.f32.mrb[0].mxu0
        %v2047 = vpop.f32.mrb[0].mxu0
        %v2048 = vadd.f32 %v1984, %v2047
        %v2049 = vpop.f32.mrb[0].mxu0
        %2050 = vmatprep.mubr.bf16.mxu0 0
        %2051 = vmatmul.mubr.bf16.gmra.mrb[0].mxu0 %v1731
        %v2052 = vpop.f32.mrb[0].mxu0
        %v2053 = vadd.f32 %v1984, %v2052
        %v2054 = vpop.f32.mrb[0].mxu0
        %v2055 = vpop.f32.mrb[0].mxu0
        %v2056 = vadd.f32 %v1984, %v2055
        %v2057 = vpop.f32.mrb[0].mxu0
        %2058 = vmatprep.mubr.bf16.mxu0 0
        %2059 = vmatmul.mubr.bf16.gmra.mrb[0].mxu0 %v1734
        %v2060 = vpop.f32.mrb[0].mxu0
        %v2061 = vadd.f32 %v1984, %v2060
        %v2062 = vpop.f32.mrb[0].mxu0
        %v2063 = vpop.f32.mrb[0].mxu0
        %v2064 = vadd.f32 %v1984, %v2063
        %v2065 = vpop.f32.mrb[0].mxu0
        %2066 = vmatprep.mubr.bf16.mxu0 0
        %2067 = vmatmul.mubr.bf16.gmra.mrb[0].mxu0 %v1737
        %v2068 = vpop.f32.mrb[0].mxu0
        %v2069 = vadd.f32 %v1984, %v2068
        %v2070 = vpop.f32.mrb[0].mxu0
        %v2071 = vpop.f32.mrb[0].mxu0
        %v2072 = vadd.f32 %v1984, %v2071
        %v2073 = vpop.f32.mrb[0].mxu0
        %2074 = vmatprep.mubr.bf16.mxu0 0
        %2075 = vmatmul.mubr.bf16.gmra.mrb[0].mxu0 %v1740
        %v2076 = vpop.f32.mrb[0].mxu0
        %v2077 = vadd.f32 %v1984, %v2076
        %v2078 = vpop.f32.mrb[0].mxu0
        %v2079 = vpop.f32.mrb[0].mxu0
        %v2080 = vadd.f32 %v1984, %v2079
        %v2081 = vpop.f32.mrb[0].mxu0
        %2082 = vmatprep.mubr.bf16.mxu0 0
        %2083 = vmatmul.mubr.bf16.gmra.mrb[0].mxu0 %v1743
        %v2084 = vpop.f32.mrb[0].mxu0
        %v2085 = vadd.f32 %v1984, %v2084
        %v2086 = vpop.f32.mrb[0].mxu0
        %v2087 = vpop.f32.mrb[0].mxu0
        %v2088 = vadd.f32 %v1984, %v2087
        %v2089 = vpop.f32.mrb[0].mxu0
        %2090 = vmatprep.mubr.bf16.mxu0 0
        %2091 = vmatmul.mubr.bf16.gmra.mrb[0].mxu0 %v1746
        %v2092 = vpop.f32.mrb[0].mxu0
        %v2093 = vadd.f32 %v1984, %v2092
        %v2094 = vpop.f32.mrb[0].mxu0
        %v2095 = vpop.f32.mrb[0].mxu0
        %v2096 = vadd.f32 %v1984, %v2095
        %v2097 = vpop.f32.mrb[0].mxu0
        %2098 = vdwg.mxu0
        %v2099 = vpack.c.bf16 %v1792, %v1789
        %v2100 = vpack.c.bf16 %v1800, %v1797
        %v2101 = vpack.c.bf16 %v1808, %v1805
        %v2102 = vpack.c.bf16 %v1816, %v1813
        %v2103 = vpack.c.bf16 %v1824, %v1821
        %v2104 = vpack.c.bf16 %v1832, %v1829
        %v2105 = vpack.c.bf16 %v1840, %v1837
        %v2106 = vpack.c.bf16 %v1848, %v1845
        %v2107 = vpack.c.bf16 %v1916, %v1913
        %v2108 = vpack.c.bf16 %v1924, %v1921
        %v2109 = vpack.c.bf16 %v1932, %v1929
        %v2110 = vpack.c.bf16 %v1940, %v1937
        %v2111 = vpack.c.bf16 %v1948, %v1945
        %v2112 = vpack.c.bf16 %v1956, %v1953
        %v2113 = vpack.c.bf16 %v1964, %v1961
        %v2114 = vpack.c.bf16 %v1972, %v1969
        %v2115 = vpack.c.bf16 %v2040, %v2037
        %v2116 = vpack.c.bf16 %v2048, %v2045
        %v2117 = vpack.c.bf16 %v2056, %v2053
        %v2118 = vpack.c.bf16 %v2064, %v2061
        %v2119 = vpack.c.bf16 %v2072, %v2069
        %v2120 = vpack.c.bf16 %v2080, %v2077
        %v2121 = vpack.c.bf16 %v2088, %v2085
        %v2122 = vpack.c.bf16 %v2096, %v2093
        %v2123 = vsel %vm1684, 1, 0
        %vm2124 = vcmp.eq.s32.totalorder %v2123, 1
        %vm2125 = vmpackc.low %vm2124, %vm2124
        %v2126 = vsel %vm2125, 65537, 0
        %v2127 = vlaneseq
        %v2128 = vshrl.u32 %v2127, 7
        %v2129 = vsub.s32 0, %v2128
        %v2130 = vrot.slane %v2126, %v2129
        %vm2131 = vcmp.ne.s16.totalorder %v2130, 0
        %v2132 = vsel %vm2131, %v2107, 0
        %v2133 = vsel %vm2131, %v2108, 0
        %v2134 = vsel %vm2131, %v2109, 0
        %v2135 = vsel %vm2131, %v2110, 0
        %v2136 = vsel %vm2131, %v2111, 0
        %v2137 = vsel %vm2131, %v2112, 0
        %v2138 = vsel %vm2131, %v2113, 0
        %v2139 = vsel %vm2131, %v2114, 0
        %v2141 = vsel %vm1723, %v2099, 0
        %v2144 = vsel %vm1723, %v2100, 0
        %v2147 = vsel %vm1723, %v2101, 0
        %v2150 = vsel %vm1723, %v2102, 0
        %v2153 = vsel %vm1723, %v2103, 0
        %v2156 = vsel %vm1723, %v2104, 0
        %v2159 = vsel %vm1723, %v2105, 0
        %v2162 = vsel %vm1723, %v2106, 0
        %v2165 = vsel %vm1723, %v2132, 0
        %v2168 = vsel %vm1723, %v2133, 0
        %v2171 = vsel %vm1723, %v2134, 0
        %v2174 = vsel %vm1723, %v2135, 0
        %v2177 = vsel %vm1723, %v2136, 0
        %v2180 = vsel %vm1723, %v2137, 0
        %v2183 = vsel %vm1723, %v2138, 0
        %v2186 = vsel %vm1723, %v2139, 0
        %2188 = vmatprep.subr.bf16.mxu0 0
        %2189 = vmatpush1.bf16.xpose.msra.mxu0 %v2165
        %2190 = vmatprep.subr.bf16.mxu0 0
        %2191 = vmatpush1.bf16.xpose.msra.mxu0 %v2168
        %2192 = vmatprep.subr.bf16.mxu0 0
        %2193 = vmatpush1.bf16.xpose.msra.mxu0 %v2171
        %2194 = vmatprep.subr.bf16.mxu0 0
        %2195 = vmatpush1.bf16.xpose.msra.mxu0 %v2174
        %2196 = vmatprep.subr.bf16.mxu0 0
        %2197 = vmatpush1.bf16.xpose.msra.mxu0 %v2177
        %2198 = vmatprep.subr.bf16.mxu0 0
        %2199 = vmatpush1.bf16.xpose.msra.mxu0 %v2180
        %2200 = vmatprep.subr.bf16.mxu0 0
        %2201 = vmatpush1.bf16.xpose.msra.mxu0 %v2183
        %2202 = vmatprep.subr.bf16.mxu0 0
        %2203 = vmatpush1.bf16.xpose.msra.mxu0 %v2186
        %2204 = vmatprep.subr.bf16.mxu0 0
        %2205 = vmatpush1.bf16.xpose.msra.mxu0 0
        %2206 = vmatprep.subr.bf16.mxu0 0
        %2207 = vmatpush1.bf16.xpose.msra.mxu0 0
        %2208 = vmatprep.subr.bf16.mxu0 0
        %2209 = vmatpush1.bf16.xpose.msra.mxu0 0
        %2210 = vmatprep.subr.bf16.mxu0 0
        %2211 = vmatpush1.bf16.xpose.msra.mxu0 0
        %2212 = vmatprep.subr.bf16.mxu0 0
        %2213 = vmatpush1.bf16.xpose.msra.mxu0 0
        %2214 = vmatprep.subr.bf16.mxu0 0
        %2215 = vmatpush1.bf16.xpose.msra.mxu0 0
        %2216 = vmatprep.subr.bf16.mxu0 0
        %2217 = vmatpush1.bf16.xpose.msra.mxu0 0
        %2218 = vmatprep.subr.bf16.mxu0 0
        %2219 = vmatpush1.bf16.xpose.msra.mxu0 0
        %2220 = vmatprep.mubr.bf16.mxu0 0
        %2221 = vmatmul.mubr.bf16.gmra.mrb[0].mxu0 %v2141
        %v2222 = vpop.f32.mrb[0].mxu0
        %v2223 = vadd.f32 0.0, %v2222
        %v2224 = vpop.f32.mrb[0].mxu0
        %v2225 = vpop.f32.mrb[0].mxu0
        %v2226 = vadd.f32 0.0, %v2225
        %v2227 = vpop.f32.mrb[0].mxu0
        %2228 = vmatprep.mubr.bf16.mxu0 0
        %2229 = vmatmul.mubr.bf16.gmra.mrb[0].mxu0 %v2144
        %v2230 = vpop.f32.mrb[0].mxu0
        %v2231 = vadd.f32 0.0, %v2230
        %v2232 = vpop.f32.mrb[0].mxu0
        %v2233 = vpop.f32.mrb[0].mxu0
        %v2234 = vadd.f32 0.0, %v2233
        %v2235 = vpop.f32.mrb[0].mxu0
        %2236 = vmatprep.mubr.bf16.mxu0 0
        %2237 = vmatmul.mubr.bf16.gmra.mrb[0].mxu0 %v2147
        %v2238 = vpop.f32.mrb[0].mxu0
        %v2239 = vadd.f32 0.0, %v2238
        %v2240 = vpop.f32.mrb[0].mxu0
        %v2241 = vpop.f32.mrb[0].mxu0
        %v2242 = vadd.f32 0.0, %v2241
        %v2243 = vpop.f32.mrb[0].mxu0
        %2244 = vmatprep.mubr.bf16.mxu0 0
        %2245 = vmatmul.mubr.bf16.gmra.mrb[0].mxu0 %v2150
        %v2246 = vpop.f32.mrb[0].mxu0
        %v2247 = vadd.f32 0.0, %v2246
        %v2248 = vpop.f32.mrb[0].mxu0
        %v2249 = vpop.f32.mrb[0].mxu0
        %v2250 = vadd.f32 0.0, %v2249
        %v2251 = vpop.f32.mrb[0].mxu0
        %2252 = vmatprep.mubr.bf16.mxu0 0
        %2253 = vmatmul.mubr.bf16.gmra.mrb[0].mxu0 %v2153
        %v2254 = vpop.f32.mrb[0].mxu0
        %v2255 = vadd.f32 0.0, %v2254
        %v2256 = vpop.f32.mrb[0].mxu0
        %v2257 = vpop.f32.mrb[0].mxu0
        %v2258 = vadd.f32 0.0, %v2257
        %v2259 = vpop.f32.mrb[0].mxu0
        %2260 = vmatprep.mubr.bf16.mxu0 0
        %2261 = vmatmul.mubr.bf16.gmra.mrb[0].mxu0 %v2156
        %v2262 = vpop.f32.mrb[0].mxu0
        %v2263 = vadd.f32 0.0, %v2262
        %v2264 = vpop.f32.mrb[0].mxu0
        %v2265 = vpop.f32.mrb[0].mxu0
        %v2266 = vadd.f32 0.0, %v2265
        %v2267 = vpop.f32.mrb[0].mxu0
        %2268 = vmatprep.mubr.bf16.mxu0 0
        %2269 = vmatmul.mubr.bf16.gmra.mrb[0].mxu0 %v2159
        %v2270 = vpop.f32.mrb[0].mxu0
        %v2271 = vadd.f32 0.0, %v2270
        %v2272 = vpop.f32.mrb[0].mxu0
        %v2273 = vpop.f32.mrb[0].mxu0
        %v2274 = vadd.f32 0.0, %v2273
        %v2275 = vpop.f32.mrb[0].mxu0
        %2276 = vmatprep.mubr.bf16.mxu0 0
        %2277 = vmatmul.mubr.bf16.gmra.mrb[0].mxu0 %v2162
        %v2278 = vpop.f32.mrb[0].mxu0
        %v2279 = vadd.f32 0.0, %v2278
        %v2280 = vpop.f32.mrb[0].mxu0
        %v2281 = vpop.f32.mrb[0].mxu0
        %v2282 = vadd.f32 0.0, %v2281
        %v2283 = vpop.f32.mrb[0].mxu0
        %2284 = vdwg.mxu0
        %v2285 = vsel %vm1311, %v2223, -1e+30
        %v2286 = vsel %vm1312, %v2226, -1e+30
        %v2287 = vsel %vm1313, %v2231, -1e+30
        %v2288 = vsel %vm1314, %v2234, -1e+30
        %v2289 = vsel %vm1315, %v2239, -1e+30
        %v2290 = vsel %vm1316, %v2242, -1e+30
        %v2291 = vsel %vm1317, %v2247, -1e+30
        %v2292 = vsel %vm1318, %v2250, -1e+30
        %v2293 = vsel %vm1319, %v2255, -1e+30
        %v2294 = vsel %vm1320, %v2258, -1e+30
        %v2295 = vsel %vm1321, %v2263, -1e+30
        %v2296 = vsel %vm1322, %v2266, -1e+30
        %v2297 = vsel %vm1323, %v2271, -1e+30
        %v2298 = vsel %vm1324, %v2274, -1e+30
        %v2299 = vsel %vm1325, %v2279, -1e+30
        %v2300 = vsel %vm1326, %v2282, -1e+30
        %2301 = vmax.xlane.f32.xlu0 %v2285
        %v2302 = vpop.xlane.xlu0 %2301
        %2303 = vmax.xlane.f32.xlu0 %v2286
        %v2304 = vpop.xlane.xlu0 %2303
        %2305 = vmax.xlane.f32.xlu0 %v2287
        %v2306 = vpop.xlane.xlu0 %2305
        %2307 = vmax.xlane.f32.xlu0 %v2288
        %v2308 = vpop.xlane.xlu0 %2307
        %2309 = vmax.xlane.f32.xlu0 %v2289
        %v2310 = vpop.xlane.xlu0 %2309
        %2311 = vmax.xlane.f32.xlu0 %v2290
        %v2312 = vpop.xlane.xlu0 %2311
        %2313 = vmax.xlane.f32.xlu0 %v2291
        %v2314 = vpop.xlane.xlu0 %2313
        %2315 = vmax.xlane.f32.xlu0 %v2292
        %v2316 = vpop.xlane.xlu0 %2315
        %2317 = vmax.xlane.f32.xlu0 %v2293
        %v2318 = vpop.xlane.xlu0 %2317
        %2319 = vmax.xlane.f32.xlu0 %v2294
        %v2320 = vpop.xlane.xlu0 %2319
        %2321 = vmax.xlane.f32.xlu0 %v2295
        %v2322 = vpop.xlane.xlu0 %2321
        %2323 = vmax.xlane.f32.xlu0 %v2296
        %v2324 = vpop.xlane.xlu0 %2323
        %2325 = vmax.xlane.f32.xlu0 %v2297
        %v2326 = vpop.xlane.xlu0 %2325
        %2327 = vmax.xlane.f32.xlu0 %v2298
        %v2328 = vpop.xlane.xlu0 %2327
        %2329 = vmax.xlane.f32.xlu0 %v2299
        %v2330 = vpop.xlane.xlu0 %2329
        %2331 = vmax.xlane.f32.xlu0 %v2300
        %v2332 = vpop.xlane.xlu0 %2331
        %v2333 = vsub.f32 %v2285, %v2302
        %v2334 = vsub.f32 %v2286, %v2304
        %v2335 = vsub.f32 %v2287, %v2306
        %v2336 = vsub.f32 %v2288, %v2308
        %v2337 = vsub.f32 %v2289, %v2310
        %v2338 = vsub.f32 %v2290, %v2312
        %v2339 = vsub.f32 %v2291, %v2314
        %v2340 = vsub.f32 %v2292, %v2316
        %v2341 = vsub.f32 %v2293, %v2318
        %v2342 = vsub.f32 %v2294, %v2320
        %v2343 = vsub.f32 %v2295, %v2322
        %v2344 = vsub.f32 %v2296, %v2324
        %v2345 = vsub.f32 %v2297, %v2326
        %v2346 = vsub.f32 %v2298, %v2328
        %v2347 = vsub.f32 %v2299, %v2330
        %v2348 = vsub.f32 %v2300, %v2332
        %v2349 = vmul.f32 %v2333, 1.442695
        %v2350 = vpow.pop %v2349
        %v2351 = vmul.f32 %v2334, 1.442695
        %v2352 = vpow.pop %v2351
        %v2353 = vmul.f32 %v2335, 1.442695
        %v2354 = vpow.pop %v2353
        %v2355 = vmul.f32 %v2336, 1.442695
        %v2356 = vpow.pop %v2355
        %v2357 = vmul.f32 %v2337, 1.442695
        %v2358 = vpow.pop %v2357
        %v2359 = vmul.f32 %v2338, 1.442695
        %v2360 = vpow.pop %v2359
        %v2361 = vmul.f32 %v2339, 1.442695
        %v2362 = vpow.pop %v2361
        %v2363 = vmul.f32 %v2340, 1.442695
        %v2364 = vpow.pop %v2363
        %v2365 = vmul.f32 %v2341, 1.442695
        %v2366 = vpow.pop %v2365
        %v2367 = vmul.f32 %v2342, 1.442695
        %v2368 = vpow.pop %v2367
        %v2369 = vmul.f32 %v2343, 1.442695
        %v2370 = vpow.pop %v2369
        %v2371 = vmul.f32 %v2344, 1.442695
        %v2372 = vpow.pop %v2371
        %v2373 = vmul.f32 %v2345, 1.442695
        %v2374 = vpow.pop %v2373
        %v2375 = vmul.f32 %v2346, 1.442695
        %v2376 = vpow.pop %v2375
        %v2377 = vmul.f32 %v2347, 1.442695
        %v2378 = vpow.pop %v2377
        %v2379 = vmul.f32 %v2348, 1.442695
        %v2380 = vpow.pop %v2379
        %2381 = vadd.xlane.f32.xlu0 %v2350
        %v2382 = vpop.xlane.xlu0 %2381
        %2383 = vadd.xlane.f32.xlu0 %v2352
        %v2384 = vpop.xlane.xlu0 %2383
        %2385 = vadd.xlane.f32.xlu0 %v2354
        %v2386 = vpop.xlane.xlu0 %2385
        %2387 = vadd.xlane.f32.xlu0 %v2356
        %v2388 = vpop.xlane.xlu0 %2387
        %2389 = vadd.xlane.f32.xlu0 %v2358
        %v2390 = vpop.xlane.xlu0 %2389
        %2391 = vadd.xlane.f32.xlu0 %v2360
        %v2392 = vpop.xlane.xlu0 %2391
        %2393 = vadd.xlane.f32.xlu0 %v2362
        %v2394 = vpop.xlane.xlu0 %2393
        %2395 = vadd.xlane.f32.xlu0 %v2364
        %v2396 = vpop.xlane.xlu0 %2395
        %2397 = vadd.xlane.f32.xlu0 %v2366
        %v2398 = vpop.xlane.xlu0 %2397
        %2399 = vadd.xlane.f32.xlu0 %v2368
        %v2400 = vpop.xlane.xlu0 %2399
        %2401 = vadd.xlane.f32.xlu0 %v2370
        %v2402 = vpop.xlane.xlu0 %2401
        %2403 = vadd.xlane.f32.xlu0 %v2372
        %v2404 = vpop.xlane.xlu0 %2403
        %2405 = vadd.xlane.f32.xlu0 %v2374
        %v2406 = vpop.xlane.xlu0 %2405
        %2407 = vadd.xlane.f32.xlu0 %v2376
        %v2408 = vpop.xlane.xlu0 %2407
        %2409 = vadd.xlane.f32.xlu0 %v2378
        %v2410 = vpop.xlane.xlu0 %2409
        %2411 = vadd.xlane.f32.xlu0 %v2380
        %v2412 = vpop.xlane.xlu0 %2411
        %v2413 = vrcp.pop %v2382
        %v2414 = vrcp.pop %v2384
        %v2415 = vrcp.pop %v2386
        %v2416 = vrcp.pop %v2388
        %v2417 = vrcp.pop %v2390
        %v2418 = vrcp.pop %v2392
        %v2419 = vrcp.pop %v2394
        %v2420 = vrcp.pop %v2396
        %v2421 = vrcp.pop %v2398
        %v2422 = vrcp.pop %v2400
        %v2423 = vrcp.pop %v2402
        %v2424 = vrcp.pop %v2404
        %v2425 = vrcp.pop %v2406
        %v2426 = vrcp.pop %v2408
        %v2427 = vrcp.pop %v2410
        %v2428 = vrcp.pop %v2412
        %v2429 = vmul.f32 %v2350, %v2413
        %v2430 = vmul.f32 %v2352, %v2414
        %v2431 = vmul.f32 %v2354, %v2415
        %v2432 = vmul.f32 %v2356, %v2416
        %v2433 = vmul.f32 %v2358, %v2417
        %v2434 = vmul.f32 %v2360, %v2418
        %v2435 = vmul.f32 %v2362, %v2419
        %v2436 = vmul.f32 %v2364, %v2420
        %v2437 = vmul.f32 %v2366, %v2421
        %v2438 = vmul.f32 %v2368, %v2422
        %v2439 = vmul.f32 %v2370, %v2423
        %v2440 = vmul.f32 %v2372, %v2424
        %v2441 = vmul.f32 %v2374, %v2425
        %v2442 = vmul.f32 %v2376, %v2426
        %v2443 = vmul.f32 %v2378, %v2427
        %v2444 = vmul.f32 %v2380, %v2428
        %v2445 = vpack.c.bf16 %v2430, %v2429
        %v2446 = vpack.c.bf16 %v2432, %v2431
        %v2447 = vpack.c.bf16 %v2434, %v2433
        %v2448 = vpack.c.bf16 %v2436, %v2435
        %v2449 = vpack.c.bf16 %v2438, %v2437
        %v2450 = vpack.c.bf16 %v2440, %v2439
        %v2451 = vpack.c.bf16 %v2442, %v2441
        %v2452 = vpack.c.bf16 %v2444, %v2443
        %v2453 = vsel %vm2131, %v2115, 0
        %v2454 = vsel %vm2131, %v2116, 0
        %v2455 = vsel %vm2131, %v2117, 0
        %v2456 = vsel %vm2131, %v2118, 0
        %v2457 = vsel %vm2131, %v2119, 0
        %v2458 = vsel %vm2131, %v2120, 0
        %v2459 = vsel %vm2131, %v2121, 0
        %v2460 = vsel %vm2131, %v2122, 0
        %v2461 = vsel %vm1687, 1, 0
        %vm2462 = vcmp.eq.s32.totalorder %v2461, 1
        %vm2463 = vmpackc.low %vm2462, %vm2462
        %v2464 = vsel %vm2463, 65537, 0
        %v2465 = vlaneseq
        %v2466 = vshrl.u32 %v2465, 7
        %v2467 = vsub.s32 0, %v2466
        %v2468 = vrot.slane %v2464, %v2467
        %vm2469 = vcmp.ne.s16.totalorder %v2468, 0
        %v2470 = vsel %vm2469, %v2107, 0
        %v2471 = vsel %vm2469, %v2108, 0
        %v2472 = vsel %vm2469, %v2109, 0
        %v2473 = vsel %vm2469, %v2110, 0
        %v2474 = vsel %vm2469, %v2111, 0
        %v2475 = vsel %vm2469, %v2112, 0
        %v2476 = vsel %vm2469, %v2113, 0
        %v2477 = vsel %vm2469, %v2114, 0
        %v2479 = vsel %vm1723, %v2470, 0
        %v2482 = vsel %vm1723, %v2471, 0
        %v2485 = vsel %vm1723, %v2472, 0
        %v2488 = vsel %vm1723, %v2473, 0
        %v2491 = vsel %vm1723, %v2474, 0
        %v2494 = vsel %vm1723, %v2475, 0
        %v2497 = vsel %vm1723, %v2476, 0
        %v2500 = vsel %vm1723, %v2477, 0
        %2502 = vmatprep.subr.bf16.mxu0 0
        %2503 = vmatpush1.bf16.xpose.msra.mxu0 %v2479
        %2504 = vmatprep.subr.bf16.mxu0 0
        %2505 = vmatpush1.bf16.xpose.msra.mxu0 %v2482
        %2506 = vmatprep.subr.bf16.mxu0 0
        %2507 = vmatpush1.bf16.xpose.msra.mxu0 %v2485
        %2508 = vmatprep.subr.bf16.mxu0 0
        %2509 = vmatpush1.bf16.xpose.msra.mxu0 %v2488
        %2510 = vmatprep.subr.bf16.mxu0 0
        %2511 = vmatpush1.bf16.xpose.msra.mxu0 %v2491
        %2512 = vmatprep.subr.bf16.mxu0 0
        %2513 = vmatpush1.bf16.xpose.msra.mxu0 %v2494
        %2514 = vmatprep.subr.bf16.mxu0 0
        %2515 = vmatpush1.bf16.xpose.msra.mxu0 %v2497
        %2516 = vmatprep.subr.bf16.mxu0 0
        %2517 = vmatpush1.bf16.xpose.msra.mxu0 %v2500
        %2518 = vmatprep.subr.bf16.mxu0 0
        %2519 = vmatpush1.bf16.xpose.msra.mxu0 0
        %2520 = vmatprep.subr.bf16.mxu0 0
        %2521 = vmatpush1.bf16.xpose.msra.mxu0 0
        %2522 = vmatprep.subr.bf16.mxu0 0
        %2523 = vmatpush1.bf16.xpose.msra.mxu0 0
        %2524 = vmatprep.subr.bf16.mxu0 0
        %2525 = vmatpush1.bf16.xpose.msra.mxu0 0
        %2526 = vmatprep.subr.bf16.mxu0 0
        %2527 = vmatpush1.bf16.xpose.msra.mxu0 0
        %2528 = vmatprep.subr.bf16.mxu0 0
        %2529 = vmatpush1.bf16.xpose.msra.mxu0 0
        %2530 = vmatprep.subr.bf16.mxu0 0
        %2531 = vmatpush1.bf16.xpose.msra.mxu0 0
        %2532 = vmatprep.subr.bf16.mxu0 0
        %2533 = vmatpush1.bf16.xpose.msra.mxu0 0
        %2534 = vmatprep.mubr.bf16.mxu0 0
        %2535 = vmatmul.mubr.bf16.gmra.mrb[0].mxu0 %v2141
        %v2536 = vpop.f32.mrb[0].mxu0
        %v2537 = vadd.f32 0.0, %v2536
        %v2538 = vpop.f32.mrb[0].mxu0
        %v2539 = vpop.f32.mrb[0].mxu0
        %v2540 = vadd.f32 0.0, %v2539
        %v2541 = vpop.f32.mrb[0].mxu0
        %2542 = vmatprep.mubr.bf16.mxu0 0
        %2543 = vmatmul.mubr.bf16.gmra.mrb[0].mxu0 %v2144
        %v2544 = vpop.f32.mrb[0].mxu0
        %v2545 = vadd.f32 0.0, %v2544
        %v2546 = vpop.f32.mrb[0].mxu0
        %v2547 = vpop.f32.mrb[0].mxu0
        %v2548 = vadd.f32 0.0, %v2547
        %v2549 = vpop.f32.mrb[0].mxu0
        %2550 = vmatprep.mubr.bf16.mxu0 0
        %2551 = vmatmul.mubr.bf16.gmra.mrb[0].mxu0 %v2147
        %v2552 = vpop.f32.mrb[0].mxu0
        %v2553 = vadd.f32 0.0, %v2552
        %v2554 = vpop.f32.mrb[0].mxu0
        %v2555 = vpop.f32.mrb[0].mxu0
        %v2556 = vadd.f32 0.0, %v2555
        %v2557 = vpop.f32.mrb[0].mxu0
        %2558 = vmatprep.mubr.bf16.mxu0 0
        %2559 = vmatmul.mubr.bf16.gmra.mrb[0].mxu0 %v2150
        %v2560 = vpop.f32.mrb[0].mxu0
        %v2561 = vadd.f32 0.0, %v2560
        %v2562 = vpop.f32.mrb[0].mxu0
        %v2563 = vpop.f32.mrb[0].mxu0
        %v2564 = vadd.f32 0.0, %v2563
        %v2565 = vpop.f32.mrb[0].mxu0
        %2566 = vmatprep.mubr.bf16.mxu0 0
        %2567 = vmatmul.mubr.bf16.gmra.mrb[0].mxu0 %v2153
        %v2568 = vpop.f32.mrb[0].mxu0
        %v2569 = vadd.f32 0.0, %v2568
        %v2570 = vpop.f32.mrb[0].mxu0
        %v2571 = vpop.f32.mrb[0].mxu0
        %v2572 = vadd.f32 0.0, %v2571
        %v2573 = vpop.f32.mrb[0].mxu0
        %2574 = vmatprep.mubr.bf16.mxu0 0
        %2575 = vmatmul.mubr.bf16.gmra.mrb[0].mxu0 %v2156
        %v2576 = vpop.f32.mrb[0].mxu0
        %v2577 = vadd.f32 0.0, %v2576
        %v2578 = vpop.f32.mrb[0].mxu0
        %v2579 = vpop.f32.mrb[0].mxu0
        %v2580 = vadd.f32 0.0, %v2579
        %v2581 = vpop.f32.mrb[0].mxu0
        %2582 = vmatprep.mubr.bf16.mxu0 0
        %2583 = vmatmul.mubr.bf16.gmra.mrb[0].mxu0 %v2159
        %v2584 = vpop.f32.mrb[0].mxu0
        %v2585 = vadd.f32 0.0, %v2584
        %v2586 = vpop.f32.mrb[0].mxu0
        %v2587 = vpop.f32.mrb[0].mxu0
        %v2588 = vadd.f32 0.0, %v2587
        %v2589 = vpop.f32.mrb[0].mxu0
        %2590 = vmatprep.mubr.bf16.mxu0 0
        %2591 = vmatmul.mubr.bf16.gmra.mrb[0].mxu0 %v2162
        %v2592 = vpop.f32.mrb[0].mxu0
        %v2593 = vadd.f32 0.0, %v2592
        %v2594 = vpop.f32.mrb[0].mxu0
        %v2595 = vpop.f32.mrb[0].mxu0
        %v2596 = vadd.f32 0.0, %v2595
        %v2597 = vpop.f32.mrb[0].mxu0
        %2598 = vdwg.mxu0
        %v2599 = vsel %vm1311, %v2537, -1e+30
        %v2600 = vsel %vm1312, %v2540, -1e+30
        %v2601 = vsel %vm1313, %v2545, -1e+30
        %v2602 = vsel %vm1314, %v2548, -1e+30
        %v2603 = vsel %vm1315, %v2553, -1e+30
        %v2604 = vsel %vm1316, %v2556, -1e+30
        %v2605 = vsel %vm1317, %v2561, -1e+30
        %v2606 = vsel %vm1318, %v2564, -1e+30
        %v2607 = vsel %vm1319, %v2569, -1e+30
        %v2608 = vsel %vm1320, %v2572, -1e+30
        %v2609 = vsel %vm1321, %v2577, -1e+30
        %v2610 = vsel %vm1322, %v2580, -1e+30
        %v2611 = vsel %vm1323, %v2585, -1e+30
        %v2612 = vsel %vm1324, %v2588, -1e+30
        %v2613 = vsel %vm1325, %v2593, -1e+30
        %v2614 = vsel %vm1326, %v2596, -1e+30
        %2615 = vmax.xlane.f32.xlu0 %v2599
        %v2616 = vpop.xlane.xlu0 %2615
        %2617 = vmax.xlane.f32.xlu0 %v2600
        %v2618 = vpop.xlane.xlu0 %2617
        %2619 = vmax.xlane.f32.xlu0 %v2601
        %v2620 = vpop.xlane.xlu0 %2619
        %2621 = vmax.xlane.f32.xlu0 %v2602
        %v2622 = vpop.xlane.xlu0 %2621
        %2623 = vmax.xlane.f32.xlu0 %v2603
        %v2624 = vpop.xlane.xlu0 %2623
        %2625 = vmax.xlane.f32.xlu0 %v2604
        %v2626 = vpop.xlane.xlu0 %2625
        %2627 = vmax.xlane.f32.xlu0 %v2605
        %v2628 = vpop.xlane.xlu0 %2627
        %2629 = vmax.xlane.f32.xlu0 %v2606
        %v2630 = vpop.xlane.xlu0 %2629
        %2631 = vmax.xlane.f32.xlu0 %v2607
        %v2632 = vpop.xlane.xlu0 %2631
        %2633 = vmax.xlane.f32.xlu0 %v2608
        %v2634 = vpop.xlane.xlu0 %2633
        %2635 = vmax.xlane.f32.xlu0 %v2609
        %v2636 = vpop.xlane.xlu0 %2635
        %2637 = vmax.xlane.f32.xlu0 %v2610
        %v2638 = vpop.xlane.xlu0 %2637
        %2639 = vmax.xlane.f32.xlu0 %v2611
        %v2640 = vpop.xlane.xlu0 %2639
        %2641 = vmax.xlane.f32.xlu0 %v2612
        %v2642 = vpop.xlane.xlu0 %2641
        %2643 = vmax.xlane.f32.xlu0 %v2613
        %v2644 = vpop.xlane.xlu0 %2643
        %2645 = vmax.xlane.f32.xlu0 %v2614
        %v2646 = vpop.xlane.xlu0 %2645
        %v2647 = vsub.f32 %v2599, %v2616
        %v2648 = vsub.f32 %v2600, %v2618
        %v2649 = vsub.f32 %v2601, %v2620
        %v2650 = vsub.f32 %v2602, %v2622
        %v2651 = vsub.f32 %v2603, %v2624
        %v2652 = vsub.f32 %v2604, %v2626
        %v2653 = vsub.f32 %v2605, %v2628
        %v2654 = vsub.f32 %v2606, %v2630
        %v2655 = vsub.f32 %v2607, %v2632
        %v2656 = vsub.f32 %v2608, %v2634
        %v2657 = vsub.f32 %v2609, %v2636
        %v2658 = vsub.f32 %v2610, %v2638
        %v2659 = vsub.f32 %v2611, %v2640
        %v2660 = vsub.f32 %v2612, %v2642
        %v2661 = vsub.f32 %v2613, %v2644
        %v2662 = vsub.f32 %v2614, %v2646
        %v2663 = vmul.f32 %v2647, 1.442695
        %v2664 = vpow.pop %v2663
        %v2665 = vmul.f32 %v2648, 1.442695
        %v2666 = vpow.pop %v2665
        %v2667 = vmul.f32 %v2649, 1.442695
        %v2668 = vpow.pop %v2667
        %v2669 = vmul.f32 %v2650, 1.442695
        %v2670 = vpow.pop %v2669
        %v2671 = vmul.f32 %v2651, 1.442695
        %v2672 = vpow.pop %v2671
        %v2673 = vmul.f32 %v2652, 1.442695
        %v2674 = vpow.pop %v2673
        %v2675 = vmul.f32 %v2653, 1.442695
        %v2676 = vpow.pop %v2675
        %v2677 = vmul.f32 %v2654, 1.442695
        %v2678 = vpow.pop %v2677
        %v2679 = vmul.f32 %v2655, 1.442695
        %v2680 = vpow.pop %v2679
        %v2681 = vmul.f32 %v2656, 1.442695
        %v2682 = vpow.pop %v2681
        %v2683 = vmul.f32 %v2657, 1.442695
        %v2684 = vpow.pop %v2683
        %v2685 = vmul.f32 %v2658, 1.442695
        %v2686 = vpow.pop %v2685
        %v2687 = vmul.f32 %v2659, 1.442695
        %v2688 = vpow.pop %v2687
        %v2689 = vmul.f32 %v2660, 1.442695
        %v2690 = vpow.pop %v2689
        %v2691 = vmul.f32 %v2661, 1.442695
        %v2692 = vpow.pop %v2691
        %v2693 = vmul.f32 %v2662, 1.442695
        %v2694 = vpow.pop %v2693
        %2695 = vadd.xlane.f32.xlu0 %v2664
        %v2696 = vpop.xlane.xlu0 %2695
        %2697 = vadd.xlane.f32.xlu0 %v2666
        %v2698 = vpop.xlane.xlu0 %2697
        %2699 = vadd.xlane.f32.xlu0 %v2668
        %v2700 = vpop.xlane.xlu0 %2699
        %2701 = vadd.xlane.f32.xlu0 %v2670
        %v2702 = vpop.xlane.xlu0 %2701
        %2703 = vadd.xlane.f32.xlu0 %v2672
        %v2704 = vpop.xlane.xlu0 %2703
        %2705 = vadd.xlane.f32.xlu0 %v2674
        %v2706 = vpop.xlane.xlu0 %2705
        %2707 = vadd.xlane.f32.xlu0 %v2676
        %v2708 = vpop.xlane.xlu0 %2707
        %2709 = vadd.xlane.f32.xlu0 %v2678
        %v2710 = vpop.xlane.xlu0 %2709
        %2711 = vadd.xlane.f32.xlu0 %v2680
        %v2712 = vpop.xlane.xlu0 %2711
        %2713 = vadd.xlane.f32.xlu0 %v2682
        %v2714 = vpop.xlane.xlu0 %2713
        %2715 = vadd.xlane.f32.xlu0 %v2684
        %v2716 = vpop.xlane.xlu0 %2715
        %2717 = vadd.xlane.f32.xlu0 %v2686
        %v2718 = vpop.xlane.xlu0 %2717
        %2719 = vadd.xlane.f32.xlu0 %v2688
        %v2720 = vpop.xlane.xlu0 %2719
        %2721 = vadd.xlane.f32.xlu0 %v2690
        %v2722 = vpop.xlane.xlu0 %2721
        %2723 = vadd.xlane.f32.xlu0 %v2692
        %v2724 = vpop.xlane.xlu0 %2723
        %2725 = vadd.xlane.f32.xlu0 %v2694
        %v2726 = vpop.xlane.xlu0 %2725
        %v2727 = vrcp.pop %v2696
        %v2728 = vrcp.pop %v2698
        %v2729 = vrcp.pop %v2700
        %v2730 = vrcp.pop %v2702
        %v2731 = vrcp.pop %v2704
        %v2732 = vrcp.pop %v2706
        %v2733 = vrcp.pop %v2708
        %v2734 = vrcp.pop %v2710
        %v2735 = vrcp.pop %v2712
        %v2736 = vrcp.pop %v2714
        %v2737 = vrcp.pop %v2716
        %v2738 = vrcp.pop %v2718
        %v2739 = vrcp.pop %v2720
        %v2740 = vrcp.pop %v2722
        %v2741 = vrcp.pop %v2724
        %v2742 = vrcp.pop %v2726
        %v2743 = vmul.f32 %v2664, %v2727
        %v2744 = vmul.f32 %v2666, %v2728
        %v2745 = vmul.f32 %v2668, %v2729
        %v2746 = vmul.f32 %v2670, %v2730
        %v2747 = vmul.f32 %v2672, %v2731
        %v2748 = vmul.f32 %v2674, %v2732
        %v2749 = vmul.f32 %v2676, %v2733
        %v2750 = vmul.f32 %v2678, %v2734
        %v2751 = vmul.f32 %v2680, %v2735
        %v2752 = vmul.f32 %v2682, %v2736
        %v2753 = vmul.f32 %v2684, %v2737
        %v2754 = vmul.f32 %v2686, %v2738
        %v2755 = vmul.f32 %v2688, %v2739
        %v2756 = vmul.f32 %v2690, %v2740
        %v2757 = vmul.f32 %v2692, %v2741
        %v2758 = vmul.f32 %v2694, %v2742
        %v2759 = vpack.c.bf16 %v2744, %v2743
        %v2760 = vpack.c.bf16 %v2746, %v2745
        %v2761 = vpack.c.bf16 %v2748, %v2747
        %v2762 = vpack.c.bf16 %v2750, %v2749
        %v2763 = vpack.c.bf16 %v2752, %v2751
        %v2764 = vpack.c.bf16 %v2754, %v2753
        %v2765 = vpack.c.bf16 %v2756, %v2755
        %v2766 = vpack.c.bf16 %v2758, %v2757
        %v2767 = vsel %vm2469, %v2115, 0
        %v2768 = vsel %vm2469, %v2116, 0
        %v2769 = vsel %vm2469, %v2117, 0
        %v2770 = vsel %vm2469, %v2118, 0
        %v2771 = vsel %vm2469, %v2119, 0
        %v2772 = vsel %vm2469, %v2120, 0
        %v2773 = vsel %vm2469, %v2121, 0
        %v2774 = vsel %vm2469, %v2122, 0
        %2775 = vmatprep.subr.bf16.mxu0 0
        %2776 = vmatpush1.bf16.msra.mxu0 %v2767
        %2777 = vmatprep.subr.bf16.mxu0 0
        %2778 = vmatpush1.bf16.msra.mxu0 %v2768
        %2779 = vmatprep.subr.bf16.mxu0 0
        %2780 = vmatpush1.bf16.msra.mxu0 %v2769
        %2781 = vmatprep.subr.bf16.mxu0 0
        %2782 = vmatpush1.bf16.msra.mxu0 %v2770
        %2783 = vmatprep.subr.bf16.mxu0 0
        %2784 = vmatpush1.bf16.msra.mxu0 %v2771
        %2785 = vmatprep.subr.bf16.mxu0 0
        %2786 = vmatpush1.bf16.msra.mxu0 %v2772
        %2787 = vmatprep.subr.bf16.mxu0 0
        %2788 = vmatpush1.bf16.msra.mxu0 %v2773
        %2789 = vmatprep.subr.bf16.mxu0 0
        %2790 = vmatpush1.bf16.msra.mxu0 %v2774
        %2791 = vmatprep.subr.bf16.mxu0 0
        %2792 = vmatpush1.bf16.msra.mxu0 0
        %2793 = vmatprep.subr.bf16.mxu0 0
        %2794 = vmatpush1.bf16.msra.mxu0 0
        %2795 = vmatprep.subr.bf16.mxu0 0
        %2796 = vmatpush1.bf16.msra.mxu0 0
        %2797 = vmatprep.subr.bf16.mxu0 0
        %2798 = vmatpush1.bf16.msra.mxu0 0
        %2799 = vmatprep.subr.bf16.mxu0 0
        %2800 = vmatpush1.bf16.msra.mxu0 0
        %2801 = vmatprep.subr.bf16.mxu0 0
        %2802 = vmatpush1.bf16.msra.mxu0 0
        %2803 = vmatprep.subr.bf16.mxu0 0
        %2804 = vmatpush1.bf16.msra.mxu0 0
        %2805 = vmatprep.subr.bf16.mxu0 0
        %2806 = vmatpush1.bf16.msra.mxu0 0
        %2807 = vmatprep.mubr.bf16.mxu0 0
        %2808 = vmatmul.mubr.bf16.gmra.mrb[0].mxu0 %v2759
        %v2809 = vpop.f32.mrb[0].mxu0
        %v2810 = vadd.f32 0.0, %v2809
        %v2811 = vpop.f32.mrb[0].mxu0
        %v2812 = vpop.f32.mrb[0].mxu0
        %v2813 = vadd.f32 0.0, %v2812
        %v2814 = vpop.f32.mrb[0].mxu0
        %2815 = vmatprep.mubr.bf16.mxu0 0
        %2816 = vmatmul.mubr.bf16.gmra.mrb[0].mxu0 %v2760
        %v2817 = vpop.f32.mrb[0].mxu0
        %v2818 = vadd.f32 0.0, %v2817
        %v2819 = vpop.f32.mrb[0].mxu0
        %v2820 = vpop.f32.mrb[0].mxu0
        %v2821 = vadd.f32 0.0, %v2820
        %v2822 = vpop.f32.mrb[0].mxu0
        %2823 = vmatprep.mubr.bf16.mxu0 0
        %2824 = vmatmul.mubr.bf16.gmra.mrb[0].mxu0 %v2761
        %v2825 = vpop.f32.mrb[0].mxu0
        %v2826 = vadd.f32 0.0, %v2825
        %v2827 = vpop.f32.mrb[0].mxu0
        %v2828 = vpop.f32.mrb[0].mxu0
        %v2829 = vadd.f32 0.0, %v2828
        %v2830 = vpop.f32.mrb[0].mxu0
        %2831 = vmatprep.mubr.bf16.mxu0 0
        %2832 = vmatmul.mubr.bf16.gmra.mrb[0].mxu0 %v2762
        %v2833 = vpop.f32.mrb[0].mxu0
        %v2834 = vadd.f32 0.0, %v2833
        %v2835 = vpop.f32.mrb[0].mxu0
        %v2836 = vpop.f32.mrb[0].mxu0
        %v2837 = vadd.f32 0.0, %v2836
        %v2838 = vpop.f32.mrb[0].mxu0
        %2839 = vmatprep.mubr.bf16.mxu0 0
        %2840 = vmatmul.mubr.bf16.gmra.mrb[0].mxu0 %v2763
        %v2841 = vpop.f32.mrb[0].mxu0
        %v2842 = vadd.f32 0.0, %v2841
        %v2843 = vpop.f32.mrb[0].mxu0
        %v2844 = vpop.f32.mrb[0].mxu0
        %v2845 = vadd.f32 0.0, %v2844
        %v2846 = vpop.f32.mrb[0].mxu0
        %2847 = vmatprep.mubr.bf16.mxu0 0
        %2848 = vmatmul.mubr.bf16.gmra.mrb[0].mxu0 %v2764
        %v2849 = vpop.f32.mrb[0].mxu0
        %v2850 = vadd.f32 0.0, %v2849
        %v2851 = vpop.f32.mrb[0].mxu0
        %v2852 = vpop.f32.mrb[0].mxu0
        %v2853 = vadd.f32 0.0, %v2852
        %v2854 = vpop.f32.mrb[0].mxu0
        %2855 = vmatprep.mubr.bf16.mxu0 0
        %2856 = vmatmul.mubr.bf16.gmra.mrb[0].mxu0 %v2765
        %v2857 = vpop.f32.mrb[0].mxu0
        %v2858 = vadd.f32 0.0, %v2857
        %v2859 = vpop.f32.mrb[0].mxu0
        %v2860 = vpop.f32.mrb[0].mxu0
        %v2861 = vadd.f32 0.0, %v2860
        %v2862 = vpop.f32.mrb[0].mxu0
        %2863 = vmatprep.mubr.bf16.mxu0 0
        %2864 = vmatmul.mubr.bf16.gmra.mrb[0].mxu0 %v2766
        %v2865 = vpop.f32.mrb[0].mxu0
        %v2866 = vadd.f32 0.0, %v2865
        %v2867 = vpop.f32.mrb[0].mxu0
        %v2868 = vpop.f32.mrb[0].mxu0
        %v2869 = vadd.f32 0.0, %v2868
        %v2870 = vpop.f32.mrb[0].mxu0
        %2871 = vdwg.mxu0
        %2872 = vmatprep.subr.bf16.mxu0 0
        %2873 = vmatpush1.bf16.msra.mxu0 %v2453
        %2874 = vmatprep.subr.bf16.mxu0 0
        %2875 = vmatpush1.bf16.msra.mxu0 %v2454
        %2876 = vmatprep.subr.bf16.mxu0 0
        %2877 = vmatpush1.bf16.msra.mxu0 %v2455
        %2878 = vmatprep.subr.bf16.mxu0 0
        %2879 = vmatpush1.bf16.msra.mxu0 %v2456
        %2880 = vmatprep.subr.bf16.mxu0 0
        %2881 = vmatpush1.bf16.msra.mxu0 %v2457
        %2882 = vmatprep.subr.bf16.mxu0 0
        %2883 = vmatpush1.bf16.msra.mxu0 %v2458
        %2884 = vmatprep.subr.bf16.mxu0 0
        %2885 = vmatpush1.bf16.msra.mxu0 %v2459
        %2886 = vmatprep.subr.bf16.mxu0 0
        %2887 = vmatpush1.bf16.msra.mxu0 %v2460
        %2888 = vmatprep.subr.bf16.mxu0 0
        %2889 = vmatpush1.bf16.msra.mxu0 0
        %2890 = vmatprep.subr.bf16.mxu0 0
        %2891 = vmatpush1.bf16.msra.mxu0 0
        %2892 = vmatprep.subr.bf16.mxu0 0
        %2893 = vmatpush1.bf16.msra.mxu0 0
        %2894 = vmatprep.subr.bf16.mxu0 0
        %2895 = vmatpush1.bf16.msra.mxu0 0
        %2896 = vmatprep.subr.bf16.mxu0 0
        %2897 = vmatpush1.bf16.msra.mxu0 0
        %2898 = vmatprep.subr.bf16.mxu0 0
        %2899 = vmatpush1.bf16.msra.mxu0 0
        %2900 = vmatprep.subr.bf16.mxu0 0
        %2901 = vmatpush1.bf16.msra.mxu0 0
        %2902 = vmatprep.subr.bf16.mxu0 0
        %2903 = vmatpush1.bf16.msra.mxu0 0
        %2904 = vmatprep.mubr.bf16.mxu0 0
        %2905 = vmatmul.mubr.bf16.gmra.mrb[0].mxu0 %v2445
        %v2906 = vpop.f32.mrb[0].mxu0
        %v2907 = vadd.f32 %v2810, %v2906
        %v2908 = vpop.f32.mrb[0].mxu0
        %v2909 = vpop.f32.mrb[0].mxu0
        %v2910 = vadd.f32 %v2813, %v2909
        %v2911 = vpop.f32.mrb[0].mxu0
        %2912 = vmatprep.mubr.bf16.mxu0 0
        %2913 = vmatmul.mubr.bf16.gmra.mrb[0].mxu0 %v2446
        %v2914 = vpop.f32.mrb[0].mxu0
        %v2915 = vadd.f32 %v2818, %v2914
        %v2916 = vpop.f32.mrb[0].mxu0
        %v2917 = vpop.f32.mrb[0].mxu0
        %v2918 = vadd.f32 %v2821, %v2917
        %v2919 = vpop.f32.mrb[0].mxu0
        %2920 = vmatprep.mubr.bf16.mxu0 0
        %2921 = vmatmul.mubr.bf16.gmra.mrb[0].mxu0 %v2447
        %v2922 = vpop.f32.mrb[0].mxu0
        %v2923 = vadd.f32 %v2826, %v2922
        %v2924 = vpop.f32.mrb[0].mxu0
        %v2925 = vpop.f32.mrb[0].mxu0
        %v2926 = vadd.f32 %v2829, %v2925
        %v2927 = vpop.f32.mrb[0].mxu0
        %2928 = vmatprep.mubr.bf16.mxu0 0
        %2929 = vmatmul.mubr.bf16.gmra.mrb[0].mxu0 %v2448
        %v2930 = vpop.f32.mrb[0].mxu0
        %v2931 = vadd.f32 %v2834, %v2930
        %v2932 = vpop.f32.mrb[0].mxu0
        %v2933 = vpop.f32.mrb[0].mxu0
        %v2934 = vadd.f32 %v2837, %v2933
        %v2935 = vpop.f32.mrb[0].mxu0
        %2936 = vmatprep.mubr.bf16.mxu0 0
        %2937 = vmatmul.mubr.bf16.gmra.mrb[0].mxu0 %v2449
        %v2938 = vpop.f32.mrb[0].mxu0
        %v2939 = vadd.f32 %v2842, %v2938
        %v2940 = vpop.f32.mrb[0].mxu0
        %v2941 = vpop.f32.mrb[0].mxu0
        %v2942 = vadd.f32 %v2845, %v2941
        %v2943 = vpop.f32.mrb[0].mxu0
        %2944 = vmatprep.mubr.bf16.mxu0 0
        %2945 = vmatmul.mubr.bf16.gmra.mrb[0].mxu0 %v2450
        %v2946 = vpop.f32.mrb[0].mxu0
        %v2947 = vadd.f32 %v2850, %v2946
        %v2948 = vpop.f32.mrb[0].mxu0
        %v2949 = vpop.f32.mrb[0].mxu0
        %v2950 = vadd.f32 %v2853, %v2949
        %v2951 = vpop.f32.mrb[0].mxu0
        %2952 = vmatprep.mubr.bf16.mxu0 0
        %2953 = vmatmul.mubr.bf16.gmra.mrb[0].mxu0 %v2451
        %v2954 = vpop.f32.mrb[0].mxu0
        %v2955 = vadd.f32 %v2858, %v2954
        %v2956 = vpop.f32.mrb[0].mxu0
        %v2957 = vpop.f32.mrb[0].mxu0
        %v2958 = vadd.f32 %v2861, %v2957
        %v2959 = vpop.f32.mrb[0].mxu0
        %2960 = vmatprep.mubr.bf16.mxu0 0
        %2961 = vmatmul.mubr.bf16.gmra.mrb[0].mxu0 %v2452
        %v2962 = vpop.f32.mrb[0].mxu0
        %v2963 = vadd.f32 %v2866, %v2962
        %v2964 = vpop.f32.mrb[0].mxu0
        %v2965 = vpop.f32.mrb[0].mxu0
        %v2966 = vadd.f32 %v2869, %v2965
        %v2967 = vpop.f32.mrb[0].mxu0
        %2968 = vdwg.mxu0
        %v2969 = vsel %vm1690, 1, 0
        %vm2970 = vcmp.eq.s32.totalorder %v2969, 1
        %vm2971 = vmpackc.low %vm2970, %vm2970
        %v2972 = vsel %vm2971, 65537, 0
        %v2973 = vlaneseq
        %v2974 = vshrl.u32 %v2973, 7
        %v2975 = vsub.s32 0, %v2974
        %v2976 = vrot.slane %v2972, %v2975
        %vm2977 = vcmp.ne.s16.totalorder %v2976, 0
        %v2978 = vsel %vm2977, %v2107, 0
        %v2979 = vsel %vm2977, %v2108, 0
        %v2980 = vsel %vm2977, %v2109, 0
        %v2981 = vsel %vm2977, %v2110, 0
        %v2982 = vsel %vm2977, %v2111, 0
        %v2983 = vsel %vm2977, %v2112, 0
        %v2984 = vsel %vm2977, %v2113, 0
        %v2985 = vsel %vm2977, %v2114, 0
        %v2987 = vsel %vm1723, %v2978, 0
        %v2990 = vsel %vm1723, %v2979, 0
        %v2993 = vsel %vm1723, %v2980, 0
        %v2996 = vsel %vm1723, %v2981, 0
        %v2999 = vsel %vm1723, %v2982, 0
        %v3002 = vsel %vm1723, %v2983, 0
        %v3005 = vsel %vm1723, %v2984, 0
        %v3008 = vsel %vm1723, %v2985, 0
        %3010 = vmatprep.subr.bf16.mxu0 0
        %3011 = vmatpush1.bf16.xpose.msra.mxu0 %v2987
        %3012 = vmatprep.subr.bf16.mxu0 0
        %3013 = vmatpush1.bf16.xpose.msra.mxu0 %v2990
        %3014 = vmatprep.subr.bf16.mxu0 0
        %3015 = vmatpush1.bf16.xpose.msra.mxu0 %v2993
        %3016 = vmatprep.subr.bf16.mxu0 0
        %3017 = vmatpush1.bf16.xpose.msra.mxu0 %v2996
        %3018 = vmatprep.subr.bf16.mxu0 0
        %3019 = vmatpush1.bf16.xpose.msra.mxu0 %v2999
        %3020 = vmatprep.subr.bf16.mxu0 0
        %3021 = vmatpush1.bf16.xpose.msra.mxu0 %v3002
        %3022 = vmatprep.subr.bf16.mxu0 0
        %3023 = vmatpush1.bf16.xpose.msra.mxu0 %v3005
        %3024 = vmatprep.subr.bf16.mxu0 0
        %3025 = vmatpush1.bf16.xpose.msra.mxu0 %v3008
        %3026 = vmatprep.subr.bf16.mxu0 0
        %3027 = vmatpush1.bf16.xpose.msra.mxu0 0
        %3028 = vmatprep.subr.bf16.mxu0 0
        %3029 = vmatpush1.bf16.xpose.msra.mxu0 0
        %3030 = vmatprep.subr.bf16.mxu0 0
        %3031 = vmatpush1.bf16.xpose.msra.mxu0 0
        %3032 = vmatprep.subr.bf16.mxu0 0
        %3033 = vmatpush1.bf16.xpose.msra.mxu0 0
        %3034 = vmatprep.subr.bf16.mxu0 0
        %3035 = vmatpush1.bf16.xpose.msra.mxu0 0
        %3036 = vmatprep.subr.bf16.mxu0 0
        %3037 = vmatpush1.bf16.xpose.msra.mxu0 0
        %3038 = vmatprep.subr.bf16.mxu0 0
        %3039 = vmatpush1.bf16.xpose.msra.mxu0 0
        %3040 = vmatprep.subr.bf16.mxu0 0
        %3041 = vmatpush1.bf16.xpose.msra.mxu0 0
        %3042 = vmatprep.mubr.bf16.mxu0 0
        %3043 = vmatmul.mubr.bf16.gmra.mrb[0].mxu0 %v2141
        %v3044 = vpop.f32.mrb[0].mxu0
        %v3045 = vadd.f32 0.0, %v3044
        %v3046 = vpop.f32.mrb[0].mxu0
        %v3047 = vpop.f32.mrb[0].mxu0
        %v3048 = vadd.f32 0.0, %v3047
        %v3049 = vpop.f32.mrb[0].mxu0
        %3050 = vmatprep.mubr.bf16.mxu0 0
        %3051 = vmatmul.mubr.bf16.gmra.mrb[0].mxu0 %v2144
        %v3052 = vpop.f32.mrb[0].mxu0
        %v3053 = vadd.f32 0.0, %v3052
        %v3054 = vpop.f32.mrb[0].mxu0
        %v3055 = vpop.f32.mrb[0].mxu0
        %v3056 = vadd.f32 0.0, %v3055
        %v3057 = vpop.f32.mrb[0].mxu0
        %3058 = vmatprep.mubr.bf16.mxu0 0
        %3059 = vmatmul.mubr.bf16.gmra.mrb[0].mxu0 %v2147
        %v3060 = vpop.f32.mrb[0].mxu0
        %v3061 = vadd.f32 0.0, %v3060
        %v3062 = vpop.f32.mrb[0].mxu0
        %v3063 = vpop.f32.mrb[0].mxu0
        %v3064 = vadd.f32 0.0, %v3063
        %v3065 = vpop.f32.mrb[0].mxu0
        %3066 = vmatprep.mubr.bf16.mxu0 0
        %3067 = vmatmul.mubr.bf16.gmra.mrb[0].mxu0 %v2150
        %v3068 = vpop.f32.mrb[0].mxu0
        %v3069 = vadd.f32 0.0, %v3068
        %v3070 = vpop.f32.mrb[0].mxu0
        %v3071 = vpop.f32.mrb[0].mxu0
        %v3072 = vadd.f32 0.0, %v3071
        %v3073 = vpop.f32.mrb[0].mxu0
        %3074 = vmatprep.mubr.bf16.mxu0 0
        %3075 = vmatmul.mubr.bf16.gmra.mrb[0].mxu0 %v2153
        %v3076 = vpop.f32.mrb[0].mxu0
        %v3077 = vadd.f32 0.0, %v3076
        %v3078 = vpop.f32.mrb[0].mxu0
        %v3079 = vpop.f32.mrb[0].mxu0
        %v3080 = vadd.f32 0.0, %v3079
        %v3081 = vpop.f32.mrb[0].mxu0
        %3082 = vmatprep.mubr.bf16.mxu0 0
        %3083 = vmatmul.mubr.bf16.gmra.mrb[0].mxu0 %v2156
        %v3084 = vpop.f32.mrb[0].mxu0
        %v3085 = vadd.f32 0.0, %v3084
        %v3086 = vpop.f32.mrb[0].mxu0
        %v3087 = vpop.f32.mrb[0].mxu0
        %v3088 = vadd.f32 0.0, %v3087
        %v3089 = vpop.f32.mrb[0].mxu0
        %3090 = vmatprep.mubr.bf16.mxu0 0
        %3091 = vmatmul.mubr.bf16.gmra.mrb[0].mxu0 %v2159
        %v3092 = vpop.f32.mrb[0].mxu0
        %v3093 = vadd.f32 0.0, %v3092
        %v3094 = vpop.f32.mrb[0].mxu0
        %v3095 = vpop.f32.mrb[0].mxu0
        %v3096 = vadd.f32 0.0, %v3095
        %v3097 = vpop.f32.mrb[0].mxu0
        %3098 = vmatprep.mubr.bf16.mxu0 0
        %3099 = vmatmul.mubr.bf16.gmra.mrb[0].mxu0 %v2162
        %v3100 = vpop.f32.mrb[0].mxu0
        %v3101 = vadd.f32 0.0, %v3100
        %v3102 = vpop.f32.mrb[0].mxu0
        %v3103 = vpop.f32.mrb[0].mxu0
        %v3104 = vadd.f32 0.0, %v3103
        %v3105 = vpop.f32.mrb[0].mxu0
        %3106 = vdwg.mxu0
        %v3107 = vsel %vm1311, %v3045, -1e+30
        %v3108 = vsel %vm1312, %v3048, -1e+30
        %v3109 = vsel %vm1313, %v3053, -1e+30
        %v3110 = vsel %vm1314, %v3056, -1e+30
        %v3111 = vsel %vm1315, %v3061, -1e+30
        %v3112 = vsel %vm1316, %v3064, -1e+30
        %v3113 = vsel %vm1317, %v3069, -1e+30
        %v3114 = vsel %vm1318, %v3072, -1e+30
        %v3115 = vsel %vm1319, %v3077, -1e+30
        %v3116 = vsel %vm1320, %v3080, -1e+30
        %v3117 = vsel %vm1321, %v3085, -1e+30
        %v3118 = vsel %vm1322, %v3088, -1e+30
        %v3119 = vsel %vm1323, %v3093, -1e+30
        %v3120 = vsel %vm1324, %v3096, -1e+30
        %v3121 = vsel %vm1325, %v3101, -1e+30
        %v3122 = vsel %vm1326, %v3104, -1e+30
        %3123 = vmax.xlane.f32.xlu0 %v3107
        %v3124 = vpop.xlane.xlu0 %3123
        %3125 = vmax.xlane.f32.xlu0 %v3108
        %v3126 = vpop.xlane.xlu0 %3125
        %3127 = vmax.xlane.f32.xlu0 %v3109
        %v3128 = vpop.xlane.xlu0 %3127
        %3129 = vmax.xlane.f32.xlu0 %v3110
        %v3130 = vpop.xlane.xlu0 %3129
        %3131 = vmax.xlane.f32.xlu0 %v3111
        %v3132 = vpop.xlane.xlu0 %3131
        %3133 = vmax.xlane.f32.xlu0 %v3112
        %v3134 = vpop.xlane.xlu0 %3133
        %3135 = vmax.xlane.f32.xlu0 %v3113
        %v3136 = vpop.xlane.xlu0 %3135
        %3137 = vmax.xlane.f32.xlu0 %v3114
        %v3138 = vpop.xlane.xlu0 %3137
        %3139 = vmax.xlane.f32.xlu0 %v3115
        %v3140 = vpop.xlane.xlu0 %3139
        %3141 = vmax.xlane.f32.xlu0 %v3116
        %v3142 = vpop.xlane.xlu0 %3141
        %3143 = vmax.xlane.f32.xlu0 %v3117
        %v3144 = vpop.xlane.xlu0 %3143
        %3145 = vmax.xlane.f32.xlu0 %v3118
        %v3146 = vpop.xlane.xlu0 %3145
        %3147 = vmax.xlane.f32.xlu0 %v3119
        %v3148 = vpop.xlane.xlu0 %3147
        %3149 = vmax.xlane.f32.xlu0 %v3120
        %v3150 = vpop.xlane.xlu0 %3149
        %3151 = vmax.xlane.f32.xlu0 %v3121
        %v3152 = vpop.xlane.xlu0 %3151
        %3153 = vmax.xlane.f32.xlu0 %v3122
        %v3154 = vpop.xlane.xlu0 %3153
        %v3155 = vsub.f32 %v3107, %v3124
        %v3156 = vsub.f32 %v3108, %v3126
        %v3157 = vsub.f32 %v3109, %v3128
        %v3158 = vsub.f32 %v3110, %v3130
        %v3159 = vsub.f32 %v3111, %v3132
        %v3160 = vsub.f32 %v3112, %v3134
        %v3161 = vsub.f32 %v3113, %v3136
        %v3162 = vsub.f32 %v3114, %v3138
        %v3163 = vsub.f32 %v3115, %v3140
        %v3164 = vsub.f32 %v3116, %v3142
        %v3165 = vsub.f32 %v3117, %v3144
        %v3166 = vsub.f32 %v3118, %v3146
        %v3167 = vsub.f32 %v3119, %v3148
        %v3168 = vsub.f32 %v3120, %v3150
        %v3169 = vsub.f32 %v3121, %v3152
        %v3170 = vsub.f32 %v3122, %v3154
        %v3171 = vmul.f32 %v3155, 1.442695
        %v3172 = vpow.pop %v3171
        %v3173 = vmul.f32 %v3156, 1.442695
        %v3174 = vpow.pop %v3173
        %v3175 = vmul.f32 %v3157, 1.442695
        %v3176 = vpow.pop %v3175
        %v3177 = vmul.f32 %v3158, 1.442695
        %v3178 = vpow.pop %v3177
        %v3179 = vmul.f32 %v3159, 1.442695
        %v3180 = vpow.pop %v3179
        %v3181 = vmul.f32 %v3160, 1.442695
        %v3182 = vpow.pop %v3181
        %v3183 = vmul.f32 %v3161, 1.442695
        %v3184 = vpow.pop %v3183
        %v3185 = vmul.f32 %v3162, 1.442695
        %v3186 = vpow.pop %v3185
        %v3187 = vmul.f32 %v3163, 1.442695
        %v3188 = vpow.pop %v3187
        %v3189 = vmul.f32 %v3164, 1.442695
        %v3190 = vpow.pop %v3189
        %v3191 = vmul.f32 %v3165, 1.442695
        %v3192 = vpow.pop %v3191
        %v3193 = vmul.f32 %v3166, 1.442695
        %v3194 = vpow.pop %v3193
        %v3195 = vmul.f32 %v3167, 1.442695
        %v3196 = vpow.pop %v3195
        %v3197 = vmul.f32 %v3168, 1.442695
        %v3198 = vpow.pop %v3197
        %v3199 = vmul.f32 %v3169, 1.442695
        %v3200 = vpow.pop %v3199
        %v3201 = vmul.f32 %v3170, 1.442695
        %v3202 = vpow.pop %v3201
        %3203 = vadd.xlane.f32.xlu0 %v3172
        %v3204 = vpop.xlane.xlu0 %3203
        %3205 = vadd.xlane.f32.xlu0 %v3174
        %v3206 = vpop.xlane.xlu0 %3205
        %3207 = vadd.xlane.f32.xlu0 %v3176
        %v3208 = vpop.xlane.xlu0 %3207
        %3209 = vadd.xlane.f32.xlu0 %v3178
        %v3210 = vpop.xlane.xlu0 %3209
        %3211 = vadd.xlane.f32.xlu0 %v3180
        %v3212 = vpop.xlane.xlu0 %3211
        %3213 = vadd.xlane.f32.xlu0 %v3182
        %v3214 = vpop.xlane.xlu0 %3213
        %3215 = vadd.xlane.f32.xlu0 %v3184
        %v3216 = vpop.xlane.xlu0 %3215
        %3217 = vadd.xlane.f32.xlu0 %v3186
        %v3218 = vpop.xlane.xlu0 %3217
        %3219 = vadd.xlane.f32.xlu0 %v3188
        %v3220 = vpop.xlane.xlu0 %3219
        %3221 = vadd.xlane.f32.xlu0 %v3190
        %v3222 = vpop.xlane.xlu0 %3221
        %3223 = vadd.xlane.f32.xlu0 %v3192
        %v3224 = vpop.xlane.xlu0 %3223
        %3225 = vadd.xlane.f32.xlu0 %v3194
        %v3226 = vpop.xlane.xlu0 %3225
        %3227 = vadd.xlane.f32.xlu0 %v3196
        %v3228 = vpop.xlane.xlu0 %3227
        %3229 = vadd.xlane.f32.xlu0 %v3198
        %v3230 = vpop.xlane.xlu0 %3229
        %3231 = vadd.xlane.f32.xlu0 %v3200
        %v3232 = vpop.xlane.xlu0 %3231
        %3233 = vadd.xlane.f32.xlu0 %v3202
        %v3234 = vpop.xlane.xlu0 %3233
        %v3235 = vrcp.pop %v3204
        %v3236 = vrcp.pop %v3206
        %v3237 = vrcp.pop %v3208
        %v3238 = vrcp.pop %v3210
        %v3239 = vrcp.pop %v3212
        %v3240 = vrcp.pop %v3214
        %v3241 = vrcp.pop %v3216
        %v3242 = vrcp.pop %v3218
        %v3243 = vrcp.pop %v3220
        %v3244 = vrcp.pop %v3222
        %v3245 = vrcp.pop %v3224
        %v3246 = vrcp.pop %v3226
        %v3247 = vrcp.pop %v3228
        %v3248 = vrcp.pop %v3230
        %v3249 = vrcp.pop %v3232
        %v3250 = vrcp.pop %v3234
        %v3251 = vmul.f32 %v3172, %v3235
        %v3252 = vmul.f32 %v3174, %v3236
        %v3253 = vmul.f32 %v3176, %v3237
        %v3254 = vmul.f32 %v3178, %v3238
        %v3255 = vmul.f32 %v3180, %v3239
        %v3256 = vmul.f32 %v3182, %v3240
        %v3257 = vmul.f32 %v3184, %v3241
        %v3258 = vmul.f32 %v3186, %v3242
        %v3259 = vmul.f32 %v3188, %v3243
        %v3260 = vmul.f32 %v3190, %v3244
        %v3261 = vmul.f32 %v3192, %v3245
        %v3262 = vmul.f32 %v3194, %v3246
        %v3263 = vmul.f32 %v3196, %v3247
        %v3264 = vmul.f32 %v3198, %v3248
        %v3265 = vmul.f32 %v3200, %v3249
        %v3266 = vmul.f32 %v3202, %v3250
        %v3267 = vpack.c.bf16 %v3252, %v3251
        %v3268 = vpack.c.bf16 %v3254, %v3253
        %v3269 = vpack.c.bf16 %v3256, %v3255
        %v3270 = vpack.c.bf16 %v3258, %v3257
        %v3271 = vpack.c.bf16 %v3260, %v3259
        %v3272 = vpack.c.bf16 %v3262, %v3261
        %v3273 = vpack.c.bf16 %v3264, %v3263
        %v3274 = vpack.c.bf16 %v3266, %v3265
        %v3275 = vsel %vm2977, %v2115, 0
        %v3276 = vsel %vm2977, %v2116, 0
        %v3277 = vsel %vm2977, %v2117, 0
        %v3278 = vsel %vm2977, %v2118, 0
        %v3279 = vsel %vm2977, %v2119, 0
        %v3280 = vsel %vm2977, %v2120, 0
        %v3281 = vsel %vm2977, %v2121, 0
        %v3282 = vsel %vm2977, %v2122, 0
        %3283 = vmatprep.subr.bf16.mxu0 0
        %3284 = vmatpush1.bf16.msra.mxu0 %v3275
        %3285 = vmatprep.subr.bf16.mxu0 0
        %3286 = vmatpush1.bf16.msra.mxu0 %v3276
        %3287 = vmatprep.subr.bf16.mxu0 0
        %3288 = vmatpush1.bf16.msra.mxu0 %v3277
        %3289 = vmatprep.subr.bf16.mxu0 0
        %3290 = vmatpush1.bf16.msra.mxu0 %v3278
        %3291 = vmatprep.subr.bf16.mxu0 0
        %3292 = vmatpush1.bf16.msra.mxu0 %v3279
        %3293 = vmatprep.subr.bf16.mxu0 0
        %3294 = vmatpush1.bf16.msra.mxu0 %v3280
        %3295 = vmatprep.subr.bf16.mxu0 0
        %3296 = vmatpush1.bf16.msra.mxu0 %v3281
        %3297 = vmatprep.subr.bf16.mxu0 0
        %3298 = vmatpush1.bf16.msra.mxu0 %v3282
        %3299 = vmatprep.subr.bf16.mxu0 0
        %3300 = vmatpush1.bf16.msra.mxu0 0
        %3301 = vmatprep.subr.bf16.mxu0 0
        %3302 = vmatpush1.bf16.msra.mxu0 0
        %3303 = vmatprep.subr.bf16.mxu0 0
        %3304 = vmatpush1.bf16.msra.mxu0 0
        %3305 = vmatprep.subr.bf16.mxu0 0
        %3306 = vmatpush1.bf16.msra.mxu0 0
        %3307 = vmatprep.subr.bf16.mxu0 0
        %3308 = vmatpush1.bf16.msra.mxu0 0
        %3309 = vmatprep.subr.bf16.mxu0 0
        %3310 = vmatpush1.bf16.msra.mxu0 0
        %3311 = vmatprep.subr.bf16.mxu0 0
        %3312 = vmatpush1.bf16.msra.mxu0 0
        %3313 = vmatprep.subr.bf16.mxu0 0
        %3314 = vmatpush1.bf16.msra.mxu0 0
        %3315 = vmatprep.mubr.bf16.mxu0 0
        %3316 = vmatmul.mubr.bf16.gmra.mrb[0].mxu0 %v3267
        %v3317 = vpop.f32.mrb[0].mxu0
        %v3318 = vadd.f32 0.0, %v3317
        %v3319 = vpop.f32.mrb[0].mxu0
        %v3320 = vpop.f32.mrb[0].mxu0
        %v3321 = vadd.f32 0.0, %v3320
        %v3322 = vpop.f32.mrb[0].mxu0
        %3323 = vmatprep.mubr.bf16.mxu0 0
        %3324 = vmatmul.mubr.bf16.gmra.mrb[0].mxu0 %v3268
        %v3325 = vpop.f32.mrb[0].mxu0
        %v3326 = vadd.f32 0.0, %v3325
        %v3327 = vpop.f32.mrb[0].mxu0
        %v3328 = vpop.f32.mrb[0].mxu0
        %v3329 = vadd.f32 0.0, %v3328
        %v3330 = vpop.f32.mrb[0].mxu0
        %3331 = vmatprep.mubr.bf16.mxu0 0
        %3332 = vmatmul.mubr.bf16.gmra.mrb[0].mxu0 %v3269
        %v3333 = vpop.f32.mrb[0].mxu0
        %v3334 = vadd.f32 0.0, %v3333
        %v3335 = vpop.f32.mrb[0].mxu0
        %v3336 = vpop.f32.mrb[0].mxu0
        %v3337 = vadd.f32 0.0, %v3336
        %v3338 = vpop.f32.mrb[0].mxu0
        %3339 = vmatprep.mubr.bf16.mxu0 0
        %3340 = vmatmul.mubr.bf16.gmra.mrb[0].mxu0 %v3270
        %v3341 = vpop.f32.mrb[0].mxu0
        %v3342 = vadd.f32 0.0, %v3341
        %v3343 = vpop.f32.mrb[0].mxu0
        %v3344 = vpop.f32.mrb[0].mxu0
        %v3345 = vadd.f32 0.0, %v3344
        %v3346 = vpop.f32.mrb[0].mxu0
        %3347 = vmatprep.mubr.bf16.mxu0 0
        %3348 = vmatmul.mubr.bf16.gmra.mrb[0].mxu0 %v3271
        %v3349 = vpop.f32.mrb[0].mxu0
        %v3350 = vadd.f32 0.0, %v3349
        %v3351 = vpop.f32.mrb[0].mxu0
        %v3352 = vpop.f32.mrb[0].mxu0
        %v3353 = vadd.f32 0.0, %v3352
        %v3354 = vpop.f32.mrb[0].mxu0
        %3355 = vmatprep.mubr.bf16.mxu0 0
        %3356 = vmatmul.mubr.bf16.gmra.mrb[0].mxu0 %v3272
        %v3357 = vpop.f32.mrb[0].mxu0
        %v3358 = vadd.f32 0.0, %v3357
        %v3359 = vpop.f32.mrb[0].mxu0
        %v3360 = vpop.f32.mrb[0].mxu0
        %v3361 = vadd.f32 0.0, %v3360
        %v3362 = vpop.f32.mrb[0].mxu0
        %3363 = vmatprep.mubr.bf16.mxu0 0
        %3364 = vmatmul.mubr.bf16.gmra.mrb[0].mxu0 %v3273
        %v3365 = vpop.f32.mrb[0].mxu0
        %v3366 = vadd.f32 0.0, %v3365
        %v3367 = vpop.f32.mrb[0].mxu0
        %v3368 = vpop.f32.mrb[0].mxu0
        %v3369 = vadd.f32 0.0, %v3368
        %v3370 = vpop.f32.mrb[0].mxu0
        %3371 = vmatprep.mubr.bf16.mxu0 0
        %3372 = vmatmul.mubr.bf16.gmra.mrb[0].mxu0 %v3274
        %v3373 = vpop.f32.mrb[0].mxu0
        %v3374 = vadd.f32 0.0, %v3373
        %v3375 = vpop.f32.mrb[0].mxu0
        %v3376 = vpop.f32.mrb[0].mxu0
        %v3377 = vadd.f32 0.0, %v3376
        %v3378 = vpop.f32.mrb[0].mxu0
        %3379 = vdwg.mxu0
        %v3380 = vadd.f32 %v2907, %v3318
        %v3381 = vadd.f32 %v2910, %v3321
        %v3382 = vadd.f32 %v2915, %v3326
        %v3383 = vadd.f32 %v2918, %v3329
        %v3384 = vadd.f32 %v2923, %v3334
        %v3385 = vadd.f32 %v2926, %v3337
        %v3386 = vadd.f32 %v2931, %v3342
        %v3387 = vadd.f32 %v2934, %v3345
        %v3388 = vadd.f32 %v2939, %v3350
        %v3389 = vadd.f32 %v2942, %v3353
        %v3390 = vadd.f32 %v2947, %v3358
        %v3391 = vadd.f32 %v2950, %v3361
        %v3392 = vadd.f32 %v2955, %v3366
        %v3393 = vadd.f32 %v2958, %v3369
        %v3394 = vadd.f32 %v2963, %v3374
        %v3395 = vadd.f32 %v2966, %v3377
        %v3396 = vsel %vm1693, 1, 0
        %vm3397 = vcmp.eq.s32.totalorder %v3396, 1
        %vm3398 = vmpackc.low %vm3397, %vm3397
        %v3399 = vsel %vm3398, 65537, 0
        %v3400 = vlaneseq
        %v3401 = vshrl.u32 %v3400, 7
        %v3402 = vsub.s32 0, %v3401
        %v3403 = vrot.slane %v3399, %v3402
        %vm3404 = vcmp.ne.s16.totalorder %v3403, 0
        %v3405 = vsel %vm3404, %v2107, 0
        %v3406 = vsel %vm3404, %v2108, 0
        %v3407 = vsel %vm3404, %v2109, 0
        %v3408 = vsel %vm3404, %v2110, 0
        %v3409 = vsel %vm3404, %v2111, 0
        %v3410 = vsel %vm3404, %v2112, 0
        %v3411 = vsel %vm3404, %v2113, 0
        %v3412 = vsel %vm3404, %v2114, 0
        %v3414 = vsel %vm1723, %v3405, 0
        %v3417 = vsel %vm1723, %v3406, 0
        %v3420 = vsel %vm1723, %v3407, 0
        %v3423 = vsel %vm1723, %v3408, 0
        %v3426 = vsel %vm1723, %v3409, 0
        %v3429 = vsel %vm1723, %v3410, 0
        %v3432 = vsel %vm1723, %v3411, 0
        %v3435 = vsel %vm1723, %v3412, 0
        %3437 = vmatprep.subr.bf16.mxu0 0
        %3438 = vmatpush1.bf16.xpose.msra.mxu0 %v3414
        %3439 = vmatprep.subr.bf16.mxu0 0
        %3440 = vmatpush1.bf16.xpose.msra.mxu0 %v3417
        %3441 = vmatprep.subr.bf16.mxu0 0
        %3442 = vmatpush1.bf16.xpose.msra.mxu0 %v3420
        %3443 = vmatprep.subr.bf16.mxu0 0
        %3444 = vmatpush1.bf16.xpose.msra.mxu0 %v3423
        %3445 = vmatprep.subr.bf16.mxu0 0
        %3446 = vmatpush1.bf16.xpose.msra.mxu0 %v3426
        %3447 = vmatprep.subr.bf16.mxu0 0
        %3448 = vmatpush1.bf16.xpose.msra.mxu0 %v3429
        %3449 = vmatprep.subr.bf16.mxu0 0
        %3450 = vmatpush1.bf16.xpose.msra.mxu0 %v3432
        %3451 = vmatprep.subr.bf16.mxu0 0
        %3452 = vmatpush1.bf16.xpose.msra.mxu0 %v3435
        %3453 = vmatprep.subr.bf16.mxu0 0
        %3454 = vmatpush1.bf16.xpose.msra.mxu0 0
        %3455 = vmatprep.subr.bf16.mxu0 0
        %3456 = vmatpush1.bf16.xpose.msra.mxu0 0
        %3457 = vmatprep.subr.bf16.mxu0 0
        %3458 = vmatpush1.bf16.xpose.msra.mxu0 0
        %3459 = vmatprep.subr.bf16.mxu0 0
        %3460 = vmatpush1.bf16.xpose.msra.mxu0 0
        %3461 = vmatprep.subr.bf16.mxu0 0
        %3462 = vmatpush1.bf16.xpose.msra.mxu0 0
        %3463 = vmatprep.subr.bf16.mxu0 0
        %3464 = vmatpush1.bf16.xpose.msra.mxu0 0
        %3465 = vmatprep.subr.bf16.mxu0 0
        %3466 = vmatpush1.bf16.xpose.msra.mxu0 0
        %3467 = vmatprep.subr.bf16.mxu0 0
        %3468 = vmatpush1.bf16.xpose.msra.mxu0 0
        %3469 = vmatprep.mubr.bf16.mxu0 0
        %3470 = vmatmul.mubr.bf16.gmra.mrb[0].mxu0 %v2141
        %v3471 = vpop.f32.mrb[0].mxu0
        %v3472 = vadd.f32 0.0, %v3471
        %v3473 = vpop.f32.mrb[0].mxu0
        %v3474 = vpop.f32.mrb[0].mxu0
        %v3475 = vadd.f32 0.0, %v3474
        %v3476 = vpop.f32.mrb[0].mxu0
        %3477 = vmatprep.mubr.bf16.mxu0 0
        %3478 = vmatmul.mubr.bf16.gmra.mrb[0].mxu0 %v2144
        %v3479 = vpop.f32.mrb[0].mxu0
        %v3480 = vadd.f32 0.0, %v3479
        %v3481 = vpop.f32.mrb[0].mxu0
        %v3482 = vpop.f32.mrb[0].mxu0
        %v3483 = vadd.f32 0.0, %v3482
        %v3484 = vpop.f32.mrb[0].mxu0
        %3485 = vmatprep.mubr.bf16.mxu0 0
        %3486 = vmatmul.mubr.bf16.gmra.mrb[0].mxu0 %v2147
        %v3487 = vpop.f32.mrb[0].mxu0
        %v3488 = vadd.f32 0.0, %v3487
        %v3489 = vpop.f32.mrb[0].mxu0
        %v3490 = vpop.f32.mrb[0].mxu0
        %v3491 = vadd.f32 0.0, %v3490
        %v3492 = vpop.f32.mrb[0].mxu0
        %3493 = vmatprep.mubr.bf16.mxu0 0
        %3494 = vmatmul.mubr.bf16.gmra.mrb[0].mxu0 %v2150
        %v3495 = vpop.f32.mrb[0].mxu0
        %v3496 = vadd.f32 0.0, %v3495
        %v3497 = vpop.f32.mrb[0].mxu0
        %v3498 = vpop.f32.mrb[0].mxu0
        %v3499 = vadd.f32 0.0, %v3498
        %v3500 = vpop.f32.mrb[0].mxu0
        %3501 = vmatprep.mubr.bf16.mxu0 0
        %3502 = vmatmul.mubr.bf16.gmra.mrb[0].mxu0 %v2153
        %v3503 = vpop.f32.mrb[0].mxu0
        %v3504 = vadd.f32 0.0, %v3503
        %v3505 = vpop.f32.mrb[0].mxu0
        %v3506 = vpop.f32.mrb[0].mxu0
        %v3507 = vadd.f32 0.0, %v3506
        %v3508 = vpop.f32.mrb[0].mxu0
        %3509 = vmatprep.mubr.bf16.mxu0 0
        %3510 = vmatmul.mubr.bf16.gmra.mrb[0].mxu0 %v2156
        %v3511 = vpop.f32.mrb[0].mxu0
        %v3512 = vadd.f32 0.0, %v3511
        %v3513 = vpop.f32.mrb[0].mxu0
        %v3514 = vpop.f32.mrb[0].mxu0
        %v3515 = vadd.f32 0.0, %v3514
        %v3516 = vpop.f32.mrb[0].mxu0
        %3517 = vmatprep.mubr.bf16.mxu0 0
        %3518 = vmatmul.mubr.bf16.gmra.mrb[0].mxu0 %v2159
        %v3519 = vpop.f32.mrb[0].mxu0
        %v3520 = vadd.f32 0.0, %v3519
        %v3521 = vpop.f32.mrb[0].mxu0
        %v3522 = vpop.f32.mrb[0].mxu0
        %v3523 = vadd.f32 0.0, %v3522
        %v3524 = vpop.f32.mrb[0].mxu0
        %3525 = vmatprep.mubr.bf16.mxu0 0
        %3526 = vmatmul.mubr.bf16.gmra.mrb[0].mxu0 %v2162
        %v3527 = vpop.f32.mrb[0].mxu0
        %v3528 = vadd.f32 0.0, %v3527
        %v3529 = vpop.f32.mrb[0].mxu0
        %v3530 = vpop.f32.mrb[0].mxu0
        %v3531 = vadd.f32 0.0, %v3530
        %v3532 = vpop.f32.mrb[0].mxu0
        %3533 = vdwg.mxu0
        %v3534 = vsel %vm1311, %v3472, -1e+30
        %v3535 = vsel %vm1312, %v3475, -1e+30
        %v3536 = vsel %vm1313, %v3480, -1e+30
        %v3537 = vsel %vm1314, %v3483, -1e+30
        %v3538 = vsel %vm1315, %v3488, -1e+30
        %v3539 = vsel %vm1316, %v3491, -1e+30
        %v3540 = vsel %vm1317, %v3496, -1e+30
        %v3541 = vsel %vm1318, %v3499, -1e+30
        %v3542 = vsel %vm1319, %v3504, -1e+30
        %v3543 = vsel %vm1320, %v3507, -1e+30
        %v3544 = vsel %vm1321, %v3512, -1e+30
        %v3545 = vsel %vm1322, %v3515, -1e+30
        %v3546 = vsel %vm1323, %v3520, -1e+30
        %v3547 = vsel %vm1324, %v3523, -1e+30
        %v3548 = vsel %vm1325, %v3528, -1e+30
        %v3549 = vsel %vm1326, %v3531, -1e+30
        %3550 = vmax.xlane.f32.xlu0 %v3534
        %v3551 = vpop.xlane.xlu0 %3550
        %3552 = vmax.xlane.f32.xlu0 %v3535
        %v3553 = vpop.xlane.xlu0 %3552
        %3554 = vmax.xlane.f32.xlu0 %v3536
        %v3555 = vpop.xlane.xlu0 %3554
        %3556 = vmax.xlane.f32.xlu0 %v3537
        %v3557 = vpop.xlane.xlu0 %3556
        %3558 = vmax.xlane.f32.xlu0 %v3538
        %v3559 = vpop.xlane.xlu0 %3558
        %3560 = vmax.xlane.f32.xlu0 %v3539
        %v3561 = vpop.xlane.xlu0 %3560
        %3562 = vmax.xlane.f32.xlu0 %v3540
        %v3563 = vpop.xlane.xlu0 %3562
        %3564 = vmax.xlane.f32.xlu0 %v3541
        %v3565 = vpop.xlane.xlu0 %3564
        %3566 = vmax.xlane.f32.xlu0 %v3542
        %v3567 = vpop.xlane.xlu0 %3566
        %3568 = vmax.xlane.f32.xlu0 %v3543
        %v3569 = vpop.xlane.xlu0 %3568
        %3570 = vmax.xlane.f32.xlu0 %v3544
        %v3571 = vpop.xlane.xlu0 %3570
        %3572 = vmax.xlane.f32.xlu0 %v3545
        %v3573 = vpop.xlane.xlu0 %3572
        %3574 = vmax.xlane.f32.xlu0 %v3546
        %v3575 = vpop.xlane.xlu0 %3574
        %3576 = vmax.xlane.f32.xlu0 %v3547
        %v3577 = vpop.xlane.xlu0 %3576
        %3578 = vmax.xlane.f32.xlu0 %v3548
        %v3579 = vpop.xlane.xlu0 %3578
        %3580 = vmax.xlane.f32.xlu0 %v3549
        %v3581 = vpop.xlane.xlu0 %3580
        %v3582 = vsub.f32 %v3534, %v3551
        %v3583 = vsub.f32 %v3535, %v3553
        %v3584 = vsub.f32 %v3536, %v3555
        %v3585 = vsub.f32 %v3537, %v3557
        %v3586 = vsub.f32 %v3538, %v3559
        %v3587 = vsub.f32 %v3539, %v3561
        %v3588 = vsub.f32 %v3540, %v3563
        %v3589 = vsub.f32 %v3541, %v3565
        %v3590 = vsub.f32 %v3542, %v3567
        %v3591 = vsub.f32 %v3543, %v3569
        %v3592 = vsub.f32 %v3544, %v3571
        %v3593 = vsub.f32 %v3545, %v3573
        %v3594 = vsub.f32 %v3546, %v3575
        %v3595 = vsub.f32 %v3547, %v3577
        %v3596 = vsub.f32 %v3548, %v3579
        %v3597 = vsub.f32 %v3549, %v3581
        %v3598 = vmul.f32 %v3582, 1.442695
        %v3599 = vpow.pop %v3598
        %v3600 = vmul.f32 %v3583, 1.442695
        %v3601 = vpow.pop %v3600
        %v3602 = vmul.f32 %v3584, 1.442695
        %v3603 = vpow.pop %v3602
        %v3604 = vmul.f32 %v3585, 1.442695
        %v3605 = vpow.pop %v3604
        %v3606 = vmul.f32 %v3586, 1.442695
        %v3607 = vpow.pop %v3606
        %v3608 = vmul.f32 %v3587, 1.442695
        %v3609 = vpow.pop %v3608
        %v3610 = vmul.f32 %v3588, 1.442695
        %v3611 = vpow.pop %v3610
        %v3612 = vmul.f32 %v3589, 1.442695
        %v3613 = vpow.pop %v3612
        %v3614 = vmul.f32 %v3590, 1.442695
        %v3615 = vpow.pop %v3614
        %v3616 = vmul.f32 %v3591, 1.442695
        %v3617 = vpow.pop %v3616
        %v3618 = vmul.f32 %v3592, 1.442695
        %v3619 = vpow.pop %v3618
        %v3620 = vmul.f32 %v3593, 1.442695
        %v3621 = vpow.pop %v3620
        %v3622 = vmul.f32 %v3594, 1.442695
        %v3623 = vpow.pop %v3622
        %v3624 = vmul.f32 %v3595, 1.442695
        %v3625 = vpow.pop %v3624
        %v3626 = vmul.f32 %v3596, 1.442695
        %v3627 = vpow.pop %v3626
        %v3628 = vmul.f32 %v3597, 1.442695
        %v3629 = vpow.pop %v3628
        %3630 = vadd.xlane.f32.xlu0 %v3599
        %v3631 = vpop.xlane.xlu0 %3630
        %3632 = vadd.xlane.f32.xlu0 %v3601
        %v3633 = vpop.xlane.xlu0 %3632
        %3634 = vadd.xlane.f32.xlu0 %v3603
        %v3635 = vpop.xlane.xlu0 %3634
        %3636 = vadd.xlane.f32.xlu0 %v3605
        %v3637 = vpop.xlane.xlu0 %3636
        %3638 = vadd.xlane.f32.xlu0 %v3607
        %v3639 = vpop.xlane.xlu0 %3638
        %3640 = vadd.xlane.f32.xlu0 %v3609
        %v3641 = vpop.xlane.xlu0 %3640
        %3642 = vadd.xlane.f32.xlu0 %v3611
        %v3643 = vpop.xlane.xlu0 %3642
        %3644 = vadd.xlane.f32.xlu0 %v3613
        %v3645 = vpop.xlane.xlu0 %3644
        %3646 = vadd.xlane.f32.xlu0 %v3615
        %v3647 = vpop.xlane.xlu0 %3646
        %3648 = vadd.xlane.f32.xlu0 %v3617
        %v3649 = vpop.xlane.xlu0 %3648
        %3650 = vadd.xlane.f32.xlu0 %v3619
        %v3651 = vpop.xlane.xlu0 %3650
        %3652 = vadd.xlane.f32.xlu0 %v3621
        %v3653 = vpop.xlane.xlu0 %3652
        %3654 = vadd.xlane.f32.xlu0 %v3623
        %v3655 = vpop.xlane.xlu0 %3654
        %3656 = vadd.xlane.f32.xlu0 %v3625
        %v3657 = vpop.xlane.xlu0 %3656
        %3658 = vadd.xlane.f32.xlu0 %v3627
        %v3659 = vpop.xlane.xlu0 %3658
        %3660 = vadd.xlane.f32.xlu0 %v3629
        %v3661 = vpop.xlane.xlu0 %3660
        %v3662 = vrcp.pop %v3631
        %v3663 = vrcp.pop %v3633
        %v3664 = vrcp.pop %v3635
        %v3665 = vrcp.pop %v3637
        %v3666 = vrcp.pop %v3639
        %v3667 = vrcp.pop %v3641
        %v3668 = vrcp.pop %v3643
        %v3669 = vrcp.pop %v3645
        %v3670 = vrcp.pop %v3647
        %v3671 = vrcp.pop %v3649
        %v3672 = vrcp.pop %v3651
        %v3673 = vrcp.pop %v3653
        %v3674 = vrcp.pop %v3655
        %v3675 = vrcp.pop %v3657
        %v3676 = vrcp.pop %v3659
        %v3677 = vrcp.pop %v3661
        %v3678 = vmul.f32 %v3599, %v3662
        %v3679 = vmul.f32 %v3601, %v3663
        %v3680 = vmul.f32 %v3603, %v3664
        %v3681 = vmul.f32 %v3605, %v3665
        %v3682 = vmul.f32 %v3607, %v3666
        %v3683 = vmul.f32 %v3609, %v3667
        %v3684 = vmul.f32 %v3611, %v3668
        %v3685 = vmul.f32 %v3613, %v3669
        %v3686 = vmul.f32 %v3615, %v3670
        %v3687 = vmul.f32 %v3617, %v3671
        %v3688 = vmul.f32 %v3619, %v3672
        %v3689 = vmul.f32 %v3621, %v3673
        %v3690 = vmul.f32 %v3623, %v3674
        %v3691 = vmul.f32 %v3625, %v3675
        %v3692 = vmul.f32 %v3627, %v3676
        %v3693 = vmul.f32 %v3629, %v3677
        %v3694 = vpack.c.bf16 %v3679, %v3678
        %v3695 = vpack.c.bf16 %v3681, %v3680
        %v3696 = vpack.c.bf16 %v3683, %v3682
        %v3697 = vpack.c.bf16 %v3685, %v3684
        %v3698 = vpack.c.bf16 %v3687, %v3686
        %v3699 = vpack.c.bf16 %v3689, %v3688
        %v3700 = vpack.c.bf16 %v3691, %v3690
        %v3701 = vpack.c.bf16 %v3693, %v3692
        %v3702 = vsel %vm3404, %v2115, 0
        %v3703 = vsel %vm3404, %v2116, 0
        %v3704 = vsel %vm3404, %v2117, 0
        %v3705 = vsel %vm3404, %v2118, 0
        %v3706 = vsel %vm3404, %v2119, 0
        %v3707 = vsel %vm3404, %v2120, 0
        %v3708 = vsel %vm3404, %v2121, 0
        %v3709 = vsel %vm3404, %v2122, 0
        %3710 = vmatprep.subr.bf16.mxu0 0
        %3711 = vmatpush1.bf16.msra.mxu0 %v3702
        %3712 = vmatprep.subr.bf16.mxu0 0
        %3713 = vmatpush1.bf16.msra.mxu0 %v3703
        %3714 = vmatprep.subr.bf16.mxu0 0
        %3715 = vmatpush1.bf16.msra.mxu0 %v3704
        %3716 = vmatprep.subr.bf16.mxu0 0
        %3717 = vmatpush1.bf16.msra.mxu0 %v3705
        %3718 = vmatprep.subr.bf16.mxu0 0
        %3719 = vmatpush1.bf16.msra.mxu0 %v3706
        %3720 = vmatprep.subr.bf16.mxu0 0
        %3721 = vmatpush1.bf16.msra.mxu0 %v3707
        %3722 = vmatprep.subr.bf16.mxu0 0
        %3723 = vmatpush1.bf16.msra.mxu0 %v3708
        %3724 = vmatprep.subr.bf16.mxu0 0
        %3725 = vmatpush1.bf16.msra.mxu0 %v3709
        %3726 = vmatprep.subr.bf16.mxu0 0
        %3727 = vmatpush1.bf16.msra.mxu0 0
        %3728 = vmatprep.subr.bf16.mxu0 0
        %3729 = vmatpush1.bf16.msra.mxu0 0
        %3730 = vmatprep.subr.bf16.mxu0 0
        %3731 = vmatpush1.bf16.msra.mxu0 0
        %3732 = vmatprep.subr.bf16.mxu0 0
        %3733 = vmatpush1.bf16.msra.mxu0 0
        %3734 = vmatprep.subr.bf16.mxu0 0
        %3735 = vmatpush1.bf16.msra.mxu0 0
        %3736 = vmatprep.subr.bf16.mxu0 0
        %3737 = vmatpush1.bf16.msra.mxu0 0
        %3738 = vmatprep.subr.bf16.mxu0 0
        %3739 = vmatpush1.bf16.msra.mxu0 0
        %3740 = vmatprep.subr.bf16.mxu0 0
        %3741 = vmatpush1.bf16.msra.mxu0 0
        %3742 = vmatprep.mubr.bf16.mxu0 0
        %3743 = vmatmul.mubr.bf16.gmra.mrb[0].mxu0 %v3694
        %v3744 = vpop.f32.mrb[0].mxu0
        %v3745 = vadd.f32 0.0, %v3744
        %v3746 = vpop.f32.mrb[0].mxu0
        %v3747 = vpop.f32.mrb[0].mxu0
        %v3748 = vadd.f32 0.0, %v3747
        %v3749 = vpop.f32.mrb[0].mxu0
        %3750 = vmatprep.mubr.bf16.mxu0 0
        %3751 = vmatmul.mubr.bf16.gmra.mrb[0].mxu0 %v3695
        %v3752 = vpop.f32.mrb[0].mxu0
        %v3753 = vadd.f32 0.0, %v3752
        %v3754 = vpop.f32.mrb[0].mxu0
        %v3755 = vpop.f32.mrb[0].mxu0
        %v3756 = vadd.f32 0.0, %v3755
        %v3757 = vpop.f32.mrb[0].mxu0
        %3758 = vmatprep.mubr.bf16.mxu0 0
        %3759 = vmatmul.mubr.bf16.gmra.mrb[0].mxu0 %v3696
        %v3760 = vpop.f32.mrb[0].mxu0
        %v3761 = vadd.f32 0.0, %v3760
        %v3762 = vpop.f32.mrb[0].mxu0
        %v3763 = vpop.f32.mrb[0].mxu0
        %v3764 = vadd.f32 0.0, %v3763
        %v3765 = vpop.f32.mrb[0].mxu0
        %3766 = vmatprep.mubr.bf16.mxu0 0
        %3767 = vmatmul.mubr.bf16.gmra.mrb[0].mxu0 %v3697
        %v3768 = vpop.f32.mrb[0].mxu0
        %v3769 = vadd.f32 0.0, %v3768
        %v3770 = vpop.f32.mrb[0].mxu0
        %v3771 = vpop.f32.mrb[0].mxu0
        %v3772 = vadd.f32 0.0, %v3771
        %v3773 = vpop.f32.mrb[0].mxu0
        %3774 = vmatprep.mubr.bf16.mxu0 0
        %3775 = vmatmul.mubr.bf16.gmra.mrb[0].mxu0 %v3698
        %v3776 = vpop.f32.mrb[0].mxu0
        %v3777 = vadd.f32 0.0, %v3776
        %v3778 = vpop.f32.mrb[0].mxu0
        %v3779 = vpop.f32.mrb[0].mxu0
        %v3780 = vadd.f32 0.0, %v3779
        %v3781 = vpop.f32.mrb[0].mxu0
        %3782 = vmatprep.mubr.bf16.mxu0 0
        %3783 = vmatmul.mubr.bf16.gmra.mrb[0].mxu0 %v3699
        %v3784 = vpop.f32.mrb[0].mxu0
        %v3785 = vadd.f32 0.0, %v3784
        %v3786 = vpop.f32.mrb[0].mxu0
        %v3787 = vpop.f32.mrb[0].mxu0
        %v3788 = vadd.f32 0.0, %v3787
        %v3789 = vpop.f32.mrb[0].mxu0
        %3790 = vmatprep.mubr.bf16.mxu0 0
        %3791 = vmatmul.mubr.bf16.gmra.mrb[0].mxu0 %v3700
        %v3792 = vpop.f32.mrb[0].mxu0
        %v3793 = vadd.f32 0.0, %v3792
        %v3794 = vpop.f32.mrb[0].mxu0
        %v3795 = vpop.f32.mrb[0].mxu0
        %v3796 = vadd.f32 0.0, %v3795
        %v3797 = vpop.f32.mrb[0].mxu0
        %3798 = vmatprep.mubr.bf16.mxu0 0
        %3799 = vmatmul.mubr.bf16.gmra.mrb[0].mxu0 %v3701
        %v3800 = vpop.f32.mrb[0].mxu0
        %v3801 = vadd.f32 0.0, %v3800
        %v3802 = vpop.f32.mrb[0].mxu0
        %v3803 = vpop.f32.mrb[0].mxu0
        %v3804 = vadd.f32 0.0, %v3803
        %v3805 = vpop.f32.mrb[0].mxu0
        %3806 = vdwg.mxu0
        %v3807 = vadd.f32 %v3380, %v3745
        %v3808 = vadd.f32 %v3381, %v3748
        %v3809 = vadd.f32 %v3382, %v3753
        %v3810 = vadd.f32 %v3383, %v3756
        %v3811 = vadd.f32 %v3384, %v3761
        %v3812 = vadd.f32 %v3385, %v3764
        %v3813 = vadd.f32 %v3386, %v3769
        %v3814 = vadd.f32 %v3387, %v3772
        %v3815 = vadd.f32 %v3388, %v3777
        %v3816 = vadd.f32 %v3389, %v3780
        %v3817 = vadd.f32 %v3390, %v3785
        %v3818 = vadd.f32 %v3391, %v3788
        %v3819 = vadd.f32 %v3392, %v3793
        %v3820 = vadd.f32 %v3393, %v3796
        %v3821 = vadd.f32 %v3394, %v3801
        %v3822 = vadd.f32 %v3395, %v3804
        %v3823 = vld [vmem:[%s9] sm:$0xf]
        %v3824 = vld [vmem:[%s9 + $0x4] sm:$0xf]
        %v3825 = vld [vmem:[%s9 + $0x8] sm:$0xf]
        %v3826 = vld [vmem:[%s9 + $0xc] sm:$0xf]
        %v3827 = vpack.c.bf16 %v3808, %v3807
        %v3828 = vpack.c.bf16 %v3810, %v3809
        %v3829 = vpack.c.bf16 %v3812, %v3811
        %v3830 = vpack.c.bf16 %v3814, %v3813
        %v3831 = vpack.c.bf16 %v3816, %v3815
        %v3832 = vpack.c.bf16 %v3818, %v3817
        %v3833 = vpack.c.bf16 %v3820, %v3819
        %v3834 = vpack.c.bf16 %v3822, %v3821
        %v3835 = vld [vmem:[%s10] sm:$0x1]
        %v3837 = vlaneseq
        %v3838 = vshrl.u32 %v3837, 7
        %v3839 = vsub.s32 0, %v3838
        %v3840 = vrot.slane %v3835, %v3839
        %v3846 = vunpack.c.l.b16 %v3823
        %v3847 = vunpack.c.l.b16 %v3824
        %v3848 = vunpack.c.l.b16 %v3825
        %v3849 = vunpack.c.l.b16 %v3826
        %v3850 = vpack.c.b16 %v3847, %v3846
        %v3851 = vpack.c.b16 %v3849, %v3848
        %v3853 = vsel %vm1723, %v3827, 0
        %v3856 = vsel %vm1723, %v3828, 0
        %v3859 = vsel %vm1723, %v3829, 0
        %v3862 = vsel %vm1723, %v3830, 0
        %v3865 = vsel %vm1723, %v3831, 0
        %v3868 = vsel %vm1723, %v3832, 0
        %v3871 = vsel %vm1723, %v3833, 0
        %v3874 = vsel %vm1723, %v3834, 0
        %v3877 = vsel %vm1723, %v3850, 0
        %v3880 = vsel %vm1723, %v3851, 0
        %3882 = vmatprep.subr.bf16.mxu0 0
        %3883 = vmatpush1.bf16.xpose.msra.mxu0 %v3877
        %3884 = vmatprep.subr.bf16.mxu0 0
        %3885 = vmatpush1.bf16.xpose.msra.mxu0 %v3880
        %3886 = vmatprep.subr.bf16.mxu0 0
        %3887 = vmatpush1.bf16.xpose.msra.mxu0 0
        %3888 = vmatprep.subr.bf16.mxu0 0
        %3889 = vmatpush1.bf16.xpose.msra.mxu0 0
        %3890 = vmatprep.subr.bf16.mxu0 0
        %3891 = vmatpush1.bf16.xpose.msra.mxu0 0
        %3892 = vmatprep.subr.bf16.mxu0 0
        %3893 = vmatpush1.bf16.xpose.msra.mxu0 0
        %3894 = vmatprep.subr.bf16.mxu0 0
        %3895 = vmatpush1.bf16.xpose.msra.mxu0 0
        %3896 = vmatprep.subr.bf16.mxu0 0
        %3897 = vmatpush1.bf16.xpose.msra.mxu0 0
        %3898 = vmatprep.subr.bf16.mxu0 0
        %3899 = vmatpush1.bf16.xpose.msra.mxu0 0
        %3900 = vmatprep.subr.bf16.mxu0 0
        %3901 = vmatpush1.bf16.xpose.msra.mxu0 0
        %3902 = vmatprep.subr.bf16.mxu0 0
        %3903 = vmatpush1.bf16.xpose.msra.mxu0 0
        %3904 = vmatprep.subr.bf16.mxu0 0
        %3905 = vmatpush1.bf16.xpose.msra.mxu0 0
        %3906 = vmatprep.subr.bf16.mxu0 0
        %3907 = vmatpush1.bf16.xpose.msra.mxu0 0
        %3908 = vmatprep.subr.bf16.mxu0 0
        %3909 = vmatpush1.bf16.xpose.msra.mxu0 0
        %3910 = vmatprep.subr.bf16.mxu0 0
        %3911 = vmatpush1.bf16.xpose.msra.mxu0 0
        %3912 = vmatprep.subr.bf16.mxu0 0
        %3913 = vmatpush1.bf16.xpose.msra.mxu0 0
        %3914 = vmatprep.mubr.bf16.mxu0 0
        %3915 = vmatmul.mubr.bf16.gmra.mrb[0].mxu0 %v3853
        %v3916 = vpop.f32.mrb[0].mxu0
        %v3917 = vadd.f32 %v3840, %v3916
        %v3918 = vpop.f32.mrb[0].mxu0
        %v3919 = vpop.f32.mrb[0].mxu0
        %v3920 = vadd.f32 %v3840, %v3919
        %v3921 = vpop.f32.mrb[0].mxu0
        %3922 = vmatprep.mubr.bf16.mxu0 0
        %3923 = vmatmul.mubr.bf16.gmra.mrb[0].mxu0 %v3856
        %v3924 = vpop.f32.mrb[0].mxu0
        %v3925 = vadd.f32 %v3840, %v3924
        %v3926 = vpop.f32.mrb[0].mxu0
        %v3927 = vpop.f32.mrb[0].mxu0
        %v3928 = vadd.f32 %v3840, %v3927
        %v3929 = vpop.f32.mrb[0].mxu0
        %3930 = vmatprep.mubr.bf16.mxu0 0
        %3931 = vmatmul.mubr.bf16.gmra.mrb[0].mxu0 %v3859
        %v3932 = vpop.f32.mrb[0].mxu0
        %v3933 = vadd.f32 %v3840, %v3932
        %v3934 = vpop.f32.mrb[0].mxu0
        %v3935 = vpop.f32.mrb[0].mxu0
        %v3936 = vadd.f32 %v3840, %v3935
        %v3937 = vpop.f32.mrb[0].mxu0
        %3938 = vmatprep.mubr.bf16.mxu0 0
        %3939 = vmatmul.mubr.bf16.gmra.mrb[0].mxu0 %v3862
        %v3940 = vpop.f32.mrb[0].mxu0
        %v3941 = vadd.f32 %v3840, %v3940
        %v3942 = vpop.f32.mrb[0].mxu0
        %v3943 = vpop.f32.mrb[0].mxu0
        %v3944 = vadd.f32 %v3840, %v3943
        %v3945 = vpop.f32.mrb[0].mxu0
        %3946 = vmatprep.mubr.bf16.mxu0 0
        %3947 = vmatmul.mubr.bf16.gmra.mrb[0].mxu0 %v3865
        %v3948 = vpop.f32.mrb[0].mxu0
        %v3949 = vadd.f32 %v3840, %v3948
        %v3950 = vpop.f32.mrb[0].mxu0
        %v3951 = vpop.f32.mrb[0].mxu0
        %v3952 = vadd.f32 %v3840, %v3951
        %v3953 = vpop.f32.mrb[0].mxu0
        %3954 = vmatprep.mubr.bf16.mxu0 0
        %3955 = vmatmul.mubr.bf16.gmra.mrb[0].mxu0 %v3868
        %v3956 = vpop.f32.mrb[0].mxu0
        %v3957 = vadd.f32 %v3840, %v3956
        %v3958 = vpop.f32.mrb[0].mxu0
        %v3959 = vpop.f32.mrb[0].mxu0
        %v3960 = vadd.f32 %v3840, %v3959
        %v3961 = vpop.f32.mrb[0].mxu0
        %3962 = vmatprep.mubr.bf16.mxu0 0
        %3963 = vmatmul.mubr.bf16.gmra.mrb[0].mxu0 %v3871
        %v3964 = vpop.f32.mrb[0].mxu0
        %v3965 = vadd.f32 %v3840, %v3964
        %v3966 = vpop.f32.mrb[0].mxu0
        %v3967 = vpop.f32.mrb[0].mxu0
        %v3968 = vadd.f32 %v3840, %v3967
        %v3969 = vpop.f32.mrb[0].mxu0
        %3970 = vmatprep.mubr.bf16.mxu0 0
        %3971 = vmatmul.mubr.bf16.gmra.mrb[0].mxu0 %v3874
        %v3972 = vpop.f32.mrb[0].mxu0
        %v3973 = vadd.f32 %v3840, %v3972
        %v3974 = vpop.f32.mrb[0].mxu0
        %v3975 = vpop.f32.mrb[0].mxu0
        %v3976 = vadd.f32 %v3840, %v3975
        %v3977 = vpop.f32.mrb[0].mxu0
        %3978 = vdwg.mxu0
        %v3979 = vadd.f32 %v1666, %v3917
        %v3980 = vadd.f32 %v1667, %v3920
        %v3981 = vadd.f32 %v1668, %v3925
        %v3982 = vadd.f32 %v1669, %v3928
        %v3983 = vadd.f32 %v1670, %v3933
        %v3984 = vadd.f32 %v1671, %v3936
        %v3985 = vadd.f32 %v1672, %v3941
        %v3986 = vadd.f32 %v1673, %v3944
        %v3987 = vadd.f32 %v1674, %v3949
        %v3988 = vadd.f32 %v1675, %v3952
        %v3989 = vadd.f32 %v1676, %v3957
        %v3990 = vadd.f32 %v1677, %v3960
        %v3991 = vadd.f32 %v1678, %v3965
        %v3992 = vadd.f32 %v1679, %v3968
        %v3993 = vadd.f32 %v1680, %v3973
        %v3994 = vadd.f32 %v1681, %v3976
        %v3995 = vld [vmem:[%s11] sm:$0x1]
        %v3996 = vld [vmem:[%s12] sm:$0x1]
        %v3997 = vsel %vm1723, %v3979, 0.0
        %3998 = vadd.xlane.f32.xlu0 %v3997
        %v3999 = vpop.xlane.xlu0 %3998
        %v4000 = vsel %vm1723, %v3980, 0.0
        %4001 = vadd.xlane.f32.xlu0 %v4000
        %v4002 = vpop.xlane.xlu0 %4001
        %v4003 = vsel %vm1723, %v3981, 0.0
        %4004 = vadd.xlane.f32.xlu0 %v4003
        %v4005 = vpop.xlane.xlu0 %4004
        %v4006 = vsel %vm1723, %v3982, 0.0
        %4007 = vadd.xlane.f32.xlu0 %v4006
        %v4008 = vpop.xlane.xlu0 %4007
        %v4009 = vsel %vm1723, %v3983, 0.0
        %4010 = vadd.xlane.f32.xlu0 %v4009
        %v4011 = vpop.xlane.xlu0 %4010
        %v4012 = vsel %vm1723, %v3984, 0.0
        %4013 = vadd.xlane.f32.xlu0 %v4012
        %v4014 = vpop.xlane.xlu0 %4013
        %v4015 = vsel %vm1723, %v3985, 0.0
        %4016 = vadd.xlane.f32.xlu0 %v4015
        %v4017 = vpop.xlane.xlu0 %4016
        %v4018 = vsel %vm1723, %v3986, 0.0
        %4019 = vadd.xlane.f32.xlu0 %v4018
        %v4020 = vpop.xlane.xlu0 %4019
        %v4021 = vsel %vm1723, %v3987, 0.0
        %4022 = vadd.xlane.f32.xlu0 %v4021
        %v4023 = vpop.xlane.xlu0 %4022
        %v4024 = vsel %vm1723, %v3988, 0.0
        %4025 = vadd.xlane.f32.xlu0 %v4024
        %v4026 = vpop.xlane.xlu0 %4025
        %v4027 = vsel %vm1723, %v3989, 0.0
        %4028 = vadd.xlane.f32.xlu0 %v4027
        %v4029 = vpop.xlane.xlu0 %4028
        %v4030 = vsel %vm1723, %v3990, 0.0
        %4031 = vadd.xlane.f32.xlu0 %v4030
        %v4032 = vpop.xlane.xlu0 %4031
        %v4033 = vsel %vm1723, %v3991, 0.0
        %4034 = vadd.xlane.f32.xlu0 %v4033
        %v4035 = vpop.xlane.xlu0 %4034
        %v4036 = vsel %vm1723, %v3992, 0.0
        %4037 = vadd.xlane.f32.xlu0 %v4036
        %v4038 = vpop.xlane.xlu0 %4037
        %v4039 = vsel %vm1723, %v3993, 0.0
        %4040 = vadd.xlane.f32.xlu0 %v4039
        %v4041 = vpop.xlane.xlu0 %4040
        %v4042 = vsel %vm1723, %v3994, 0.0
        %4043 = vadd.xlane.f32.xlu0 %v4042
        %v4044 = vpop.xlane.xlu0 %4043
        %v4045 = vrcp.pop 32.0
        %v4046 = vmul.f32 %v3999, %v4045
        %v4047 = vmul.f32 %v4002, %v4045
        %v4048 = vmul.f32 %v4005, %v4045
        %v4049 = vmul.f32 %v4008, %v4045
        %v4050 = vmul.f32 %v4011, %v4045
        %v4051 = vmul.f32 %v4014, %v4045
        %v4052 = vmul.f32 %v4017, %v4045
        %v4053 = vmul.f32 %v4020, %v4045
        %v4054 = vmul.f32 %v4023, %v4045
        %v4055 = vmul.f32 %v4026, %v4045
        %v4056 = vmul.f32 %v4029, %v4045
        %v4057 = vmul.f32 %v4032, %v4045
        %v4058 = vmul.f32 %v4035, %v4045
        %v4059 = vmul.f32 %v4038, %v4045
        %v4060 = vmul.f32 %v4041, %v4045
        %v4061 = vmul.f32 %v4044, %v4045
        %v4062 = vsub.f32 %v3979, %v4046
        %v4063 = vsub.f32 %v3980, %v4047
        %v4064 = vsub.f32 %v3981, %v4048
        %v4065 = vsub.f32 %v3982, %v4049
        %v4066 = vsub.f32 %v3983, %v4050
        %v4067 = vsub.f32 %v3984, %v4051
        %v4068 = vsub.f32 %v3985, %v4052
        %v4069 = vsub.f32 %v3986, %v4053
        %v4070 = vsub.f32 %v3987, %v4054
        %v4071 = vsub.f32 %v3988, %v4055
        %v4072 = vsub.f32 %v3989, %v4056
        %v4073 = vsub.f32 %v3990, %v4057
        %v4074 = vsub.f32 %v3991, %v4058
        %v4075 = vsub.f32 %v3992, %v4059
        %v4076 = vsub.f32 %v3993, %v4060
        %v4077 = vsub.f32 %v3994, %v4061
        %v4078 = vmul.f32 %v4062, %v4062
        %v4079 = vmul.f32 %v4063, %v4063
        %v4080 = vmul.f32 %v4064, %v4064
        %v4081 = vmul.f32 %v4065, %v4065
        %v4082 = vmul.f32 %v4066, %v4066
        %v4083 = vmul.f32 %v4067, %v4067
        %v4084 = vmul.f32 %v4068, %v4068
        %v4085 = vmul.f32 %v4069, %v4069
        %v4086 = vmul.f32 %v4070, %v4070
        %v4087 = vmul.f32 %v4071, %v4071
        %v4088 = vmul.f32 %v4072, %v4072
        %v4089 = vmul.f32 %v4073, %v4073
        %v4090 = vmul.f32 %v4074, %v4074
        %v4091 = vmul.f32 %v4075, %v4075
        %v4092 = vmul.f32 %v4076, %v4076
        %v4093 = vmul.f32 %v4077, %v4077
        %v4094 = vsel %vm1723, %v4078, 0.0
        %4095 = vadd.xlane.f32.xlu0 %v4094
        %v4096 = vpop.xlane.xlu0 %4095
        %v4097 = vsel %vm1723, %v4079, 0.0
        %4098 = vadd.xlane.f32.xlu0 %v4097
        %v4099 = vpop.xlane.xlu0 %4098
        %v4100 = vsel %vm1723, %v4080, 0.0
        %4101 = vadd.xlane.f32.xlu0 %v4100
        %v4102 = vpop.xlane.xlu0 %4101
        %v4103 = vsel %vm1723, %v4081, 0.0
        %4104 = vadd.xlane.f32.xlu0 %v4103
        %v4105 = vpop.xlane.xlu0 %4104
        %v4106 = vsel %vm1723, %v4082, 0.0
        %4107 = vadd.xlane.f32.xlu0 %v4106
        %v4108 = vpop.xlane.xlu0 %4107
        %v4109 = vsel %vm1723, %v4083, 0.0
        %4110 = vadd.xlane.f32.xlu0 %v4109
        %v4111 = vpop.xlane.xlu0 %4110
        %v4112 = vsel %vm1723, %v4084, 0.0
        %4113 = vadd.xlane.f32.xlu0 %v4112
        %v4114 = vpop.xlane.xlu0 %4113
        %v4115 = vsel %vm1723, %v4085, 0.0
        %4116 = vadd.xlane.f32.xlu0 %v4115
        %v4117 = vpop.xlane.xlu0 %4116
        %v4118 = vsel %vm1723, %v4086, 0.0
        %4119 = vadd.xlane.f32.xlu0 %v4118
        %v4120 = vpop.xlane.xlu0 %4119
        %v4121 = vsel %vm1723, %v4087, 0.0
        %4122 = vadd.xlane.f32.xlu0 %v4121
        %v4123 = vpop.xlane.xlu0 %4122
        %v4124 = vsel %vm1723, %v4088, 0.0
        %4125 = vadd.xlane.f32.xlu0 %v4124
        %v4126 = vpop.xlane.xlu0 %4125
        %v4127 = vsel %vm1723, %v4089, 0.0
        %4128 = vadd.xlane.f32.xlu0 %v4127
        %v4129 = vpop.xlane.xlu0 %4128
        %v4130 = vsel %vm1723, %v4090, 0.0
        %4131 = vadd.xlane.f32.xlu0 %v4130
        %v4132 = vpop.xlane.xlu0 %4131
        %v4133 = vsel %vm1723, %v4091, 0.0
        %4134 = vadd.xlane.f32.xlu0 %v4133
        %v4135 = vpop.xlane.xlu0 %4134
        %v4136 = vsel %vm1723, %v4092, 0.0
        %4137 = vadd.xlane.f32.xlu0 %v4136
        %v4138 = vpop.xlane.xlu0 %4137
        %v4139 = vsel %vm1723, %v4093, 0.0
        %4140 = vadd.xlane.f32.xlu0 %v4139
        %v4141 = vpop.xlane.xlu0 %4140
        %v4142 = vmul.f32 %v4096, %v4045
        %v4143 = vmul.f32 %v4099, %v4045
        %v4144 = vmul.f32 %v4102, %v4045
        %v4145 = vmul.f32 %v4105, %v4045
        %v4146 = vmul.f32 %v4108, %v4045
        %v4147 = vmul.f32 %v4111, %v4045
        %v4148 = vmul.f32 %v4114, %v4045
        %v4149 = vmul.f32 %v4117, %v4045
        %v4150 = vmul.f32 %v4120, %v4045
        %v4151 = vmul.f32 %v4123, %v4045
        %v4152 = vmul.f32 %v4126, %v4045
        %v4153 = vmul.f32 %v4129, %v4045
        %v4154 = vmul.f32 %v4132, %v4045
        %v4155 = vmul.f32 %v4135, %v4045
        %v4156 = vmul.f32 %v4138, %v4045
        %v4157 = vmul.f32 %v4141, %v4045
        %v4158 = vadd.f32 %v4142, 1e-05
        %v4159 = vadd.f32 %v4143, 1e-05
        %v4160 = vadd.f32 %v4144, 1e-05
        %v4161 = vadd.f32 %v4145, 1e-05
        %v4162 = vadd.f32 %v4146, 1e-05
        %v4163 = vadd.f32 %v4147, 1e-05
        %v4164 = vadd.f32 %v4148, 1e-05
        %v4165 = vadd.f32 %v4149, 1e-05
        %v4166 = vadd.f32 %v4150, 1e-05
        %v4167 = vadd.f32 %v4151, 1e-05
        %v4168 = vadd.f32 %v4152, 1e-05
        %v4169 = vadd.f32 %v4153, 1e-05
        %v4170 = vadd.f32 %v4154, 1e-05
        %v4171 = vadd.f32 %v4155, 1e-05
        %v4172 = vadd.f32 %v4156, 1e-05
        %v4173 = vadd.f32 %v4157, 1e-05
        %v4174 = vrsqrt.pop %v4158
        %v4175 = vrsqrt.pop %v4159
        %v4176 = vrsqrt.pop %v4160
        %v4177 = vrsqrt.pop %v4161
        %v4178 = vrsqrt.pop %v4162
        %v4179 = vrsqrt.pop %v4163
        %v4180 = vrsqrt.pop %v4164
        %v4181 = vrsqrt.pop %v4165
        %v4182 = vrsqrt.pop %v4166
        %v4183 = vrsqrt.pop %v4167
        %v4184 = vrsqrt.pop %v4168
        %v4185 = vrsqrt.pop %v4169
        %v4186 = vrsqrt.pop %v4170
        %v4187 = vrsqrt.pop %v4171
        %v4188 = vrsqrt.pop %v4172
        %v4189 = vrsqrt.pop %v4173
        %v4190 = vmul.f32 %v4062, %v4174
        %v4191 = vmul.f32 %v4063, %v4175
        %v4192 = vmul.f32 %v4064, %v4176
        %v4193 = vmul.f32 %v4065, %v4177
        %v4194 = vmul.f32 %v4066, %v4178
        %v4195 = vmul.f32 %v4067, %v4179
        %v4196 = vmul.f32 %v4068, %v4180
        %v4197 = vmul.f32 %v4069, %v4181
        %v4198 = vmul.f32 %v4070, %v4182
        %v4199 = vmul.f32 %v4071, %v4183
        %v4200 = vmul.f32 %v4072, %v4184
        %v4201 = vmul.f32 %v4073, %v4185
        %v4202 = vmul.f32 %v4074, %v4186
        %v4203 = vmul.f32 %v4075, %v4187
        %v4204 = vmul.f32 %v4076, %v4188
        %v4205 = vmul.f32 %v4077, %v4189
        %v4207 = vlaneseq
        %v4208 = vshrl.u32 %v4207, 7
        %v4209 = vsub.s32 0, %v4208
        %v4210 = vrot.slane %v3995, %v4209
        %v4212 = vmul.f32 %v4190, %v4210
        %v4213 = vmul.f32 %v4191, %v4210
        %v4214 = vmul.f32 %v4192, %v4210
        %v4215 = vmul.f32 %v4193, %v4210
        %v4216 = vmul.f32 %v4194, %v4210
        %v4217 = vmul.f32 %v4195, %v4210
        %v4218 = vmul.f32 %v4196, %v4210
        %v4219 = vmul.f32 %v4197, %v4210
        %v4220 = vmul.f32 %v4198, %v4210
        %v4221 = vmul.f32 %v4199, %v4210
        %v4222 = vmul.f32 %v4200, %v4210
        %v4223 = vmul.f32 %v4201, %v4210
        %v4224 = vmul.f32 %v4202, %v4210
        %v4225 = vmul.f32 %v4203, %v4210
        %v4226 = vmul.f32 %v4204, %v4210
        %v4227 = vmul.f32 %v4205, %v4210
        %v4229 = vlaneseq
        %v4230 = vshrl.u32 %v4229, 7
        %v4231 = vsub.s32 0, %v4230
        %v4232 = vrot.slane %v3996, %v4231
        %v4234 = vadd.f32 %v4212, %v4232
        %v4235 = vadd.f32 %v4213, %v4232
        %v4236 = vadd.f32 %v4214, %v4232
        %v4237 = vadd.f32 %v4215, %v4232
        %v4238 = vadd.f32 %v4216, %v4232
        %v4239 = vadd.f32 %v4217, %v4232
        %v4240 = vadd.f32 %v4218, %v4232
        %v4241 = vadd.f32 %v4219, %v4232
        %v4242 = vadd.f32 %v4220, %v4232
        %v4243 = vadd.f32 %v4221, %v4232
        %v4244 = vadd.f32 %v4222, %v4232
        %v4245 = vadd.f32 %v4223, %v4232
        %v4246 = vadd.f32 %v4224, %v4232
        %v4247 = vadd.f32 %v4225, %v4232
        %v4248 = vadd.f32 %v4226, %v4232
        %v4249 = vadd.f32 %v4227, %v4232
        %v4250 = vld [vmem:[%s13] sm:$0xf]
        %v4251 = vld [vmem:[%s13 + $0x4] sm:$0xf]
        %v4252 = vld [vmem:[%s13 + $0x8] sm:$0xf]
        %v4253 = vld [vmem:[%s13 + $0xc] sm:$0xf]
        %v4254 = vpack.c.bf16 %v4235, %v4234
        %v4255 = vpack.c.bf16 %v4237, %v4236
        %v4256 = vpack.c.bf16 %v4239, %v4238
        %v4257 = vpack.c.bf16 %v4241, %v4240
        %v4258 = vpack.c.bf16 %v4243, %v4242
        %v4259 = vpack.c.bf16 %v4245, %v4244
        %v4260 = vpack.c.bf16 %v4247, %v4246
        %v4261 = vpack.c.bf16 %v4249, %v4248
        %v4262 = vld [vmem:[%s14] sm:$0x1]
        %v4264 = vlaneseq
        %v4265 = vshrl.u32 %v4264, 7
        %v4266 = vsub.s32 0, %v4265
        %v4267 = vrot.slane %v4262, %v4266
        %v4273 = vunpack.c.l.b16 %v4250
        %v4274 = vunpack.c.l.b16 %v4251
        %v4275 = vunpack.c.l.b16 %v4252
        %v4276 = vunpack.c.l.b16 %v4253
        %v4277 = vpack.c.b16 %v4274, %v4273
        %v4278 = vpack.c.b16 %v4276, %v4275
        %v4280 = vsel %vm1723, %v4254, 0
        %v4283 = vsel %vm1723, %v4255, 0
        %v4286 = vsel %vm1723, %v4256, 0
        %v4289 = vsel %vm1723, %v4257, 0
        %v4292 = vsel %vm1723, %v4258, 0
        %v4295 = vsel %vm1723, %v4259, 0
        %v4298 = vsel %vm1723, %v4260, 0
        %v4301 = vsel %vm1723, %v4261, 0
        %v4304 = vsel %vm1723, %v4277, 0
        %v4307 = vsel %vm1723, %v4278, 0
        %4309 = vmatprep.subr.bf16.mxu0 0
        %4310 = vmatpush1.bf16.xpose.msra.mxu0 %v4304
        %4311 = vmatprep.subr.bf16.mxu0 0
        %4312 = vmatpush1.bf16.xpose.msra.mxu0 %v4307
        %4313 = vmatprep.subr.bf16.mxu0 0
        %4314 = vmatpush1.bf16.xpose.msra.mxu0 0
        %4315 = vmatprep.subr.bf16.mxu0 0
        %4316 = vmatpush1.bf16.xpose.msra.mxu0 0
        %4317 = vmatprep.subr.bf16.mxu0 0
        %4318 = vmatpush1.bf16.xpose.msra.mxu0 0
        %4319 = vmatprep.subr.bf16.mxu0 0
        %4320 = vmatpush1.bf16.xpose.msra.mxu0 0
        %4321 = vmatprep.subr.bf16.mxu0 0
        %4322 = vmatpush1.bf16.xpose.msra.mxu0 0
        %4323 = vmatprep.subr.bf16.mxu0 0
        %4324 = vmatpush1.bf16.xpose.msra.mxu0 0
        %4325 = vmatprep.subr.bf16.mxu0 0
        %4326 = vmatpush1.bf16.xpose.msra.mxu0 0
        %4327 = vmatprep.subr.bf16.mxu0 0
        %4328 = vmatpush1.bf16.xpose.msra.mxu0 0
        %4329 = vmatprep.subr.bf16.mxu0 0
        %4330 = vmatpush1.bf16.xpose.msra.mxu0 0
        %4331 = vmatprep.subr.bf16.mxu0 0
        %4332 = vmatpush1.bf16.xpose.msra.mxu0 0
        %4333 = vmatprep.subr.bf16.mxu0 0
        %4334 = vmatpush1.bf16.xpose.msra.mxu0 0
        %4335 = vmatprep.subr.bf16.mxu0 0
        %4336 = vmatpush1.bf16.xpose.msra.mxu0 0
        %4337 = vmatprep.subr.bf16.mxu0 0
        %4338 = vmatpush1.bf16.xpose.msra.mxu0 0
        %4339 = vmatprep.subr.bf16.mxu0 0
        %4340 = vmatpush1.bf16.xpose.msra.mxu0 0
        %4341 = vmatprep.mubr.bf16.mxu0 0
        %4342 = vmatmul.mubr.bf16.gmra.mrb[0].mxu0 %v4280
        %v4343 = vpop.f32.mrb[0].mxu0
        %v4344 = vadd.f32 %v4267, %v4343
        %v4345 = vpop.f32.mrb[0].mxu0
        %v4346 = vpop.f32.mrb[0].mxu0
        %v4347 = vadd.f32 %v4267, %v4346
        %v4348 = vpop.f32.mrb[0].mxu0
        %4349 = vmatprep.mubr.bf16.mxu0 0
        %4350 = vmatmul.mubr.bf16.gmra.mrb[0].mxu0 %v4283
        %v4351 = vpop.f32.mrb[0].mxu0
        %v4352 = vadd.f32 %v4267, %v4351
        %v4353 = vpop.f32.mrb[0].mxu0
        %v4354 = vpop.f32.mrb[0].mxu0
        %v4355 = vadd.f32 %v4267, %v4354
        %v4356 = vpop.f32.mrb[0].mxu0
        %4357 = vmatprep.mubr.bf16.mxu0 0
        %4358 = vmatmul.mubr.bf16.gmra.mrb[0].mxu0 %v4286
        %v4359 = vpop.f32.mrb[0].mxu0
        %v4360 = vadd.f32 %v4267, %v4359
        %v4361 = vpop.f32.mrb[0].mxu0
        %v4362 = vpop.f32.mrb[0].mxu0
        %v4363 = vadd.f32 %v4267, %v4362
        %v4364 = vpop.f32.mrb[0].mxu0
        %4365 = vmatprep.mubr.bf16.mxu0 0
        %4366 = vmatmul.mubr.bf16.gmra.mrb[0].mxu0 %v4289
        %v4367 = vpop.f32.mrb[0].mxu0
        %v4368 = vadd.f32 %v4267, %v4367
        %v4369 = vpop.f32.mrb[0].mxu0
        %v4370 = vpop.f32.mrb[0].mxu0
        %v4371 = vadd.f32 %v4267, %v4370
        %v4372 = vpop.f32.mrb[0].mxu0
        %4373 = vmatprep.mubr.bf16.mxu0 0
        %4374 = vmatmul.mubr.bf16.gmra.mrb[0].mxu0 %v4292
        %v4375 = vpop.f32.mrb[0].mxu0
        %v4376 = vadd.f32 %v4267, %v4375
        %v4377 = vpop.f32.mrb[0].mxu0
        %v4378 = vpop.f32.mrb[0].mxu0
        %v4379 = vadd.f32 %v4267, %v4378
        %v4380 = vpop.f32.mrb[0].mxu0
        %4381 = vmatprep.mubr.bf16.mxu0 0
        %4382 = vmatmul.mubr.bf16.gmra.mrb[0].mxu0 %v4295
        %v4383 = vpop.f32.mrb[0].mxu0
        %v4384 = vadd.f32 %v4267, %v4383
        %v4385 = vpop.f32.mrb[0].mxu0
        %v4386 = vpop.f32.mrb[0].mxu0
        %v4387 = vadd.f32 %v4267, %v4386
        %v4388 = vpop.f32.mrb[0].mxu0
        %4389 = vmatprep.mubr.bf16.mxu0 0
        %4390 = vmatmul.mubr.bf16.gmra.mrb[0].mxu0 %v4298
        %v4391 = vpop.f32.mrb[0].mxu0
        %v4392 = vadd.f32 %v4267, %v4391
        %v4393 = vpop.f32.mrb[0].mxu0
        %v4394 = vpop.f32.mrb[0].mxu0
        %v4395 = vadd.f32 %v4267, %v4394
        %v4396 = vpop.f32.mrb[0].mxu0
        %4397 = vmatprep.mubr.bf16.mxu0 0
        %4398 = vmatmul.mubr.bf16.gmra.mrb[0].mxu0 %v4301
        %v4399 = vpop.f32.mrb[0].mxu0
        %v4400 = vadd.f32 %v4267, %v4399
        %v4401 = vpop.f32.mrb[0].mxu0
        %v4402 = vpop.f32.mrb[0].mxu0
        %v4403 = vadd.f32 %v4267, %v4402
        %v4404 = vpop.f32.mrb[0].mxu0
        %4405 = vdwg.mxu0
        %v4406 = vmul.f32 %v4344, 0.5
        %v4407 = vmul.f32 %v4347, 0.5
        %v4408 = vmul.f32 %v4352, 0.5
        %v4409 = vmul.f32 %v4355, 0.5
        %v4410 = vmul.f32 %v4360, 0.5
        %v4411 = vmul.f32 %v4363, 0.5
        %v4412 = vmul.f32 %v4368, 0.5
        %v4413 = vmul.f32 %v4371, 0.5
        %v4414 = vmul.f32 %v4376, 0.5
        %v4415 = vmul.f32 %v4379, 0.5
        %v4416 = vmul.f32 %v4384, 0.5
        %v4417 = vmul.f32 %v4387, 0.5
        %v4418 = vmul.f32 %v4392, 0.5
        %v4419 = vmul.f32 %v4395, 0.5
        %v4420 = vmul.f32 %v4400, 0.5
        %v4421 = vmul.f32 %v4403, 0.5
        %v4422 = vmul.f32 %v4344, 0.044715
        %v4423 = vmul.f32 %v4347, 0.044715
        %v4424 = vmul.f32 %v4352, 0.044715
        %v4425 = vmul.f32 %v4355, 0.044715
        %v4426 = vmul.f32 %v4360, 0.044715
        %v4427 = vmul.f32 %v4363, 0.044715
        %v4428 = vmul.f32 %v4368, 0.044715
        %v4429 = vmul.f32 %v4371, 0.044715
        %v4430 = vmul.f32 %v4376, 0.044715
        %v4431 = vmul.f32 %v4379, 0.044715
        %v4432 = vmul.f32 %v4384, 0.044715
        %v4433 = vmul.f32 %v4387, 0.044715
        %v4434 = vmul.f32 %v4392, 0.044715
        %v4435 = vmul.f32 %v4395, 0.044715
        %v4436 = vmul.f32 %v4400, 0.044715
        %v4437 = vmul.f32 %v4403, 0.044715
        %v4438 = vmul.f32 %v4422, %v4344
        %v4439 = vmul.f32 %v4423, %v4347
        %v4440 = vmul.f32 %v4424, %v4352
        %v4441 = vmul.f32 %v4425, %v4355
        %v4442 = vmul.f32 %v4426, %v4360
        %v4443 = vmul.f32 %v4427, %v4363
        %v4444 = vmul.f32 %v4428, %v4368
        %v4445 = vmul.f32 %v4429, %v4371
        %v4446 = vmul.f32 %v4430, %v4376
        %v4447 = vmul.f32 %v4431, %v4379
        %v4448 = vmul.f32 %v4432, %v4384
        %v4449 = vmul.f32 %v4433, %v4387
        %v4450 = vmul.f32 %v4434, %v4392
        %v4451 = vmul.f32 %v4435, %v4395
        %v4452 = vmul.f32 %v4436, %v4400
        %v4453 = vmul.f32 %v4437, %v4403
        %v4454 = vmul.f32 %v4438, %v4344
        %v4455 = vmul.f32 %v4439, %v4347
        %v4456 = vmul.f32 %v4440, %v4352
        %v4457 = vmul.f32 %v4441, %v4355
        %v4458 = vmul.f32 %v4442, %v4360
        %v4459 = vmul.f32 %v4443, %v4363
        %v4460 = vmul.f32 %v4444, %v4368
        %v4461 = vmul.f32 %v4445, %v4371
        %v4462 = vmul.f32 %v4446, %v4376
        %v4463 = vmul.f32 %v4447, %v4379
        %v4464 = vmul.f32 %v4448, %v4384
        %v4465 = vmul.f32 %v4449, %v4387
        %v4466 = vmul.f32 %v4450, %v4392
        %v4467 = vmul.f32 %v4451, %v4395
        %v4468 = vmul.f32 %v4452, %v4400
        %v4469 = vmul.f32 %v4453, %v4403
        %v4470 = vadd.f32 %v4344, %v4454
        %v4471 = vadd.f32 %v4347, %v4455
        %v4472 = vadd.f32 %v4352, %v4456
        %v4473 = vadd.f32 %v4355, %v4457
        %v4474 = vadd.f32 %v4360, %v4458
        %v4475 = vadd.f32 %v4363, %v4459
        %v4476 = vadd.f32 %v4368, %v4460
        %v4477 = vadd.f32 %v4371, %v4461
        %v4478 = vadd.f32 %v4376, %v4462
        %v4479 = vadd.f32 %v4379, %v4463
        %v4480 = vadd.f32 %v4384, %v4464
        %v4481 = vadd.f32 %v4387, %v4465
        %v4482 = vadd.f32 %v4392, %v4466
        %v4483 = vadd.f32 %v4395, %v4467
        %v4484 = vadd.f32 %v4400, %v4468
        %v4485 = vadd.f32 %v4403, %v4469
        %v4486 = vmul.f32 %v4470, 0.7978846
        %v4487 = vmul.f32 %v4471, 0.7978846
        %v4488 = vmul.f32 %v4472, 0.7978846
        %v4489 = vmul.f32 %v4473, 0.7978846
        %v4490 = vmul.f32 %v4474, 0.7978846
        %v4491 = vmul.f32 %v4475, 0.7978846
        %v4492 = vmul.f32 %v4476, 0.7978846
        %v4493 = vmul.f32 %v4477, 0.7978846
        %v4494 = vmul.f32 %v4478, 0.7978846
        %v4495 = vmul.f32 %v4479, 0.7978846
        %v4496 = vmul.f32 %v4480, 0.7978846
        %v4497 = vmul.f32 %v4481, 0.7978846
        %v4498 = vmul.f32 %v4482, 0.7978846
        %v4499 = vmul.f32 %v4483, 0.7978846
        %v4500 = vmul.f32 %v4484, 0.7978846
        %v4501 = vmul.f32 %v4485, 0.7978846
        %v4502 = vtanh.pop %v4486
        %v4503 = vtanh.pop %v4487
        %v4504 = vtanh.pop %v4488
        %v4505 = vtanh.pop %v4489
        %v4506 = vtanh.pop %v4490
        %v4507 = vtanh.pop %v4491
        %v4508 = vtanh.pop %v4492
        %v4509 = vtanh.pop %v4493
        %v4510 = vtanh.pop %v4494
        %v4511 = vtanh.pop %v4495
        %v4512 = vtanh.pop %v4496
        %v4513 = vtanh.pop %v4497
        %v4514 = vtanh.pop %v4498
        %v4515 = vtanh.pop %v4499
        %v4516 = vtanh.pop %v4500
        %v4517 = vtanh.pop %v4501
        %v4518 = vadd.f32 %v4502, 1.0
        %v4519 = vadd.f32 %v4503, 1.0
        %v4520 = vadd.f32 %v4504, 1.0
        %v4521 = vadd.f32 %v4505, 1.0
        %v4522 = vadd.f32 %v4506, 1.0
        %v4523 = vadd.f32 %v4507, 1.0
        %v4524 = vadd.f32 %v4508, 1.0
        %v4525 = vadd.f32 %v4509, 1.0
        %v4526 = vadd.f32 %v4510, 1.0
        %v4527 = vadd.f32 %v4511, 1.0
        %v4528 = vadd.f32 %v4512, 1.0
        %v4529 = vadd.f32 %v4513, 1.0
        %v4530 = vadd.f32 %v4514, 1.0
        %v4531 = vadd.f32 %v4515, 1.0
        %v4532 = vadd.f32 %v4516, 1.0
        %v4533 = vadd.f32 %v4517, 1.0
        %v4534 = vmul.f32 %v4406, %v4518
        %v4535 = vmul.f32 %v4407, %v4519
        %v4536 = vmul.f32 %v4408, %v4520
        %v4537 = vmul.f32 %v4409, %v4521
        %v4538 = vmul.f32 %v4410, %v4522
        %v4539 = vmul.f32 %v4411, %v4523
        %v4540 = vmul.f32 %v4412, %v4524
        %v4541 = vmul.f32 %v4413, %v4525
        %v4542 = vmul.f32 %v4414, %v4526
        %v4543 = vmul.f32 %v4415, %v4527
        %v4544 = vmul.f32 %v4416, %v4528
        %v4545 = vmul.f32 %v4417, %v4529
        %v4546 = vmul.f32 %v4418, %v4530
        %v4547 = vmul.f32 %v4419, %v4531
        %v4548 = vmul.f32 %v4420, %v4532
        %v4549 = vmul.f32 %v4421, %v4533
        %v4550 = vld [vmem:[%s15] sm:$0xf]
        %v4551 = vld [vmem:[%s15 + $0x4] sm:$0xf]
        %v4552 = vld [vmem:[%s15 + $0x8] sm:$0xf]
        %v4553 = vld [vmem:[%s15 + $0xc] sm:$0xf]
        %v4554 = vpack.c.bf16 %v4535, %v4534
        %v4555 = vpack.c.bf16 %v4537, %v4536
        %v4556 = vpack.c.bf16 %v4539, %v4538
        %v4557 = vpack.c.bf16 %v4541, %v4540
        %v4558 = vpack.c.bf16 %v4543, %v4542
        %v4559 = vpack.c.bf16 %v4545, %v4544
        %v4560 = vpack.c.bf16 %v4547, %v4546
        %v4561 = vpack.c.bf16 %v4549, %v4548
        %v4562 = vld [vmem:[%s16] sm:$0x1]
        %v4564 = vlaneseq
        %v4565 = vshrl.u32 %v4564, 7
        %v4566 = vsub.s32 0, %v4565
        %v4567 = vrot.slane %v4562, %v4566
        %v4573 = vunpack.c.l.b16 %v4550
        %v4574 = vunpack.c.l.b16 %v4551
        %v4575 = vunpack.c.l.b16 %v4552
        %v4576 = vunpack.c.l.b16 %v4553
        %v4577 = vpack.c.b16 %v4574, %v4573
        %v4578 = vpack.c.b16 %v4576, %v4575
        %v4580 = vsel %vm1723, %v4554, 0
        %v4583 = vsel %vm1723, %v4555, 0
        %v4586 = vsel %vm1723, %v4556, 0
        %v4589 = vsel %vm1723, %v4557, 0
        %v4592 = vsel %vm1723, %v4558, 0
        %v4595 = vsel %vm1723, %v4559, 0
        %v4598 = vsel %vm1723, %v4560, 0
        %v4601 = vsel %vm1723, %v4561, 0
        %v4604 = vsel %vm1723, %v4577, 0
        %v4607 = vsel %vm1723, %v4578, 0
        %4609 = vmatprep.subr.bf16.mxu0 0
        %4610 = vmatpush1.bf16.xpose.msra.mxu0 %v4604
        %4611 = vmatprep.subr.bf16.mxu0 0
        %4612 = vmatpush1.bf16.xpose.msra.mxu0 %v4607
        %4613 = vmatprep.subr.bf16.mxu0 0
        %4614 = vmatpush1.bf16.xpose.msra.mxu0 0
        %4615 = vmatprep.subr.bf16.mxu0 0
        %4616 = vmatpush1.bf16.xpose.msra.mxu0 0
        %4617 = vmatprep.subr.bf16.mxu0 0
        %4618 = vmatpush1.bf16.xpose.msra.mxu0 0
        %4619 = vmatprep.subr.bf16.mxu0 0
        %4620 = vmatpush1.bf16.xpose.msra.mxu0 0
        %4621 = vmatprep.subr.bf16.mxu0 0
        %4622 = vmatpush1.bf16.xpose.msra.mxu0 0
        %4623 = vmatprep.subr.bf16.mxu0 0
        %4624 = vmatpush1.bf16.xpose.msra.mxu0 0
        %4625 = vmatprep.subr.bf16.mxu0 0
        %4626 = vmatpush1.bf16.xpose.msra.mxu0 0
        %4627 = vmatprep.subr.bf16.mxu0 0
        %4628 = vmatpush1.bf16.xpose.msra.mxu0 0
        %4629 = vmatprep.subr.bf16.mxu0 0
        %4630 = vmatpush1.bf16.xpose.msra.mxu0 0
        %4631 = vmatprep.subr.bf16.mxu0 0
        %4632 = vmatpush1.bf16.xpose.msra.mxu0 0
        %4633 = vmatprep.subr.bf16.mxu0 0
        %4634 = vmatpush1.bf16.xpose.msra.mxu0 0
        %4635 = vmatprep.subr.bf16.mxu0 0
        %4636 = vmatpush1.bf16.xpose.msra.mxu0 0
        %4637 = vmatprep.subr.bf16.mxu0 0
        %4638 = vmatpush1.bf16.xpose.msra.mxu0 0
        %4639 = vmatprep.subr.bf16.mxu0 0
        %4640 = vmatpush1.bf16.xpose.msra.mxu0 0
        %4641 = vmatprep.mubr.bf16.mxu0 0
        %4642 = vmatmul.mubr.bf16.gmra.mrb[0].mxu0 %v4580
        %v4643 = vpop.f32.mrb[0].mxu0
        %v4644 = vadd.f32 %v4567, %v4643
        %v4645 = vpop.f32.mrb[0].mxu0
        %v4646 = vpop.f32.mrb[0].mxu0
        %v4647 = vadd.f32 %v4567, %v4646
        %v4648 = vpop.f32.mrb[0].mxu0
        %4649 = vmatprep.mubr.bf16.mxu0 0
        %4650 = vmatmul.mubr.bf16.gmra.mrb[0].mxu0 %v4583
        %v4651 = vpop.f32.mrb[0].mxu0
        %v4652 = vadd.f32 %v4567, %v4651
        %v4653 = vpop.f32.mrb[0].mxu0
        %v4654 = vpop.f32.mrb[0].mxu0
        %v4655 = vadd.f32 %v4567, %v4654
        %v4656 = vpop.f32.mrb[0].mxu0
        %4657 = vmatprep.mubr.bf16.mxu0 0
        %4658 = vmatmul.mubr.bf16.gmra.mrb[0].mxu0 %v4586
        %v4659 = vpop.f32.mrb[0].mxu0
        %v4660 = vadd.f32 %v4567, %v4659
        %v4661 = vpop.f32.mrb[0].mxu0
        %v4662 = vpop.f32.mrb[0].mxu0
        %v4663 = vadd.f32 %v4567, %v4662
        %v4664 = vpop.f32.mrb[0].mxu0
        %4665 = vmatprep.mubr.bf16.mxu0 0
        %4666 = vmatmul.mubr.bf16.gmra.mrb[0].mxu0 %v4589
        %v4667 = vpop.f32.mrb[0].mxu0
        %v4668 = vadd.f32 %v4567, %v4667
        %v4669 = vpop.f32.mrb[0].mxu0
        %v4670 = vpop.f32.mrb[0].mxu0
        %v4671 = vadd.f32 %v4567, %v4670
        %v4672 = vpop.f32.mrb[0].mxu0
        %4673 = vmatprep.mubr.bf16.mxu0 0
        %4674 = vmatmul.mubr.bf16.gmra.mrb[0].mxu0 %v4592
        %v4675 = vpop.f32.mrb[0].mxu0
        %v4676 = vadd.f32 %v4567, %v4675
        %v4677 = vpop.f32.mrb[0].mxu0
        %v4678 = vpop.f32.mrb[0].mxu0
        %v4679 = vadd.f32 %v4567, %v4678
        %v4680 = vpop.f32.mrb[0].mxu0
        %4681 = vmatprep.mubr.bf16.mxu0 0
        %4682 = vmatmul.mubr.bf16.gmra.mrb[0].mxu0 %v4595
        %v4683 = vpop.f32.mrb[0].mxu0
        %v4684 = vadd.f32 %v4567, %v4683
        %v4685 = vpop.f32.mrb[0].mxu0
        %v4686 = vpop.f32.mrb[0].mxu0
        %v4687 = vadd.f32 %v4567, %v4686
        %v4688 = vpop.f32.mrb[0].mxu0
        %4689 = vmatprep.mubr.bf16.mxu0 0
        %4690 = vmatmul.mubr.bf16.gmra.mrb[0].mxu0 %v4598
        %v4691 = vpop.f32.mrb[0].mxu0
        %v4692 = vadd.f32 %v4567, %v4691
        %v4693 = vpop.f32.mrb[0].mxu0
        %v4694 = vpop.f32.mrb[0].mxu0
        %v4695 = vadd.f32 %v4567, %v4694
        %v4696 = vpop.f32.mrb[0].mxu0
        %4697 = vmatprep.mubr.bf16.mxu0 0
        %4698 = vmatmul.mubr.bf16.gmra.mrb[0].mxu0 %v4601
        %v4699 = vpop.f32.mrb[0].mxu0
        %v4700 = vadd.f32 %v4567, %v4699
        %v4701 = vpop.f32.mrb[0].mxu0
        %v4702 = vpop.f32.mrb[0].mxu0
        %v4703 = vadd.f32 %v4567, %v4702
        %v4704 = vpop.f32.mrb[0].mxu0
        %4705 = vdwg.mxu0
        %v4706 = vadd.f32 %v4234, %v4644
        %v4707 = vadd.f32 %v4235, %v4647
        %v4708 = vadd.f32 %v4236, %v4652
        %v4709 = vadd.f32 %v4237, %v4655
        %v4710 = vadd.f32 %v4238, %v4660
        %v4711 = vadd.f32 %v4239, %v4663
        %v4712 = vadd.f32 %v4240, %v4668
        %v4713 = vadd.f32 %v4241, %v4671
        %v4714 = vadd.f32 %v4242, %v4676
        %v4715 = vadd.f32 %v4243, %v4679
        %v4716 = vadd.f32 %v4244, %v4684
        %v4717 = vadd.f32 %v4245, %v4687
        %v4718 = vadd.f32 %v4246, %v4692
        %v4719 = vadd.f32 %v4247, %v4695
        %v4720 = vadd.f32 %v4248, %v4700
        %v4721 = vadd.f32 %v4249, %v4703
        %v4722 = vld [vmem:[%s17] sm:$0x1]
        %v4723 = vld [vmem:[%s18] sm:$0x1]
        %v4724 = vsel %vm1723, %v4706, 0.0
        %4725 = vadd.xlane.f32.xlu0 %v4724
        %v4726 = vpop.xlane.xlu0 %4725
        %v4727 = vsel %vm1723, %v4707, 0.0
        %4728 = vadd.xlane.f32.xlu0 %v4727
        %v4729 = vpop.xlane.xlu0 %4728
        %v4730 = vsel %vm1723, %v4708, 0.0
        %4731 = vadd.xlane.f32.xlu0 %v4730
        %v4732 = vpop.xlane.xlu0 %4731
        %v4733 = vsel %vm1723, %v4709, 0.0
        %4734 = vadd.xlane.f32.xlu0 %v4733
        %v4735 = vpop.xlane.xlu0 %4734
        %v4736 = vsel %vm1723, %v4710, 0.0
        %4737 = vadd.xlane.f32.xlu0 %v4736
        %v4738 = vpop.xlane.xlu0 %4737
        %v4739 = vsel %vm1723, %v4711, 0.0
        %4740 = vadd.xlane.f32.xlu0 %v4739
        %v4741 = vpop.xlane.xlu0 %4740
        %v4742 = vsel %vm1723, %v4712, 0.0
        %4743 = vadd.xlane.f32.xlu0 %v4742
        %v4744 = vpop.xlane.xlu0 %4743
        %v4745 = vsel %vm1723, %v4713, 0.0
        %4746 = vadd.xlane.f32.xlu0 %v4745
        %v4747 = vpop.xlane.xlu0 %4746
        %v4748 = vsel %vm1723, %v4714, 0.0
        %4749 = vadd.xlane.f32.xlu0 %v4748
        %v4750 = vpop.xlane.xlu0 %4749
        %v4751 = vsel %vm1723, %v4715, 0.0
        %4752 = vadd.xlane.f32.xlu0 %v4751
        %v4753 = vpop.xlane.xlu0 %4752
        %v4754 = vsel %vm1723, %v4716, 0.0
        %4755 = vadd.xlane.f32.xlu0 %v4754
        %v4756 = vpop.xlane.xlu0 %4755
        %v4757 = vsel %vm1723, %v4717, 0.0
        %4758 = vadd.xlane.f32.xlu0 %v4757
        %v4759 = vpop.xlane.xlu0 %4758
        %v4760 = vsel %vm1723, %v4718, 0.0
        %4761 = vadd.xlane.f32.xlu0 %v4760
        %v4762 = vpop.xlane.xlu0 %4761
        %v4763 = vsel %vm1723, %v4719, 0.0
        %4764 = vadd.xlane.f32.xlu0 %v4763
        %v4765 = vpop.xlane.xlu0 %4764
        %v4766 = vsel %vm1723, %v4720, 0.0
        %4767 = vadd.xlane.f32.xlu0 %v4766
        %v4768 = vpop.xlane.xlu0 %4767
        %v4769 = vsel %vm1723, %v4721, 0.0
        %4770 = vadd.xlane.f32.xlu0 %v4769
        %v4771 = vpop.xlane.xlu0 %4770
        %v4772 = vmul.f32 %v4726, %v4045
        %v4773 = vmul.f32 %v4729, %v4045
        %v4774 = vmul.f32 %v4732, %v4045
        %v4775 = vmul.f32 %v4735, %v4045
        %v4776 = vmul.f32 %v4738, %v4045
        %v4777 = vmul.f32 %v4741, %v4045
        %v4778 = vmul.f32 %v4744, %v4045
        %v4779 = vmul.f32 %v4747, %v4045
        %v4780 = vmul.f32 %v4750, %v4045
        %v4781 = vmul.f32 %v4753, %v4045
        %v4782 = vmul.f32 %v4756, %v4045
        %v4783 = vmul.f32 %v4759, %v4045
        %v4784 = vmul.f32 %v4762, %v4045
        %v4785 = vmul.f32 %v4765, %v4045
        %v4786 = vmul.f32 %v4768, %v4045
        %v4787 = vmul.f32 %v4771, %v4045
        %v4788 = vsub.f32 %v4706, %v4772
        %v4789 = vsub.f32 %v4707, %v4773
        %v4790 = vsub.f32 %v4708, %v4774
        %v4791 = vsub.f32 %v4709, %v4775
        %v4792 = vsub.f32 %v4710, %v4776
        %v4793 = vsub.f32 %v4711, %v4777
        %v4794 = vsub.f32 %v4712, %v4778
        %v4795 = vsub.f32 %v4713, %v4779
        %v4796 = vsub.f32 %v4714, %v4780
        %v4797 = vsub.f32 %v4715, %v4781
        %v4798 = vsub.f32 %v4716, %v4782
        %v4799 = vsub.f32 %v4717, %v4783
        %v4800 = vsub.f32 %v4718, %v4784
        %v4801 = vsub.f32 %v4719, %v4785
        %v4802 = vsub.f32 %v4720, %v4786
        %v4803 = vsub.f32 %v4721, %v4787
        %v4804 = vmul.f32 %v4788, %v4788
        %v4805 = vmul.f32 %v4789, %v4789
        %v4806 = vmul.f32 %v4790, %v4790
        %v4807 = vmul.f32 %v4791, %v4791
        %v4808 = vmul.f32 %v4792, %v4792
        %v4809 = vmul.f32 %v4793, %v4793
        %v4810 = vmul.f32 %v4794, %v4794
        %v4811 = vmul.f32 %v4795, %v4795
        %v4812 = vmul.f32 %v4796, %v4796
        %v4813 = vmul.f32 %v4797, %v4797
        %v4814 = vmul.f32 %v4798, %v4798
        %v4815 = vmul.f32 %v4799, %v4799
        %v4816 = vmul.f32 %v4800, %v4800
        %v4817 = vmul.f32 %v4801, %v4801
        %v4818 = vmul.f32 %v4802, %v4802
        %v4819 = vmul.f32 %v4803, %v4803
        %v4820 = vsel %vm1723, %v4804, 0.0
        %4821 = vadd.xlane.f32.xlu0 %v4820
        %v4822 = vpop.xlane.xlu0 %4821
        %v4823 = vsel %vm1723, %v4805, 0.0
        %4824 = vadd.xlane.f32.xlu0 %v4823
        %v4825 = vpop.xlane.xlu0 %4824
        %v4826 = vsel %vm1723, %v4806, 0.0
        %4827 = vadd.xlane.f32.xlu0 %v4826
        %v4828 = vpop.xlane.xlu0 %4827
        %v4829 = vsel %vm1723, %v4807, 0.0
        %4830 = vadd.xlane.f32.xlu0 %v4829
        %v4831 = vpop.xlane.xlu0 %4830
        %v4832 = vsel %vm1723, %v4808, 0.0
        %4833 = vadd.xlane.f32.xlu0 %v4832
        %v4834 = vpop.xlane.xlu0 %4833
        %v4835 = vsel %vm1723, %v4809, 0.0
        %4836 = vadd.xlane.f32.xlu0 %v4835
        %v4837 = vpop.xlane.xlu0 %4836
        %v4838 = vsel %vm1723, %v4810, 0.0
        %4839 = vadd.xlane.f32.xlu0 %v4838
        %v4840 = vpop.xlane.xlu0 %4839
        %v4841 = vsel %vm1723, %v4811, 0.0
        %4842 = vadd.xlane.f32.xlu0 %v4841
        %v4843 = vpop.xlane.xlu0 %4842
        %v4844 = vsel %vm1723, %v4812, 0.0
        %4845 = vadd.xlane.f32.xlu0 %v4844
        %v4846 = vpop.xlane.xlu0 %4845
        %v4847 = vsel %vm1723, %v4813, 0.0
        %4848 = vadd.xlane.f32.xlu0 %v4847
        %v4849 = vpop.xlane.xlu0 %4848
        %v4850 = vsel %vm1723, %v4814, 0.0
        %4851 = vadd.xlane.f32.xlu0 %v4850
        %v4852 = vpop.xlane.xlu0 %4851
        %v4853 = vsel %vm1723, %v4815, 0.0
        %4854 = vadd.xlane.f32.xlu0 %v4853
        %v4855 = vpop.xlane.xlu0 %4854
        %v4856 = vsel %vm1723, %v4816, 0.0
        %4857 = vadd.xlane.f32.xlu0 %v4856
        %v4858 = vpop.xlane.xlu0 %4857
        %v4859 = vsel %vm1723, %v4817, 0.0
        %4860 = vadd.xlane.f32.xlu0 %v4859
        %v4861 = vpop.xlane.xlu0 %4860
        %v4862 = vsel %vm1723, %v4818, 0.0
        %4863 = vadd.xlane.f32.xlu0 %v4862
        %v4864 = vpop.xlane.xlu0 %4863
        %v4865 = vsel %vm1723, %v4819, 0.0
        %4866 = vadd.xlane.f32.xlu0 %v4865
        %v4867 = vpop.xlane.xlu0 %4866
        %v4868 = vmul.f32 %v4822, %v4045
        %v4869 = vmul.f32 %v4825, %v4045
        %v4870 = vmul.f32 %v4828, %v4045
        %v4871 = vmul.f32 %v4831, %v4045
        %v4872 = vmul.f32 %v4834, %v4045
        %v4873 = vmul.f32 %v4837, %v4045
        %v4874 = vmul.f32 %v4840, %v4045
        %v4875 = vmul.f32 %v4843, %v4045
        %v4876 = vmul.f32 %v4846, %v4045
        %v4877 = vmul.f32 %v4849, %v4045
        %v4878 = vmul.f32 %v4852, %v4045
        %v4879 = vmul.f32 %v4855, %v4045
        %v4880 = vmul.f32 %v4858, %v4045
        %v4881 = vmul.f32 %v4861, %v4045
        %v4882 = vmul.f32 %v4864, %v4045
        %v4883 = vmul.f32 %v4867, %v4045
        %v4884 = vadd.f32 %v4868, 1e-05
        %v4885 = vadd.f32 %v4869, 1e-05
        %v4886 = vadd.f32 %v4870, 1e-05
        %v4887 = vadd.f32 %v4871, 1e-05
        %v4888 = vadd.f32 %v4872, 1e-05
        %v4889 = vadd.f32 %v4873, 1e-05
        %v4890 = vadd.f32 %v4874, 1e-05
        %v4891 = vadd.f32 %v4875, 1e-05
        %v4892 = vadd.f32 %v4876, 1e-05
        %v4893 = vadd.f32 %v4877, 1e-05
        %v4894 = vadd.f32 %v4878, 1e-05
        %v4895 = vadd.f32 %v4879, 1e-05
        %v4896 = vadd.f32 %v4880, 1e-05
        %v4897 = vadd.f32 %v4881, 1e-05
        %v4898 = vadd.f32 %v4882, 1e-05
        %v4899 = vadd.f32 %v4883, 1e-05
        %v4900 = vrsqrt.pop %v4884
        %v4901 = vrsqrt.pop %v4885
        %v4902 = vrsqrt.pop %v4886
        %v4903 = vrsqrt.pop %v4887
        %v4904 = vrsqrt.pop %v4888
        %v4905 = vrsqrt.pop %v4889
        %v4906 = vrsqrt.pop %v4890
        %v4907 = vrsqrt.pop %v4891
        %v4908 = vrsqrt.pop %v4892
        %v4909 = vrsqrt.pop %v4893
        %v4910 = vrsqrt.pop %v4894
        %v4911 = vrsqrt.pop %v4895
        %v4912 = vrsqrt.pop %v4896
        %v4913 = vrsqrt.pop %v4897
        %v4914 = vrsqrt.pop %v4898
        %v4915 = vrsqrt.pop %v4899
        %v4916 = vmul.f32 %v4788, %v4900
        %v4917 = vmul.f32 %v4789, %v4901
        %v4918 = vmul.f32 %v4790, %v4902
        %v4919 = vmul.f32 %v4791, %v4903
        %v4920 = vmul.f32 %v4792, %v4904
        %v4921 = vmul.f32 %v4793, %v4905
        %v4922 = vmul.f32 %v4794, %v4906
        %v4923 = vmul.f32 %v4795, %v4907
        %v4924 = vmul.f32 %v4796, %v4908
        %v4925 = vmul.f32 %v4797, %v4909
        %v4926 = vmul.f32 %v4798, %v4910
        %v4927 = vmul.f32 %v4799, %v4911
        %v4928 = vmul.f32 %v4800, %v4912
        %v4929 = vmul.f32 %v4801, %v4913
        %v4930 = vmul.f32 %v4802, %v4914
        %v4931 = vmul.f32 %v4803, %v4915
        %v4933 = vlaneseq
        %v4934 = vshrl.u32 %v4933, 7
        %v4935 = vsub.s32 0, %v4934
        %v4936 = vrot.slane %v4722, %v4935
        %v4938 = vmul.f32 %v4916, %v4936
        %v4939 = vmul.f32 %v4917, %v4936
        %v4940 = vmul.f32 %v4918, %v4936
        %v4941 = vmul.f32 %v4919, %v4936
        %v4942 = vmul.f32 %v4920, %v4936
        %v4943 = vmul.f32 %v4921, %v4936
        %v4944 = vmul.f32 %v4922, %v4936
        %v4945 = vmul.f32 %v4923, %v4936
        %v4946 = vmul.f32 %v4924, %v4936
        %v4947 = vmul.f32 %v4925, %v4936
        %v4948 = vmul.f32 %v4926, %v4936
        %v4949 = vmul.f32 %v4927, %v4936
        %v4950 = vmul.f32 %v4928, %v4936
        %v4951 = vmul.f32 %v4929, %v4936
        %v4952 = vmul.f32 %v4930, %v4936
        %v4953 = vmul.f32 %v4931, %v4936
        %v4955 = vlaneseq
        %v4956 = vshrl.u32 %v4955, 7
        %v4957 = vsub.s32 0, %v4956
        %v4958 = vrot.slane %v4723, %v4957
        %v4960 = vadd.f32 %v4938, %v4958
        %v4961 = vadd.f32 %v4939, %v4958
        %v4962 = vadd.f32 %v4940, %v4958
        %v4963 = vadd.f32 %v4941, %v4958
        %v4964 = vadd.f32 %v4942, %v4958
        %v4965 = vadd.f32 %v4943, %v4958
        %v4966 = vadd.f32 %v4944, %v4958
        %v4967 = vadd.f32 %v4945, %v4958
        %v4968 = vadd.f32 %v4946, %v4958
        %v4969 = vadd.f32 %v4947, %v4958
        %v4970 = vadd.f32 %v4948, %v4958
        %v4971 = vadd.f32 %v4949, %v4958
        %v4972 = vadd.f32 %v4950, %v4958
        %v4973 = vadd.f32 %v4951, %v4958
        %v4974 = vadd.f32 %v4952, %v4958
        %v4975 = vadd.f32 %v4953, %v4958
        %v4976 = vpack.c.bf16 %v4961, %v4960
        %v4977 = vpack.c.bf16 %v4963, %v4962
        %v4978 = vpack.c.bf16 %v4965, %v4964
        %v4979 = vpack.c.bf16 %v4967, %v4966
        %v4980 = vpack.c.bf16 %v4969, %v4968
        %v4981 = vpack.c.bf16 %v4971, %v4970
        %v4982 = vpack.c.bf16 %v4973, %v4972
        %v4983 = vpack.c.bf16 %v4975, %v4974
        %s4984 = scalar_lea.vmem %s3, 16
        %v4985 = vld [vmem:[%s4984] sm:$0xf]
        %v4986 = vld [vmem:[%s4984 + $0x4] sm:$0xf]
        %v4987 = vld [vmem:[%s4984 + $0x8] sm:$0xf]
        %v4988 = vld [vmem:[%s4984 + $0xc] sm:$0xf]
        %s4989 = scalar_lea.vmem %s4, 1
        %v4990 = vld [vmem:[%s4989] sm:$0x1]
        %v4992 = vlaneseq
        %v4993 = vshrl.u32 %v4992, 7
        %v4994 = vsub.s32 0, %v4993
        %v4995 = vrot.slane %v4990, %v4994
        %v5001 = vunpack.c.l.b16 %v4985
        %v5002 = vunpack.c.l.b16 %v4986
        %v5003 = vunpack.c.l.b16 %v4987
        %v5004 = vunpack.c.l.b16 %v4988
        %v5005 = vpack.c.b16 %v5002, %v5001
        %v5006 = vpack.c.b16 %v5004, %v5003
        %v5008 = vsel %vm1723, %v4976, 0
        %v5011 = vsel %vm1723, %v4977, 0
        %v5014 = vsel %vm1723, %v4978, 0
        %v5017 = vsel %vm1723, %v4979, 0
        %v5020 = vsel %vm1723, %v4980, 0
        %v5023 = vsel %vm1723, %v4981, 0
        %v5026 = vsel %vm1723, %v4982, 0
        %v5029 = vsel %vm1723, %v4983, 0
        %v5032 = vsel %vm1723, %v5005, 0
        %v5035 = vsel %vm1723, %v5006, 0
        %5037 = vmatprep.subr.bf16.mxu0 0
        %5038 = vmatpush1.bf16.xpose.msra.mxu0 %v5032
        %5039 = vmatprep.subr.bf16.mxu0 0
        %5040 = vmatpush1.bf16.xpose.msra.mxu0 %v5035
        %5041 = vmatprep.subr.bf16.mxu0 0
        %5042 = vmatpush1.bf16.xpose.msra.mxu0 0
        %5043 = vmatprep.subr.bf16.mxu0 0
        %5044 = vmatpush1.bf16.xpose.msra.mxu0 0
        %5045 = vmatprep.subr.bf16.mxu0 0
        %5046 = vmatpush1.bf16.xpose.msra.mxu0 0
        %5047 = vmatprep.subr.bf16.mxu0 0
        %5048 = vmatpush1.bf16.xpose.msra.mxu0 0
        %5049 = vmatprep.subr.bf16.mxu0 0
        %5050 = vmatpush1.bf16.xpose.msra.mxu0 0
        %5051 = vmatprep.subr.bf16.mxu0 0
        %5052 = vmatpush1.bf16.xpose.msra.mxu0 0
        %5053 = vmatprep.subr.bf16.mxu0 0
        %5054 = vmatpush1.bf16.xpose.msra.mxu0 0
        %5055 = vmatprep.subr.bf16.mxu0 0
        %5056 = vmatpush1.bf16.xpose.msra.mxu0 0
        %5057 = vmatprep.subr.bf16.mxu0 0
        %5058 = vmatpush1.bf16.xpose.msra.mxu0 0
        %5059 = vmatprep.subr.bf16.mxu0 0
        %5060 = vmatpush1.bf16.xpose.msra.mxu0 0
        %5061 = vmatprep.subr.bf16.mxu0 0
        %5062 = vmatpush1.bf16.xpose.msra.mxu0 0
        %5063 = vmatprep.subr.bf16.mxu0 0
        %5064 = vmatpush1.bf16.xpose.msra.mxu0 0
        %5065 = vmatprep.subr.bf16.mxu0 0
        %5066 = vmatpush1.bf16.xpose.msra.mxu0 0
        %5067 = vmatprep.subr.bf16.mxu0 0
        %5068 = vmatpush1.bf16.xpose.msra.mxu0 0
        %5069 = vmatprep.mubr.bf16.mxu0 0
        %5070 = vmatmul.mubr.bf16.gmra.mrb[0].mxu0 %v5008
        %v5071 = vpop.f32.mrb[0].mxu0
        %v5072 = vadd.f32 %v4995, %v5071
        %v5073 = vpop.f32.mrb[0].mxu0
        %v5074 = vpop.f32.mrb[0].mxu0
        %v5075 = vadd.f32 %v4995, %v5074
        %v5076 = vpop.f32.mrb[0].mxu0
        %5077 = vmatprep.mubr.bf16.mxu0 0
        %5078 = vmatmul.mubr.bf16.gmra.mrb[0].mxu0 %v5011
        %v5079 = vpop.f32.mrb[0].mxu0
        %v5080 = vadd.f32 %v4995, %v5079
        %v5081 = vpop.f32.mrb[0].mxu0
        %v5082 = vpop.f32.mrb[0].mxu0
        %v5083 = vadd.f32 %v4995, %v5082
        %v5084 = vpop.f32.mrb[0].mxu0
        %5085 = vmatprep.mubr.bf16.mxu0 0
        %5086 = vmatmul.mubr.bf16.gmra.mrb[0].mxu0 %v5014
        %v5087 = vpop.f32.mrb[0].mxu0
        %v5088 = vadd.f32 %v4995, %v5087
        %v5089 = vpop.f32.mrb[0].mxu0
        %v5090 = vpop.f32.mrb[0].mxu0
        %v5091 = vadd.f32 %v4995, %v5090
        %v5092 = vpop.f32.mrb[0].mxu0
        %5093 = vmatprep.mubr.bf16.mxu0 0
        %5094 = vmatmul.mubr.bf16.gmra.mrb[0].mxu0 %v5017
        %v5095 = vpop.f32.mrb[0].mxu0
        %v5096 = vadd.f32 %v4995, %v5095
        %v5097 = vpop.f32.mrb[0].mxu0
        %v5098 = vpop.f32.mrb[0].mxu0
        %v5099 = vadd.f32 %v4995, %v5098
        %v5100 = vpop.f32.mrb[0].mxu0
        %5101 = vmatprep.mubr.bf16.mxu0 0
        %5102 = vmatmul.mubr.bf16.gmra.mrb[0].mxu0 %v5020
        %v5103 = vpop.f32.mrb[0].mxu0
        %v5104 = vadd.f32 %v4995, %v5103
        %v5105 = vpop.f32.mrb[0].mxu0
        %v5106 = vpop.f32.mrb[0].mxu0
        %v5107 = vadd.f32 %v4995, %v5106
        %v5108 = vpop.f32.mrb[0].mxu0
        %5109 = vmatprep.mubr.bf16.mxu0 0
        %5110 = vmatmul.mubr.bf16.gmra.mrb[0].mxu0 %v5023
        %v5111 = vpop.f32.mrb[0].mxu0
        %v5112 = vadd.f32 %v4995, %v5111
        %v5113 = vpop.f32.mrb[0].mxu0
        %v5114 = vpop.f32.mrb[0].mxu0
        %v5115 = vadd.f32 %v4995, %v5114
        %v5116 = vpop.f32.mrb[0].mxu0
        %5117 = vmatprep.mubr.bf16.mxu0 0
        %5118 = vmatmul.mubr.bf16.gmra.mrb[0].mxu0 %v5026
        %v5119 = vpop.f32.mrb[0].mxu0
        %v5120 = vadd.f32 %v4995, %v5119
        %v5121 = vpop.f32.mrb[0].mxu0
        %v5122 = vpop.f32.mrb[0].mxu0
        %v5123 = vadd.f32 %v4995, %v5122
        %v5124 = vpop.f32.mrb[0].mxu0
        %5125 = vmatprep.mubr.bf16.mxu0 0
        %5126 = vmatmul.mubr.bf16.gmra.mrb[0].mxu0 %v5029
        %v5127 = vpop.f32.mrb[0].mxu0
        %v5128 = vadd.f32 %v4995, %v5127
        %v5129 = vpop.f32.mrb[0].mxu0
        %v5130 = vpop.f32.mrb[0].mxu0
        %v5131 = vadd.f32 %v4995, %v5130
        %v5132 = vpop.f32.mrb[0].mxu0
        %5133 = vdwg.mxu0
        %s5134 = scalar_lea.vmem %s5, 16
        %v5135 = vld [vmem:[%s5134] sm:$0xf]
        %v5136 = vld [vmem:[%s5134 + $0x4] sm:$0xf]
        %v5137 = vld [vmem:[%s5134 + $0x8] sm:$0xf]
        %v5138 = vld [vmem:[%s5134 + $0xc] sm:$0xf]
        %s5139 = scalar_lea.vmem %s6, 1
        %v5140 = vld [vmem:[%s5139] sm:$0x1]
        %v5142 = vlaneseq
        %v5143 = vshrl.u32 %v5142, 7
        %v5144 = vsub.s32 0, %v5143
        %v5145 = vrot.slane %v5140, %v5144
        %v5151 = vunpack.c.l.b16 %v5135
        %v5152 = vunpack.c.l.b16 %v5136
        %v5153 = vunpack.c.l.b16 %v5137
        %v5154 = vunpack.c.l.b16 %v5138
        %v5155 = vpack.c.b16 %v5152, %v5151
        %v5156 = vpack.c.b16 %v5154, %v5153
        %v5158 = vsel %vm1723, %v5155, 0
        %v5161 = vsel %vm1723, %v5156, 0
        %5163 = vmatprep.subr.bf16.mxu0 0
        %5164 = vmatpush1.bf16.xpose.msra.mxu0 %v5158
        %5165 = vmatprep.subr.bf16.mxu0 0
        %5166 = vmatpush1.bf16.xpose.msra.mxu0 %v5161
        %5167 = vmatprep.subr.bf16.mxu0 0
        %5168 = vmatpush1.bf16.xpose.msra.mxu0 0
        %5169 = vmatprep.subr.bf16.mxu0 0
        %5170 = vmatpush1.bf16.xpose.msra.mxu0 0
        %5171 = vmatprep.subr.bf16.mxu0 0
        %5172 = vmatpush1.bf16.xpose.msra.mxu0 0
        %5173 = vmatprep.subr.bf16.mxu0 0
        %5174 = vmatpush1.bf16.xpose.msra.mxu0 0
        %5175 = vmatprep.subr.bf16.mxu0 0
        %5176 = vmatpush1.bf16.xpose.msra.mxu0 0
        %5177 = vmatprep.subr.bf16.mxu0 0
        %5178 = vmatpush1.bf16.xpose.msra.mxu0 0
        %5179 = vmatprep.subr.bf16.mxu0 0
        %5180 = vmatpush1.bf16.xpose.msra.mxu0 0
        %5181 = vmatprep.subr.bf16.mxu0 0
        %5182 = vmatpush1.bf16.xpose.msra.mxu0 0
        %5183 = vmatprep.subr.bf16.mxu0 0
        %5184 = vmatpush1.bf16.xpose.msra.mxu0 0
        %5185 = vmatprep.subr.bf16.mxu0 0
        %5186 = vmatpush1.bf16.xpose.msra.mxu0 0
        %5187 = vmatprep.subr.bf16.mxu0 0
        %5188 = vmatpush1.bf16.xpose.msra.mxu0 0
        %5189 = vmatprep.subr.bf16.mxu0 0
        %5190 = vmatpush1.bf16.xpose.msra.mxu0 0
        %5191 = vmatprep.subr.bf16.mxu0 0
        %5192 = vmatpush1.bf16.xpose.msra.mxu0 0
        %5193 = vmatprep.subr.bf16.mxu0 0
        %5194 = vmatpush1.bf16.xpose.msra.mxu0 0
        %5195 = vmatprep.mubr.bf16.mxu0 0
        %5196 = vmatmul.mubr.bf16.gmra.mrb[0].mxu0 %v5008
        %v5197 = vpop.f32.mrb[0].mxu0
        %v5198 = vadd.f32 %v5145, %v5197
        %v5199 = vpop.f32.mrb[0].mxu0
        %v5200 = vpop.f32.mrb[0].mxu0
        %v5201 = vadd.f32 %v5145, %v5200
        %v5202 = vpop.f32.mrb[0].mxu0
        %5203 = vmatprep.mubr.bf16.mxu0 0
        %5204 = vmatmul.mubr.bf16.gmra.mrb[0].mxu0 %v5011
        %v5205 = vpop.f32.mrb[0].mxu0
        %v5206 = vadd.f32 %v5145, %v5205
        %v5207 = vpop.f32.mrb[0].mxu0
        %v5208 = vpop.f32.mrb[0].mxu0
        %v5209 = vadd.f32 %v5145, %v5208
        %v5210 = vpop.f32.mrb[0].mxu0
        %5211 = vmatprep.mubr.bf16.mxu0 0
        %5212 = vmatmul.mubr.bf16.gmra.mrb[0].mxu0 %v5014
        %v5213 = vpop.f32.mrb[0].mxu0
        %v5214 = vadd.f32 %v5145, %v5213
        %v5215 = vpop.f32.mrb[0].mxu0
        %v5216 = vpop.f32.mrb[0].mxu0
        %v5217 = vadd.f32 %v5145, %v5216
        %v5218 = vpop.f32.mrb[0].mxu0
        %5219 = vmatprep.mubr.bf16.mxu0 0
        %5220 = vmatmul.mubr.bf16.gmra.mrb[0].mxu0 %v5017
        %v5221 = vpop.f32.mrb[0].mxu0
        %v5222 = vadd.f32 %v5145, %v5221
        %v5223 = vpop.f32.mrb[0].mxu0
        %v5224 = vpop.f32.mrb[0].mxu0
        %v5225 = vadd.f32 %v5145, %v5224
        %v5226 = vpop.f32.mrb[0].mxu0
        %5227 = vmatprep.mubr.bf16.mxu0 0
        %5228 = vmatmul.mubr.bf16.gmra.mrb[0].mxu0 %v5020
        %v5229 = vpop.f32.mrb[0].mxu0
        %v5230 = vadd.f32 %v5145, %v5229
        %v5231 = vpop.f32.mrb[0].mxu0
        %v5232 = vpop.f32.mrb[0].mxu0
        %v5233 = vadd.f32 %v5145, %v5232
        %v5234 = vpop.f32.mrb[0].mxu0
        %5235 = vmatprep.mubr.bf16.mxu0 0
        %5236 = vmatmul.mubr.bf16.gmra.mrb[0].mxu0 %v5023
        %v5237 = vpop.f32.mrb[0].mxu0
        %v5238 = vadd.f32 %v5145, %v5237
        %v5239 = vpop.f32.mrb[0].mxu0
        %v5240 = vpop.f32.mrb[0].mxu0
        %v5241 = vadd.f32 %v5145, %v5240
        %v5242 = vpop.f32.mrb[0].mxu0
        %5243 = vmatprep.mubr.bf16.mxu0 0
        %5244 = vmatmul.mubr.bf16.gmra.mrb[0].mxu0 %v5026
        %v5245 = vpop.f32.mrb[0].mxu0
        %v5246 = vadd.f32 %v5145, %v5245
        %v5247 = vpop.f32.mrb[0].mxu0
        %v5248 = vpop.f32.mrb[0].mxu0
        %v5249 = vadd.f32 %v5145, %v5248
        %v5250 = vpop.f32.mrb[0].mxu0
        %5251 = vmatprep.mubr.bf16.mxu0 0
        %5252 = vmatmul.mubr.bf16.gmra.mrb[0].mxu0 %v5029
        %v5253 = vpop.f32.mrb[0].mxu0
        %v5254 = vadd.f32 %v5145, %v5253
        %v5255 = vpop.f32.mrb[0].mxu0
        %v5256 = vpop.f32.mrb[0].mxu0
        %v5257 = vadd.f32 %v5145, %v5256
        %v5258 = vpop.f32.mrb[0].mxu0
        %5259 = vdwg.mxu0
        %s5260 = scalar_lea.vmem %s7, 16
        %v5261 = vld [vmem:[%s5260] sm:$0xf]
        %v5262 = vld [vmem:[%s5260 + $0x4] sm:$0xf]
        %v5263 = vld [vmem:[%s5260 + $0x8] sm:$0xf]
        %v5264 = vld [vmem:[%s5260 + $0xc] sm:$0xf]
        %s5265 = scalar_lea.vmem %s8, 1
        %v5266 = vld [vmem:[%s5265] sm:$0x1]
        %v5268 = vlaneseq
        %v5269 = vshrl.u32 %v5268, 7
        %v5270 = vsub.s32 0, %v5269
        %v5271 = vrot.slane %v5266, %v5270
        %v5277 = vunpack.c.l.b16 %v5261
        %v5278 = vunpack.c.l.b16 %v5262
        %v5279 = vunpack.c.l.b16 %v5263
        %v5280 = vunpack.c.l.b16 %v5264
        %v5281 = vpack.c.b16 %v5278, %v5277
        %v5282 = vpack.c.b16 %v5280, %v5279
        %v5284 = vsel %vm1723, %v5281, 0
        %v5287 = vsel %vm1723, %v5282, 0
        %5289 = vmatprep.subr.bf16.mxu0 0
        %5290 = vmatpush1.bf16.xpose.msra.mxu0 %v5284
        %5291 = vmatprep.subr.bf16.mxu0 0
        %5292 = vmatpush1.bf16.xpose.msra.mxu0 %v5287
        %5293 = vmatprep.subr.bf16.mxu0 0
        %5294 = vmatpush1.bf16.xpose.msra.mxu0 0
        %5295 = vmatprep.subr.bf16.mxu0 0
        %5296 = vmatpush1.bf16.xpose.msra.mxu0 0
        %5297 = vmatprep.subr.bf16.mxu0 0
        %5298 = vmatpush1.bf16.xpose.msra.mxu0 0
        %5299 = vmatprep.subr.bf16.mxu0 0
        %5300 = vmatpush1.bf16.xpose.msra.mxu0 0
        %5301 = vmatprep.subr.bf16.mxu0 0
        %5302 = vmatpush1.bf16.xpose.msra.mxu0 0
        %5303 = vmatprep.subr.bf16.mxu0 0
        %5304 = vmatpush1.bf16.xpose.msra.mxu0 0
        %5305 = vmatprep.subr.bf16.mxu0 0
        %5306 = vmatpush1.bf16.xpose.msra.mxu0 0
        %5307 = vmatprep.subr.bf16.mxu0 0
        %5308 = vmatpush1.bf16.xpose.msra.mxu0 0
        %5309 = vmatprep.subr.bf16.mxu0 0
        %5310 = vmatpush1.bf16.xpose.msra.mxu0 0
        %5311 = vmatprep.subr.bf16.mxu0 0
        %5312 = vmatpush1.bf16.xpose.msra.mxu0 0
        %5313 = vmatprep.subr.bf16.mxu0 0
        %5314 = vmatpush1.bf16.xpose.msra.mxu0 0
        %5315 = vmatprep.subr.bf16.mxu0 0
        %5316 = vmatpush1.bf16.xpose.msra.mxu0 0
        %5317 = vmatprep.subr.bf16.mxu0 0
        %5318 = vmatpush1.bf16.xpose.msra.mxu0 0
        %5319 = vmatprep.subr.bf16.mxu0 0
        %5320 = vmatpush1.bf16.xpose.msra.mxu0 0
        %5321 = vmatprep.mubr.bf16.mxu0 0
        %5322 = vmatmul.mubr.bf16.gmra.mrb[0].mxu0 %v5008
        %v5323 = vpop.f32.mrb[0].mxu0
        %v5324 = vadd.f32 %v5271, %v5323
        %v5325 = vpop.f32.mrb[0].mxu0
        %v5326 = vpop.f32.mrb[0].mxu0
        %v5327 = vadd.f32 %v5271, %v5326
        %v5328 = vpop.f32.mrb[0].mxu0
        %5329 = vmatprep.mubr.bf16.mxu0 0
        %5330 = vmatmul.mubr.bf16.gmra.mrb[0].mxu0 %v5011
        %v5331 = vpop.f32.mrb[0].mxu0
        %v5332 = vadd.f32 %v5271, %v5331
        %v5333 = vpop.f32.mrb[0].mxu0
        %v5334 = vpop.f32.mrb[0].mxu0
        %v5335 = vadd.f32 %v5271, %v5334
        %v5336 = vpop.f32.mrb[0].mxu0
        %5337 = vmatprep.mubr.bf16.mxu0 0
        %5338 = vmatmul.mubr.bf16.gmra.mrb[0].mxu0 %v5014
        %v5339 = vpop.f32.mrb[0].mxu0
        %v5340 = vadd.f32 %v5271, %v5339
        %v5341 = vpop.f32.mrb[0].mxu0
        %v5342 = vpop.f32.mrb[0].mxu0
        %v5343 = vadd.f32 %v5271, %v5342
        %v5344 = vpop.f32.mrb[0].mxu0
        %5345 = vmatprep.mubr.bf16.mxu0 0
        %5346 = vmatmul.mubr.bf16.gmra.mrb[0].mxu0 %v5017
        %v5347 = vpop.f32.mrb[0].mxu0
        %v5348 = vadd.f32 %v5271, %v5347
        %v5349 = vpop.f32.mrb[0].mxu0
        %v5350 = vpop.f32.mrb[0].mxu0
        %v5351 = vadd.f32 %v5271, %v5350
        %v5352 = vpop.f32.mrb[0].mxu0
        %5353 = vmatprep.mubr.bf16.mxu0 0
        %5354 = vmatmul.mubr.bf16.gmra.mrb[0].mxu0 %v5020
        %v5355 = vpop.f32.mrb[0].mxu0
        %v5356 = vadd.f32 %v5271, %v5355
        %v5357 = vpop.f32.mrb[0].mxu0
        %v5358 = vpop.f32.mrb[0].mxu0
        %v5359 = vadd.f32 %v5271, %v5358
        %v5360 = vpop.f32.mrb[0].mxu0
        %5361 = vmatprep.mubr.bf16.mxu0 0
        %5362 = vmatmul.mubr.bf16.gmra.mrb[0].mxu0 %v5023
        %v5363 = vpop.f32.mrb[0].mxu0
        %v5364 = vadd.f32 %v5271, %v5363
        %v5365 = vpop.f32.mrb[0].mxu0
        %v5366 = vpop.f32.mrb[0].mxu0
        %v5367 = vadd.f32 %v5271, %v5366
        %v5368 = vpop.f32.mrb[0].mxu0
        %5369 = vmatprep.mubr.bf16.mxu0 0
        %5370 = vmatmul.mubr.bf16.gmra.mrb[0].mxu0 %v5026
        %v5371 = vpop.f32.mrb[0].mxu0
        %v5372 = vadd.f32 %v5271, %v5371
        %v5373 = vpop.f32.mrb[0].mxu0
        %v5374 = vpop.f32.mrb[0].mxu0
        %v5375 = vadd.f32 %v5271, %v5374
        %v5376 = vpop.f32.mrb[0].mxu0
        %5377 = vmatprep.mubr.bf16.mxu0 0
        %5378 = vmatmul.mubr.bf16.gmra.mrb[0].mxu0 %v5029
        %v5379 = vpop.f32.mrb[0].mxu0
        %v5380 = vadd.f32 %v5271, %v5379
        %v5381 = vpop.f32.mrb[0].mxu0
        %v5382 = vpop.f32.mrb[0].mxu0
        %v5383 = vadd.f32 %v5271, %v5382
        %v5384 = vpop.f32.mrb[0].mxu0
        %5385 = vdwg.mxu0
        %v5386 = vpack.c.bf16 %v5075, %v5072
        %v5387 = vpack.c.bf16 %v5083, %v5080
        %v5388 = vpack.c.bf16 %v5091, %v5088
        %v5389 = vpack.c.bf16 %v5099, %v5096
        %v5390 = vpack.c.bf16 %v5107, %v5104
        %v5391 = vpack.c.bf16 %v5115, %v5112
        %v5392 = vpack.c.bf16 %v5123, %v5120
        %v5393 = vpack.c.bf16 %v5131, %v5128
        %v5394 = vpack.c.bf16 %v5201, %v5198
        %v5395 = vpack.c.bf16 %v5209, %v5206
        %v5396 = vpack.c.bf16 %v5217, %v5214
        %v5397 = vpack.c.bf16 %v5225, %v5222
        %v5398 = vpack.c.bf16 %v5233, %v5230
        %v5399 = vpack.c.bf16 %v5241, %v5238
        %v5400 = vpack.c.bf16 %v5249, %v5246
        %v5401 = vpack.c.bf16 %v5257, %v5254
        %v5402 = vpack.c.bf16 %v5327, %v5324
        %v5403 = vpack.c.bf16 %v5335, %v5332
        %v5404 = vpack.c.bf16 %v5343, %v5340
        %v5405 = vpack.c.bf16 %v5351, %v5348
        %v5406 = vpack.c.bf16 %v5359, %v5356
        %v5407 = vpack.c.bf16 %v5367, %v5364
        %v5408 = vpack.c.bf16 %v5375, %v5372
        %v5409 = vpack.c.bf16 %v5383, %v5380
        %v5410 = vsel %vm2131, %v5394, 0
        %v5411 = vsel %vm2131, %v5395, 0
        %v5412 = vsel %vm2131, %v5396, 0
        %v5413 = vsel %vm2131, %v5397, 0
        %v5414 = vsel %vm2131, %v5398, 0
        %v5415 = vsel %vm2131, %v5399, 0
        %v5416 = vsel %vm2131, %v5400, 0
        %v5417 = vsel %vm2131, %v5401, 0
        %v5419 = vsel %vm1723, %v5386, 0
        %v5422 = vsel %vm1723, %v5387, 0
        %v5425 = vsel %vm1723, %v5388, 0
        %v5428 = vsel %vm1723, %v5389, 0
        %v5431 = vsel %vm1723, %v5390, 0
        %v5434 = vsel %vm1723, %v5391, 0
        %v5437 = vsel %vm1723, %v5392, 0
        %v5440 = vsel %vm1723, %v5393, 0
        %v5443 = vsel %vm1723, %v5410, 0
        %v5446 = vsel %vm1723, %v5411, 0
        %v5449 = vsel %vm1723, %v5412, 0
        %v5452 = vsel %vm1723, %v5413, 0
        %v5455 = vsel %vm1723, %v5414, 0
        %v5458 = vsel %vm1723, %v5415, 0
        %v5461 = vsel %vm1723, %v5416, 0
        %v5464 = vsel %vm1723, %v5417, 0
        %5466 = vmatprep.subr.bf16.mxu0 0
        %5467 = vmatpush1.bf16.xpose.msra.mxu0 %v5443
        %5468 = vmatprep.subr.bf16.mxu0 0
        %5469 = vmatpush1.bf16.xpose.msra.mxu0 %v5446
        %5470 = vmatprep.subr.bf16.mxu0 0
        %5471 = vmatpush1.bf16.xpose.msra.mxu0 %v5449
        %5472 = vmatprep.subr.bf16.mxu0 0
        %5473 = vmatpush1.bf16.xpose.msra.mxu0 %v5452
        %5474 = vmatprep.subr.bf16.mxu0 0
        %5475 = vmatpush1.bf16.xpose.msra.mxu0 %v5455
        %5476 = vmatprep.subr.bf16.mxu0 0
        %5477 = vmatpush1.bf16.xpose.msra.mxu0 %v5458
        %5478 = vmatprep.subr.bf16.mxu0 0
        %5479 = vmatpush1.bf16.xpose.msra.mxu0 %v5461
        %5480 = vmatprep.subr.bf16.mxu0 0
        %5481 = vmatpush1.bf16.xpose.msra.mxu0 %v5464
        %5482 = vmatprep.subr.bf16.mxu0 0
        %5483 = vmatpush1.bf16.xpose.msra.mxu0 0
        %5484 = vmatprep.subr.bf16.mxu0 0
        %5485 = vmatpush1.bf16.xpose.msra.mxu0 0
        %5486 = vmatprep.subr.bf16.mxu0 0
        %5487 = vmatpush1.bf16.xpose.msra.mxu0 0
        %5488 = vmatprep.subr.bf16.mxu0 0
        %5489 = vmatpush1.bf16.xpose.msra.mxu0 0
        %5490 = vmatprep.subr.bf16.mxu0 0
        %5491 = vmatpush1.bf16.xpose.msra.mxu0 0
        %5492 = vmatprep.subr.bf16.mxu0 0
        %5493 = vmatpush1.bf16.xpose.msra.mxu0 0
        %5494 = vmatprep.subr.bf16.mxu0 0
        %5495 = vmatpush1.bf16.xpose.msra.mxu0 0
        %5496 = vmatprep.subr.bf16.mxu0 0
        %5497 = vmatpush1.bf16.xpose.msra.mxu0 0
        %5498 = vmatprep.mubr.bf16.mxu0 0
        %5499 = vmatmul.mubr.bf16.gmra.mrb[0].mxu0 %v5419
        %v5500 = vpop.f32.mrb[0].mxu0
        %v5501 = vadd.f32 0.0, %v5500
        %v5502 = vpop.f32.mrb[0].mxu0
        %v5503 = vpop.f32.mrb[0].mxu0
        %v5504 = vadd.f32 0.0, %v5503
        %v5505 = vpop.f32.mrb[0].mxu0
        %5506 = vmatprep.mubr.bf16.mxu0 0
        %5507 = vmatmul.mubr.bf16.gmra.mrb[0].mxu0 %v5422
        %v5508 = vpop.f32.mrb[0].mxu0
        %v5509 = vadd.f32 0.0, %v5508
        %v5510 = vpop.f32.mrb[0].mxu0
        %v5511 = vpop.f32.mrb[0].mxu0
        %v5512 = vadd.f32 0.0, %v5511
        %v5513 = vpop.f32.mrb[0].mxu0
        %5514 = vmatprep.mubr.bf16.mxu0 0
        %5515 = vmatmul.mubr.bf16.gmra.mrb[0].mxu0 %v5425
        %v5516 = vpop.f32.mrb[0].mxu0
        %v5517 = vadd.f32 0.0, %v5516
        %v5518 = vpop.f32.mrb[0].mxu0
        %v5519 = vpop.f32.mrb[0].mxu0
        %v5520 = vadd.f32 0.0, %v5519
        %v5521 = vpop.f32.mrb[0].mxu0
        %5522 = vmatprep.mubr.bf16.mxu0 0
        %5523 = vmatmul.mubr.bf16.gmra.mrb[0].mxu0 %v5428
        %v5524 = vpop.f32.mrb[0].mxu0
        %v5525 = vadd.f32 0.0, %v5524
        %v5526 = vpop.f32.mrb[0].mxu0
        %v5527 = vpop.f32.mrb[0].mxu0
        %v5528 = vadd.f32 0.0, %v5527
        %v5529 = vpop.f32.mrb[0].mxu0
        %5530 = vmatprep.mubr.bf16.mxu0 0
        %5531 = vmatmul.mubr.bf16.gmra.mrb[0].mxu0 %v5431
        %v5532 = vpop.f32.mrb[0].mxu0
        %v5533 = vadd.f32 0.0, %v5532
        %v5534 = vpop.f32.mrb[0].mxu0
        %v5535 = vpop.f32.mrb[0].mxu0
        %v5536 = vadd.f32 0.0, %v5535
        %v5537 = vpop.f32.mrb[0].mxu0
        %5538 = vmatprep.mubr.bf16.mxu0 0
        %5539 = vmatmul.mubr.bf16.gmra.mrb[0].mxu0 %v5434
        %v5540 = vpop.f32.mrb[0].mxu0
        %v5541 = vadd.f32 0.0, %v5540
        %v5542 = vpop.f32.mrb[0].mxu0
        %v5543 = vpop.f32.mrb[0].mxu0
        %v5544 = vadd.f32 0.0, %v5543
        %v5545 = vpop.f32.mrb[0].mxu0
        %5546 = vmatprep.mubr.bf16.mxu0 0
        %5547 = vmatmul.mubr.bf16.gmra.mrb[0].mxu0 %v5437
        %v5548 = vpop.f32.mrb[0].mxu0
        %v5549 = vadd.f32 0.0, %v5548
        %v5550 = vpop.f32.mrb[0].mxu0
        %v5551 = vpop.f32.mrb[0].mxu0
        %v5552 = vadd.f32 0.0, %v5551
        %v5553 = vpop.f32.mrb[0].mxu0
        %5554 = vmatprep.mubr.bf16.mxu0 0
        %5555 = vmatmul.mubr.bf16.gmra.mrb[0].mxu0 %v5440
        %v5556 = vpop.f32.mrb[0].mxu0
        %v5557 = vadd.f32 0.0, %v5556
        %v5558 = vpop.f32.mrb[0].mxu0
        %v5559 = vpop.f32.mrb[0].mxu0
        %v5560 = vadd.f32 0.0, %v5559
        %v5561 = vpop.f32.mrb[0].mxu0
        %5562 = vdwg.mxu0
        %v5563 = vsel %vm1311, %v5501, -1e+30
        %v5564 = vsel %vm1312, %v5504, -1e+30
        %v5565 = vsel %vm1313, %v5509, -1e+30
        %v5566 = vsel %vm1314, %v5512, -1e+30
        %v5567 = vsel %vm1315, %v5517, -1e+30
        %v5568 = vsel %vm1316, %v5520, -1e+30
        %v5569 = vsel %vm1317, %v5525, -1e+30
        %v5570 = vsel %vm1318, %v5528, -1e+30
        %v5571 = vsel %vm1319, %v5533, -1e+30
        %v5572 = vsel %vm1320, %v5536, -1e+30
        %v5573 = vsel %vm1321, %v5541, -1e+30
        %v5574 = vsel %vm1322, %v5544, -1e+30
        %v5575 = vsel %vm1323, %v5549, -1e+30
        %v5576 = vsel %vm1324, %v5552, -1e+30
        %v5577 = vsel %vm1325, %v5557, -1e+30
        %v5578 = vsel %vm1326, %v5560, -1e+30
        %5579 = vmax.xlane.f32.xlu0 %v5563
        %v5580 = vpop.xlane.xlu0 %5579
        %5581 = vmax.xlane.f32.xlu0 %v5564
        %v5582 = vpop.xlane.xlu0 %5581
        %5583 = vmax.xlane.f32.xlu0 %v5565
        %v5584 = vpop.xlane.xlu0 %5583
        %5585 = vmax.xlane.f32.xlu0 %v5566
        %v5586 = vpop.xlane.xlu0 %5585
        %5587 = vmax.xlane.f32.xlu0 %v5567
        %v5588 = vpop.xlane.xlu0 %5587
        %5589 = vmax.xlane.f32.xlu0 %v5568
        %v5590 = vpop.xlane.xlu0 %5589
        %5591 = vmax.xlane.f32.xlu0 %v5569
        %v5592 = vpop.xlane.xlu0 %5591
        %5593 = vmax.xlane.f32.xlu0 %v5570
        %v5594 = vpop.xlane.xlu0 %5593
        %5595 = vmax.xlane.f32.xlu0 %v5571
        %v5596 = vpop.xlane.xlu0 %5595
        %5597 = vmax.xlane.f32.xlu0 %v5572
        %v5598 = vpop.xlane.xlu0 %5597
        %5599 = vmax.xlane.f32.xlu0 %v5573
        %v5600 = vpop.xlane.xlu0 %5599
        %5601 = vmax.xlane.f32.xlu0 %v5574
        %v5602 = vpop.xlane.xlu0 %5601
        %5603 = vmax.xlane.f32.xlu0 %v5575
        %v5604 = vpop.xlane.xlu0 %5603
        %5605 = vmax.xlane.f32.xlu0 %v5576
        %v5606 = vpop.xlane.xlu0 %5605
        %5607 = vmax.xlane.f32.xlu0 %v5577
        %v5608 = vpop.xlane.xlu0 %5607
        %5609 = vmax.xlane.f32.xlu0 %v5578
        %v5610 = vpop.xlane.xlu0 %5609
        %v5611 = vsub.f32 %v5563, %v5580
        %v5612 = vsub.f32 %v5564, %v5582
        %v5613 = vsub.f32 %v5565, %v5584
        %v5614 = vsub.f32 %v5566, %v5586
        %v5615 = vsub.f32 %v5567, %v5588
        %v5616 = vsub.f32 %v5568, %v5590
        %v5617 = vsub.f32 %v5569, %v5592
        %v5618 = vsub.f32 %v5570, %v5594
        %v5619 = vsub.f32 %v5571, %v5596
        %v5620 = vsub.f32 %v5572, %v5598
        %v5621 = vsub.f32 %v5573, %v5600
        %v5622 = vsub.f32 %v5574, %v5602
        %v5623 = vsub.f32 %v5575, %v5604
        %v5624 = vsub.f32 %v5576, %v5606
        %v5625 = vsub.f32 %v5577, %v5608
        %v5626 = vsub.f32 %v5578, %v5610
        %v5627 = vmul.f32 %v5611, 1.442695
        %v5628 = vpow.pop %v5627
        %v5629 = vmul.f32 %v5612, 1.442695
        %v5630 = vpow.pop %v5629
        %v5631 = vmul.f32 %v5613, 1.442695
        %v5632 = vpow.pop %v5631
        %v5633 = vmul.f32 %v5614, 1.442695
        %v5634 = vpow.pop %v5633
        %v5635 = vmul.f32 %v5615, 1.442695
        %v5636 = vpow.pop %v5635
        %v5637 = vmul.f32 %v5616, 1.442695
        %v5638 = vpow.pop %v5637
        %v5639 = vmul.f32 %v5617, 1.442695
        %v5640 = vpow.pop %v5639
        %v5641 = vmul.f32 %v5618, 1.442695
        %v5642 = vpow.pop %v5641
        %v5643 = vmul.f32 %v5619, 1.442695
        %v5644 = vpow.pop %v5643
        %v5645 = vmul.f32 %v5620, 1.442695
        %v5646 = vpow.pop %v5645
        %v5647 = vmul.f32 %v5621, 1.442695
        %v5648 = vpow.pop %v5647
        %v5649 = vmul.f32 %v5622, 1.442695
        %v5650 = vpow.pop %v5649
        %v5651 = vmul.f32 %v5623, 1.442695
        %v5652 = vpow.pop %v5651
        %v5653 = vmul.f32 %v5624, 1.442695
        %v5654 = vpow.pop %v5653
        %v5655 = vmul.f32 %v5625, 1.442695
        %v5656 = vpow.pop %v5655
        %v5657 = vmul.f32 %v5626, 1.442695
        %v5658 = vpow.pop %v5657
        %5659 = vadd.xlane.f32.xlu0 %v5628
        %v5660 = vpop.xlane.xlu0 %5659
        %5661 = vadd.xlane.f32.xlu0 %v5630
        %v5662 = vpop.xlane.xlu0 %5661
        %5663 = vadd.xlane.f32.xlu0 %v5632
        %v5664 = vpop.xlane.xlu0 %5663
        %5665 = vadd.xlane.f32.xlu0 %v5634
        %v5666 = vpop.xlane.xlu0 %5665
        %5667 = vadd.xlane.f32.xlu0 %v5636
        %v5668 = vpop.xlane.xlu0 %5667
        %5669 = vadd.xlane.f32.xlu0 %v5638
        %v5670 = vpop.xlane.xlu0 %5669
        %5671 = vadd.xlane.f32.xlu0 %v5640
        %v5672 = vpop.xlane.xlu0 %5671
        %5673 = vadd.xlane.f32.xlu0 %v5642
        %v5674 = vpop.xlane.xlu0 %5673
        %5675 = vadd.xlane.f32.xlu0 %v5644
        %v5676 = vpop.xlane.xlu0 %5675
        %5677 = vadd.xlane.f32.xlu0 %v5646
        %v5678 = vpop.xlane.xlu0 %5677
        %5679 = vadd.xlane.f32.xlu0 %v5648
        %v5680 = vpop.xlane.xlu0 %5679
        %5681 = vadd.xlane.f32.xlu0 %v5650
        %v5682 = vpop.xlane.xlu0 %5681
        %5683 = vadd.xlane.f32.xlu0 %v5652
        %v5684 = vpop.xlane.xlu0 %5683
        %5685 = vadd.xlane.f32.xlu0 %v5654
        %v5686 = vpop.xlane.xlu0 %5685
        %5687 = vadd.xlane.f32.xlu0 %v5656
        %v5688 = vpop.xlane.xlu0 %5687
        %5689 = vadd.xlane.f32.xlu0 %v5658
        %v5690 = vpop.xlane.xlu0 %5689
        %v5691 = vrcp.pop %v5660
        %v5692 = vrcp.pop %v5662
        %v5693 = vrcp.pop %v5664
        %v5694 = vrcp.pop %v5666
        %v5695 = vrcp.pop %v5668
        %v5696 = vrcp.pop %v5670
        %v5697 = vrcp.pop %v5672
        %v5698 = vrcp.pop %v5674
        %v5699 = vrcp.pop %v5676
        %v5700 = vrcp.pop %v5678
        %v5701 = vrcp.pop %v5680
        %v5702 = vrcp.pop %v5682
        %v5703 = vrcp.pop %v5684
        %v5704 = vrcp.pop %v5686
        %v5705 = vrcp.pop %v5688
        %v5706 = vrcp.pop %v5690
        %v5707 = vmul.f32 %v5628, %v5691
        %v5708 = vmul.f32 %v5630, %v5692
        %v5709 = vmul.f32 %v5632, %v5693
        %v5710 = vmul.f32 %v5634, %v5694
        %v5711 = vmul.f32 %v5636, %v5695
        %v5712 = vmul.f32 %v5638, %v5696
        %v5713 = vmul.f32 %v5640, %v5697
        %v5714 = vmul.f32 %v5642, %v5698
        %v5715 = vmul.f32 %v5644, %v5699
        %v5716 = vmul.f32 %v5646, %v5700
        %v5717 = vmul.f32 %v5648, %v5701
        %v5718 = vmul.f32 %v5650, %v5702
        %v5719 = vmul.f32 %v5652, %v5703
        %v5720 = vmul.f32 %v5654, %v5704
        %v5721 = vmul.f32 %v5656, %v5705
        %v5722 = vmul.f32 %v5658, %v5706
        %v5723 = vpack.c.bf16 %v5708, %v5707
        %v5724 = vpack.c.bf16 %v5710, %v5709
        %v5725 = vpack.c.bf16 %v5712, %v5711
        %v5726 = vpack.c.bf16 %v5714, %v5713
        %v5727 = vpack.c.bf16 %v5716, %v5715
        %v5728 = vpack.c.bf16 %v5718, %v5717
        %v5729 = vpack.c.bf16 %v5720, %v5719
        %v5730 = vpack.c.bf16 %v5722, %v5721
        %v5731 = vsel %vm2131, %v5402, 0
        %v5732 = vsel %vm2131, %v5403, 0
        %v5733 = vsel %vm2131, %v5404, 0
        %v5734 = vsel %vm2131, %v5405, 0
        %v5735 = vsel %vm2131, %v5406, 0
        %v5736 = vsel %vm2131, %v5407, 0
        %v5737 = vsel %vm2131, %v5408, 0
        %v5738 = vsel %vm2131, %v5409, 0
        %v5739 = vsel %vm2469, %v5394, 0
        %v5740 = vsel %vm2469, %v5395, 0
        %v5741 = vsel %vm2469, %v5396, 0
        %v5742 = vsel %vm2469, %v5397, 0
        %v5743 = vsel %vm2469, %v5398, 0
        %v5744 = vsel %vm2469, %v5399, 0
        %v5745 = vsel %vm2469, %v5400, 0
        %v5746 = vsel %vm2469, %v5401, 0
        %v5748 = vsel %vm1723, %v5739, 0
        %v5751 = vsel %vm1723, %v5740, 0
        %v5754 = vsel %vm1723, %v5741, 0
        %v5757 = vsel %vm1723, %v5742, 0
        %v5760 = vsel %vm1723, %v5743, 0
        %v5763 = vsel %vm1723, %v5744, 0
        %v5766 = vsel %vm1723, %v5745, 0
        %v5769 = vsel %vm1723, %v5746, 0
        %5771 = vmatprep.subr.bf16.mxu0 0
        %5772 = vmatpush1.bf16.xpose.msra.mxu0 %v5748
        %5773 = vmatprep.subr.bf16.mxu0 0
        %5774 = vmatpush1.bf16.xpose.msra.mxu0 %v5751
        %5775 = vmatprep.subr.bf16.mxu0 0
        %5776 = vmatpush1.bf16.xpose.msra.mxu0 %v5754
        %5777 = vmatprep.subr.bf16.mxu0 0
        %5778 = vmatpush1.bf16.xpose.msra.mxu0 %v5757
        %5779 = vmatprep.subr.bf16.mxu0 0
        %5780 = vmatpush1.bf16.xpose.msra.mxu0 %v5760
        %5781 = vmatprep.subr.bf16.mxu0 0
        %5782 = vmatpush1.bf16.xpose.msra.mxu0 %v5763
        %5783 = vmatprep.subr.bf16.mxu0 0
        %5784 = vmatpush1.bf16.xpose.msra.mxu0 %v5766
        %5785 = vmatprep.subr.bf16.mxu0 0
        %5786 = vmatpush1.bf16.xpose.msra.mxu0 %v5769
        %5787 = vmatprep.subr.bf16.mxu0 0
        %5788 = vmatpush1.bf16.xpose.msra.mxu0 0
        %5789 = vmatprep.subr.bf16.mxu0 0
        %5790 = vmatpush1.bf16.xpose.msra.mxu0 0
        %5791 = vmatprep.subr.bf16.mxu0 0
        %5792 = vmatpush1.bf16.xpose.msra.mxu0 0
        %5793 = vmatprep.subr.bf16.mxu0 0
        %5794 = vmatpush1.bf16.xpose.msra.mxu0 0
        %5795 = vmatprep.subr.bf16.mxu0 0
        %5796 = vmatpush1.bf16.xpose.msra.mxu0 0
        %5797 = vmatprep.subr.bf16.mxu0 0
        %5798 = vmatpush1.bf16.xpose.msra.mxu0 0
        %5799 = vmatprep.subr.bf16.mxu0 0
        %5800 = vmatpush1.bf16.xpose.msra.mxu0 0
        %5801 = vmatprep.subr.bf16.mxu0 0
        %5802 = vmatpush1.bf16.xpose.msra.mxu0 0
        %5803 = vmatprep.mubr.bf16.mxu0 0
        %5804 = vmatmul.mubr.bf16.gmra.mrb[0].mxu0 %v5419
        %v5805 = vpop.f32.mrb[0].mxu0
        %v5806 = vadd.f32 0.0, %v5805
        %v5807 = vpop.f32.mrb[0].mxu0
        %v5808 = vpop.f32.mrb[0].mxu0
        %v5809 = vadd.f32 0.0, %v5808
        %v5810 = vpop.f32.mrb[0].mxu0
        %5811 = vmatprep.mubr.bf16.mxu0 0
        %5812 = vmatmul.mubr.bf16.gmra.mrb[0].mxu0 %v5422
        %v5813 = vpop.f32.mrb[0].mxu0
        %v5814 = vadd.f32 0.0, %v5813
        %v5815 = vpop.f32.mrb[0].mxu0
        %v5816 = vpop.f32.mrb[0].mxu0
        %v5817 = vadd.f32 0.0, %v5816
        %v5818 = vpop.f32.mrb[0].mxu0
        %5819 = vmatprep.mubr.bf16.mxu0 0
        %5820 = vmatmul.mubr.bf16.gmra.mrb[0].mxu0 %v5425
        %v5821 = vpop.f32.mrb[0].mxu0
        %v5822 = vadd.f32 0.0, %v5821
        %v5823 = vpop.f32.mrb[0].mxu0
        %v5824 = vpop.f32.mrb[0].mxu0
        %v5825 = vadd.f32 0.0, %v5824
        %v5826 = vpop.f32.mrb[0].mxu0
        %5827 = vmatprep.mubr.bf16.mxu0 0
        %5828 = vmatmul.mubr.bf16.gmra.mrb[0].mxu0 %v5428
        %v5829 = vpop.f32.mrb[0].mxu0
        %v5830 = vadd.f32 0.0, %v5829
        %v5831 = vpop.f32.mrb[0].mxu0
        %v5832 = vpop.f32.mrb[0].mxu0
        %v5833 = vadd.f32 0.0, %v5832
        %v5834 = vpop.f32.mrb[0].mxu0
        %5835 = vmatprep.mubr.bf16.mxu0 0
        %5836 = vmatmul.mubr.bf16.gmra.mrb[0].mxu0 %v5431
        %v5837 = vpop.f32.mrb[0].mxu0
        %v5838 = vadd.f32 0.0, %v5837
        %v5839 = vpop.f32.mrb[0].mxu0
        %v5840 = vpop.f32.mrb[0].mxu0
        %v5841 = vadd.f32 0.0, %v5840
        %v5842 = vpop.f32.mrb[0].mxu0
        %5843 = vmatprep.mubr.bf16.mxu0 0
        %5844 = vmatmul.mubr.bf16.gmra.mrb[0].mxu0 %v5434
        %v5845 = vpop.f32.mrb[0].mxu0
        %v5846 = vadd.f32 0.0, %v5845
        %v5847 = vpop.f32.mrb[0].mxu0
        %v5848 = vpop.f32.mrb[0].mxu0
        %v5849 = vadd.f32 0.0, %v5848
        %v5850 = vpop.f32.mrb[0].mxu0
        %5851 = vmatprep.mubr.bf16.mxu0 0
        %5852 = vmatmul.mubr.bf16.gmra.mrb[0].mxu0 %v5437
        %v5853 = vpop.f32.mrb[0].mxu0
        %v5854 = vadd.f32 0.0, %v5853
        %v5855 = vpop.f32.mrb[0].mxu0
        %v5856 = vpop.f32.mrb[0].mxu0
        %v5857 = vadd.f32 0.0, %v5856
        %v5858 = vpop.f32.mrb[0].mxu0
        %5859 = vmatprep.mubr.bf16.mxu0 0
        %5860 = vmatmul.mubr.bf16.gmra.mrb[0].mxu0 %v5440
        %v5861 = vpop.f32.mrb[0].mxu0
        %v5862 = vadd.f32 0.0, %v5861
        %v5863 = vpop.f32.mrb[0].mxu0
        %v5864 = vpop.f32.mrb[0].mxu0
        %v5865 = vadd.f32 0.0, %v5864
        %v5866 = vpop.f32.mrb[0].mxu0
        %5867 = vdwg.mxu0
        %v5868 = vsel %vm1311, %v5806, -1e+30
        %v5869 = vsel %vm1312, %v5809, -1e+30
        %v5870 = vsel %vm1313, %v5814, -1e+30
        %v5871 = vsel %vm1314, %v5817, -1e+30
        %v5872 = vsel %vm1315, %v5822, -1e+30
        %v5873 = vsel %vm1316, %v5825, -1e+30
        %v5874 = vsel %vm1317, %v5830, -1e+30
        %v5875 = vsel %vm1318, %v5833, -1e+30
        %v5876 = vsel %vm1319, %v5838, -1e+30
        %v5877 = vsel %vm1320, %v5841, -1e+30
        %v5878 = vsel %vm1321, %v5846, -1e+30
        %v5879 = vsel %vm1322, %v5849, -1e+30
        %v5880 = vsel %vm1323, %v5854, -1e+30
        %v5881 = vsel %vm1324, %v5857, -1e+30
        %v5882 = vsel %vm1325, %v5862, -1e+30
        %v5883 = vsel %vm1326, %v5865, -1e+30
        %5884 = vmax.xlane.f32.xlu0 %v5868
        %v5885 = vpop.xlane.xlu0 %5884
        %5886 = vmax.xlane.f32.xlu0 %v5869
        %v5887 = vpop.xlane.xlu0 %5886
        %5888 = vmax.xlane.f32.xlu0 %v5870
        %v5889 = vpop.xlane.xlu0 %5888
        %5890 = vmax.xlane.f32.xlu0 %v5871
        %v5891 = vpop.xlane.xlu0 %5890
        %5892 = vmax.xlane.f32.xlu0 %v5872
        %v5893 = vpop.xlane.xlu0 %5892
        %5894 = vmax.xlane.f32.xlu0 %v5873
        %v5895 = vpop.xlane.xlu0 %5894
        %5896 = vmax.xlane.f32.xlu0 %v5874
        %v5897 = vpop.xlane.xlu0 %5896
        %5898 = vmax.xlane.f32.xlu0 %v5875
        %v5899 = vpop.xlane.xlu0 %5898
        %5900 = vmax.xlane.f32.xlu0 %v5876
        %v5901 = vpop.xlane.xlu0 %5900
        %5902 = vmax.xlane.f32.xlu0 %v5877
        %v5903 = vpop.xlane.xlu0 %5902
        %5904 = vmax.xlane.f32.xlu0 %v5878
        %v5905 = vpop.xlane.xlu0 %5904
        %5906 = vmax.xlane.f32.xlu0 %v5879
        %v5907 = vpop.xlane.xlu0 %5906
        %5908 = vmax.xlane.f32.xlu0 %v5880
        %v5909 = vpop.xlane.xlu0 %5908
        %5910 = vmax.xlane.f32.xlu0 %v5881
        %v5911 = vpop.xlane.xlu0 %5910
        %5912 = vmax.xlane.f32.xlu0 %v5882
        %v5913 = vpop.xlane.xlu0 %5912
        %5914 = vmax.xlane.f32.xlu0 %v5883
        %v5915 = vpop.xlane.xlu0 %5914
        %v5916 = vsub.f32 %v5868, %v5885
        %v5917 = vsub.f32 %v5869, %v5887
        %v5918 = vsub.f32 %v5870, %v5889
        %v5919 = vsub.f32 %v5871, %v5891
        %v5920 = vsub.f32 %v5872, %v5893
        %v5921 = vsub.f32 %v5873, %v5895
        %v5922 = vsub.f32 %v5874, %v5897
        %v5923 = vsub.f32 %v5875, %v5899
        %v5924 = vsub.f32 %v5876, %v5901
        %v5925 = vsub.f32 %v5877, %v5903
        %v5926 = vsub.f32 %v5878, %v5905
        %v5927 = vsub.f32 %v5879, %v5907
        %v5928 = vsub.f32 %v5880, %v5909
        %v5929 = vsub.f32 %v5881, %v5911
        %v5930 = vsub.f32 %v5882, %v5913
        %v5931 = vsub.f32 %v5883, %v5915
        %v5932 = vmul.f32 %v5916, 1.442695
        %v5933 = vpow.pop %v5932
        %v5934 = vmul.f32 %v5917, 1.442695
        %v5935 = vpow.pop %v5934
        %v5936 = vmul.f32 %v5918, 1.442695
        %v5937 = vpow.pop %v5936
        %v5938 = vmul.f32 %v5919, 1.442695
        %v5939 = vpow.pop %v5938
        %v5940 = vmul.f32 %v5920, 1.442695
        %v5941 = vpow.pop %v5940
        %v5942 = vmul.f32 %v5921, 1.442695
        %v5943 = vpow.pop %v5942
        %v5944 = vmul.f32 %v5922, 1.442695
        %v5945 = vpow.pop %v5944
        %v5946 = vmul.f32 %v5923, 1.442695
        %v5947 = vpow.pop %v5946
        %v5948 = vmul.f32 %v5924, 1.442695
        %v5949 = vpow.pop %v5948
        %v5950 = vmul.f32 %v5925, 1.442695
        %v5951 = vpow.pop %v5950
        %v5952 = vmul.f32 %v5926, 1.442695
        %v5953 = vpow.pop %v5952
        %v5954 = vmul.f32 %v5927, 1.442695
        %v5955 = vpow.pop %v5954
        %v5956 = vmul.f32 %v5928, 1.442695
        %v5957 = vpow.pop %v5956
        %v5958 = vmul.f32 %v5929, 1.442695
        %v5959 = vpow.pop %v5958
        %v5960 = vmul.f32 %v5930, 1.442695
        %v5961 = vpow.pop %v5960
        %v5962 = vmul.f32 %v5931, 1.442695
        %v5963 = vpow.pop %v5962
        %5964 = vadd.xlane.f32.xlu0 %v5933
        %v5965 = vpop.xlane.xlu0 %5964
        %5966 = vadd.xlane.f32.xlu0 %v5935
        %v5967 = vpop.xlane.xlu0 %5966
        %5968 = vadd.xlane.f32.xlu0 %v5937
        %v5969 = vpop.xlane.xlu0 %5968
        %5970 = vadd.xlane.f32.xlu0 %v5939
        %v5971 = vpop.xlane.xlu0 %5970
        %5972 = vadd.xlane.f32.xlu0 %v5941
        %v5973 = vpop.xlane.xlu0 %5972
        %5974 = vadd.xlane.f32.xlu0 %v5943
        %v5975 = vpop.xlane.xlu0 %5974
        %5976 = vadd.xlane.f32.xlu0 %v5945
        %v5977 = vpop.xlane.xlu0 %5976
        %5978 = vadd.xlane.f32.xlu0 %v5947
        %v5979 = vpop.xlane.xlu0 %5978
        %5980 = vadd.xlane.f32.xlu0 %v5949
        %v5981 = vpop.xlane.xlu0 %5980
        %5982 = vadd.xlane.f32.xlu0 %v5951
        %v5983 = vpop.xlane.xlu0 %5982
        %5984 = vadd.xlane.f32.xlu0 %v5953
        %v5985 = vpop.xlane.xlu0 %5984
        %5986 = vadd.xlane.f32.xlu0 %v5955
        %v5987 = vpop.xlane.xlu0 %5986
        %5988 = vadd.xlane.f32.xlu0 %v5957
        %v5989 = vpop.xlane.xlu0 %5988
        %5990 = vadd.xlane.f32.xlu0 %v5959
        %v5991 = vpop.xlane.xlu0 %5990
        %5992 = vadd.xlane.f32.xlu0 %v5961
        %v5993 = vpop.xlane.xlu0 %5992
        %5994 = vadd.xlane.f32.xlu0 %v5963
        %v5995 = vpop.xlane.xlu0 %5994
        %v5996 = vrcp.pop %v5965
        %v5997 = vrcp.pop %v5967
        %v5998 = vrcp.pop %v5969
        %v5999 = vrcp.pop %v5971
        %v6000 = vrcp.pop %v5973
        %v6001 = vrcp.pop %v5975
        %v6002 = vrcp.pop %v5977
        %v6003 = vrcp.pop %v5979
        %v6004 = vrcp.pop %v5981
        %v6005 = vrcp.pop %v5983
        %v6006 = vrcp.pop %v5985
        %v6007 = vrcp.pop %v5987
        %v6008 = vrcp.pop %v5989
        %v6009 = vrcp.pop %v5991
        %v6010 = vrcp.pop %v5993
        %v6011 = vrcp.pop %v5995
        %v6012 = vmul.f32 %v5933, %v5996
        %v6013 = vmul.f32 %v5935, %v5997
        %v6014 = vmul.f32 %v5937, %v5998
        %v6015 = vmul.f32 %v5939, %v5999
        %v6016 = vmul.f32 %v5941, %v6000
        %v6017 = vmul.f32 %v5943, %v6001
        %v6018 = vmul.f32 %v5945, %v6002
        %v6019 = vmul.f32 %v5947, %v6003
        %v6020 = vmul.f32 %v5949, %v6004
        %v6021 = vmul.f32 %v5951, %v6005
        %v6022 = vmul.f32 %v5953, %v6006
        %v6023 = vmul.f32 %v5955, %v6007
        %v6024 = vmul.f32 %v5957, %v6008
        %v6025 = vmul.f32 %v5959, %v6009
        %v6026 = vmul.f32 %v5961, %v6010
        %v6027 = vmul.f32 %v5963, %v6011
        %v6028 = vpack.c.bf16 %v6013, %v6012
        %v6029 = vpack.c.bf16 %v6015, %v6014
        %v6030 = vpack.c.bf16 %v6017, %v6016
        %v6031 = vpack.c.bf16 %v6019, %v6018
        %v6032 = vpack.c.bf16 %v6021, %v6020
        %v6033 = vpack.c.bf16 %v6023, %v6022
        %v6034 = vpack.c.bf16 %v6025, %v6024
        %v6035 = vpack.c.bf16 %v6027, %v6026
        %v6036 = vsel %vm2469, %v5402, 0
        %v6037 = vsel %vm2469, %v5403, 0
        %v6038 = vsel %vm2469, %v5404, 0
        %v6039 = vsel %vm2469, %v5405, 0
        %v6040 = vsel %vm2469, %v5406, 0
        %v6041 = vsel %vm2469, %v5407, 0
        %v6042 = vsel %vm2469, %v5408, 0
        %v6043 = vsel %vm2469, %v5409, 0
        %6044 = vmatprep.subr.bf16.mxu0 0
        %6045 = vmatpush1.bf16.msra.mxu0 %v6036
        %6046 = vmatprep.subr.bf16.mxu0 0
        %6047 = vmatpush1.bf16.msra.mxu0 %v6037
        %6048 = vmatprep.subr.bf16.mxu0 0
        %6049 = vmatpush1.bf16.msra.mxu0 %v6038
        %6050 = vmatprep.subr.bf16.mxu0 0
        %6051 = vmatpush1.bf16.msra.mxu0 %v6039
        %6052 = vmatprep.subr.bf16.mxu0 0
        %6053 = vmatpush1.bf16.msra.mxu0 %v6040
        %6054 = vmatprep.subr.bf16.mxu0 0
        %6055 = vmatpush1.bf16.msra.mxu0 %v6041
        %6056 = vmatprep.subr.bf16.mxu0 0
        %6057 = vmatpush1.bf16.msra.mxu0 %v6042
        %6058 = vmatprep.subr.bf16.mxu0 0
        %6059 = vmatpush1.bf16.msra.mxu0 %v6043
        %6060 = vmatprep.subr.bf16.mxu0 0
        %6061 = vmatpush1.bf16.msra.mxu0 0
        %6062 = vmatprep.subr.bf16.mxu0 0
        %6063 = vmatpush1.bf16.msra.mxu0 0
        %6064 = vmatprep.subr.bf16.mxu0 0
        %6065 = vmatpush1.bf16.msra.mxu0 0
        %6066 = vmatprep.subr.bf16.mxu0 0
        %6067 = vmatpush1.bf16.msra.mxu0 0
        %6068 = vmatprep.subr.bf16.mxu0 0
        %6069 = vmatpush1.bf16.msra.mxu0 0
        %6070 = vmatprep.subr.bf16.mxu0 0
        %6071 = vmatpush1.bf16.msra.mxu0 0
        %6072 = vmatprep.subr.bf16.mxu0 0
        %6073 = vmatpush1.bf16.msra.mxu0 0
        %6074 = vmatprep.subr.bf16.mxu0 0
        %6075 = vmatpush1.bf16.msra.mxu0 0
        %6076 = vmatprep.mubr.bf16.mxu0 0
        %6077 = vmatmul.mubr.bf16.gmra.mrb[0].mxu0 %v6028
        %v6078 = vpop.f32.mrb[0].mxu0
        %v6079 = vadd.f32 0.0, %v6078
        %v6080 = vpop.f32.mrb[0].mxu0
        %v6081 = vpop.f32.mrb[0].mxu0
        %v6082 = vadd.f32 0.0, %v6081
        %v6083 = vpop.f32.mrb[0].mxu0
        %6084 = vmatprep.mubr.bf16.mxu0 0
        %6085 = vmatmul.mubr.bf16.gmra.mrb[0].mxu0 %v6029
        %v6086 = vpop.f32.mrb[0].mxu0
        %v6087 = vadd.f32 0.0, %v6086
        %v6088 = vpop.f32.mrb[0].mxu0
        %v6089 = vpop.f32.mrb[0].mxu0
        %v6090 = vadd.f32 0.0, %v6089
        %v6091 = vpop.f32.mrb[0].mxu0
        %6092 = vmatprep.mubr.bf16.mxu0 0
        %6093 = vmatmul.mubr.bf16.gmra.mrb[0].mxu0 %v6030
        %v6094 = vpop.f32.mrb[0].mxu0
        %v6095 = vadd.f32 0.0, %v6094
        %v6096 = vpop.f32.mrb[0].mxu0
        %v6097 = vpop.f32.mrb[0].mxu0
        %v6098 = vadd.f32 0.0, %v6097
        %v6099 = vpop.f32.mrb[0].mxu0
        %6100 = vmatprep.mubr.bf16.mxu0 0
        %6101 = vmatmul.mubr.bf16.gmra.mrb[0].mxu0 %v6031
        %v6102 = vpop.f32.mrb[0].mxu0
        %v6103 = vadd.f32 0.0, %v6102
        %v6104 = vpop.f32.mrb[0].mxu0
        %v6105 = vpop.f32.mrb[0].mxu0
        %v6106 = vadd.f32 0.0, %v6105
        %v6107 = vpop.f32.mrb[0].mxu0
        %6108 = vmatprep.mubr.bf16.mxu0 0
        %6109 = vmatmul.mubr.bf16.gmra.mrb[0].mxu0 %v6032
        %v6110 = vpop.f32.mrb[0].mxu0
        %v6111 = vadd.f32 0.0, %v6110
        %v6112 = vpop.f32.mrb[0].mxu0
        %v6113 = vpop.f32.mrb[0].mxu0
        %v6114 = vadd.f32 0.0, %v6113
        %v6115 = vpop.f32.mrb[0].mxu0
        %6116 = vmatprep.mubr.bf16.mxu0 0
        %6117 = vmatmul.mubr.bf16.gmra.mrb[0].mxu0 %v6033
        %v6118 = vpop.f32.mrb[0].mxu0
        %v6119 = vadd.f32 0.0, %v6118
        %v6120 = vpop.f32.mrb[0].mxu0
        %v6121 = vpop.f32.mrb[0].mxu0
        %v6122 = vadd.f32 0.0, %v6121
        %v6123 = vpop.f32.mrb[0].mxu0
        %6124 = vmatprep.mubr.bf16.mxu0 0
        %6125 = vmatmul.mubr.bf16.gmra.mrb[0].mxu0 %v6034
        %v6126 = vpop.f32.mrb[0].mxu0
        %v6127 = vadd.f32 0.0, %v6126
        %v6128 = vpop.f32.mrb[0].mxu0
        %v6129 = vpop.f32.mrb[0].mxu0
        %v6130 = vadd.f32 0.0, %v6129
        %v6131 = vpop.f32.mrb[0].mxu0
        %6132 = vmatprep.mubr.bf16.mxu0 0
        %6133 = vmatmul.mubr.bf16.gmra.mrb[0].mxu0 %v6035
        %v6134 = vpop.f32.mrb[0].mxu0
        %v6135 = vadd.f32 0.0, %v6134
        %v6136 = vpop.f32.mrb[0].mxu0
        %v6137 = vpop.f32.mrb[0].mxu0
        %v6138 = vadd.f32 0.0, %v6137
        %v6139 = vpop.f32.mrb[0].mxu0
        %6140 = vdwg.mxu0
        %6141 = vmatprep.subr.bf16.mxu0 0
        %6142 = vmatpush1.bf16.msra.mxu0 %v5731
        %6143 = vmatprep.subr.bf16.mxu0 0
        %6144 = vmatpush1.bf16.msra.mxu0 %v5732
        %6145 = vmatprep.subr.bf16.mxu0 0
        %6146 = vmatpush1.bf16.msra.mxu0 %v5733
        %6147 = vmatprep.subr.bf16.mxu0 0
        %6148 = vmatpush1.bf16.msra.mxu0 %v5734
        %6149 = vmatprep.subr.bf16.mxu0 0
        %6150 = vmatpush1.bf16.msra.mxu0 %v5735
        %6151 = vmatprep.subr.bf16.mxu0 0
        %6152 = vmatpush1.bf16.msra.mxu0 %v5736
        %6153 = vmatprep.subr.bf16.mxu0 0
        %6154 = vmatpush1.bf16.msra.mxu0 %v5737
        %6155 = vmatprep.subr.bf16.mxu0 0
        %6156 = vmatpush1.bf16.msra.mxu0 %v5738
        %6157 = vmatprep.subr.bf16.mxu0 0
        %6158 = vmatpush1.bf16.msra.mxu0 0
        %6159 = vmatprep.subr.bf16.mxu0 0
        %6160 = vmatpush1.bf16.msra.mxu0 0
        %6161 = vmatprep.subr.bf16.mxu0 0
        %6162 = vmatpush1.bf16.msra.mxu0 0
        %6163 = vmatprep.subr.bf16.mxu0 0
        %6164 = vmatpush1.bf16.msra.mxu0 0
        %6165 = vmatprep.subr.bf16.mxu0 0
        %6166 = vmatpush1.bf16.msra.mxu0 0
        %6167 = vmatprep.subr.bf16.mxu0 0
        %6168 = vmatpush1.bf16.msra.mxu0 0
        %6169 = vmatprep.subr.bf16.mxu0 0
        %6170 = vmatpush1.bf16.msra.mxu0 0
        %6171 = vmatprep.subr.bf16.mxu0 0
        %6172 = vmatpush1.bf16.msra.mxu0 0
        %6173 = vmatprep.mubr.bf16.mxu0 0
        %6174 = vmatmul.mubr.bf16.gmra.mrb[0].mxu0 %v5723
        %v6175 = vpop.f32.mrb[0].mxu0
        %v6176 = vadd.f32 %v6079, %v6175
        %v6177 = vpop.f32.mrb[0].mxu0
        %v6178 = vpop.f32.mrb[0].mxu0
        %v6179 = vadd.f32 %v6082, %v6178
        %v6180 = vpop.f32.mrb[0].mxu0
        %6181 = vmatprep.mubr.bf16.mxu0 0
        %6182 = vmatmul.mubr.bf16.gmra.mrb[0].mxu0 %v5724
        %v6183 = vpop.f32.mrb[0].mxu0
        %v6184 = vadd.f32 %v6087, %v6183
        %v6185 = vpop.f32.mrb[0].mxu0
        %v6186 = vpop.f32.mrb[0].mxu0
        %v6187 = vadd.f32 %v6090, %v6186
        %v6188 = vpop.f32.mrb[0].mxu0
        %6189 = vmatprep.mubr.bf16.mxu0 0
        %6190 = vmatmul.mubr.bf16.gmra.mrb[0].mxu0 %v5725
        %v6191 = vpop.f32.mrb[0].mxu0
        %v6192 = vadd.f32 %v6095, %v6191
        %v6193 = vpop.f32.mrb[0].mxu0
        %v6194 = vpop.f32.mrb[0].mxu0
        %v6195 = vadd.f32 %v6098, %v6194
        %v6196 = vpop.f32.mrb[0].mxu0
        %6197 = vmatprep.mubr.bf16.mxu0 0
        %6198 = vmatmul.mubr.bf16.gmra.mrb[0].mxu0 %v5726
        %v6199 = vpop.f32.mrb[0].mxu0
        %v6200 = vadd.f32 %v6103, %v6199
        %v6201 = vpop.f32.mrb[0].mxu0
        %v6202 = vpop.f32.mrb[0].mxu0
        %v6203 = vadd.f32 %v6106, %v6202
        %v6204 = vpop.f32.mrb[0].mxu0
        %6205 = vmatprep.mubr.bf16.mxu0 0
        %6206 = vmatmul.mubr.bf16.gmra.mrb[0].mxu0 %v5727
        %v6207 = vpop.f32.mrb[0].mxu0
        %v6208 = vadd.f32 %v6111, %v6207
        %v6209 = vpop.f32.mrb[0].mxu0
        %v6210 = vpop.f32.mrb[0].mxu0
        %v6211 = vadd.f32 %v6114, %v6210
        %v6212 = vpop.f32.mrb[0].mxu0
        %6213 = vmatprep.mubr.bf16.mxu0 0
        %6214 = vmatmul.mubr.bf16.gmra.mrb[0].mxu0 %v5728
        %v6215 = vpop.f32.mrb[0].mxu0
        %v6216 = vadd.f32 %v6119, %v6215
        %v6217 = vpop.f32.mrb[0].mxu0
        %v6218 = vpop.f32.mrb[0].mxu0
        %v6219 = vadd.f32 %v6122, %v6218
        %v6220 = vpop.f32.mrb[0].mxu0
        %6221 = vmatprep.mubr.bf16.mxu0 0
        %6222 = vmatmul.mubr.bf16.gmra.mrb[0].mxu0 %v5729
        %v6223 = vpop.f32.mrb[0].mxu0
        %v6224 = vadd.f32 %v6127, %v6223
        %v6225 = vpop.f32.mrb[0].mxu0
        %v6226 = vpop.f32.mrb[0].mxu0
        %v6227 = vadd.f32 %v6130, %v6226
        %v6228 = vpop.f32.mrb[0].mxu0
        %6229 = vmatprep.mubr.bf16.mxu0 0
        %6230 = vmatmul.mubr.bf16.gmra.mrb[0].mxu0 %v5730
        %v6231 = vpop.f32.mrb[0].mxu0
        %v6232 = vadd.f32 %v6135, %v6231
        %v6233 = vpop.f32.mrb[0].mxu0
        %v6234 = vpop.f32.mrb[0].mxu0
        %v6235 = vadd.f32 %v6138, %v6234
        %v6236 = vpop.f32.mrb[0].mxu0
        %6237 = vdwg.mxu0
        %v6238 = vsel %vm2977, %v5394, 0
        %v6239 = vsel %vm2977, %v5395, 0
        %v6240 = vsel %vm2977, %v5396, 0
        %v6241 = vsel %vm2977, %v5397, 0
        %v6242 = vsel %vm2977, %v5398, 0
        %v6243 = vsel %vm2977, %v5399, 0
        %v6244 = vsel %vm2977, %v5400, 0
        %v6245 = vsel %vm2977, %v5401, 0
        %v6247 = vsel %vm1723, %v6238, 0
        %v6250 = vsel %vm1723, %v6239, 0
        %v6253 = vsel %vm1723, %v6240, 0
        %v6256 = vsel %vm1723, %v6241, 0
        %v6259 = vsel %vm1723, %v6242, 0
        %v6262 = vsel %vm1723, %v6243, 0
        %v6265 = vsel %vm1723, %v6244, 0
        %v6268 = vsel %vm1723, %v6245, 0
        %6270 = vmatprep.subr.bf16.mxu0 0
        %6271 = vmatpush1.bf16.xpose.msra.mxu0 %v6247
        %6272 = vmatprep.subr.bf16.mxu0 0
        %6273 = vmatpush1.bf16.xpose.msra.mxu0 %v6250
        %6274 = vmatprep.subr.bf16.mxu0 0
        %6275 = vmatpush1.bf16.xpose.msra.mxu0 %v6253
        %6276 = vmatprep.subr.bf16.mxu0 0
        %6277 = vmatpush1.bf16.xpose.msra.mxu0 %v6256
        %6278 = vmatprep.subr.bf16.mxu0 0
        %6279 = vmatpush1.bf16.xpose.msra.mxu0 %v6259
        %6280 = vmatprep.subr.bf16.mxu0 0
        %6281 = vmatpush1.bf16.xpose.msra.mxu0 %v6262
        %6282 = vmatprep.subr.bf16.mxu0 0
        %6283 = vmatpush1.bf16.xpose.msra.mxu0 %v6265
        %6284 = vmatprep.subr.bf16.mxu0 0
        %6285 = vmatpush1.bf16.xpose.msra.mxu0 %v6268
        %6286 = vmatprep.subr.bf16.mxu0 0
        %6287 = vmatpush1.bf16.xpose.msra.mxu0 0
        %6288 = vmatprep.subr.bf16.mxu0 0
        %6289 = vmatpush1.bf16.xpose.msra.mxu0 0
        %6290 = vmatprep.subr.bf16.mxu0 0
        %6291 = vmatpush1.bf16.xpose.msra.mxu0 0
        %6292 = vmatprep.subr.bf16.mxu0 0
        %6293 = vmatpush1.bf16.xpose.msra.mxu0 0
        %6294 = vmatprep.subr.bf16.mxu0 0
        %6295 = vmatpush1.bf16.xpose.msra.mxu0 0
        %6296 = vmatprep.subr.bf16.mxu0 0
        %6297 = vmatpush1.bf16.xpose.msra.mxu0 0
        %6298 = vmatprep.subr.bf16.mxu0 0
        %6299 = vmatpush1.bf16.xpose.msra.mxu0 0
        %6300 = vmatprep.subr.bf16.mxu0 0
        %6301 = vmatpush1.bf16.xpose.msra.mxu0 0
        %6302 = vmatprep.mubr.bf16.mxu0 0
        %6303 = vmatmul.mubr.bf16.gmra.mrb[0].mxu0 %v5419
        %v6304 = vpop.f32.mrb[0].mxu0
        %v6305 = vadd.f32 0.0, %v6304
        %v6306 = vpop.f32.mrb[0].mxu0
        %v6307 = vpop.f32.mrb[0].mxu0
        %v6308 = vadd.f32 0.0, %v6307
        %v6309 = vpop.f32.mrb[0].mxu0
        %6310 = vmatprep.mubr.bf16.mxu0 0
        %6311 = vmatmul.mubr.bf16.gmra.mrb[0].mxu0 %v5422
        %v6312 = vpop.f32.mrb[0].mxu0
        %v6313 = vadd.f32 0.0, %v6312
        %v6314 = vpop.f32.mrb[0].mxu0
        %v6315 = vpop.f32.mrb[0].mxu0
        %v6316 = vadd.f32 0.0, %v6315
        %v6317 = vpop.f32.mrb[0].mxu0
        %6318 = vmatprep.mubr.bf16.mxu0 0
        %6319 = vmatmul.mubr.bf16.gmra.mrb[0].mxu0 %v5425
        %v6320 = vpop.f32.mrb[0].mxu0
        %v6321 = vadd.f32 0.0, %v6320
        %v6322 = vpop.f32.mrb[0].mxu0
        %v6323 = vpop.f32.mrb[0].mxu0
        %v6324 = vadd.f32 0.0, %v6323
        %v6325 = vpop.f32.mrb[0].mxu0
        %6326 = vmatprep.mubr.bf16.mxu0 0
        %6327 = vmatmul.mubr.bf16.gmra.mrb[0].mxu0 %v5428
        %v6328 = vpop.f32.mrb[0].mxu0
        %v6329 = vadd.f32 0.0, %v6328
        %v6330 = vpop.f32.mrb[0].mxu0
        %v6331 = vpop.f32.mrb[0].mxu0
        %v6332 = vadd.f32 0.0, %v6331
        %v6333 = vpop.f32.mrb[0].mxu0
        %6334 = vmatprep.mubr.bf16.mxu0 0
        %6335 = vmatmul.mubr.bf16.gmra.mrb[0].mxu0 %v5431
        %v6336 = vpop.f32.mrb[0].mxu0
        %v6337 = vadd.f32 0.0, %v6336
        %v6338 = vpop.f32.mrb[0].mxu0
        %v6339 = vpop.f32.mrb[0].mxu0
        %v6340 = vadd.f32 0.0, %v6339
        %v6341 = vpop.f32.mrb[0].mxu0
        %6342 = vmatprep.mubr.bf16.mxu0 0
        %6343 = vmatmul.mubr.bf16.gmra.mrb[0].mxu0 %v5434
        %v6344 = vpop.f32.mrb[0].mxu0
        %v6345 = vadd.f32 0.0, %v6344
        %v6346 = vpop.f32.mrb[0].mxu0
        %v6347 = vpop.f32.mrb[0].mxu0
        %v6348 = vadd.f32 0.0, %v6347
        %v6349 = vpop.f32.mrb[0].mxu0
        %6350 = vmatprep.mubr.bf16.mxu0 0
        %6351 = vmatmul.mubr.bf16.gmra.mrb[0].mxu0 %v5437
        %v6352 = vpop.f32.mrb[0].mxu0
        %v6353 = vadd.f32 0.0, %v6352
        %v6354 = vpop.f32.mrb[0].mxu0
        %v6355 = vpop.f32.mrb[0].mxu0
        %v6356 = vadd.f32 0.0, %v6355
        %v6357 = vpop.f32.mrb[0].mxu0
        %6358 = vmatprep.mubr.bf16.mxu0 0
        %6359 = vmatmul.mubr.bf16.gmra.mrb[0].mxu0 %v5440
        %v6360 = vpop.f32.mrb[0].mxu0
        %v6361 = vadd.f32 0.0, %v6360
        %v6362 = vpop.f32.mrb[0].mxu0
        %v6363 = vpop.f32.mrb[0].mxu0
        %v6364 = vadd.f32 0.0, %v6363
        %v6365 = vpop.f32.mrb[0].mxu0
        %6366 = vdwg.mxu0
        %v6367 = vsel %vm1311, %v6305, -1e+30
        %v6368 = vsel %vm1312, %v6308, -1e+30
        %v6369 = vsel %vm1313, %v6313, -1e+30
        %v6370 = vsel %vm1314, %v6316, -1e+30
        %v6371 = vsel %vm1315, %v6321, -1e+30
        %v6372 = vsel %vm1316, %v6324, -1e+30
        %v6373 = vsel %vm1317, %v6329, -1e+30
        %v6374 = vsel %vm1318, %v6332, -1e+30
        %v6375 = vsel %vm1319, %v6337, -1e+30
        %v6376 = vsel %vm1320, %v6340, -1e+30
        %v6377 = vsel %vm1321, %v6345, -1e+30
        %v6378 = vsel %vm1322, %v6348, -1e+30
        %v6379 = vsel %vm1323, %v6353, -1e+30
        %v6380 = vsel %vm1324, %v6356, -1e+30
        %v6381 = vsel %vm1325, %v6361, -1e+30
        %v6382 = vsel %vm1326, %v6364, -1e+30
        %6383 = vmax.xlane.f32.xlu0 %v6367
        %v6384 = vpop.xlane.xlu0 %6383
        %6385 = vmax.xlane.f32.xlu0 %v6368
        %v6386 = vpop.xlane.xlu0 %6385
        %6387 = vmax.xlane.f32.xlu0 %v6369
        %v6388 = vpop.xlane.xlu0 %6387
        %6389 = vmax.xlane.f32.xlu0 %v6370
        %v6390 = vpop.xlane.xlu0 %6389
        %6391 = vmax.xlane.f32.xlu0 %v6371
        %v6392 = vpop.xlane.xlu0 %6391
        %6393 = vmax.xlane.f32.xlu0 %v6372
        %v6394 = vpop.xlane.xlu0 %6393
        %6395 = vmax.xlane.f32.xlu0 %v6373
        %v6396 = vpop.xlane.xlu0 %6395
        %6397 = vmax.xlane.f32.xlu0 %v6374
        %v6398 = vpop.xlane.xlu0 %6397
        %6399 = vmax.xlane.f32.xlu0 %v6375
        %v6400 = vpop.xlane.xlu0 %6399
        %6401 = vmax.xlane.f32.xlu0 %v6376
        %v6402 = vpop.xlane.xlu0 %6401
        %6403 = vmax.xlane.f32.xlu0 %v6377
        %v6404 = vpop.xlane.xlu0 %6403
        %6405 = vmax.xlane.f32.xlu0 %v6378
        %v6406 = vpop.xlane.xlu0 %6405
        %6407 = vmax.xlane.f32.xlu0 %v6379
        %v6408 = vpop.xlane.xlu0 %6407
        %6409 = vmax.xlane.f32.xlu0 %v6380
        %v6410 = vpop.xlane.xlu0 %6409
        %6411 = vmax.xlane.f32.xlu0 %v6381
        %v6412 = vpop.xlane.xlu0 %6411
        %6413 = vmax.xlane.f32.xlu0 %v6382
        %v6414 = vpop.xlane.xlu0 %6413
        %v6415 = vsub.f32 %v6367, %v6384
        %v6416 = vsub.f32 %v6368, %v6386
        %v6417 = vsub.f32 %v6369, %v6388
        %v6418 = vsub.f32 %v6370, %v6390
        %v6419 = vsub.f32 %v6371, %v6392
        %v6420 = vsub.f32 %v6372, %v6394
        %v6421 = vsub.f32 %v6373, %v6396
        %v6422 = vsub.f32 %v6374, %v6398
        %v6423 = vsub.f32 %v6375, %v6400
        %v6424 = vsub.f32 %v6376, %v6402
        %v6425 = vsub.f32 %v6377, %v6404
        %v6426 = vsub.f32 %v6378, %v6406
        %v6427 = vsub.f32 %v6379, %v6408
        %v6428 = vsub.f32 %v6380, %v6410
        %v6429 = vsub.f32 %v6381, %v6412
        %v6430 = vsub.f32 %v6382, %v6414
        %v6431 = vmul.f32 %v6415, 1.442695
        %v6432 = vpow.pop %v6431
        %v6433 = vmul.f32 %v6416, 1.442695
        %v6434 = vpow.pop %v6433
        %v6435 = vmul.f32 %v6417, 1.442695
        %v6436 = vpow.pop %v6435
        %v6437 = vmul.f32 %v6418, 1.442695
        %v6438 = vpow.pop %v6437
        %v6439 = vmul.f32 %v6419, 1.442695
        %v6440 = vpow.pop %v6439
        %v6441 = vmul.f32 %v6420, 1.442695
        %v6442 = vpow.pop %v6441
        %v6443 = vmul.f32 %v6421, 1.442695
        %v6444 = vpow.pop %v6443
        %v6445 = vmul.f32 %v6422, 1.442695
        %v6446 = vpow.pop %v6445
        %v6447 = vmul.f32 %v6423, 1.442695
        %v6448 = vpow.pop %v6447
        %v6449 = vmul.f32 %v6424, 1.442695
        %v6450 = vpow.pop %v6449
        %v6451 = vmul.f32 %v6425, 1.442695
        %v6452 = vpow.pop %v6451
        %v6453 = vmul.f32 %v6426, 1.442695
        %v6454 = vpow.pop %v6453
        %v6455 = vmul.f32 %v6427, 1.442695
        %v6456 = vpow.pop %v6455
        %v6457 = vmul.f32 %v6428, 1.442695
        %v6458 = vpow.pop %v6457
        %v6459 = vmul.f32 %v6429, 1.442695
        %v6460 = vpow.pop %v6459
        %v6461 = vmul.f32 %v6430, 1.442695
        %v6462 = vpow.pop %v6461
        %6463 = vadd.xlane.f32.xlu0 %v6432
        %v6464 = vpop.xlane.xlu0 %6463
        %6465 = vadd.xlane.f32.xlu0 %v6434
        %v6466 = vpop.xlane.xlu0 %6465
        %6467 = vadd.xlane.f32.xlu0 %v6436
        %v6468 = vpop.xlane.xlu0 %6467
        %6469 = vadd.xlane.f32.xlu0 %v6438
        %v6470 = vpop.xlane.xlu0 %6469
        %6471 = vadd.xlane.f32.xlu0 %v6440
        %v6472 = vpop.xlane.xlu0 %6471
        %6473 = vadd.xlane.f32.xlu0 %v6442
        %v6474 = vpop.xlane.xlu0 %6473
        %6475 = vadd.xlane.f32.xlu0 %v6444
        %v6476 = vpop.xlane.xlu0 %6475
        %6477 = vadd.xlane.f32.xlu0 %v6446
        %v6478 = vpop.xlane.xlu0 %6477
        %6479 = vadd.xlane.f32.xlu0 %v6448
        %v6480 = vpop.xlane.xlu0 %6479
        %6481 = vadd.xlane.f32.xlu0 %v6450
        %v6482 = vpop.xlane.xlu0 %6481
        %6483 = vadd.xlane.f32.xlu0 %v6452
        %v6484 = vpop.xlane.xlu0 %6483
        %6485 = vadd.xlane.f32.xlu0 %v6454
        %v6486 = vpop.xlane.xlu0 %6485
        %6487 = vadd.xlane.f32.xlu0 %v6456
        %v6488 = vpop.xlane.xlu0 %6487
        %6489 = vadd.xlane.f32.xlu0 %v6458
        %v6490 = vpop.xlane.xlu0 %6489
        %6491 = vadd.xlane.f32.xlu0 %v6460
        %v6492 = vpop.xlane.xlu0 %6491
        %6493 = vadd.xlane.f32.xlu0 %v6462
        %v6494 = vpop.xlane.xlu0 %6493
        %v6495 = vrcp.pop %v6464
        %v6496 = vrcp.pop %v6466
        %v6497 = vrcp.pop %v6468
        %v6498 = vrcp.pop %v6470
        %v6499 = vrcp.pop %v6472
        %v6500 = vrcp.pop %v6474
        %v6501 = vrcp.pop %v6476
        %v6502 = vrcp.pop %v6478
        %v6503 = vrcp.pop %v6480
        %v6504 = vrcp.pop %v6482
        %v6505 = vrcp.pop %v6484
        %v6506 = vrcp.pop %v6486
        %v6507 = vrcp.pop %v6488
        %v6508 = vrcp.pop %v6490
        %v6509 = vrcp.pop %v6492
        %v6510 = vrcp.pop %v6494
        %v6511 = vmul.f32 %v6432, %v6495
        %v6512 = vmul.f32 %v6434, %v6496
        %v6513 = vmul.f32 %v6436, %v6497
        %v6514 = vmul.f32 %v6438, %v6498
        %v6515 = vmul.f32 %v6440, %v6499
        %v6516 = vmul.f32 %v6442, %v6500
        %v6517 = vmul.f32 %v6444, %v6501
        %v6518 = vmul.f32 %v6446, %v6502
        %v6519 = vmul.f32 %v6448, %v6503
        %v6520 = vmul.f32 %v6450, %v6504
        %v6521 = vmul.f32 %v6452, %v6505
        %v6522 = vmul.f32 %v6454, %v6506
        %v6523 = vmul.f32 %v6456, %v6507
        %v6524 = vmul.f32 %v6458, %v6508
        %v6525 = vmul.f32 %v6460, %v6509
        %v6526 = vmul.f32 %v6462, %v6510
        %v6527 = vpack.c.bf16 %v6512, %v6511
        %v6528 = vpack.c.bf16 %v6514, %v6513
        %v6529 = vpack.c.bf16 %v6516, %v6515
        %v6530 = vpack.c.bf16 %v6518, %v6517
        %v6531 = vpack.c.bf16 %v6520, %v6519
        %v6532 = vpack.c.bf16 %v6522, %v6521
        %v6533 = vpack.c.bf16 %v6524, %v6523
        %v6534 = vpack.c.bf16 %v6526, %v6525
        %v6535 = vsel %vm2977, %v5402, 0
        %v6536 = vsel %vm2977, %v5403, 0
        %v6537 = vsel %vm2977, %v5404, 0
        %v6538 = vsel %vm2977, %v5405, 0
        %v6539 = vsel %vm2977, %v5406, 0
        %v6540 = vsel %vm2977, %v5407, 0
        %v6541 = vsel %vm2977, %v5408, 0
        %v6542 = vsel %vm2977, %v5409, 0
        %6543 = vmatprep.subr.bf16.mxu0 0
        %6544 = vmatpush1.bf16.msra.mxu0 %v6535
        %6545 = vmatprep.subr.bf16.mxu0 0
        %6546 = vmatpush1.bf16.msra.mxu0 %v6536
        %6547 = vmatprep.subr.bf16.mxu0 0
        %6548 = vmatpush1.bf16.msra.mxu0 %v6537
        %6549 = vmatprep.subr.bf16.mxu0 0
        %6550 = vmatpush1.bf16.msra.mxu0 %v6538
        %6551 = vmatprep.subr.bf16.mxu0 0
        %6552 = vmatpush1.bf16.msra.mxu0 %v6539
        %6553 = vmatprep.subr.bf16.mxu0 0
        %6554 = vmatpush1.bf16.msra.mxu0 %v6540
        %6555 = vmatprep.subr.bf16.mxu0 0
        %6556 = vmatpush1.bf16.msra.mxu0 %v6541
        %6557 = vmatprep.subr.bf16.mxu0 0
        %6558 = vmatpush1.bf16.msra.mxu0 %v6542
        %6559 = vmatprep.subr.bf16.mxu0 0
        %6560 = vmatpush1.bf16.msra.mxu0 0
        %6561 = vmatprep.subr.bf16.mxu0 0
        %6562 = vmatpush1.bf16.msra.mxu0 0
        %6563 = vmatprep.subr.bf16.mxu0 0
        %6564 = vmatpush1.bf16.msra.mxu0 0
        %6565 = vmatprep.subr.bf16.mxu0 0
        %6566 = vmatpush1.bf16.msra.mxu0 0
        %6567 = vmatprep.subr.bf16.mxu0 0
        %6568 = vmatpush1.bf16.msra.mxu0 0
        %6569 = vmatprep.subr.bf16.mxu0 0
        %6570 = vmatpush1.bf16.msra.mxu0 0
        %6571 = vmatprep.subr.bf16.mxu0 0
        %6572 = vmatpush1.bf16.msra.mxu0 0
        %6573 = vmatprep.subr.bf16.mxu0 0
        %6574 = vmatpush1.bf16.msra.mxu0 0
        %6575 = vmatprep.mubr.bf16.mxu0 0
        %6576 = vmatmul.mubr.bf16.gmra.mrb[0].mxu0 %v6527
        %v6577 = vpop.f32.mrb[0].mxu0
        %v6578 = vadd.f32 0.0, %v6577
        %v6579 = vpop.f32.mrb[0].mxu0
        %v6580 = vpop.f32.mrb[0].mxu0
        %v6581 = vadd.f32 0.0, %v6580
        %v6582 = vpop.f32.mrb[0].mxu0
        %6583 = vmatprep.mubr.bf16.mxu0 0
        %6584 = vmatmul.mubr.bf16.gmra.mrb[0].mxu0 %v6528
        %v6585 = vpop.f32.mrb[0].mxu0
        %v6586 = vadd.f32 0.0, %v6585
        %v6587 = vpop.f32.mrb[0].mxu0
        %v6588 = vpop.f32.mrb[0].mxu0
        %v6589 = vadd.f32 0.0, %v6588
        %v6590 = vpop.f32.mrb[0].mxu0
        %6591 = vmatprep.mubr.bf16.mxu0 0
        %6592 = vmatmul.mubr.bf16.gmra.mrb[0].mxu0 %v6529
        %v6593 = vpop.f32.mrb[0].mxu0
        %v6594 = vadd.f32 0.0, %v6593
        %v6595 = vpop.f32.mrb[0].mxu0
        %v6596 = vpop.f32.mrb[0].mxu0
        %v6597 = vadd.f32 0.0, %v6596
        %v6598 = vpop.f32.mrb[0].mxu0
        %6599 = vmatprep.mubr.bf16.mxu0 0
        %6600 = vmatmul.mubr.bf16.gmra.mrb[0].mxu0 %v6530
        %v6601 = vpop.f32.mrb[0].mxu0
        %v6602 = vadd.f32 0.0, %v6601
        %v6603 = vpop.f32.mrb[0].mxu0
        %v6604 = vpop.f32.mrb[0].mxu0
        %v6605 = vadd.f32 0.0, %v6604
        %v6606 = vpop.f32.mrb[0].mxu0
        %6607 = vmatprep.mubr.bf16.mxu0 0
        %6608 = vmatmul.mubr.bf16.gmra.mrb[0].mxu0 %v6531
        %v6609 = vpop.f32.mrb[0].mxu0
        %v6610 = vadd.f32 0.0, %v6609
        %v6611 = vpop.f32.mrb[0].mxu0
        %v6612 = vpop.f32.mrb[0].mxu0
        %v6613 = vadd.f32 0.0, %v6612
        %v6614 = vpop.f32.mrb[0].mxu0
        %6615 = vmatprep.mubr.bf16.mxu0 0
        %6616 = vmatmul.mubr.bf16.gmra.mrb[0].mxu0 %v6532
        %v6617 = vpop.f32.mrb[0].mxu0
        %v6618 = vadd.f32 0.0, %v6617
        %v6619 = vpop.f32.mrb[0].mxu0
        %v6620 = vpop.f32.mrb[0].mxu0
        %v6621 = vadd.f32 0.0, %v6620
        %v6622 = vpop.f32.mrb[0].mxu0
        %6623 = vmatprep.mubr.bf16.mxu0 0
        %6624 = vmatmul.mubr.bf16.gmra.mrb[0].mxu0 %v6533
        %v6625 = vpop.f32.mrb[0].mxu0
        %v6626 = vadd.f32 0.0, %v6625
        %v6627 = vpop.f32.mrb[0].mxu0
        %v6628 = vpop.f32.mrb[0].mxu0
        %v6629 = vadd.f32 0.0, %v6628
        %v6630 = vpop.f32.mrb[0].mxu0
        %6631 = vmatprep.mubr.bf16.mxu0 0
        %6632 = vmatmul.mubr.bf16.gmra.mrb[0].mxu0 %v6534
        %v6633 = vpop.f32.mrb[0].mxu0
        %v6634 = vadd.f32 0.0, %v6633
        %v6635 = vpop.f32.mrb[0].mxu0
        %v6636 = vpop.f32.mrb[0].mxu0
        %v6637 = vadd.f32 0.0, %v6636
        %v6638 = vpop.f32.mrb[0].mxu0
        %6639 = vdwg.mxu0
        %v6640 = vadd.f32 %v6176, %v6578
        %v6641 = vadd.f32 %v6179, %v6581
        %v6642 = vadd.f32 %v6184, %v6586
        %v6643 = vadd.f32 %v6187, %v6589
        %v6644 = vadd.f32 %v6192, %v6594
        %v6645 = vadd.f32 %v6195, %v6597
        %v6646 = vadd.f32 %v6200, %v6602
        %v6647 = vadd.f32 %v6203, %v6605
        %v6648 = vadd.f32 %v6208, %v6610
        %v6649 = vadd.f32 %v6211, %v6613
        %v6650 = vadd.f32 %v6216, %v6618
        %v6651 = vadd.f32 %v6219, %v6621
        %v6652 = vadd.f32 %v6224, %v6626
        %v6653 = vadd.f32 %v6227, %v6629
        %v6654 = vadd.f32 %v6232, %v6634
        %v6655 = vadd.f32 %v6235, %v6637
        %v6656 = vsel %vm3404, %v5394, 0
        %v6657 = vsel %vm3404, %v5395, 0
        %v6658 = vsel %vm3404, %v5396, 0
        %v6659 = vsel %vm3404, %v5397, 0
        %v6660 = vsel %vm3404, %v5398, 0
        %v6661 = vsel %vm3404, %v5399, 0
        %v6662 = vsel %vm3404, %v5400, 0
        %v6663 = vsel %vm3404, %v5401, 0
        %v6665 = vsel %vm1723, %v6656, 0
        %v6668 = vsel %vm1723, %v6657, 0
        %v6671 = vsel %vm1723, %v6658, 0
        %v6674 = vsel %vm1723, %v6659, 0
        %v6677 = vsel %vm1723, %v6660, 0
        %v6680 = vsel %vm1723, %v6661, 0
        %v6683 = vsel %vm1723, %v6662, 0
        %v6686 = vsel %vm1723, %v6663, 0
        %6688 = vmatprep.subr.bf16.mxu0 0
        %6689 = vmatpush1.bf16.xpose.msra.mxu0 %v6665
        %6690 = vmatprep.subr.bf16.mxu0 0
        %6691 = vmatpush1.bf16.xpose.msra.mxu0 %v6668
        %6692 = vmatprep.subr.bf16.mxu0 0
        %6693 = vmatpush1.bf16.xpose.msra.mxu0 %v6671
        %6694 = vmatprep.subr.bf16.mxu0 0
        %6695 = vmatpush1.bf16.xpose.msra.mxu0 %v6674
        %6696 = vmatprep.subr.bf16.mxu0 0
        %6697 = vmatpush1.bf16.xpose.msra.mxu0 %v6677
        %6698 = vmatprep.subr.bf16.mxu0 0
        %6699 = vmatpush1.bf16.xpose.msra.mxu0 %v6680
        %6700 = vmatprep.subr.bf16.mxu0 0
        %6701 = vmatpush1.bf16.xpose.msra.mxu0 %v6683
        %6702 = vmatprep.subr.bf16.mxu0 0
        %6703 = vmatpush1.bf16.xpose.msra.mxu0 %v6686
        %6704 = vmatprep.subr.bf16.mxu0 0
        %6705 = vmatpush1.bf16.xpose.msra.mxu0 0
        %6706 = vmatprep.subr.bf16.mxu0 0
        %6707 = vmatpush1.bf16.xpose.msra.mxu0 0
        %6708 = vmatprep.subr.bf16.mxu0 0
        %6709 = vmatpush1.bf16.xpose.msra.mxu0 0
        %6710 = vmatprep.subr.bf16.mxu0 0
        %6711 = vmatpush1.bf16.xpose.msra.mxu0 0
        %6712 = vmatprep.subr.bf16.mxu0 0
        %6713 = vmatpush1.bf16.xpose.msra.mxu0 0
        %6714 = vmatprep.subr.bf16.mxu0 0
        %6715 = vmatpush1.bf16.xpose.msra.mxu0 0
        %6716 = vmatprep.subr.bf16.mxu0 0
        %6717 = vmatpush1.bf16.xpose.msra.mxu0 0
        %6718 = vmatprep.subr.bf16.mxu0 0
        %6719 = vmatpush1.bf16.xpose.msra.mxu0 0
        %6720 = vmatprep.mubr.bf16.mxu0 0
        %6721 = vmatmul.mubr.bf16.gmra.mrb[0].mxu0 %v5419
        %v6722 = vpop.f32.mrb[0].mxu0
        %v6723 = vadd.f32 0.0, %v6722
        %v6724 = vpop.f32.mrb[0].mxu0
        %v6725 = vpop.f32.mrb[0].mxu0
        %v6726 = vadd.f32 0.0, %v6725
        %v6727 = vpop.f32.mrb[0].mxu0
        %6728 = vmatprep.mubr.bf16.mxu0 0
        %6729 = vmatmul.mubr.bf16.gmra.mrb[0].mxu0 %v5422
        %v6730 = vpop.f32.mrb[0].mxu0
        %v6731 = vadd.f32 0.0, %v6730
        %v6732 = vpop.f32.mrb[0].mxu0
        %v6733 = vpop.f32.mrb[0].mxu0
        %v6734 = vadd.f32 0.0, %v6733
        %v6735 = vpop.f32.mrb[0].mxu0
        %6736 = vmatprep.mubr.bf16.mxu0 0
        %6737 = vmatmul.mubr.bf16.gmra.mrb[0].mxu0 %v5425
        %v6738 = vpop.f32.mrb[0].mxu0
        %v6739 = vadd.f32 0.0, %v6738
        %v6740 = vpop.f32.mrb[0].mxu0
        %v6741 = vpop.f32.mrb[0].mxu0
        %v6742 = vadd.f32 0.0, %v6741
        %v6743 = vpop.f32.mrb[0].mxu0
        %6744 = vmatprep.mubr.bf16.mxu0 0
        %6745 = vmatmul.mubr.bf16.gmra.mrb[0].mxu0 %v5428
        %v6746 = vpop.f32.mrb[0].mxu0
        %v6747 = vadd.f32 0.0, %v6746
        %v6748 = vpop.f32.mrb[0].mxu0
        %v6749 = vpop.f32.mrb[0].mxu0
        %v6750 = vadd.f32 0.0, %v6749
        %v6751 = vpop.f32.mrb[0].mxu0
        %6752 = vmatprep.mubr.bf16.mxu0 0
        %6753 = vmatmul.mubr.bf16.gmra.mrb[0].mxu0 %v5431
        %v6754 = vpop.f32.mrb[0].mxu0
        %v6755 = vadd.f32 0.0, %v6754
        %v6756 = vpop.f32.mrb[0].mxu0
        %v6757 = vpop.f32.mrb[0].mxu0
        %v6758 = vadd.f32 0.0, %v6757
        %v6759 = vpop.f32.mrb[0].mxu0
        %6760 = vmatprep.mubr.bf16.mxu0 0
        %6761 = vmatmul.mubr.bf16.gmra.mrb[0].mxu0 %v5434
        %v6762 = vpop.f32.mrb[0].mxu0
        %v6763 = vadd.f32 0.0, %v6762
        %v6764 = vpop.f32.mrb[0].mxu0
        %v6765 = vpop.f32.mrb[0].mxu0
        %v6766 = vadd.f32 0.0, %v6765
        %v6767 = vpop.f32.mrb[0].mxu0
        %6768 = vmatprep.mubr.bf16.mxu0 0
        %6769 = vmatmul.mubr.bf16.gmra.mrb[0].mxu0 %v5437
        %v6770 = vpop.f32.mrb[0].mxu0
        %v6771 = vadd.f32 0.0, %v6770
        %v6772 = vpop.f32.mrb[0].mxu0
        %v6773 = vpop.f32.mrb[0].mxu0
        %v6774 = vadd.f32 0.0, %v6773
        %v6775 = vpop.f32.mrb[0].mxu0
        %6776 = vmatprep.mubr.bf16.mxu0 0
        %6777 = vmatmul.mubr.bf16.gmra.mrb[0].mxu0 %v5440
        %v6778 = vpop.f32.mrb[0].mxu0
        %v6779 = vadd.f32 0.0, %v6778
        %v6780 = vpop.f32.mrb[0].mxu0
        %v6781 = vpop.f32.mrb[0].mxu0
        %v6782 = vadd.f32 0.0, %v6781
        %v6783 = vpop.f32.mrb[0].mxu0
        %6784 = vdwg.mxu0
        %v6785 = vsel %vm1311, %v6723, -1e+30
        %v6786 = vsel %vm1312, %v6726, -1e+30
        %v6787 = vsel %vm1313, %v6731, -1e+30
        %v6788 = vsel %vm1314, %v6734, -1e+30
        %v6789 = vsel %vm1315, %v6739, -1e+30
        %v6790 = vsel %vm1316, %v6742, -1e+30
        %v6791 = vsel %vm1317, %v6747, -1e+30
        %v6792 = vsel %vm1318, %v6750, -1e+30
        %v6793 = vsel %vm1319, %v6755, -1e+30
        %v6794 = vsel %vm1320, %v6758, -1e+30
        %v6795 = vsel %vm1321, %v6763, -1e+30
        %v6796 = vsel %vm1322, %v6766, -1e+30
        %v6797 = vsel %vm1323, %v6771, -1e+30
        %v6798 = vsel %vm1324, %v6774, -1e+30
        %v6799 = vsel %vm1325, %v6779, -1e+30
        %v6800 = vsel %vm1326, %v6782, -1e+30
        %6801 = vmax.xlane.f32.xlu0 %v6785
        %v6802 = vpop.xlane.xlu0 %6801
        %6803 = vmax.xlane.f32.xlu0 %v6786
        %v6804 = vpop.xlane.xlu0 %6803
        %6805 = vmax.xlane.f32.xlu0 %v6787
        %v6806 = vpop.xlane.xlu0 %6805
        %6807 = vmax.xlane.f32.xlu0 %v6788
        %v6808 = vpop.xlane.xlu0 %6807
        %6809 = vmax.xlane.f32.xlu0 %v6789
        %v6810 = vpop.xlane.xlu0 %6809
        %6811 = vmax.xlane.f32.xlu0 %v6790
        %v6812 = vpop.xlane.xlu0 %6811
        %6813 = vmax.xlane.f32.xlu0 %v6791
        %v6814 = vpop.xlane.xlu0 %6813
        %6815 = vmax.xlane.f32.xlu0 %v6792
        %v6816 = vpop.xlane.xlu0 %6815
        %6817 = vmax.xlane.f32.xlu0 %v6793
        %v6818 = vpop.xlane.xlu0 %6817
        %6819 = vmax.xlane.f32.xlu0 %v6794
        %v6820 = vpop.xlane.xlu0 %6819
        %6821 = vmax.xlane.f32.xlu0 %v6795
        %v6822 = vpop.xlane.xlu0 %6821
        %6823 = vmax.xlane.f32.xlu0 %v6796
        %v6824 = vpop.xlane.xlu0 %6823
        %6825 = vmax.xlane.f32.xlu0 %v6797
        %v6826 = vpop.xlane.xlu0 %6825
        %6827 = vmax.xlane.f32.xlu0 %v6798
        %v6828 = vpop.xlane.xlu0 %6827
        %6829 = vmax.xlane.f32.xlu0 %v6799
        %v6830 = vpop.xlane.xlu0 %6829
        %6831 = vmax.xlane.f32.xlu0 %v6800
        %v6832 = vpop.xlane.xlu0 %6831
        %v6833 = vsub.f32 %v6785, %v6802
        %v6834 = vsub.f32 %v6786, %v6804
        %v6835 = vsub.f32 %v6787, %v6806
        %v6836 = vsub.f32 %v6788, %v6808
        %v6837 = vsub.f32 %v6789, %v6810
        %v6838 = vsub.f32 %v6790, %v6812
        %v6839 = vsub.f32 %v6791, %v6814
        %v6840 = vsub.f32 %v6792, %v6816
        %v6841 = vsub.f32 %v6793, %v6818
        %v6842 = vsub.f32 %v6794, %v6820
        %v6843 = vsub.f32 %v6795, %v6822
        %v6844 = vsub.f32 %v6796, %v6824
        %v6845 = vsub.f32 %v6797, %v6826
        %v6846 = vsub.f32 %v6798, %v6828
        %v6847 = vsub.f32 %v6799, %v6830
        %v6848 = vsub.f32 %v6800, %v6832
        %v6849 = vmul.f32 %v6833, 1.442695
        %v6850 = vpow.pop %v6849
        %v6851 = vmul.f32 %v6834, 1.442695
        %v6852 = vpow.pop %v6851
        %v6853 = vmul.f32 %v6835, 1.442695
        %v6854 = vpow.pop %v6853
        %v6855 = vmul.f32 %v6836, 1.442695
        %v6856 = vpow.pop %v6855
        %v6857 = vmul.f32 %v6837, 1.442695
        %v6858 = vpow.pop %v6857
        %v6859 = vmul.f32 %v6838, 1.442695
        %v6860 = vpow.pop %v6859
        %v6861 = vmul.f32 %v6839, 1.442695
        %v6862 = vpow.pop %v6861
        %v6863 = vmul.f32 %v6840, 1.442695
        %v6864 = vpow.pop %v6863
        %v6865 = vmul.f32 %v6841, 1.442695
        %v6866 = vpow.pop %v6865
        %v6867 = vmul.f32 %v6842, 1.442695
        %v6868 = vpow.pop %v6867
        %v6869 = vmul.f32 %v6843, 1.442695
        %v6870 = vpow.pop %v6869
        %v6871 = vmul.f32 %v6844, 1.442695
        %v6872 = vpow.pop %v6871
        %v6873 = vmul.f32 %v6845, 1.442695
        %v6874 = vpow.pop %v6873
        %v6875 = vmul.f32 %v6846, 1.442695
        %v6876 = vpow.pop %v6875
        %v6877 = vmul.f32 %v6847, 1.442695
        %v6878 = vpow.pop %v6877
        %v6879 = vmul.f32 %v6848, 1.442695
        %v6880 = vpow.pop %v6879
        %6881 = vadd.xlane.f32.xlu0 %v6850
        %v6882 = vpop.xlane.xlu0 %6881
        %6883 = vadd.xlane.f32.xlu0 %v6852
        %v6884 = vpop.xlane.xlu0 %6883
        %6885 = vadd.xlane.f32.xlu0 %v6854
        %v6886 = vpop.xlane.xlu0 %6885
        %6887 = vadd.xlane.f32.xlu0 %v6856
        %v6888 = vpop.xlane.xlu0 %6887
        %6889 = vadd.xlane.f32.xlu0 %v6858
        %v6890 = vpop.xlane.xlu0 %6889
        %6891 = vadd.xlane.f32.xlu0 %v6860
        %v6892 = vpop.xlane.xlu0 %6891
        %6893 = vadd.xlane.f32.xlu0 %v6862
        %v6894 = vpop.xlane.xlu0 %6893
        %6895 = vadd.xlane.f32.xlu0 %v6864
        %v6896 = vpop.xlane.xlu0 %6895
        %6897 = vadd.xlane.f32.xlu0 %v6866
        %v6898 = vpop.xlane.xlu0 %6897
        %6899 = vadd.xlane.f32.xlu0 %v6868
        %v6900 = vpop.xlane.xlu0 %6899
        %6901 = vadd.xlane.f32.xlu0 %v6870
        %v6902 = vpop.xlane.xlu0 %6901
        %6903 = vadd.xlane.f32.xlu0 %v6872
        %v6904 = vpop.xlane.xlu0 %6903
        %6905 = vadd.xlane.f32.xlu0 %v6874
        %v6906 = vpop.xlane.xlu0 %6905
        %6907 = vadd.xlane.f32.xlu0 %v6876
        %v6908 = vpop.xlane.xlu0 %6907
        %6909 = vadd.xlane.f32.xlu0 %v6878
        %v6910 = vpop.xlane.xlu0 %6909
        %6911 = vadd.xlane.f32.xlu0 %v6880
        %v6912 = vpop.xlane.xlu0 %6911
        %v6913 = vrcp.pop %v6882
        %v6914 = vrcp.pop %v6884
        %v6915 = vrcp.pop %v6886
        %v6916 = vrcp.pop %v6888
        %v6917 = vrcp.pop %v6890
        %v6918 = vrcp.pop %v6892
        %v6919 = vrcp.pop %v6894
        %v6920 = vrcp.pop %v6896
        %v6921 = vrcp.pop %v6898
        %v6922 = vrcp.pop %v6900
        %v6923 = vrcp.pop %v6902
        %v6924 = vrcp.pop %v6904
        %v6925 = vrcp.pop %v6906
        %v6926 = vrcp.pop %v6908
        %v6927 = vrcp.pop %v6910
        %v6928 = vrcp.pop %v6912
        %v6929 = vmul.f32 %v6850, %v6913
        %v6930 = vmul.f32 %v6852, %v6914
        %v6931 = vmul.f32 %v6854, %v6915
        %v6932 = vmul.f32 %v6856, %v6916
        %v6933 = vmul.f32 %v6858, %v6917
        %v6934 = vmul.f32 %v6860, %v6918
        %v6935 = vmul.f32 %v6862, %v6919
        %v6936 = vmul.f32 %v6864, %v6920
        %v6937 = vmul.f32 %v6866, %v6921
        %v6938 = vmul.f32 %v6868, %v6922
        %v6939 = vmul.f32 %v6870, %v6923
        %v6940 = vmul.f32 %v6872, %v6924
        %v6941 = vmul.f32 %v6874, %v6925
        %v6942 = vmul.f32 %v6876, %v6926
        %v6943 = vmul.f32 %v6878, %v6927
        %v6944 = vmul.f32 %v6880, %v6928
        %v6945 = vpack.c.bf16 %v6930, %v6929
        %v6946 = vpack.c.bf16 %v6932, %v6931
        %v6947 = vpack.c.bf16 %v6934, %v6933
        %v6948 = vpack.c.bf16 %v6936, %v6935
        %v6949 = vpack.c.bf16 %v6938, %v6937
        %v6950 = vpack.c.bf16 %v6940, %v6939
        %v6951 = vpack.c.bf16 %v6942, %v6941
        %v6952 = vpack.c.bf16 %v6944, %v6943
        %v6953 = vsel %vm3404, %v5402, 0
        %v6954 = vsel %vm3404, %v5403, 0
        %v6955 = vsel %vm3404, %v5404, 0
        %v6956 = vsel %vm3404, %v5405, 0
        %v6957 = vsel %vm3404, %v5406, 0
        %v6958 = vsel %vm3404, %v5407, 0
        %v6959 = vsel %vm3404, %v5408, 0
        %v6960 = vsel %vm3404, %v5409, 0
        %6961 = vmatprep.subr.bf16.mxu0 0
        %6962 = vmatpush1.bf16.msra.mxu0 %v6953
        %6963 = vmatprep.subr.bf16.mxu0 0
        %6964 = vmatpush1.bf16.msra.mxu0 %v6954
        %6965 = vmatprep.subr.bf16.mxu0 0
        %6966 = vmatpush1.bf16.msra.mxu0 %v6955
        %6967 = vmatprep.subr.bf16.mxu0 0
        %6968 = vmatpush1.bf16.msra.mxu0 %v6956
        %6969 = vmatprep.subr.bf16.mxu0 0
        %6970 = vmatpush1.bf16.msra.mxu0 %v6957
        %6971 = vmatprep.subr.bf16.mxu0 0
        %6972 = vmatpush1.bf16.msra.mxu0 %v6958
        %6973 = vmatprep.subr.bf16.mxu0 0
        %6974 = vmatpush1.bf16.msra.mxu0 %v6959
        %6975 = vmatprep.subr.bf16.mxu0 0
        %6976 = vmatpush1.bf16.msra.mxu0 %v6960
        %6977 = vmatprep.subr.bf16.mxu0 0
        %6978 = vmatpush1.bf16.msra.mxu0 0
        %6979 = vmatprep.subr.bf16.mxu0 0
        %6980 = vmatpush1.bf16.msra.mxu0 0
        %6981 = vmatprep.subr.bf16.mxu0 0
        %6982 = vmatpush1.bf16.msra.mxu0 0
        %6983 = vmatprep.subr.bf16.mxu0 0
        %6984 = vmatpush1.bf16.msra.mxu0 0
        %6985 = vmatprep.subr.bf16.mxu0 0
        %6986 = vmatpush1.bf16.msra.mxu0 0
        %6987 = vmatprep.subr.bf16.mxu0 0
        %6988 = vmatpush1.bf16.msra.mxu0 0
        %6989 = vmatprep.subr.bf16.mxu0 0
        %6990 = vmatpush1.bf16.msra.mxu0 0
        %6991 = vmatprep.subr.bf16.mxu0 0
        %6992 = vmatpush1.bf16.msra.mxu0 0
        %6993 = vmatprep.mubr.bf16.mxu0 0
        %6994 = vmatmul.mubr.bf16.gmra.mrb[0].mxu0 %v6945
        %v6995 = vpop.f32.mrb[0].mxu0
        %v6996 = vadd.f32 0.0, %v6995
        %v6997 = vpop.f32.mrb[0].mxu0
        %v6998 = vpop.f32.mrb[0].mxu0
        %v6999 = vadd.f32 0.0, %v6998
        %v7000 = vpop.f32.mrb[0].mxu0
        %7001 = vmatprep.mubr.bf16.mxu0 0
        %7002 = vmatmul.mubr.bf16.gmra.mrb[0].mxu0 %v6946
        %v7003 = vpop.f32.mrb[0].mxu0
        %v7004 = vadd.f32 0.0, %v7003
        %v7005 = vpop.f32.mrb[0].mxu0
        %v7006 = vpop.f32.mrb[0].mxu0
        %v7007 = vadd.f32 0.0, %v7006
        %v7008 = vpop.f32.mrb[0].mxu0
        %7009 = vmatprep.mubr.bf16.mxu0 0
        %7010 = vmatmul.mubr.bf16.gmra.mrb[0].mxu0 %v6947
        %v7011 = vpop.f32.mrb[0].mxu0
        %v7012 = vadd.f32 0.0, %v7011
        %v7013 = vpop.f32.mrb[0].mxu0
        %v7014 = vpop.f32.mrb[0].mxu0
        %v7015 = vadd.f32 0.0, %v7014
        %v7016 = vpop.f32.mrb[0].mxu0
        %7017 = vmatprep.mubr.bf16.mxu0 0
        %7018 = vmatmul.mubr.bf16.gmra.mrb[0].mxu0 %v6948
        %v7019 = vpop.f32.mrb[0].mxu0
        %v7020 = vadd.f32 0.0, %v7019
        %v7021 = vpop.f32.mrb[0].mxu0
        %v7022 = vpop.f32.mrb[0].mxu0
        %v7023 = vadd.f32 0.0, %v7022
        %v7024 = vpop.f32.mrb[0].mxu0
        %7025 = vmatprep.mubr.bf16.mxu0 0
        %7026 = vmatmul.mubr.bf16.gmra.mrb[0].mxu0 %v6949
        %v7027 = vpop.f32.mrb[0].mxu0
        %v7028 = vadd.f32 0.0, %v7027
        %v7029 = vpop.f32.mrb[0].mxu0
        %v7030 = vpop.f32.mrb[0].mxu0
        %v7031 = vadd.f32 0.0, %v7030
        %v7032 = vpop.f32.mrb[0].mxu0
        %7033 = vmatprep.mubr.bf16.mxu0 0
        %7034 = vmatmul.mubr.bf16.gmra.mrb[0].mxu0 %v6950
        %v7035 = vpop.f32.mrb[0].mxu0
        %v7036 = vadd.f32 0.0, %v7035
        %v7037 = vpop.f32.mrb[0].mxu0
        %v7038 = vpop.f32.mrb[0].mxu0
        %v7039 = vadd.f32 0.0, %v7038
        %v7040 = vpop.f32.mrb[0].mxu0
        %7041 = vmatprep.mubr.bf16.mxu0 0
        %7042 = vmatmul.mubr.bf16.gmra.mrb[0].mxu0 %v6951
        %v7043 = vpop.f32.mrb[0].mxu0
        %v7044 = vadd.f32 0.0, %v7043
        %v7045 = vpop.f32.mrb[0].mxu0
        %v7046 = vpop.f32.mrb[0].mxu0
        %v7047 = vadd.f32 0.0, %v7046
        %v7048 = vpop.f32.mrb[0].mxu0
        %7049 = vmatprep.mubr.bf16.mxu0 0
        %7050 = vmatmul.mubr.bf16.gmra.mrb[0].mxu0 %v6952
        %v7051 = vpop.f32.mrb[0].mxu0
        %v7052 = vadd.f32 0.0, %v7051
        %v7053 = vpop.f32.mrb[0].mxu0
        %v7054 = vpop.f32.mrb[0].mxu0
        %v7055 = vadd.f32 0.0, %v7054
        %v7056 = vpop.f32.mrb[0].mxu0
        %7057 = vdwg.mxu0
        %v7058 = vadd.f32 %v6640, %v6996
        %v7059 = vadd.f32 %v6641, %v6999
        %v7060 = vadd.f32 %v6642, %v7004
        %v7061 = vadd.f32 %v6643, %v7007
        %v7062 = vadd.f32 %v6644, %v7012
        %v7063 = vadd.f32 %v6645, %v7015
        %v7064 = vadd.f32 %v6646, %v7020
        %v7065 = vadd.f32 %v6647, %v7023
        %v7066 = vadd.f32 %v6648, %v7028
        %v7067 = vadd.f32 %v6649, %v7031
        %v7068 = vadd.f32 %v6650, %v7036
        %v7069 = vadd.f32 %v6651, %v7039
        %v7070 = vadd.f32 %v6652, %v7044
        %v7071 = vadd.f32 %v6653, %v7047
        %v7072 = vadd.f32 %v6654, %v7052
        %v7073 = vadd.f32 %v6655, %v7055
        %s7074 = scalar_lea.vmem %s9, 16
        %v7075 = vld [vmem:[%s7074] sm:$0xf]
        %v7076 = vld [vmem:[%s7074 + $0x4] sm:$0xf]
        %v7077 = vld [vmem:[%s7074 + $0x8] sm:$0xf]
        %v7078 = vld [vmem:[%s7074 + $0xc] sm:$0xf]
        %v7079 = vpack.c.bf16 %v7059, %v7058
        %v7080 = vpack.c.bf16 %v7061, %v7060
        %v7081 = vpack.c.bf16 %v7063, %v7062
        %v7082 = vpack.c.bf16 %v7065, %v7064
        %v7083 = vpack.c.bf16 %v7067, %v7066
        %v7084 = vpack.c.bf16 %v7069, %v7068
        %v7085 = vpack.c.bf16 %v7071, %v7070
        %v7086 = vpack.c.bf16 %v7073, %v7072
        %s7087 = scalar_lea.vmem %s10, 1
        %v7088 = vld [vmem:[%s7087] sm:$0x1]
        %v7090 = vlaneseq
        %v7091 = vshrl.u32 %v7090, 7
        %v7092 = vsub.s32 0, %v7091
        %v7093 = vrot.slane %v7088, %v7092
        %v7099 = vunpack.c.l.b16 %v7075
        %v7100 = vunpack.c.l.b16 %v7076
        %v7101 = vunpack.c.l.b16 %v7077
        %v7102 = vunpack.c.l.b16 %v7078
        %v7103 = vpack.c.b16 %v7100, %v7099
        %v7104 = vpack.c.b16 %v7102, %v7101
        %v7106 = vsel %vm1723, %v7079, 0
        %v7109 = vsel %vm1723, %v7080, 0
        %v7112 = vsel %vm1723, %v7081, 0
        %v7115 = vsel %vm1723, %v7082, 0
        %v7118 = vsel %vm1723, %v7083, 0
        %v7121 = vsel %vm1723, %v7084, 0
        %v7124 = vsel %vm1723, %v7085, 0
        %v7127 = vsel %vm1723, %v7086, 0
        %v7130 = vsel %vm1723, %v7103, 0
        %v7133 = vsel %vm1723, %v7104, 0
        %7135 = vmatprep.subr.bf16.mxu0 0
        %7136 = vmatpush1.bf16.xpose.msra.mxu0 %v7130
        %7137 = vmatprep.subr.bf16.mxu0 0
        %7138 = vmatpush1.bf16.xpose.msra.mxu0 %v7133
        %7139 = vmatprep.subr.bf16.mxu0 0
        %7140 = vmatpush1.bf16.xpose.msra.mxu0 0
        %7141 = vmatprep.subr.bf16.mxu0 0
        %7142 = vmatpush1.bf16.xpose.msra.mxu0 0
        %7143 = vmatprep.subr.bf16.mxu0 0
        %7144 = vmatpush1.bf16.xpose.msra.mxu0 0
        %7145 = vmatprep.subr.bf16.mxu0 0
        %7146 = vmatpush1.bf16.xpose.msra.mxu0 0
        %7147 = vmatprep.subr.bf16.mxu0 0
        %7148 = vmatpush1.bf16.xpose.msra.mxu0 0
        %7149 = vmatprep.subr.bf16.mxu0 0
        %7150 = vmatpush1.bf16.xpose.msra.mxu0 0
        %7151 = vmatprep.subr.bf16.mxu0 0
        %7152 = vmatpush1.bf16.xpose.msra.mxu0 0
        %7153 = vmatprep.subr.bf16.mxu0 0
        %7154 = vmatpush1.bf16.xpose.msra.mxu0 0
        %7155 = vmatprep.subr.bf16.mxu0 0
        %7156 = vmatpush1.bf16.xpose.msra.mxu0 0
        %7157 = vmatprep.subr.bf16.mxu0 0
        %7158 = vmatpush1.bf16.xpose.msra.mxu0 0
        %7159 = vmatprep.subr.bf16.mxu0 0
        %7160 = vmatpush1.bf16.xpose.msra.mxu0 0
        %7161 = vmatprep.subr.bf16.mxu0 0
        %7162 = vmatpush1.bf16.xpose.msra.mxu0 0
        %7163 = vmatprep.subr.bf16.mxu0 0
        %7164 = vmatpush1.bf16.xpose.msra.mxu0 0
        %7165 = vmatprep.subr.bf16.mxu0 0
        %7166 = vmatpush1.bf16.xpose.msra.mxu0 0
        %7167 = vmatprep.mubr.bf16.mxu0 0
        %7168 = vmatmul.mubr.bf16.gmra.mrb[0].mxu0 %v7106
        %v7169 = vpop.f32.mrb[0].mxu0
        %v7170 = vadd.f32 %v7093, %v7169
        %v7171 = vpop.f32.mrb[0].mxu0
        %v7172 = vpop.f32.mrb[0].mxu0
        %v7173 = vadd.f32 %v7093, %v7172
        %v7174 = vpop.f32.mrb[0].mxu0
        %7175 = vmatprep.mubr.bf16.mxu0 0
        %7176 = vmatmul.mubr.bf16.gmra.mrb[0].mxu0 %v7109
        %v7177 = vpop.f32.mrb[0].mxu0
        %v7178 = vadd.f32 %v7093, %v7177
        %v7179 = vpop.f32.mrb[0].mxu0
        %v7180 = vpop.f32.mrb[0].mxu0
        %v7181 = vadd.f32 %v7093, %v7180
        %v7182 = vpop.f32.mrb[0].mxu0
        %7183 = vmatprep.mubr.bf16.mxu0 0
        %7184 = vmatmul.mubr.bf16.gmra.mrb[0].mxu0 %v7112
        %v7185 = vpop.f32.mrb[0].mxu0
        %v7186 = vadd.f32 %v7093, %v7185
        %v7187 = vpop.f32.mrb[0].mxu0
        %v7188 = vpop.f32.mrb[0].mxu0
        %v7189 = vadd.f32 %v7093, %v7188
        %v7190 = vpop.f32.mrb[0].mxu0
        %7191 = vmatprep.mubr.bf16.mxu0 0
        %7192 = vmatmul.mubr.bf16.gmra.mrb[0].mxu0 %v7115
        %v7193 = vpop.f32.mrb[0].mxu0
        %v7194 = vadd.f32 %v7093, %v7193
        %v7195 = vpop.f32.mrb[0].mxu0
        %v7196 = vpop.f32.mrb[0].mxu0
        %v7197 = vadd.f32 %v7093, %v7196
        %v7198 = vpop.f32.mrb[0].mxu0
        %7199 = vmatprep.mubr.bf16.mxu0 0
        %7200 = vmatmul.mubr.bf16.gmra.mrb[0].mxu0 %v7118
        %v7201 = vpop.f32.mrb[0].mxu0
        %v7202 = vadd.f32 %v7093, %v7201
        %v7203 = vpop.f32.mrb[0].mxu0
        %v7204 = vpop.f32.mrb[0].mxu0
        %v7205 = vadd.f32 %v7093, %v7204
        %v7206 = vpop.f32.mrb[0].mxu0
        %7207 = vmatprep.mubr.bf16.mxu0 0
        %7208 = vmatmul.mubr.bf16.gmra.mrb[0].mxu0 %v7121
        %v7209 = vpop.f32.mrb[0].mxu0
        %v7210 = vadd.f32 %v7093, %v7209
        %v7211 = vpop.f32.mrb[0].mxu0
        %v7212 = vpop.f32.mrb[0].mxu0
        %v7213 = vadd.f32 %v7093, %v7212
        %v7214 = vpop.f32.mrb[0].mxu0
        %7215 = vmatprep.mubr.bf16.mxu0 0
        %7216 = vmatmul.mubr.bf16.gmra.mrb[0].mxu0 %v7124
        %v7217 = vpop.f32.mrb[0].mxu0
        %v7218 = vadd.f32 %v7093, %v7217
        %v7219 = vpop.f32.mrb[0].mxu0
        %v7220 = vpop.f32.mrb[0].mxu0
        %v7221 = vadd.f32 %v7093, %v7220
        %v7222 = vpop.f32.mrb[0].mxu0
        %7223 = vmatprep.mubr.bf16.mxu0 0
        %7224 = vmatmul.mubr.bf16.gmra.mrb[0].mxu0 %v7127
        %v7225 = vpop.f32.mrb[0].mxu0
        %v7226 = vadd.f32 %v7093, %v7225
        %v7227 = vpop.f32.mrb[0].mxu0
        %v7228 = vpop.f32.mrb[0].mxu0
        %v7229 = vadd.f32 %v7093, %v7228
        %v7230 = vpop.f32.mrb[0].mxu0
        %7231 = vdwg.mxu0
        %v7232 = vadd.f32 %v4960, %v7170
        %v7233 = vadd.f32 %v4961, %v7173
        %v7234 = vadd.f32 %v4962, %v7178
        %v7235 = vadd.f32 %v4963, %v7181
        %v7236 = vadd.f32 %v4964, %v7186
        %v7237 = vadd.f32 %v4965, %v7189
        %v7238 = vadd.f32 %v4966, %v7194
        %v7239 = vadd.f32 %v4967, %v7197
        %v7240 = vadd.f32 %v4968, %v7202
        %v7241 = vadd.f32 %v4969, %v7205
        %v7242 = vadd.f32 %v4970, %v7210
        %v7243 = vadd.f32 %v4971, %v7213
        %v7244 = vadd.f32 %v4972, %v7218
        %v7245 = vadd.f32 %v4973, %v7221
        %v7246 = vadd.f32 %v4974, %v7226
        %v7247 = vadd.f32 %v4975, %v7229
        %s7248 = scalar_lea.vmem %s11, 1
        %v7249 = vld [vmem:[%s7248] sm:$0x1]
        %s7250 = scalar_lea.vmem %s12, 1
        %v7251 = vld [vmem:[%s7250] sm:$0x1]
        %v7252 = vsel %vm1723, %v7232, 0.0
        %7253 = vadd.xlane.f32.xlu0 %v7252
        %v7254 = vpop.xlane.xlu0 %7253
        %v7255 = vsel %vm1723, %v7233, 0.0
        %7256 = vadd.xlane.f32.xlu0 %v7255
        %v7257 = vpop.xlane.xlu0 %7256
        %v7258 = vsel %vm1723, %v7234, 0.0
        %7259 = vadd.xlane.f32.xlu0 %v7258
        %v7260 = vpop.xlane.xlu0 %7259
        %v7261 = vsel %vm1723, %v7235, 0.0
        %7262 = vadd.xlane.f32.xlu0 %v7261
        %v7263 = vpop.xlane.xlu0 %7262
        %v7264 = vsel %vm1723, %v7236, 0.0
        %7265 = vadd.xlane.f32.xlu0 %v7264
        %v7266 = vpop.xlane.xlu0 %7265
        %v7267 = vsel %vm1723, %v7237, 0.0
        %7268 = vadd.xlane.f32.xlu0 %v7267
        %v7269 = vpop.xlane.xlu0 %7268
        %v7270 = vsel %vm1723, %v7238, 0.0
        %7271 = vadd.xlane.f32.xlu0 %v7270
        %v7272 = vpop.xlane.xlu0 %7271
        %v7273 = vsel %vm1723, %v7239, 0.0
        %7274 = vadd.xlane.f32.xlu0 %v7273
        %v7275 = vpop.xlane.xlu0 %7274
        %v7276 = vsel %vm1723, %v7240, 0.0
        %7277 = vadd.xlane.f32.xlu0 %v7276
        %v7278 = vpop.xlane.xlu0 %7277
        %v7279 = vsel %vm1723, %v7241, 0.0
        %7280 = vadd.xlane.f32.xlu0 %v7279
        %v7281 = vpop.xlane.xlu0 %7280
        %v7282 = vsel %vm1723, %v7242, 0.0
        %7283 = vadd.xlane.f32.xlu0 %v7282
        %v7284 = vpop.xlane.xlu0 %7283
        %v7285 = vsel %vm1723, %v7243, 0.0
        %7286 = vadd.xlane.f32.xlu0 %v7285
        %v7287 = vpop.xlane.xlu0 %7286
        %v7288 = vsel %vm1723, %v7244, 0.0
        %7289 = vadd.xlane.f32.xlu0 %v7288
        %v7290 = vpop.xlane.xlu0 %7289
        %v7291 = vsel %vm1723, %v7245, 0.0
        %7292 = vadd.xlane.f32.xlu0 %v7291
        %v7293 = vpop.xlane.xlu0 %7292
        %v7294 = vsel %vm1723, %v7246, 0.0
        %7295 = vadd.xlane.f32.xlu0 %v7294
        %v7296 = vpop.xlane.xlu0 %7295
        %v7297 = vsel %vm1723, %v7247, 0.0
        %7298 = vadd.xlane.f32.xlu0 %v7297
        %v7299 = vpop.xlane.xlu0 %7298
        %v7300 = vmul.f32 %v7254, %v4045
        %v7301 = vmul.f32 %v7257, %v4045
        %v7302 = vmul.f32 %v7260, %v4045
        %v7303 = vmul.f32 %v7263, %v4045
        %v7304 = vmul.f32 %v7266, %v4045
        %v7305 = vmul.f32 %v7269, %v4045
        %v7306 = vmul.f32 %v7272, %v4045
        %v7307 = vmul.f32 %v7275, %v4045
        %v7308 = vmul.f32 %v7278, %v4045
        %v7309 = vmul.f32 %v7281, %v4045
        %v7310 = vmul.f32 %v7284, %v4045
        %v7311 = vmul.f32 %v7287, %v4045
        %v7312 = vmul.f32 %v7290, %v4045
        %v7313 = vmul.f32 %v7293, %v4045
        %v7314 = vmul.f32 %v7296, %v4045
        %v7315 = vmul.f32 %v7299, %v4045
        %v7316 = vsub.f32 %v7232, %v7300
        %v7317 = vsub.f32 %v7233, %v7301
        %v7318 = vsub.f32 %v7234, %v7302
        %v7319 = vsub.f32 %v7235, %v7303
        %v7320 = vsub.f32 %v7236, %v7304
        %v7321 = vsub.f32 %v7237, %v7305
        %v7322 = vsub.f32 %v7238, %v7306
        %v7323 = vsub.f32 %v7239, %v7307
        %v7324 = vsub.f32 %v7240, %v7308
        %v7325 = vsub.f32 %v7241, %v7309
        %v7326 = vsub.f32 %v7242, %v7310
        %v7327 = vsub.f32 %v7243, %v7311
        %v7328 = vsub.f32 %v7244, %v7312
        %v7329 = vsub.f32 %v7245, %v7313
        %v7330 = vsub.f32 %v7246, %v7314
        %v7331 = vsub.f32 %v7247, %v7315
        %v7332 = vmul.f32 %v7316, %v7316
        %v7333 = vmul.f32 %v7317, %v7317
        %v7334 = vmul.f32 %v7318, %v7318
        %v7335 = vmul.f32 %v7319, %v7319
        %v7336 = vmul.f32 %v7320, %v7320
        %v7337 = vmul.f32 %v7321, %v7321
        %v7338 = vmul.f32 %v7322, %v7322
        %v7339 = vmul.f32 %v7323, %v7323
        %v7340 = vmul.f32 %v7324, %v7324
        %v7341 = vmul.f32 %v7325, %v7325
        %v7342 = vmul.f32 %v7326, %v7326
        %v7343 = vmul.f32 %v7327, %v7327
        %v7344 = vmul.f32 %v7328, %v7328
        %v7345 = vmul.f32 %v7329, %v7329
        %v7346 = vmul.f32 %v7330, %v7330
        %v7347 = vmul.f32 %v7331, %v7331
        %v7348 = vsel %vm1723, %v7332, 0.0
        %7349 = vadd.xlane.f32.xlu0 %v7348
        %v7350 = vpop.xlane.xlu0 %7349
        %v7351 = vsel %vm1723, %v7333, 0.0
        %7352 = vadd.xlane.f32.xlu0 %v7351
        %v7353 = vpop.xlane.xlu0 %7352
        %v7354 = vsel %vm1723, %v7334, 0.0
        %7355 = vadd.xlane.f32.xlu0 %v7354
        %v7356 = vpop.xlane.xlu0 %7355
        %v7357 = vsel %vm1723, %v7335, 0.0
        %7358 = vadd.xlane.f32.xlu0 %v7357
        %v7359 = vpop.xlane.xlu0 %7358
        %v7360 = vsel %vm1723, %v7336, 0.0
        %7361 = vadd.xlane.f32.xlu0 %v7360
        %v7362 = vpop.xlane.xlu0 %7361
        %v7363 = vsel %vm1723, %v7337, 0.0
        %7364 = vadd.xlane.f32.xlu0 %v7363
        %v7365 = vpop.xlane.xlu0 %7364
        %v7366 = vsel %vm1723, %v7338, 0.0
        %7367 = vadd.xlane.f32.xlu0 %v7366
        %v7368 = vpop.xlane.xlu0 %7367
        %v7369 = vsel %vm1723, %v7339, 0.0
        %7370 = vadd.xlane.f32.xlu0 %v7369
        %v7371 = vpop.xlane.xlu0 %7370
        %v7372 = vsel %vm1723, %v7340, 0.0
        %7373 = vadd.xlane.f32.xlu0 %v7372
        %v7374 = vpop.xlane.xlu0 %7373
        %v7375 = vsel %vm1723, %v7341, 0.0
        %7376 = vadd.xlane.f32.xlu0 %v7375
        %v7377 = vpop.xlane.xlu0 %7376
        %v7378 = vsel %vm1723, %v7342, 0.0
        %7379 = vadd.xlane.f32.xlu0 %v7378
        %v7380 = vpop.xlane.xlu0 %7379
        %v7381 = vsel %vm1723, %v7343, 0.0
        %7382 = vadd.xlane.f32.xlu0 %v7381
        %v7383 = vpop.xlane.xlu0 %7382
        %v7384 = vsel %vm1723, %v7344, 0.0
        %7385 = vadd.xlane.f32.xlu0 %v7384
        %v7386 = vpop.xlane.xlu0 %7385
        %v7387 = vsel %vm1723, %v7345, 0.0
        %7388 = vadd.xlane.f32.xlu0 %v7387
        %v7389 = vpop.xlane.xlu0 %7388
        %v7390 = vsel %vm1723, %v7346, 0.0
        %7391 = vadd.xlane.f32.xlu0 %v7390
        %v7392 = vpop.xlane.xlu0 %7391
        %v7393 = vsel %vm1723, %v7347, 0.0
        %7394 = vadd.xlane.f32.xlu0 %v7393
        %v7395 = vpop.xlane.xlu0 %7394
        %v7396 = vmul.f32 %v7350, %v4045
        %v7397 = vmul.f32 %v7353, %v4045
        %v7398 = vmul.f32 %v7356, %v4045
        %v7399 = vmul.f32 %v7359, %v4045
        %v7400 = vmul.f32 %v7362, %v4045
        %v7401 = vmul.f32 %v7365, %v4045
        %v7402 = vmul.f32 %v7368, %v4045
        %v7403 = vmul.f32 %v7371, %v4045
        %v7404 = vmul.f32 %v7374, %v4045
        %v7405 = vmul.f32 %v7377, %v4045
        %v7406 = vmul.f32 %v7380, %v4045
        %v7407 = vmul.f32 %v7383, %v4045
        %v7408 = vmul.f32 %v7386, %v4045
        %v7409 = vmul.f32 %v7389, %v4045
        %v7410 = vmul.f32 %v7392, %v4045
        %v7411 = vmul.f32 %v7395, %v4045
        %v7412 = vadd.f32 %v7396, 1e-05
        %v7413 = vadd.f32 %v7397, 1e-05
        %v7414 = vadd.f32 %v7398, 1e-05
        %v7415 = vadd.f32 %v7399, 1e-05
        %v7416 = vadd.f32 %v7400, 1e-05
        %v7417 = vadd.f32 %v7401, 1e-05
        %v7418 = vadd.f32 %v7402, 1e-05
        %v7419 = vadd.f32 %v7403, 1e-05
        %v7420 = vadd.f32 %v7404, 1e-05
        %v7421 = vadd.f32 %v7405, 1e-05
        %v7422 = vadd.f32 %v7406, 1e-05
        %v7423 = vadd.f32 %v7407, 1e-05
        %v7424 = vadd.f32 %v7408, 1e-05
        %v7425 = vadd.f32 %v7409, 1e-05
        %v7426 = vadd.f32 %v7410, 1e-05
        %v7427 = vadd.f32 %v7411, 1e-05
        %v7428 = vrsqrt.pop %v7412
        %v7429 = vrsqrt.pop %v7413
        %v7430 = vrsqrt.pop %v7414
        %v7431 = vrsqrt.pop %v7415
        %v7432 = vrsqrt.pop %v7416
        %v7433 = vrsqrt.pop %v7417
        %v7434 = vrsqrt.pop %v7418
        %v7435 = vrsqrt.pop %v7419
        %v7436 = vrsqrt.pop %v7420
        %v7437 = vrsqrt.pop %v7421
        %v7438 = vrsqrt.pop %v7422
        %v7439 = vrsqrt.pop %v7423
        %v7440 = vrsqrt.pop %v7424
        %v7441 = vrsqrt.pop %v7425
        %v7442 = vrsqrt.pop %v7426
        %v7443 = vrsqrt.pop %v7427
        %v7444 = vmul.f32 %v7316, %v7428
        %v7445 = vmul.f32 %v7317, %v7429
        %v7446 = vmul.f32 %v7318, %v7430
        %v7447 = vmul.f32 %v7319, %v7431
        %v7448 = vmul.f32 %v7320, %v7432
        %v7449 = vmul.f32 %v7321, %v7433
        %v7450 = vmul.f32 %v7322, %v7434
        %v7451 = vmul.f32 %v7323, %v7435
        %v7452 = vmul.f32 %v7324, %v7436
        %v7453 = vmul.f32 %v7325, %v7437
        %v7454 = vmul.f32 %v7326, %v7438
        %v7455 = vmul.f32 %v7327, %v7439
        %v7456 = vmul.f32 %v7328, %v7440
        %v7457 = vmul.f32 %v7329, %v7441
        %v7458 = vmul.f32 %v7330, %v7442
        %v7459 = vmul.f32 %v7331, %v7443
        %v7461 = vlaneseq
        %v7462 = vshrl.u32 %v7461, 7
        %v7463 = vsub.s32 0, %v7462
        %v7464 = vrot.slane %v7249, %v7463
        %v7466 = vmul.f32 %v7444, %v7464
        %v7467 = vmul.f32 %v7445, %v7464
        %v7468 = vmul.f32 %v7446, %v7464
        %v7469 = vmul.f32 %v7447, %v7464
        %v7470 = vmul.f32 %v7448, %v7464
        %v7471 = vmul.f32 %v7449, %v7464
        %v7472 = vmul.f32 %v7450, %v7464
        %v7473 = vmul.f32 %v7451, %v7464
        %v7474 = vmul.f32 %v7452, %v7464
        %v7475 = vmul.f32 %v7453, %v7464
        %v7476 = vmul.f32 %v7454, %v7464
        %v7477 = vmul.f32 %v7455, %v7464
        %v7478 = vmul.f32 %v7456, %v7464
        %v7479 = vmul.f32 %v7457, %v7464
        %v7480 = vmul.f32 %v7458, %v7464
        %v7481 = vmul.f32 %v7459, %v7464
        %v7483 = vlaneseq
        %v7484 = vshrl.u32 %v7483, 7
        %v7485 = vsub.s32 0, %v7484
        %v7486 = vrot.slane %v7251, %v7485
        %v7488 = vadd.f32 %v7466, %v7486
        %v7489 = vadd.f32 %v7467, %v7486
        %v7490 = vadd.f32 %v7468, %v7486
        %v7491 = vadd.f32 %v7469, %v7486
        %v7492 = vadd.f32 %v7470, %v7486
        %v7493 = vadd.f32 %v7471, %v7486
        %v7494 = vadd.f32 %v7472, %v7486
        %v7495 = vadd.f32 %v7473, %v7486
        %v7496 = vadd.f32 %v7474, %v7486
        %v7497 = vadd.f32 %v7475, %v7486
        %v7498 = vadd.f32 %v7476, %v7486
        %v7499 = vadd.f32 %v7477, %v7486
        %v7500 = vadd.f32 %v7478, %v7486
        %v7501 = vadd.f32 %v7479, %v7486
        %v7502 = vadd.f32 %v7480, %v7486
        %v7503 = vadd.f32 %v7481, %v7486
        %s7504 = scalar_lea.vmem %s13, 16
        %v7505 = vld [vmem:[%s7504] sm:$0xf]
        %v7506 = vld [vmem:[%s7504 + $0x4] sm:$0xf]
        %v7507 = vld [vmem:[%s7504 + $0x8] sm:$0xf]
        %v7508 = vld [vmem:[%s7504 + $0xc] sm:$0xf]
        %v7509 = vpack.c.bf16 %v7489, %v7488
        %v7510 = vpack.c.bf16 %v7491, %v7490
        %v7511 = vpack.c.bf16 %v7493, %v7492
        %v7512 = vpack.c.bf16 %v7495, %v7494
        %v7513 = vpack.c.bf16 %v7497, %v7496
        %v7514 = vpack.c.bf16 %v7499, %v7498
        %v7515 = vpack.c.bf16 %v7501, %v7500
        %v7516 = vpack.c.bf16 %v7503, %v7502
        %s7517 = scalar_lea.vmem %s14, 1
        %v7518 = vld [vmem:[%s7517] sm:$0x1]
        %v7520 = vlaneseq
        %v7521 = vshrl.u32 %v7520, 7
        %v7522 = vsub.s32 0, %v7521
        %v7523 = vrot.slane %v7518, %v7522
        %v7529 = vunpack.c.l.b16 %v7505
        %v7530 = vunpack.c.l.b16 %v7506
        %v7531 = vunpack.c.l.b16 %v7507
        %v7532 = vunpack.c.l.b16 %v7508
        %v7533 = vpack.c.b16 %v7530, %v7529
        %v7534 = vpack.c.b16 %v7532, %v7531
        %v7536 = vsel %vm1723, %v7509, 0
        %v7539 = vsel %vm1723, %v7510, 0
        %v7542 = vsel %vm1723, %v7511, 0
        %v7545 = vsel %vm1723, %v7512, 0
        %v7548 = vsel %vm1723, %v7513, 0
        %v7551 = vsel %vm1723, %v7514, 0
        %v7554 = vsel %vm1723, %v7515, 0
        %v7557 = vsel %vm1723, %v7516, 0
        %v7560 = vsel %vm1723, %v7533, 0
        %v7563 = vsel %vm1723, %v7534, 0
        %7565 = vmatprep.subr.bf16.mxu0 0
        %7566 = vmatpush1.bf16.xpose.msra.mxu0 %v7560
        %7567 = vmatprep.subr.bf16.mxu0 0
        %7568 = vmatpush1.bf16.xpose.msra.mxu0 %v7563
        %7569 = vmatprep.subr.bf16.mxu0 0
        %7570 = vmatpush1.bf16.xpose.msra.mxu0 0
        %7571 = vmatprep.subr.bf16.mxu0 0
        %7572 = vmatpush1.bf16.xpose.msra.mxu0 0
        %7573 = vmatprep.subr.bf16.mxu0 0
        %7574 = vmatpush1.bf16.xpose.msra.mxu0 0
        %7575 = vmatprep.subr.bf16.mxu0 0
        %7576 = vmatpush1.bf16.xpose.msra.mxu0 0
        %7577 = vmatprep.subr.bf16.mxu0 0
        %7578 = vmatpush1.bf16.xpose.msra.mxu0 0
        %7579 = vmatprep.subr.bf16.mxu0 0
        %7580 = vmatpush1.bf16.xpose.msra.mxu0 0
        %7581 = vmatprep.subr.bf16.mxu0 0
        %7582 = vmatpush1.bf16.xpose.msra.mxu0 0
        %7583 = vmatprep.subr.bf16.mxu0 0
        %7584 = vmatpush1.bf16.xpose.msra.mxu0 0
        %7585 = vmatprep.subr.bf16.mxu0 0
        %7586 = vmatpush1.bf16.xpose.msra.mxu0 0
        %7587 = vmatprep.subr.bf16.mxu0 0
        %7588 = vmatpush1.bf16.xpose.msra.mxu0 0
        %7589 = vmatprep.subr.bf16.mxu0 0
        %7590 = vmatpush1.bf16.xpose.msra.mxu0 0
        %7591 = vmatprep.subr.bf16.mxu0 0
        %7592 = vmatpush1.bf16.xpose.msra.mxu0 0
        %7593 = vmatprep.subr.bf16.mxu0 0
        %7594 = vmatpush1.bf16.xpose.msra.mxu0 0
        %7595 = vmatprep.subr.bf16.mxu0 0
        %7596 = vmatpush1.bf16.xpose.msra.mxu0 0
        %7597 = vmatprep.mubr.bf16.mxu0 0
        %7598 = vmatmul.mubr.bf16.gmra.mrb[0].mxu0 %v7536
        %v7599 = vpop.f32.mrb[0].mxu0
        %v7600 = vadd.f32 %v7523, %v7599
        %v7601 = vpop.f32.mrb[0].mxu0
        %v7602 = vpop.f32.mrb[0].mxu0
        %v7603 = vadd.f32 %v7523, %v7602
        %v7604 = vpop.f32.mrb[0].mxu0
        %7605 = vmatprep.mubr.bf16.mxu0 0
        %7606 = vmatmul.mubr.bf16.gmra.mrb[0].mxu0 %v7539
        %v7607 = vpop.f32.mrb[0].mxu0
        %v7608 = vadd.f32 %v7523, %v7607
        %v7609 = vpop.f32.mrb[0].mxu0
        %v7610 = vpop.f32.mrb[0].mxu0
        %v7611 = vadd.f32 %v7523, %v7610
        %v7612 = vpop.f32.mrb[0].mxu0
        %7613 = vmatprep.mubr.bf16.mxu0 0
        %7614 = vmatmul.mubr.bf16.gmra.mrb[0].mxu0 %v7542
        %v7615 = vpop.f32.mrb[0].mxu0
        %v7616 = vadd.f32 %v7523, %v7615
        %v7617 = vpop.f32.mrb[0].mxu0
        %v7618 = vpop.f32.mrb[0].mxu0
        %v7619 = vadd.f32 %v7523, %v7618
        %v7620 = vpop.f32.mrb[0].mxu0
        %7621 = vmatprep.mubr.bf16.mxu0 0
        %7622 = vmatmul.mubr.bf16.gmra.mrb[0].mxu0 %v7545
        %v7623 = vpop.f32.mrb[0].mxu0
        %v7624 = vadd.f32 %v7523, %v7623
        %v7625 = vpop.f32.mrb[0].mxu0
        %v7626 = vpop.f32.mrb[0].mxu0
        %v7627 = vadd.f32 %v7523, %v7626
        %v7628 = vpop.f32.mrb[0].mxu0
        %7629 = vmatprep.mubr.bf16.mxu0 0
        %7630 = vmatmul.mubr.bf16.gmra.mrb[0].mxu0 %v7548
        %v7631 = vpop.f32.mrb[0].mxu0
        %v7632 = vadd.f32 %v7523, %v7631
        %v7633 = vpop.f32.mrb[0].mxu0
        %v7634 = vpop.f32.mrb[0].mxu0
        %v7635 = vadd.f32 %v7523, %v7634
        %v7636 = vpop.f32.mrb[0].mxu0
        %7637 = vmatprep.mubr.bf16.mxu0 0
        %7638 = vmatmul.mubr.bf16.gmra.mrb[0].mxu0 %v7551
        %v7639 = vpop.f32.mrb[0].mxu0
        %v7640 = vadd.f32 %v7523, %v7639
        %v7641 = vpop.f32.mrb[0].mxu0
        %v7642 = vpop.f32.mrb[0].mxu0
        %v7643 = vadd.f32 %v7523, %v7642
        %v7644 = vpop.f32.mrb[0].mxu0
        %7645 = vmatprep.mubr.bf16.mxu0 0
        %7646 = vmatmul.mubr.bf16.gmra.mrb[0].mxu0 %v7554
        %v7647 = vpop.f32.mrb[0].mxu0
        %v7648 = vadd.f32 %v7523, %v7647
        %v7649 = vpop.f32.mrb[0].mxu0
        %v7650 = vpop.f32.mrb[0].mxu0
        %v7651 = vadd.f32 %v7523, %v7650
        %v7652 = vpop.f32.mrb[0].mxu0
        %7653 = vmatprep.mubr.bf16.mxu0 0
        %7654 = vmatmul.mubr.bf16.gmra.mrb[0].mxu0 %v7557
        %v7655 = vpop.f32.mrb[0].mxu0
        %v7656 = vadd.f32 %v7523, %v7655
        %v7657 = vpop.f32.mrb[0].mxu0
        %v7658 = vpop.f32.mrb[0].mxu0
        %v7659 = vadd.f32 %v7523, %v7658
        %v7660 = vpop.f32.mrb[0].mxu0
        %7661 = vdwg.mxu0
        %v7662 = vmul.f32 %v7600, 0.5
        %v7663 = vmul.f32 %v7603, 0.5
        %v7664 = vmul.f32 %v7608, 0.5
        %v7665 = vmul.f32 %v7611, 0.5
        %v7666 = vmul.f32 %v7616, 0.5
        %v7667 = vmul.f32 %v7619, 0.5
        %v7668 = vmul.f32 %v7624, 0.5
        %v7669 = vmul.f32 %v7627, 0.5
        %v7670 = vmul.f32 %v7632, 0.5
        %v7671 = vmul.f32 %v7635, 0.5
        %v7672 = vmul.f32 %v7640, 0.5
        %v7673 = vmul.f32 %v7643, 0.5
        %v7674 = vmul.f32 %v7648, 0.5
        %v7675 = vmul.f32 %v7651, 0.5
        %v7676 = vmul.f32 %v7656, 0.5
        %v7677 = vmul.f32 %v7659, 0.5
        %v7678 = vmul.f32 %v7600, 0.044715
        %v7679 = vmul.f32 %v7603, 0.044715
        %v7680 = vmul.f32 %v7608, 0.044715
        %v7681 = vmul.f32 %v7611, 0.044715
        %v7682 = vmul.f32 %v7616, 0.044715
        %v7683 = vmul.f32 %v7619, 0.044715
        %v7684 = vmul.f32 %v7624, 0.044715
        %v7685 = vmul.f32 %v7627, 0.044715
        %v7686 = vmul.f32 %v7632, 0.044715
        %v7687 = vmul.f32 %v7635, 0.044715
        %v7688 = vmul.f32 %v7640, 0.044715
        %v7689 = vmul.f32 %v7643, 0.044715
        %v7690 = vmul.f32 %v7648, 0.044715
        %v7691 = vmul.f32 %v7651, 0.044715
        %v7692 = vmul.f32 %v7656, 0.044715
        %v7693 = vmul.f32 %v7659, 0.044715
        %v7694 = vmul.f32 %v7678, %v7600
        %v7695 = vmul.f32 %v7679, %v7603
        %v7696 = vmul.f32 %v7680, %v7608
        %v7697 = vmul.f32 %v7681, %v7611
        %v7698 = vmul.f32 %v7682, %v7616
        %v7699 = vmul.f32 %v7683, %v7619
        %v7700 = vmul.f32 %v7684, %v7624
        %v7701 = vmul.f32 %v7685, %v7627
        %v7702 = vmul.f32 %v7686, %v7632
        %v7703 = vmul.f32 %v7687, %v7635
        %v7704 = vmul.f32 %v7688, %v7640
        %v7705 = vmul.f32 %v7689, %v7643
        %v7706 = vmul.f32 %v7690, %v7648
        %v7707 = vmul.f32 %v7691, %v7651
        %v7708 = vmul.f32 %v7692, %v7656
        %v7709 = vmul.f32 %v7693, %v7659
        %v7710 = vmul.f32 %v7694, %v7600
        %v7711 = vmul.f32 %v7695, %v7603
        %v7712 = vmul.f32 %v7696, %v7608
        %v7713 = vmul.f32 %v7697, %v7611
        %v7714 = vmul.f32 %v7698, %v7616
        %v7715 = vmul.f32 %v7699, %v7619
        %v7716 = vmul.f32 %v7700, %v7624
        %v7717 = vmul.f32 %v7701, %v7627
        %v7718 = vmul.f32 %v7702, %v7632
        %v7719 = vmul.f32 %v7703, %v7635
        %v7720 = vmul.f32 %v7704, %v7640
        %v7721 = vmul.f32 %v7705, %v7643
        %v7722 = vmul.f32 %v7706, %v7648
        %v7723 = vmul.f32 %v7707, %v7651
        %v7724 = vmul.f32 %v7708, %v7656
        %v7725 = vmul.f32 %v7709, %v7659
        %v7726 = vadd.f32 %v7600, %v7710
        %v7727 = vadd.f32 %v7603, %v7711
        %v7728 = vadd.f32 %v7608, %v7712
        %v7729 = vadd.f32 %v7611, %v7713
        %v7730 = vadd.f32 %v7616, %v7714
        %v7731 = vadd.f32 %v7619, %v7715
        %v7732 = vadd.f32 %v7624, %v7716
        %v7733 = vadd.f32 %v7627, %v7717
        %v7734 = vadd.f32 %v7632, %v7718
        %v7735 = vadd.f32 %v7635, %v7719
        %v7736 = vadd.f32 %v7640, %v7720
        %v7737 = vadd.f32 %v7643, %v7721
        %v7738 = vadd.f32 %v7648, %v7722
        %v7739 = vadd.f32 %v7651, %v7723
        %v7740 = vadd.f32 %v7656, %v7724
        %v7741 = vadd.f32 %v7659, %v7725
        %v7742 = vmul.f32 %v7726, 0.7978846
        %v7743 = vmul.f32 %v7727, 0.7978846
        %v7744 = vmul.f32 %v7728, 0.7978846
        %v7745 = vmul.f32 %v7729, 0.7978846
        %v7746 = vmul.f32 %v7730, 0.7978846
        %v7747 = vmul.f32 %v7731, 0.7978846
        %v7748 = vmul.f32 %v7732, 0.7978846
        %v7749 = vmul.f32 %v7733, 0.7978846
        %v7750 = vmul.f32 %v7734, 0.7978846
        %v7751 = vmul.f32 %v7735, 0.7978846
        %v7752 = vmul.f32 %v7736, 0.7978846
        %v7753 = vmul.f32 %v7737, 0.7978846
        %v7754 = vmul.f32 %v7738, 0.7978846
        %v7755 = vmul.f32 %v7739, 0.7978846
        %v7756 = vmul.f32 %v7740, 0.7978846
        %v7757 = vmul.f32 %v7741, 0.7978846
        %v7758 = vtanh.pop %v7742
        %v7759 = vtanh.pop %v7743
        %v7760 = vtanh.pop %v7744
        %v7761 = vtanh.pop %v7745
        %v7762 = vtanh.pop %v7746
        %v7763 = vtanh.pop %v7747
        %v7764 = vtanh.pop %v7748
        %v7765 = vtanh.pop %v7749
        %v7766 = vtanh.pop %v7750
        %v7767 = vtanh.pop %v7751
        %v7768 = vtanh.pop %v7752
        %v7769 = vtanh.pop %v7753
        %v7770 = vtanh.pop %v7754
        %v7771 = vtanh.pop %v7755
        %v7772 = vtanh.pop %v7756
        %v7773 = vtanh.pop %v7757
        %v7774 = vadd.f32 %v7758, 1.0
        %v7775 = vadd.f32 %v7759, 1.0
        %v7776 = vadd.f32 %v7760, 1.0
        %v7777 = vadd.f32 %v7761, 1.0
        %v7778 = vadd.f32 %v7762, 1.0
        %v7779 = vadd.f32 %v7763, 1.0
        %v7780 = vadd.f32 %v7764, 1.0
        %v7781 = vadd.f32 %v7765, 1.0
        %v7782 = vadd.f32 %v7766, 1.0
        %v7783 = vadd.f32 %v7767, 1.0
        %v7784 = vadd.f32 %v7768, 1.0
        %v7785 = vadd.f32 %v7769, 1.0
        %v7786 = vadd.f32 %v7770, 1.0
        %v7787 = vadd.f32 %v7771, 1.0
        %v7788 = vadd.f32 %v7772, 1.0
        %v7789 = vadd.f32 %v7773, 1.0
        %v7790 = vmul.f32 %v7662, %v7774
        %v7791 = vmul.f32 %v7663, %v7775
        %v7792 = vmul.f32 %v7664, %v7776
        %v7793 = vmul.f32 %v7665, %v7777
        %v7794 = vmul.f32 %v7666, %v7778
        %v7795 = vmul.f32 %v7667, %v7779
        %v7796 = vmul.f32 %v7668, %v7780
        %v7797 = vmul.f32 %v7669, %v7781
        %v7798 = vmul.f32 %v7670, %v7782
        %v7799 = vmul.f32 %v7671, %v7783
        %v7800 = vmul.f32 %v7672, %v7784
        %v7801 = vmul.f32 %v7673, %v7785
        %v7802 = vmul.f32 %v7674, %v7786
        %v7803 = vmul.f32 %v7675, %v7787
        %v7804 = vmul.f32 %v7676, %v7788
        %v7805 = vmul.f32 %v7677, %v7789
        %s7806 = scalar_lea.vmem %s15, 16
        %v7807 = vld [vmem:[%s7806] sm:$0xf]
        %v7808 = vld [vmem:[%s7806 + $0x4] sm:$0xf]
        %v7809 = vld [vmem:[%s7806 + $0x8] sm:$0xf]
        %v7810 = vld [vmem:[%s7806 + $0xc] sm:$0xf]
        %v7811 = vpack.c.bf16 %v7791, %v7790
        %v7812 = vpack.c.bf16 %v7793, %v7792
        %v7813 = vpack.c.bf16 %v7795, %v7794
        %v7814 = vpack.c.bf16 %v7797, %v7796
        %v7815 = vpack.c.bf16 %v7799, %v7798
        %v7816 = vpack.c.bf16 %v7801, %v7800
        %v7817 = vpack.c.bf16 %v7803, %v7802
        %v7818 = vpack.c.bf16 %v7805, %v7804
        %s7819 = scalar_lea.vmem %s16, 1
        %v7820 = vld [vmem:[%s7819] sm:$0x1]
        %v7822 = vlaneseq
        %v7823 = vshrl.u32 %v7822, 7
        %v7824 = vsub.s32 0, %v7823
        %v7825 = vrot.slane %v7820, %v7824
        %v7831 = vunpack.c.l.b16 %v7807
        %v7832 = vunpack.c.l.b16 %v7808
        %v7833 = vunpack.c.l.b16 %v7809
        %v7834 = vunpack.c.l.b16 %v7810
        %v7835 = vpack.c.b16 %v7832, %v7831
        %v7836 = vpack.c.b16 %v7834, %v7833
        %v7838 = vsel %vm1723, %v7811, 0
        %v7841 = vsel %vm1723, %v7812, 0
        %v7844 = vsel %vm1723, %v7813, 0
        %v7847 = vsel %vm1723, %v7814, 0
        %v7850 = vsel %vm1723, %v7815, 0
        %v7853 = vsel %vm1723, %v7816, 0
        %v7856 = vsel %vm1723, %v7817, 0
        %v7859 = vsel %vm1723, %v7818, 0
        %v7862 = vsel %vm1723, %v7835, 0
        %v7865 = vsel %vm1723, %v7836, 0
        %7867 = vmatprep.subr.bf16.mxu0 0
        %7868 = vmatpush1.bf16.xpose.msra.mxu0 %v7862
        %7869 = vmatprep.subr.bf16.mxu0 0
        %7870 = vmatpush1.bf16.xpose.msra.mxu0 %v7865
        %7871 = vmatprep.subr.bf16.mxu0 0
        %7872 = vmatpush1.bf16.xpose.msra.mxu0 0
        %7873 = vmatprep.subr.bf16.mxu0 0
        %7874 = vmatpush1.bf16.xpose.msra.mxu0 0
        %7875 = vmatprep.subr.bf16.mxu0 0
        %7876 = vmatpush1.bf16.xpose.msra.mxu0 0
        %7877 = vmatprep.subr.bf16.mxu0 0
        %7878 = vmatpush1.bf16.xpose.msra.mxu0 0
        %7879 = vmatprep.subr.bf16.mxu0 0
        %7880 = vmatpush1.bf16.xpose.msra.mxu0 0
        %7881 = vmatprep.subr.bf16.mxu0 0
        %7882 = vmatpush1.bf16.xpose.msra.mxu0 0
        %7883 = vmatprep.subr.bf16.mxu0 0
        %7884 = vmatpush1.bf16.xpose.msra.mxu0 0
        %7885 = vmatprep.subr.bf16.mxu0 0
        %7886 = vmatpush1.bf16.xpose.msra.mxu0 0
        %7887 = vmatprep.subr.bf16.mxu0 0
        %7888 = vmatpush1.bf16.xpose.msra.mxu0 0
        %7889 = vmatprep.subr.bf16.mxu0 0
        %7890 = vmatpush1.bf16.xpose.msra.mxu0 0
        %7891 = vmatprep.subr.bf16.mxu0 0
        %7892 = vmatpush1.bf16.xpose.msra.mxu0 0
        %7893 = vmatprep.subr.bf16.mxu0 0
        %7894 = vmatpush1.bf16.xpose.msra.mxu0 0
        %7895 = vmatprep.subr.bf16.mxu0 0
        %7896 = vmatpush1.bf16.xpose.msra.mxu0 0
        %7897 = vmatprep.subr.bf16.mxu0 0
        %7898 = vmatpush1.bf16.xpose.msra.mxu0 0
        %7899 = vmatprep.mubr.bf16.mxu0 0
        %7900 = vmatmul.mubr.bf16.gmra.mrb[0].mxu0 %v7838
        %v7901 = vpop.f32.mrb[0].mxu0
        %v7902 = vadd.f32 %v7825, %v7901
        %v7903 = vpop.f32.mrb[0].mxu0
        %v7904 = vpop.f32.mrb[0].mxu0
        %v7905 = vadd.f32 %v7825, %v7904
        %v7906 = vpop.f32.mrb[0].mxu0
        %7907 = vmatprep.mubr.bf16.mxu0 0
        %7908 = vmatmul.mubr.bf16.gmra.mrb[0].mxu0 %v7841
        %v7909 = vpop.f32.mrb[0].mxu0
        %v7910 = vadd.f32 %v7825, %v7909
        %v7911 = vpop.f32.mrb[0].mxu0
        %v7912 = vpop.f32.mrb[0].mxu0
        %v7913 = vadd.f32 %v7825, %v7912
        %v7914 = vpop.f32.mrb[0].mxu0
        %7915 = vmatprep.mubr.bf16.mxu0 0
        %7916 = vmatmul.mubr.bf16.gmra.mrb[0].mxu0 %v7844
        %v7917 = vpop.f32.mrb[0].mxu0
        %v7918 = vadd.f32 %v7825, %v7917
        %v7919 = vpop.f32.mrb[0].mxu0
        %v7920 = vpop.f32.mrb[0].mxu0
        %v7921 = vadd.f32 %v7825, %v7920
        %v7922 = vpop.f32.mrb[0].mxu0
        %7923 = vmatprep.mubr.bf16.mxu0 0
        %7924 = vmatmul.mubr.bf16.gmra.mrb[0].mxu0 %v7847
        %v7925 = vpop.f32.mrb[0].mxu0
        %v7926 = vadd.f32 %v7825, %v7925
        %v7927 = vpop.f32.mrb[0].mxu0
        %v7928 = vpop.f32.mrb[0].mxu0
        %v7929 = vadd.f32 %v7825, %v7928
        %v7930 = vpop.f32.mrb[0].mxu0
        %7931 = vmatprep.mubr.bf16.mxu0 0
        %7932 = vmatmul.mubr.bf16.gmra.mrb[0].mxu0 %v7850
        %v7933 = vpop.f32.mrb[0].mxu0
        %v7934 = vadd.f32 %v7825, %v7933
        %v7935 = vpop.f32.mrb[0].mxu0
        %v7936 = vpop.f32.mrb[0].mxu0
        %v7937 = vadd.f32 %v7825, %v7936
        %v7938 = vpop.f32.mrb[0].mxu0
        %7939 = vmatprep.mubr.bf16.mxu0 0
        %7940 = vmatmul.mubr.bf16.gmra.mrb[0].mxu0 %v7853
        %v7941 = vpop.f32.mrb[0].mxu0
        %v7942 = vadd.f32 %v7825, %v7941
        %v7943 = vpop.f32.mrb[0].mxu0
        %v7944 = vpop.f32.mrb[0].mxu0
        %v7945 = vadd.f32 %v7825, %v7944
        %v7946 = vpop.f32.mrb[0].mxu0
        %7947 = vmatprep.mubr.bf16.mxu0 0
        %7948 = vmatmul.mubr.bf16.gmra.mrb[0].mxu0 %v7856
        %v7949 = vpop.f32.mrb[0].mxu0
        %v7950 = vadd.f32 %v7825, %v7949
        %v7951 = vpop.f32.mrb[0].mxu0
        %v7952 = vpop.f32.mrb[0].mxu0
        %v7953 = vadd.f32 %v7825, %v7952
        %v7954 = vpop.f32.mrb[0].mxu0
        %7955 = vmatprep.mubr.bf16.mxu0 0
        %7956 = vmatmul.mubr.bf16.gmra.mrb[0].mxu0 %v7859
        %v7957 = vpop.f32.mrb[0].mxu0
        %v7958 = vadd.f32 %v7825, %v7957
        %v7959 = vpop.f32.mrb[0].mxu0
        %v7960 = vpop.f32.mrb[0].mxu0
        %v7961 = vadd.f32 %v7825, %v7960
        %v7962 = vpop.f32.mrb[0].mxu0
        %7963 = vdwg.mxu0
        %v7964 = vadd.f32 %v7488, %v7902
        %v7965 = vadd.f32 %v7489, %v7905
        %v7966 = vadd.f32 %v7490, %v7910
        %v7967 = vadd.f32 %v7491, %v7913
        %v7968 = vadd.f32 %v7492, %v7918
        %v7969 = vadd.f32 %v7493, %v7921
        %v7970 = vadd.f32 %v7494, %v7926
        %v7971 = vadd.f32 %v7495, %v7929
        %v7972 = vadd.f32 %v7496, %v7934
        %v7973 = vadd.f32 %v7497, %v7937
        %v7974 = vadd.f32 %v7498, %v7942
        %v7975 = vadd.f32 %v7499, %v7945
        %v7976 = vadd.f32 %v7500, %v7950
        %v7977 = vadd.f32 %v7501, %v7953
        %v7978 = vadd.f32 %v7502, %v7958
        %v7979 = vadd.f32 %v7503, %v7961
        %s7980 = scalar_lea.vmem %s17, 1
        %v7981 = vld [vmem:[%s7980] sm:$0x1]
        %s7982 = scalar_lea.vmem %s18, 1
        %v7983 = vld [vmem:[%s7982] sm:$0x1]
        %v7984 = vsel %vm1723, %v7964, 0.0
        %7985 = vadd.xlane.f32.xlu0 %v7984
        %v7986 = vpop.xlane.xlu0 %7985
        %v7987 = vsel %vm1723, %v7965, 0.0
        %7988 = vadd.xlane.f32.xlu0 %v7987
        %v7989 = vpop.xlane.xlu0 %7988
        %v7990 = vsel %vm1723, %v7966, 0.0
        %7991 = vadd.xlane.f32.xlu0 %v7990
        %v7992 = vpop.xlane.xlu0 %7991
        %v7993 = vsel %vm1723, %v7967, 0.0
        %7994 = vadd.xlane.f32.xlu0 %v7993
        %v7995 = vpop.xlane.xlu0 %7994
        %v7996 = vsel %vm1723, %v7968, 0.0
        %7997 = vadd.xlane.f32.xlu0 %v7996
        %v7998 = vpop.xlane.xlu0 %7997
        %v7999 = vsel %vm1723, %v7969, 0.0
        %8000 = vadd.xlane.f32.xlu0 %v7999
        %v8001 = vpop.xlane.xlu0 %8000
        %v8002 = vsel %vm1723, %v7970, 0.0
        %8003 = vadd.xlane.f32.xlu0 %v8002
        %v8004 = vpop.xlane.xlu0 %8003
        %v8005 = vsel %vm1723, %v7971, 0.0
        %8006 = vadd.xlane.f32.xlu0 %v8005
        %v8007 = vpop.xlane.xlu0 %8006
        %v8008 = vsel %vm1723, %v7972, 0.0
        %8009 = vadd.xlane.f32.xlu0 %v8008
        %v8010 = vpop.xlane.xlu0 %8009
        %v8011 = vsel %vm1723, %v7973, 0.0
        %8012 = vadd.xlane.f32.xlu0 %v8011
        %v8013 = vpop.xlane.xlu0 %8012
        %v8014 = vsel %vm1723, %v7974, 0.0
        %8015 = vadd.xlane.f32.xlu0 %v8014
        %v8016 = vpop.xlane.xlu0 %8015
        %v8017 = vsel %vm1723, %v7975, 0.0
        %8018 = vadd.xlane.f32.xlu0 %v8017
        %v8019 = vpop.xlane.xlu0 %8018
        %v8020 = vsel %vm1723, %v7976, 0.0
        %8021 = vadd.xlane.f32.xlu0 %v8020
        %v8022 = vpop.xlane.xlu0 %8021
        %v8023 = vsel %vm1723, %v7977, 0.0
        %8024 = vadd.xlane.f32.xlu0 %v8023
        %v8025 = vpop.xlane.xlu0 %8024
        %v8026 = vsel %vm1723, %v7978, 0.0
        %8027 = vadd.xlane.f32.xlu0 %v8026
        %v8028 = vpop.xlane.xlu0 %8027
        %v8029 = vsel %vm1723, %v7979, 0.0
        %8030 = vadd.xlane.f32.xlu0 %v8029
        %v8031 = vpop.xlane.xlu0 %8030
        %v8032 = vmul.f32 %v7986, %v4045
        %v8033 = vmul.f32 %v7989, %v4045
        %v8034 = vmul.f32 %v7992, %v4045
        %v8035 = vmul.f32 %v7995, %v4045
        %v8036 = vmul.f32 %v7998, %v4045
        %v8037 = vmul.f32 %v8001, %v4045
        %v8038 = vmul.f32 %v8004, %v4045
        %v8039 = vmul.f32 %v8007, %v4045
        %v8040 = vmul.f32 %v8010, %v4045
        %v8041 = vmul.f32 %v8013, %v4045
        %v8042 = vmul.f32 %v8016, %v4045
        %v8043 = vmul.f32 %v8019, %v4045
        %v8044 = vmul.f32 %v8022, %v4045
        %v8045 = vmul.f32 %v8025, %v4045
        %v8046 = vmul.f32 %v8028, %v4045
        %v8047 = vmul.f32 %v8031, %v4045
        %v8048 = vsub.f32 %v7964, %v8032
        %v8049 = vsub.f32 %v7965, %v8033
        %v8050 = vsub.f32 %v7966, %v8034
        %v8051 = vsub.f32 %v7967, %v8035
        %v8052 = vsub.f32 %v7968, %v8036
        %v8053 = vsub.f32 %v7969, %v8037
        %v8054 = vsub.f32 %v7970, %v8038
        %v8055 = vsub.f32 %v7971, %v8039
        %v8056 = vsub.f32 %v7972, %v8040
        %v8057 = vsub.f32 %v7973, %v8041
        %v8058 = vsub.f32 %v7974, %v8042
        %v8059 = vsub.f32 %v7975, %v8043
        %v8060 = vsub.f32 %v7976, %v8044
        %v8061 = vsub.f32 %v7977, %v8045
        %v8062 = vsub.f32 %v7978, %v8046
        %v8063 = vsub.f32 %v7979, %v8047
        %v8064 = vmul.f32 %v8048, %v8048
        %v8065 = vmul.f32 %v8049, %v8049
        %v8066 = vmul.f32 %v8050, %v8050
        %v8067 = vmul.f32 %v8051, %v8051
        %v8068 = vmul.f32 %v8052, %v8052
        %v8069 = vmul.f32 %v8053, %v8053
        %v8070 = vmul.f32 %v8054, %v8054
        %v8071 = vmul.f32 %v8055, %v8055
        %v8072 = vmul.f32 %v8056, %v8056
        %v8073 = vmul.f32 %v8057, %v8057
        %v8074 = vmul.f32 %v8058, %v8058
        %v8075 = vmul.f32 %v8059, %v8059
        %v8076 = vmul.f32 %v8060, %v8060
        %v8077 = vmul.f32 %v8061, %v8061
        %v8078 = vmul.f32 %v8062, %v8062
        %v8079 = vmul.f32 %v8063, %v8063
        %v8080 = vsel %vm1723, %v8064, 0.0
        %8081 = vadd.xlane.f32.xlu0 %v8080
        %v8082 = vpop.xlane.xlu0 %8081
        %v8083 = vsel %vm1723, %v8065, 0.0
        %8084 = vadd.xlane.f32.xlu0 %v8083
        %v8085 = vpop.xlane.xlu0 %8084
        %v8086 = vsel %vm1723, %v8066, 0.0
        %8087 = vadd.xlane.f32.xlu0 %v8086
        %v8088 = vpop.xlane.xlu0 %8087
        %v8089 = vsel %vm1723, %v8067, 0.0
        %8090 = vadd.xlane.f32.xlu0 %v8089
        %v8091 = vpop.xlane.xlu0 %8090
        %v8092 = vsel %vm1723, %v8068, 0.0
        %8093 = vadd.xlane.f32.xlu0 %v8092
        %v8094 = vpop.xlane.xlu0 %8093
        %v8095 = vsel %vm1723, %v8069, 0.0
        %8096 = vadd.xlane.f32.xlu0 %v8095
        %v8097 = vpop.xlane.xlu0 %8096
        %v8098 = vsel %vm1723, %v8070, 0.0
        %8099 = vadd.xlane.f32.xlu0 %v8098
        %v8100 = vpop.xlane.xlu0 %8099
        %v8101 = vsel %vm1723, %v8071, 0.0
        %8102 = vadd.xlane.f32.xlu0 %v8101
        %v8103 = vpop.xlane.xlu0 %8102
        %v8104 = vsel %vm1723, %v8072, 0.0
        %8105 = vadd.xlane.f32.xlu0 %v8104
        %v8106 = vpop.xlane.xlu0 %8105
        %v8107 = vsel %vm1723, %v8073, 0.0
        %8108 = vadd.xlane.f32.xlu0 %v8107
        %v8109 = vpop.xlane.xlu0 %8108
        %v8110 = vsel %vm1723, %v8074, 0.0
        %8111 = vadd.xlane.f32.xlu0 %v8110
        %v8112 = vpop.xlane.xlu0 %8111
        %v8113 = vsel %vm1723, %v8075, 0.0
        %8114 = vadd.xlane.f32.xlu0 %v8113
        %v8115 = vpop.xlane.xlu0 %8114
        %v8116 = vsel %vm1723, %v8076, 0.0
        %8117 = vadd.xlane.f32.xlu0 %v8116
        %v8118 = vpop.xlane.xlu0 %8117
        %v8119 = vsel %vm1723, %v8077, 0.0
        %8120 = vadd.xlane.f32.xlu0 %v8119
        %v8121 = vpop.xlane.xlu0 %8120
        %v8122 = vsel %vm1723, %v8078, 0.0
        %8123 = vadd.xlane.f32.xlu0 %v8122
        %v8124 = vpop.xlane.xlu0 %8123
        %v8125 = vsel %vm1723, %v8079, 0.0
        %8126 = vadd.xlane.f32.xlu0 %v8125
        %v8127 = vpop.xlane.xlu0 %8126
        %v8128 = vmul.f32 %v8082, %v4045
        %v8129 = vmul.f32 %v8085, %v4045
        %v8130 = vmul.f32 %v8088, %v4045
        %v8131 = vmul.f32 %v8091, %v4045
        %v8132 = vmul.f32 %v8094, %v4045
        %v8133 = vmul.f32 %v8097, %v4045
        %v8134 = vmul.f32 %v8100, %v4045
        %v8135 = vmul.f32 %v8103, %v4045
        %v8136 = vmul.f32 %v8106, %v4045
        %v8137 = vmul.f32 %v8109, %v4045
        %v8138 = vmul.f32 %v8112, %v4045
        %v8139 = vmul.f32 %v8115, %v4045
        %v8140 = vmul.f32 %v8118, %v4045
        %v8141 = vmul.f32 %v8121, %v4045
        %v8142 = vmul.f32 %v8124, %v4045
        %v8143 = vmul.f32 %v8127, %v4045
        %v8144 = vadd.f32 %v8128, 1e-05
        %v8145 = vadd.f32 %v8129, 1e-05
        %v8146 = vadd.f32 %v8130, 1e-05
        %v8147 = vadd.f32 %v8131, 1e-05
        %v8148 = vadd.f32 %v8132, 1e-05
        %v8149 = vadd.f32 %v8133, 1e-05
        %v8150 = vadd.f32 %v8134, 1e-05
        %v8151 = vadd.f32 %v8135, 1e-05
        %v8152 = vadd.f32 %v8136, 1e-05
        %v8153 = vadd.f32 %v8137, 1e-05
        %v8154 = vadd.f32 %v8138, 1e-05
        %v8155 = vadd.f32 %v8139, 1e-05
        %v8156 = vadd.f32 %v8140, 1e-05
        %v8157 = vadd.f32 %v8141, 1e-05
        %v8158 = vadd.f32 %v8142, 1e-05
        %v8159 = vadd.f32 %v8143, 1e-05
        %v8160 = vrsqrt.pop %v8144
        %v8161 = vrsqrt.pop %v8145
        %v8162 = vrsqrt.pop %v8146
        %v8163 = vrsqrt.pop %v8147
        %v8164 = vrsqrt.pop %v8148
        %v8165 = vrsqrt.pop %v8149
        %v8166 = vrsqrt.pop %v8150
        %v8167 = vrsqrt.pop %v8151
        %v8168 = vrsqrt.pop %v8152
        %v8169 = vrsqrt.pop %v8153
        %v8170 = vrsqrt.pop %v8154
        %v8171 = vrsqrt.pop %v8155
        %v8172 = vrsqrt.pop %v8156
        %v8173 = vrsqrt.pop %v8157
        %v8174 = vrsqrt.pop %v8158
        %v8175 = vrsqrt.pop %v8159
        %v8176 = vmul.f32 %v8048, %v8160
        %v8177 = vmul.f32 %v8049, %v8161
        %v8178 = vmul.f32 %v8050, %v8162
        %v8179 = vmul.f32 %v8051, %v8163
        %v8180 = vmul.f32 %v8052, %v8164
        %v8181 = vmul.f32 %v8053, %v8165
        %v8182 = vmul.f32 %v8054, %v8166
        %v8183 = vmul.f32 %v8055, %v8167
        %v8184 = vmul.f32 %v8056, %v8168
        %v8185 = vmul.f32 %v8057, %v8169
        %v8186 = vmul.f32 %v8058, %v8170
        %v8187 = vmul.f32 %v8059, %v8171
        %v8188 = vmul.f32 %v8060, %v8172
        %v8189 = vmul.f32 %v8061, %v8173
        %v8190 = vmul.f32 %v8062, %v8174
        %v8191 = vmul.f32 %v8063, %v8175
        %v8193 = vlaneseq
        %v8194 = vshrl.u32 %v8193, 7
        %v8195 = vsub.s32 0, %v8194
        %v8196 = vrot.slane %v7981, %v8195
        %v8198 = vmul.f32 %v8176, %v8196
        %v8199 = vmul.f32 %v8177, %v8196
        %v8200 = vmul.f32 %v8178, %v8196
        %v8201 = vmul.f32 %v8179, %v8196
        %v8202 = vmul.f32 %v8180, %v8196
        %v8203 = vmul.f32 %v8181, %v8196
        %v8204 = vmul.f32 %v8182, %v8196
        %v8205 = vmul.f32 %v8183, %v8196
        %v8206 = vmul.f32 %v8184, %v8196
        %v8207 = vmul.f32 %v8185, %v8196
        %v8208 = vmul.f32 %v8186, %v8196
        %v8209 = vmul.f32 %v8187, %v8196
        %v8210 = vmul.f32 %v8188, %v8196
        %v8211 = vmul.f32 %v8189, %v8196
        %v8212 = vmul.f32 %v8190, %v8196
        %v8213 = vmul.f32 %v8191, %v8196
        %v8215 = vlaneseq
        %v8216 = vshrl.u32 %v8215, 7
        %v8217 = vsub.s32 0, %v8216
        %v8218 = vrot.slane %v7983, %v8217
        %v8220 = vadd.f32 %v8198, %v8218
        %v8221 = vadd.f32 %v8199, %v8218
        %v8222 = vadd.f32 %v8200, %v8218
        %v8223 = vadd.f32 %v8201, %v8218
        %v8224 = vadd.f32 %v8202, %v8218
        %v8225 = vadd.f32 %v8203, %v8218
        %v8226 = vadd.f32 %v8204, %v8218
        %v8227 = vadd.f32 %v8205, %v8218
        %v8228 = vadd.f32 %v8206, %v8218
        %v8229 = vadd.f32 %v8207, %v8218
        %v8230 = vadd.f32 %v8208, %v8218
        %v8231 = vadd.f32 %v8209, %v8218
        %v8232 = vadd.f32 %v8210, %v8218
        %v8233 = vadd.f32 %v8211, %v8218
        %v8234 = vadd.f32 %v8212, %v8218
        %v8235 = vadd.f32 %v8213, %v8218
        %v8236 = vld [vmem:[%s19] sm:$0x1]
        %v8237 = vld [vmem:[#allocation2] sm:$0x1]
        %8239 = vset.pattern.permute.xlu0 0
        %8240 = vperm.xlu0 %8239, %v8237
        %v8241 = vpop.permute.xlu0 %8240
        %v8243 = vlaneseq
        %v8244 = vshrl.u32 %v8243, 7
        %v8245 = vsub.s32 0, %v8244
        %v8246 = vrot.slane %v8241, %v8245
        %v8248 = vsel %vm1723, %v8236, 0
        %v8251 = vsel %vm1723, %v8220, 0
        %v8254 = vsel %vm1723, %v8221, 0
        %v8257 = vsel %vm1723, %v8222, 0
        %v8260 = vsel %vm1723, %v8223, 0
        %v8263 = vsel %vm1723, %v8224, 0
        %v8266 = vsel %vm1723, %v8225, 0
        %v8269 = vsel %vm1723, %v8226, 0
        %v8272 = vsel %vm1723, %v8227, 0
        %v8275 = vsel %vm1723, %v8228, 0
        %v8278 = vsel %vm1723, %v8229, 0
        %v8281 = vsel %vm1723, %v8230, 0
        %v8284 = vsel %vm1723, %v8231, 0
        %v8287 = vsel %vm1723, %v8232, 0
        %v8290 = vsel %vm1723, %v8233, 0
        %v8293 = vsel %vm1723, %v8234, 0
        %v8296 = vsel %vm1723, %v8235, 0
        %8298 = vmatprep.subr.mxu0 0.0
        %8299 = vmatpush1.xpose.msra.mxu0 %v8251
        %8300 = vmatprep.subr.mxu0 0.0
        %8301 = vmatpush1.xpose.msra.mxu0 %v8254
        %8302 = vmatprep.subr.mxu0 0.0
        %8303 = vmatpush1.xpose.msra.mxu0 %v8257
        %8304 = vmatprep.subr.mxu0 0.0
        %8305 = vmatpush1.xpose.msra.mxu0 %v8260
        %8306 = vmatprep.subr.mxu0 0.0
        %8307 = vmatpush1.xpose.msra.mxu0 %v8263
        %8308 = vmatprep.subr.mxu0 0.0
        %8309 = vmatpush1.xpose.msra.mxu0 %v8266
        %8310 = vmatprep.subr.mxu0 0.0
        %8311 = vmatpush1.xpose.msra.mxu0 %v8269
        %8312 = vmatprep.subr.mxu0 0.0
        %8313 = vmatpush1.xpose.msra.mxu0 %v8272
        %8314 = vmatprep.subr.mxu0 0.0
        %8315 = vmatpush1.xpose.msra.mxu0 %v8275
        %8316 = vmatprep.subr.mxu0 0.0
        %8317 = vmatpush1.xpose.msra.mxu0 %v8278
        %8318 = vmatprep.subr.mxu0 0.0
        %8319 = vmatpush1.xpose.msra.mxu0 %v8281
        %8320 = vmatprep.subr.mxu0 0.0
        %8321 = vmatpush1.xpose.msra.mxu0 %v8284
        %8322 = vmatprep.subr.mxu0 0.0
        %8323 = vmatpush1.xpose.msra.mxu0 %v8287
        %8324 = vmatprep.subr.mxu0 0.0
        %8325 = vmatpush1.xpose.msra.mxu0 %v8290
        %8326 = vmatprep.subr.mxu0 0.0
        %8327 = vmatpush1.xpose.msra.mxu0 %v8293
        %8328 = vmatprep.subr.mxu0 0.0
        %8329 = vmatpush1.xpose.msra.mxu0 %v8296
        %8330 = vmatprep.subr.mxu0 0.0
        %8331 = vmatpush1.xpose.msra.mxu0 0.0
        %8332 = vmatprep.subr.mxu0 0.0
        %8333 = vmatpush1.xpose.msra.mxu0 0.0
        %8334 = vmatprep.subr.mxu0 0.0
        %8335 = vmatpush1.xpose.msra.mxu0 0.0
        %8336 = vmatprep.subr.mxu0 0.0
        %8337 = vmatpush1.xpose.msra.mxu0 0.0
        %8338 = vmatprep.subr.mxu0 0.0
        %8339 = vmatpush1.xpose.msra.mxu0 0.0
        %8340 = vmatprep.subr.mxu0 0.0
        %8341 = vmatpush1.xpose.msra.mxu0 0.0
        %8342 = vmatprep.subr.mxu0 0.0
        %8343 = vmatpush1.xpose.msra.mxu0 0.0
        %8344 = vmatprep.subr.mxu0 0.0
        %8345 = vmatpush1.xpose.msra.mxu0 0.0
        %8346 = vmatprep.subr.mxu0 0.0
        %8347 = vmatpush1.xpose.msra.mxu0 0.0
        %8348 = vmatprep.subr.mxu0 0.0
        %8349 = vmatpush1.xpose.msra.mxu0 0.0
        %8350 = vmatprep.subr.mxu0 0.0
        %8351 = vmatpush1.xpose.msra.mxu0 0.0
        %8352 = vmatprep.subr.mxu0 0.0
        %8353 = vmatpush1.xpose.msra.mxu0 0.0
        %8354 = vmatprep.subr.mxu0 0.0
        %8355 = vmatpush1.xpose.msra.mxu0 0.0
        %8356 = vmatprep.subr.mxu0 0.0
        %8357 = vmatpush1.xpose.msra.mxu0 0.0
        %8358 = vmatprep.subr.mxu0 0.0
        %8359 = vmatpush1.xpose.msra.mxu0 0.0
        %8360 = vmatprep.subr.mxu0 0.0
        %8361 = vmatpush1.xpose.msra.mxu0 0.0
        %8362 = vmatprep.mubr.f32.mxu0 0.0
        %8363 = vmatmul.mubr.f32.gmra.mrb[0].mxu0 %v8248
        %v8364 = vpop.f32.mrb[0].mxu0
        %v8365 = vadd.f32 %v8246, %v8364
        %v8366 = vpop.f32.mrb[0].mxu0
        %8367 = vdwg.mxu0
        %vm8368 = vcmp.gt.f32.partialorder %v1111, 0.5
        %vm8369 = vcmp.gt.f32.partialorder %v1112, 0.5
        %vm8370 = vmand %vm8368, %vm1310
        %vm8371 = vmand %vm8369, %vm1310
        %v8372 = vlaneseq
        %v8373 = vshrl.u32 %v8372, 7
        %v8374 = vsub.s32 0, %v8373
        %v8375 = vrot.slane %v8365, %v8374
        %v8376 = vsel %vm8370, %v8375, -1e+30
        %v8377 = vsel %vm8371, %v8375, -1e+30
        %8378 = vmax.xlane.f32.xlu0 %v8376
        %v8379 = vpop.xlane.xlu0 %8378
        %8380 = vmax.xlane.f32.xlu0 %v8377
        %v8381 = vpop.xlane.xlu0 %8380
        %v8382 = vsub.f32 %v8376, %v8379
        %v8383 = vsub.f32 %v8377, %v8381
        %v8384 = vmul.f32 %v8382, 1.442695
        %v8385 = vpow.pop %v8384
        %v8386 = vmul.f32 %v8383, 1.442695
        %v8387 = vpow.pop %v8386
        %8388 = vadd.xlane.f32.xlu0 %v8385
        %v8389 = vpop.xlane.xlu0 %8388
        %8390 = vadd.xlane.f32.xlu0 %v8387
        %v8391 = vpop.xlane.xlu0 %8390
        %v8392 = vrcp.pop %v8389
        %v8393 = vmul.f32 %v8385, %v8392
        %v8394 = vrcp.pop %v8391
        %v8395 = vmul.f32 %v8387, %v8394
        %8396 = vmatprep.subr.mxu0 0.0
        %8397 = vmatpush1.msra.mxu0 %v8220
        %8398 = vmatprep.subr.mxu0 0.0
        %8399 = vmatpush1.msra.mxu0 %v8221
        %8400 = vmatprep.subr.mxu0 0.0
        %8401 = vmatpush1.msra.mxu0 %v8222
        %8402 = vmatprep.subr.mxu0 0.0
        %8403 = vmatpush1.msra.mxu0 %v8223
        %8404 = vmatprep.subr.mxu0 0.0
        %8405 = vmatpush1.msra.mxu0 %v8224
        %8406 = vmatprep.subr.mxu0 0.0
        %8407 = vmatpush1.msra.mxu0 %v8225
        %8408 = vmatprep.subr.mxu0 0.0
        %8409 = vmatpush1.msra.mxu0 %v8226
        %8410 = vmatprep.subr.mxu0 0.0
        %8411 = vmatpush1.msra.mxu0 %v8227
        %8412 = vmatprep.subr.mxu0 0.0
        %8413 = vmatpush1.msra.mxu0 %v8228
        %8414 = vmatprep.subr.mxu0 0.0
        %8415 = vmatpush1.msra.mxu0 %v8229
        %8416 = vmatprep.subr.mxu0 0.0
        %8417 = vmatpush1.msra.mxu0 %v8230
        %8418 = vmatprep.subr.mxu0 0.0
        %8419 = vmatpush1.msra.mxu0 %v8231
        %8420 = vmatprep.subr.mxu0 0.0
        %8421 = vmatpush1.msra.mxu0 %v8232
        %8422 = vmatprep.subr.mxu0 0.0
        %8423 = vmatpush1.msra.mxu0 %v8233
        %8424 = vmatprep.subr.mxu0 0.0
        %8425 = vmatpush1.msra.mxu0 %v8234
        %8426 = vmatprep.subr.mxu0 0.0
        %8427 = vmatpush1.msra.mxu0 %v8235
        %8428 = vmatprep.subr.mxu0 0.0
        %8429 = vmatpush1.msra.mxu0 0.0
        %8430 = vmatprep.subr.mxu0 0.0
        %8431 = vmatpush1.msra.mxu0 0.0
        %8432 = vmatprep.subr.mxu0 0.0
        %8433 = vmatpush1.msra.mxu0 0.0
        %8434 = vmatprep.subr.mxu0 0.0
        %8435 = vmatpush1.msra.mxu0 0.0
        %8436 = vmatprep.subr.mxu0 0.0
        %8437 = vmatpush1.msra.mxu0 0.0
        %8438 = vmatprep.subr.mxu0 0.0
        %8439 = vmatpush1.msra.mxu0 0.0
        %8440 = vmatprep.subr.mxu0 0.0
        %8441 = vmatpush1.msra.mxu0 0.0
        %8442 = vmatprep.subr.mxu0 0.0
        %8443 = vmatpush1.msra.mxu0 0.0
        %8444 = vmatprep.subr.mxu0 0.0
        %8445 = vmatpush1.msra.mxu0 0.0
        %8446 = vmatprep.subr.mxu0 0.0
        %8447 = vmatpush1.msra.mxu0 0.0
        %8448 = vmatprep.subr.mxu0 0.0
        %8449 = vmatpush1.msra.mxu0 0.0
        %8450 = vmatprep.subr.mxu0 0.0
        %8451 = vmatpush1.msra.mxu0 0.0
        %8452 = vmatprep.subr.mxu0 0.0
        %8453 = vmatpush1.msra.mxu0 0.0
        %8454 = vmatprep.subr.mxu0 0.0
        %8455 = vmatpush1.msra.mxu0 0.0
        %8456 = vmatprep.subr.mxu0 0.0
        %8457 = vmatpush1.msra.mxu0 0.0
        %8458 = vmatprep.subr.mxu0 0.0
        %8459 = vmatpush1.msra.mxu0 0.0
        %8460 = vmatprep.mubr.f32.mxu0 0.0
        %8461 = vmatmul.mubr.f32.gmra.mrb[0].mxu0 %v8393
        %v8462 = vpop.f32.mrb[0].mxu0
        %v8463 = vadd.f32 0.0, %v8462
        %v8464 = vpop.f32.mrb[0].mxu0
        %8465 = vmatprep.mubr.f32.mxu0 0.0
        %8466 = vmatmul.mubr.f32.gmra.mrb[0].mxu0 %v8395
        %v8467 = vpop.f32.mrb[0].mxu0
        %v8468 = vadd.f32 0.0, %v8467
        %v8469 = vpop.f32.mrb[0].mxu0
        %8470 = vdwg.mxu0
        %v8471 = vld [vmem:[%s21] sm:$0x3]
        %v8472 = vld [vmem:[%s22] sm:$0x1]
        %v8474 = vlaneseq
        %v8475 = vshrl.u32 %v8474, 7
        %v8476 = vsub.s32 0, %v8475
        %v8477 = vrot.slane %v8472, %v8476
        %v8480 = vsel %vm1723, %v8463, 0
        %v8483 = vsel %vm1723, %v8468, 0
        %v8486 = vsel %vm1723, %v8471, 0
        %8488 = vmatprep.subr.mxu0 0.0
        %8489 = vmatpush1.xpose.msra.mxu0 %v8486
        %8490 = vmatprep.subr.mxu0 0.0
        %8491 = vmatpush1.xpose.msra.mxu0 0.0
        %8492 = vmatprep.subr.mxu0 0.0
        %8493 = vmatpush1.xpose.msra.mxu0 0.0
        %8494 = vmatprep.subr.mxu0 0.0
        %8495 = vmatpush1.xpose.msra.mxu0 0.0
        %8496 = vmatprep.subr.mxu0 0.0
        %8497 = vmatpush1.xpose.msra.mxu0 0.0
        %8498 = vmatprep.subr.mxu0 0.0
        %8499 = vmatpush1.xpose.msra.mxu0 0.0
        %8500 = vmatprep.subr.mxu0 0.0
        %8501 = vmatpush1.xpose.msra.mxu0 0.0
        %8502 = vmatprep.subr.mxu0 0.0
        %8503 = vmatpush1.xpose.msra.mxu0 0.0
        %8504 = vmatprep.subr.mxu0 0.0
        %8505 = vmatpush1.xpose.msra.mxu0 0.0
        %8506 = vmatprep.subr.mxu0 0.0
        %8507 = vmatpush1.xpose.msra.mxu0 0.0
        %8508 = vmatprep.subr.mxu0 0.0
        %8509 = vmatpush1.xpose.msra.mxu0 0.0
        %8510 = vmatprep.subr.mxu0 0.0
        %8511 = vmatpush1.xpose.msra.mxu0 0.0
        %8512 = vmatprep.subr.mxu0 0.0
        %8513 = vmatpush1.xpose.msra.mxu0 0.0
        %8514 = vmatprep.subr.mxu0 0.0
        %8515 = vmatpush1.xpose.msra.mxu0 0.0
        %8516 = vmatprep.subr.mxu0 0.0
        %8517 = vmatpush1.xpose.msra.mxu0 0.0
        %8518 = vmatprep.subr.mxu0 0.0
        %8519 = vmatpush1.xpose.msra.mxu0 0.0
        %8520 = vmatprep.subr.mxu0 0.0
        %8521 = vmatpush1.xpose.msra.mxu0 0.0
        %8522 = vmatprep.subr.mxu0 0.0
        %8523 = vmatpush1.xpose.msra.mxu0 0.0
        %8524 = vmatprep.subr.mxu0 0.0
        %8525 = vmatpush1.xpose.msra.mxu0 0.0
        %8526 = vmatprep.subr.mxu0 0.0
        %8527 = vmatpush1.xpose.msra.mxu0 0.0
        %8528 = vmatprep.subr.mxu0 0.0
        %8529 = vmatpush1.xpose.msra.mxu0 0.0
        %8530 = vmatprep.subr.mxu0 0.0
        %8531 = vmatpush1.xpose.msra.mxu0 0.0
        %8532 = vmatprep.subr.mxu0 0.0
        %8533 = vmatpush1.xpose.msra.mxu0 0.0
        %8534 = vmatprep.subr.mxu0 0.0
        %8535 = vmatpush1.xpose.msra.mxu0 0.0
        %8536 = vmatprep.subr.mxu0 0.0
        %8537 = vmatpush1.xpose.msra.mxu0 0.0
        %8538 = vmatprep.subr.mxu0 0.0
        %8539 = vmatpush1.xpose.msra.mxu0 0.0
        %8540 = vmatprep.subr.mxu0 0.0
        %8541 = vmatpush1.xpose.msra.mxu0 0.0
        %8542 = vmatprep.subr.mxu0 0.0
        %8543 = vmatpush1.xpose.msra.mxu0 0.0
        %8544 = vmatprep.subr.mxu0 0.0
        %8545 = vmatpush1.xpose.msra.mxu0 0.0
        %8546 = vmatprep.subr.mxu0 0.0
        %8547 = vmatpush1.xpose.msra.mxu0 0.0
        %8548 = vmatprep.subr.mxu0 0.0
        %8549 = vmatpush1.xpose.msra.mxu0 0.0
        %8550 = vmatprep.subr.mxu0 0.0
        %8551 = vmatpush1.xpose.msra.mxu0 0.0
        %8552 = vmatprep.mubr.f32.mxu0 0.0
        %8553 = vmatmul.mubr.f32.gmra.mrb[0].mxu0 %v8480
        %v8554 = vpop.f32.mrb[0].mxu0
        %v8555 = vadd.f32 %v8477, %v8554
        %v8556 = vpop.f32.mrb[0].mxu0
        %8557 = vmatprep.mubr.f32.mxu0 0.0
        %8558 = vmatmul.mubr.f32.gmra.mrb[0].mxu0 %v8483
        %v8559 = vpop.f32.mrb[0].mxu0
        %v8560 = vadd.f32 %v8477, %v8559
        %v8561 = vpop.f32.mrb[0].mxu0
        %8562 = vdwg.mxu0
        %8565 = vrot.lane.b32.xlu0 %v8393, 2
        %v8566 = vpop.permute.xlu0 %8565
        %8567 = vrot.lane.b32.xlu0 %v8395, 2
        %v8568 = vpop.permute.xlu0 %8567
        %vm8571 = vcmask 15360
        %v8572 = vsel %vm8571, %v8555, %v8566
        %v8573 = vsel %vm8571, %v8560, %v8568
        %8574 = vst [vmem:[%s717] sm:$0xff] %v8572
        %8575 = vst.msk [vmem:[%s717 + $0x8] sm:$0xff] %vm8571, %v8566
        %8576 = vst [vmem:[%s717 + $0x10] sm:$0xff] %v8573
        %8577 = vst.msk [vmem:[%s717 + $0x18] sm:$0xff] %vm8571, %v8568
        %s8578 = sand.u32 %s540, 1
        %s8579 = scalar_lea.sflag [#allocation4], %s8578
        %s8580 = sand.u32 %s540, 1
        %s8581 = smul.addr %s8580, 32
        %s8582 = scalar_lea.vmem [#allocation3], %s8581
        // Predicated region
        $region113: #{tpu_custom_call.1} parent=111 // pred_check
          %p8583 = pneg %p550
        $region114: #{tpu_custom_call.1} parent=111 // pred_check_branch
          %8585 = sbr.rel (%p8583) target = $region116
        $region115: #{tpu_custom_call.1} parent=111 // pred_region
          %s8586 = smul.u32 2, %s39
          %s8588 = ssub.s32 512, 512
          %8589 = vsyncadd %s8579, %s8588
          %s8590 = smul.addr %s8586, 2
          %s8591 = smul.addr %s8590, 128
          %s8592 = scalar_lea.hbm %s23, %s8591
          %s8593 = sshll.u32 %s8582, 4
          %s8594 = int_to_ptr.vmem [resolvable:$true] %s8593
          %8599 = dma.vmem_to_hbm [thread:$0]  %s8594, 512, %s8592, %s8579, 256, 256, 16
        $region116: #{tpu_custom_call.1} parent=111 // pred_fallthru
          _
      $region112: #{tpu_custom_call.1} parent=5 // pred_fallthru
        _
      %p8600 = scmp.le.s32.totalorder 2, %s34
      // Predicated region
      $region117: #{tpu_custom_call.1} parent=5 // pred_check
        %p8601 = pneg %p8600
      $region118: #{tpu_custom_call.1} parent=5 // pred_check_branch
        %8603 = sbr.rel (%p8601) target = $region120
      $region119: #{tpu_custom_call.1} parent=5 // pred_region
        %s8604 = ssub.s32 %s34, 2
        // Predicated region
        $region121: #{tpu_custom_call.1} parent=119 // pred_check
          %p8605 = pneg %p556
        $region122: #{tpu_custom_call.1} parent=119 // pred_check_branch
          %8607 = sbr.rel (%p8605) target = $region124
        $region123: #{tpu_custom_call.1} parent=119 // pred_region
          %s8608 = sand.u32 %s541, 1
          %s8609 = scalar_lea.sflag [#allocation4], %s8608
          %s8610 = sand.u32 %s541, 1
          %s8611 = smul.addr %s8610, 32
          %s8612 = scalar_lea.vmem [#allocation3], %s8611
          %8613 = dma.done %s8609, 512
        $region124: #{tpu_custom_call.1} parent=119 // pred_fallthru
          _
      $region120: #{tpu_custom_call.1} parent=5 // pred_fallthru
        _
    $region6: #{tpu_custom_call.1} parent=1 // loop_footer
      %s38 = sadd.s32 1, %s34
    $region7: #{tpu_custom_call.1} parent=1 // loop_footer_branch
      %33 = sbr.rel target = $region3
    $region8: #{tpu_custom_call.1} parent=1 // loop_exit
      _
    %8614 = vsyncpa [#allocation4], 1
    %s8615 = scalar_lea.sflag [#allocation4], 1
    %8616 = vsyncpa %s8615, 1

</llo_original>
